<compile_context>
chip_gen: v7x
topology: tpu7x:2x2x1
jax: 0.10.0
libtpu: 0.0.40
codegen_flags: <defaults>
</compile_context>

<pallas_src>
import functools

import jax
import jax.numpy as jnp
from jax.experimental import pallas as pl
from jax.experimental.pallas import tpu as pltpu


_LANE = 128
_TM_MAX = 512                       # review: larger M tiles (~85% of HBM roofline)
_VMEM_LIMIT = 48 * 1024 * 1024      # review: <=48 MiB leaves headroom on v7x (64 MiB/TC)
_VMEM_BUDGET = 40 * 1024 * 1024     # tile-sizing budget (headroom for compiler scratch)


def _round_up(x, m):
    return ((x + m - 1) // m) * m


def _choose_tm(M, Kp, n_acc, n_out):
    """Largest M tile (multiple of 16, <= _TM_MAX) whose per-step footprint fits VMEM.

    Accounts for double-buffered LHS/out blocks, the (grid-invariant but still
    double-buffered) bf16 RHS + bias, and the f32 accumulator value of the dot.
    """
    fixed = 2 * (Kp * n_acc * 2) + 2 * (n_acc * 4)          # RHS + bias
    per_row = 2 * (Kp * 2) + 2 * (n_out * 2) + n_acc * 4    # LHS, out, f32 acc
    if fixed + 16 * per_row > _VMEM_BUDGET:
        # TODO(synk): add a K-reduction grid axis + accumulator-scratch path for
        # configurations whose RHS does not fit VMEM (e.g. n_fft > 4096).
        raise NotImplementedError("operand too large for the single-K fast path")
    cap = max(16, ((_VMEM_BUDGET - fixed) // per_row) // 16 * 16)
    cap = min(cap, _TM_MAX)
    num_m = -(-M // cap)
    return _round_up(-(-M // num_m), 16)


# ----------------------------------------------------------------------------
# Pallas kernels (single-K: whole contraction resident in VMEM, no scratch)
# ----------------------------------------------------------------------------
def _mm_bias_act_kernel(x_ref, w_ref, b_ref, o_ref, *, slope):
    """out = leaky_relu(x @ w + b) for one M tile; K is a single resident block."""
    acc = jnp.dot(x_ref[...], w_ref[...], preferred_element_type=jnp.float32)
    acc = acc + b_ref[...]
    if slope is not None:
        acc = jnp.where(acc >= 0.0, acc, slope * acc)
    o_ref[...] = acc.astype(o_ref.dtype)


def _stft_mag_kernel(fr_ref, basis_ref, o_ref, *, f_pad):
    """|STFT|: one matmul against the fused [cos | -sin] basis, then sqrt(re^2+im^2)."""
    acc = jnp.dot(fr_ref[...], basis_ref[...], preferred_element_type=jnp.float32)
    re = acc[:, :f_pad]
    im = acc[:, f_pad:]
    # NOTE: exact parity with torch .abs(); add +1e-9 under the sqrt if gradients
    # through zero magnitudes are needed during GAN training.
    o_ref[...] = jnp.sqrt(re * re + im * im).astype(o_ref.dtype)


# ----------------------------------------------------------------------------
# Kernel wrappers (tiling / padding / pallas_call)
# ----------------------------------------------------------------------------
def matmul_bias_act(x, w_packed, b_packed, slope):
    """x: (M, K); w: (Kp, Np) bf16; b: (1, Np) f32 -> (Mp, Np) bf16."""
    M, K = x.shape
    Kp, Np = w_packed.shape
    TM = _choose_tm(M, Kp, Np, Np)
    Mp = _round_up(M, TM)
    xp = jnp.pad(x.astype(jnp.bfloat16), ((0, Mp - M), (0, Kp - K)))

    kernel = functools.partial(_mm_bias_act_kernel, slope=slope)
    return pl.pallas_call(
        kernel,
        out_shape=jax.ShapeDtypeStruct((Mp, Np), jnp.bfloat16),
        grid_spec=pltpu.PrefetchScalarGridSpec(
            num_scalar_prefetch=0,
            grid=(Mp // TM,),
            in_specs=[
                pl.BlockSpec((TM, Kp), lambda i: (i, 0)),
                pl.BlockSpec((Kp, Np), lambda i: (0, 0)),   # grid-invariant, fetched once
                pl.BlockSpec((1, Np), lambda i: (0, 0)),    # grid-invariant bias
            ],
            out_specs=pl.BlockSpec((TM, Np), lambda i: (i, 0)),
        ),
        compiler_params=pltpu.CompilerParams(
            # TODO(synk): verify megacore sharding on v7x; use pltpu.CORE_PARALLEL if not.
            dimension_semantics=("parallel",),
            vmem_limit_bytes=_VMEM_LIMIT),
        cost_estimate=pl.CostEstimate(
            flops=2 * Mp * Kp * Np,
            transcendentals=0,
            bytes_accessed=Mp * Kp * 2 + Kp * Np * 2 + Np * 4 + Mp * Np * 2),
    )(xp, w_packed, b_packed)


def stft_mag_pallas(frames, basis, f_pad):
    """frames: (M, n_fft); basis: (Kp, 2*f_pad) bf16 -> (Mp, f_pad) bf16 magnitudes."""
    M, K = frames.shape
    Kp, N2 = basis.shape
    TM = _choose_tm(M, Kp, N2, f_pad)
    Mp = _round_up(M, TM)
    fr = jnp.pad(frames.astype(jnp.bfloat16), ((0, Mp - M), (0, Kp - K)))

    kernel = functools.partial(_stft_mag_kernel, f_pad=f_pad)
    return pl.pallas_call(
        kernel,
        out_shape=jax.ShapeDtypeStruct((Mp, f_pad), jnp.bfloat16),
        grid_spec=pltpu.PrefetchScalarGridSpec(
            num_scalar_prefetch=0,
            grid=(Mp // TM,),
            in_specs=[
                pl.BlockSpec((TM, Kp), lambda i: (i, 0)),
                pl.BlockSpec((Kp, N2), lambda i: (0, 0)),   # full-K basis, VMEM-resident
            ],
            out_specs=pl.BlockSpec((TM, f_pad), lambda i: (i, 0)),
        ),
        compiler_params=pltpu.CompilerParams(
            dimension_semantics=("parallel",),
            vmem_limit_bytes=_VMEM_LIMIT),
        cost_estimate=pl.CostEstimate(
            flops=2 * Mp * Kp * N2,
            transcendentals=Mp * f_pad,
            bytes_accessed=Mp * Kp * 2 + Kp * N2 * 2 + Mp * f_pad * 2),
    )(fr, basis)


# ----------------------------------------------------------------------------
# Glue: STFT magnitude (torch.stft, window=None, center=True, onesided)
# Result layout is time-major NHWC: (B, T, F, 1)  -- no spectrogram transpose.
# ----------------------------------------------------------------------------
def stft_magnitude_nhwc(x, prep):
    n_fft, hop = prep["n_fft"], prep["hop"]
    B, L = x.shape
    pad = n_fft // 2
    xp = jnp.pad(x, ((0, 0), (pad, pad)), mode="reflect").astype(jnp.bfloat16)
    T = (xp.shape[1] - n_fft) // hop + 1
    # TODO(synk): stream frames in-kernel (stride=hop DMA from the padded signal)
    # instead of materializing the n_fft/hop-times-larger frame matrix in HBM.
    idx = jnp.arange(T)[:, None] * hop + jnp.arange(n_fft)[None, :]
    frames = xp[:, idx].reshape(B * T, n_fft)                       # bf16
    mag = stft_mag_pallas(frames, prep["basis"], prep["f_pad"])     # (Mp, Fp) bf16
    mag = mag[:B * T, :prep["n_freq"]].reshape(B, T, prep["n_freq"])
    return mag[..., None]                                           # (B, T, F, 1)


# ----------------------------------------------------------------------------
# Glue: Conv2d (time-major NHWC) as im2col + Pallas matmul (+ bias + leaky-relu)
# ----------------------------------------------------------------------------
def conv2d_nhwc(x, layer, slope):
    """x: (B, H=T, W=F, C_stored) bf16; consumes the first layer['cin'] channels.

    Returns (B, Ho, Wo, Np) bf16, Np = channels padded to 128 (lane-dense); only
    the first layer['cout'] channels are meaningful (rest exact zeros).
    """
    kh, kw = layer["kh"], layer["kw"]
    sh, sw = layer["sh"], layer["sw"]
    ph, pw = layer["ph"], layer["pw"]
    cin = layer["cin"]
    B, H, W, _ = x.shape
    xp = jnp.pad(x[..., :cin], ((0, 0), (ph, ph), (pw, pw), (0, 0)))
    Ho = (H + 2 * ph - kh) // sh + 1
    Wo = (W + 2 * pw - kw) // sw + 1
    # TODO(synk): stream the kh*kw taps inside the kernel (overlapping row blocks
    # via a shifted second BlockSpec + in-VMEM patch build) instead of this HBM
    # im2col matrix -- the remaining dominant HBM-traffic term (now bf16).
    cols = []
    for i in range(kh):
        for j in range(kw):
            cols.append(
                xp[:, i:i + sh * (Ho - 1) + 1:sh, j:j + sw * (Wo - 1) + 1:sw, :])
    patches = jnp.concatenate(cols, axis=-1).reshape(B * Ho * Wo, kh * kw * cin)

    out = matmul_bias_act(patches, layer["w"], layer["b"], slope)   # (Mp, Np) bf16
    return out[:B * Ho * Wo].reshape(B, Ho, Wo, layer["n_pad"])


# ----------------------------------------------------------------------------
# Parameters / one-time packing
# ----------------------------------------------------------------------------
# Torch conv configs: (kernel, stride, pad) given in PyTorch (freq, time) order.
_TORCH_CONV_CFGS = [
    ((7, 5), (2, 2), (3, 2)),
    ((5, 3), (2, 1), (2, 1)),
    ((5, 3), (2, 2), (2, 1)),
    ((3, 3), (2, 1), (1, 1)),
    ((3, 3), (2, 2), (1, 1)),
]
_TORCH_POST_CFG = ((3, 3), (1, 1), (1, 1))


def init_discriminator_r_params(key, channels=64, in_channels=1):
    """Synthetic weights (weight_norm at init is identity: w = g * v/||v|| = v)."""
    params = {"convs": []}
    cin = in_channels
    for li, ((kf, kt), _, _) in enumerate(_TORCH_CONV_CFGS):
        kw_key, kb_key = jax.random.split(jax.random.fold_in(key, li))
        w = 0.05 * jax.random.normal(kw_key, (channels, cin, kf, kt), jnp.float32)
        b = 0.01 * jax.random.normal(kb_key, (channels,), jnp.float32)
        params["convs"].append((w, b))
        cin = channels
    kw_key, kb_key = jax.random.split(jax.random.fold_in(key, 100))
    (kf, kt), _, _ = _TORCH_POST_CFG
    w = 0.05 * jax.random.normal(kw_key, (1, channels, kf, kt), jnp.float32)
    b = 0.01 * jax.random.normal(kb_key, (1,), jnp.float32)
    params["conv_post"] = (w, b)
    return params


def _pack_conv(w, b, torch_cfg):
    """Pack torch-layout (Cout, Cin, Kf, Kt) weights for the time-major conv.

    The conv stack runs with H=time / W=freq (avoids the (B,T,F)->(B,F,T)
    spectrogram transpose), so kernel/stride/pad are swapped and the weight is
    reordered to (Kt, Kf, Cin, Cout) to match the im2col tap ordering.
    TODO(synk): fold weight_norm (w = g * v/||v||) here when loading real checkpoints.
    """
    (kf, kt), (sf, st), (pf, pt) = torch_cfg
    cout, cin, _, _ = w.shape
    K = kt * kf * cin
    Kp = _round_up(K, _LANE)        # full MXU K passes, unmasked loads
    Np = _round_up(cout, _LANE)     # lane-dense output channels
    w_mat = jnp.transpose(w, (3, 2, 1, 0)).reshape(K, cout)
    w_pad = jnp.zeros((Kp, Np), jnp.float32).at[:K, :cout].set(w_mat)
    b_pad = jnp.zeros((1, Np), jnp.float32).at[0, :cout].set(b)
    return dict(w=w_pad.astype(jnp.bfloat16), b=b_pad,
                kh=kt, kw=kf, sh=st, sw=sf, ph=pt, pw=pf,
                cin=cin, cout=cout, n_pad=Np)


def prepare_discriminator(params, resolution, lrelu_slope=0.1):
    """One-time packing: DFT basis + transposed/padded/bf16 weights."""
    n_fft, hop, win = resolution
    if win != n_fft:
        # TODO(synk): win_length != n_fft (zero-padded window) path not implemented.
        raise NotImplementedError("win_length != n_fft is not supported")
    F = n_fft // 2 + 1
    Fp = _round_up(F, _LANE)
    Kp = _round_up(n_fft, _LANE)
    n = jnp.arange(n_fft, dtype=jnp.float32)[:, None]
    f = jnp.arange(F, dtype=jnp.float32)[None, :]
    ang = 2.0 * jnp.pi * n * f / float(n_fft)
    basis = jnp.zeros((Kp, 2 * Fp), jnp.float32)
    basis = basis.at[:n_fft, :F].set(jnp.cos(ang))
    basis = basis.at[:n_fft, Fp:Fp + F].set(-jnp.sin(ang))
    return {
        "n_fft": n_fft, "hop": hop, "n_freq": F, "f_pad": Fp,
        "basis": basis.astype(jnp.bfloat16),
        "lrelu_slope": lrelu_slope,
        "convs": [_pack_conv(w, b, cfg)
                  for (w, b), cfg in zip(params["convs"], _TORCH_CONV_CFGS)],
        "conv_post": _pack_conv(*params["conv_post"], _TORCH_POST_CFG),
    }


# ----------------------------------------------------------------------------
# DiscriminatorR / MultiResolutionDiscriminator (forward only)
# ----------------------------------------------------------------------------
def discriminator_r_forward(prep, x):
    """x: (B, 1, L) -> (flattened logits (B, -1) f32, fmap list in NCHW f32)."""
    B = x.shape[0]
    h = stft_magnitude_nhwc(x[:, 0, :], prep)                   # (B, T, F, 1) bf16

    fmaps_raw = []
    for layer in prep["convs"]:
        h = conv2d_nhwc(h, layer, slope=prep["lrelu_slope"])
        fmaps_raw.append((h, layer["cout"]))

    # TODO(synk): cond_embedding_id / nn.Embedding path not implemented
    # (num_embeddings=None in this configuration, so h_cond == 0 exactly).
    post = prep["conv_post"]
    hp = conv2d_nhwc(h, post, slope=None)
    fmaps_raw.append((hp, post["cout"]))

    # Single (B,T',F',C)->(B,C,F',T') conversion + f32 cast per fmap at the boundary.
    fmap = [jnp.transpose(a[..., :c], (0, 3, 2, 1)).astype(jnp.float32)
            for a, c in fmaps_raw]
    logits = fmap[-1].reshape(B, -1)                            # == torch.flatten(1,-1)
    return logits, fmap


def multi_resolution_discriminator_forward(preps, y, y_hat):
    """y, y_hat: (B, 1, L).  y and y_hat are fused along batch per resolution."""
    B = y.shape[0]
    yy = jnp.concatenate([y, y_hat], axis=0)                    # (2B, 1, L)
    y_d_rs, y_d_gs, fmap_rs, fmap_gs = [], [], [], []
    for prep in preps:
        logits, fmaps = discriminator_r_forward(prep, yy)
        y_d_rs.append(logits[:B])
        y_d_gs.append(logits[B:])
        fmap_rs.append([f[:B] for f in fmaps])
        fmap_gs.append([f[B:] for f in fmaps])
    return y_d_rs, y_d_gs, fmap_rs, fmap_gs


# ----------------------------------------------------------------------------
if __name__ == "__main__":
    # Small, module-consistent configuration: 3 resolutions (n_fft, hop, win),
    # audio of shape (B, 1, L).
    resolutions = ((64, 16, 64), (128, 32, 128), (32, 8, 32))
    channels = 64
    B, L = 2, 256

    key = jax.random.PRNGKey(0)
    k_y, k_yh, k_p = jax.random.split(key, 3)
    y = jax.random.normal(k_y, (B, 1, L), jnp.float32)
    y_hat = jax.random.normal(k_yh, (B, 1, L), jnp.float32)

    preps = []
    for i, res in enumerate(resolutions):
        params = init_discriminator_r_params(
            jax.random.fold_in(k_p, i), channels=channels)
        preps.append(prepare_discriminator(params, res))

    fwd = jax.jit(lambda a, b: multi_resolution_discriminator_forward(preps, a, b))
    out = jax.block_until_ready(fwd(y, y_hat))

    y_d_rs, y_d_gs, fmap_rs, fmap_gs = out
    assert len(y_d_rs) == len(resolutions) and len(y_d_gs) == len(resolutions)
    assert all(len(f) == 6 for f in fmap_rs) and all(len(f) == 6 for f in fmap_gs)
    assert all(bool(jnp.all(jnp.isfinite(v))) for v in y_d_rs + y_d_gs)
    print("KERNEL_OK")
</pallas_src>

<mosaic_0001>
module attributes {stable_mosaic.version = 11 : i64} {
  func.func @_stft_mag_kernel(%arg0: i32, %arg1: memref<48x128xbf16, #tpu.memory_space<vmem>>, %arg2: memref<128x256xbf16, #tpu.memory_space<vmem>>, %arg3: memref<48x128xbf16, #tpu.memory_space<vmem>>) attributes {dimension_semantics = [#tpu.dimension_semantics<parallel>], iteration_bounds = array<i64: 1>, scalar_prefetch = 0 : i64, scratch_operands = 0 : i64, tpu.core_type = #tpu.core_type<tc>, window_params = [{transform_indices = @transform_0, window_bounds = array<i64: 48, 128>}, {pipeline_mode = #tpu.pipeline_mode<synchronous>, transform_indices = @transform_1, window_bounds = array<i64: 128, 256>}, {transform_indices = @transform_2, window_bounds = array<i64: 48, 128>}]} {
    %c0 = arith.constant 0 : index
    %c0_0 = arith.constant 0 : index
    %0 = vector.load %arg1[%c0, %c0_0] : memref<48x128xbf16, #tpu.memory_space<vmem>>, vector<48x128xbf16>
    %c0_1 = arith.constant 0 : index
    %c0_2 = arith.constant 0 : index
    %1 = vector.load %arg2[%c0_1, %c0_2] : memref<128x256xbf16, #tpu.memory_space<vmem>>, vector<128x256xbf16>
    %cst = arith.constant dense<0.000000e+00> : vector<48x256xf32>
    %2 = tpu.matmul %0, %1, %cst {dimension_numbers = #tpu.dot_dimension_numbers<[1], [0], [0], [1], [0, 0, 1, 1], [], []>} : vector<48x128xbf16>, vector<128x256xbf16>, vector<48x256xf32> -> vector<48x256xf32>
    %3 = vector.extract_strided_slice %2 {offsets = [0, 0], sizes = [48, 128], strides = [1, 1]} : vector<48x256xf32> to vector<48x128xf32>
    %4 = vector.extract_strided_slice %2 {offsets = [0, 128], sizes = [48, 128], strides = [1, 1]} : vector<48x256xf32> to vector<48x128xf32>
    %5 = arith.mulf %3, %3 : vector<48x128xf32>
    %6 = arith.mulf %4, %4 : vector<48x128xf32>
    %7 = arith.addf %5, %6 : vector<48x128xf32>
    %8 = math.sqrt %7 : vector<48x128xf32>
    %9 = arith.truncf %8 : vector<48x128xf32> to vector<48x128xbf16>
    %c0_3 = arith.constant 0 : index
    %c0_4 = arith.constant 0 : index
    %10 = vector.load %arg3[%c0_3, %c0_4] : memref<48x128xbf16, #tpu.memory_space<vmem>>, vector<48x128xbf16>
    tpu.vector_store %arg3[%c0_3, %c0_4], %9 {strides = array<i32>} : memref<48x128xbf16, #tpu.memory_space<vmem>>, vector<48x128xbf16>,
    return
  }
  func.func @transform_0(%arg0: i32) -> (i32, i32) {
    %c0_i32 = arith.constant 0 : i32
    %c0_i32_0 = arith.constant 0 : i32
    return %arg0, %c0_i32 : i32, i32
  }
  func.func @transform_1(%arg0: i32) -> (i32, i32) {
    %c0_i32 = arith.constant 0 : i32
    %c0_i32_0 = arith.constant 0 : i32
    %c0_i32_1 = arith.constant 0 : i32
    return %c0_i32, %c0_i32_0 : i32, i32
  }
  func.func @transform_2(%arg0: i32) -> (i32, i32) {
    %c0_i32 = arith.constant 0 : i32
    %c0_i32_0 = arith.constant 0 : i32
    return %arg0, %c0_i32 : i32, i32
  }
}

module attributes {stable_mosaic.version = 11 : i64} {
  func.func @_stft_mag_kernel(%arg0: i32, %arg1: memref<80x128xbf16, #tpu.memory_space<vmem>>, %arg2: memref<128x256xbf16, #tpu.memory_space<vmem>>, %arg3: memref<80x128xbf16, #tpu.memory_space<vmem>>) attributes {dimension_semantics = [#tpu.dimension_semantics<parallel>], iteration_bounds = array<i64: 1>, scalar_prefetch = 0 : i64, scratch_operands = 0 : i64, tpu.core_type = #tpu.core_type<tc>, window_params = [{transform_indices = @transform_0, window_bounds = array<i64: 80, 128>}, {pipeline_mode = #tpu.pipeline_mode<synchronous>, transform_indices = @transform_1, window_bounds = array<i64: 128, 256>}, {transform_indices = @transform_2, window_bounds = array<i64: 80, 128>}]} {
    %c0 = arith.constant 0 : index
    %c0_0 = arith.constant 0 : index
    %0 = vector.load %arg1[%c0, %c0_0] : memref<80x128xbf16, #tpu.memory_space<vmem>>, vector<80x128xbf16>
    %c0_1 = arith.constant 0 : index
    %c0_2 = arith.constant 0 : index
    %1 = vector.load %arg2[%c0_1, %c0_2] : memref<128x256xbf16, #tpu.memory_space<vmem>>, vector<128x256xbf16>
    %cst = arith.constant dense<0.000000e+00> : vector<80x256xf32>
    %2 = tpu.matmul %0, %1, %cst {dimension_numbers = #tpu.dot_dimension_numbers<[1], [0], [0], [1], [0, 0, 1, 1], [], []>} : vector<80x128xbf16>, vector<128x256xbf16>, vector<80x256xf32> -> vector<80x256xf32>
    %3 = vector.extract_strided_slice %2 {offsets = [0, 0], sizes = [80, 128], strides = [1, 1]} : vector<80x256xf32> to vector<80x128xf32>
    %4 = vector.extract_strided_slice %2 {offsets = [0, 128], sizes = [80, 128], strides = [1, 1]} : vector<80x256xf32> to vector<80x128xf32>
    %5 = arith.mulf %3, %3 : vector<80x128xf32>
    %6 = arith.mulf %4, %4 : vector<80x128xf32>
    %7 = arith.addf %5, %6 : vector<80x128xf32>
    %8 = math.sqrt %7 : vector<80x128xf32>
    %9 = arith.truncf %8 : vector<80x128xf32> to vector<80x128xbf16>
    %c0_3 = arith.constant 0 : index
    %c0_4 = arith.constant 0 : index
    %10 = vector.load %arg3[%c0_3, %c0_4] : memref<80x128xbf16, #tpu.memory_space<vmem>>, vector<80x128xbf16>
    tpu.vector_store %arg3[%c0_3, %c0_4], %9 {strides = array<i32>} : memref<80x128xbf16, #tpu.memory_space<vmem>>, vector<80x128xbf16>,
    return
  }
  func.func @transform_0(%arg0: i32) -> (i32, i32) {
    %c0_i32 = arith.constant 0 : i32
    %c0_i32_0 = arith.constant 0 : i32
    return %arg0, %c0_i32 : i32, i32
  }
  func.func @transform_1(%arg0: i32) -> (i32, i32) {
    %c0_i32 = arith.constant 0 : i32
    %c0_i32_0 = arith.constant 0 : i32
    %c0_i32_1 = arith.constant 0 : i32
    return %c0_i32, %c0_i32_0 : i32, i32
  }
  func.func @transform_2(%arg0: i32) -> (i32, i32) {
    %c0_i32 = arith.constant 0 : i32
    %c0_i32_0 = arith.constant 0 : i32
    return %arg0, %c0_i32 : i32, i32
  }
}

module attributes {stable_mosaic.version = 11 : i64} {
  func.func @_stft_mag_kernel(%arg0: i32, %arg1: memref<144x128xbf16, #tpu.memory_space<vmem>>, %arg2: memref<128x256xbf16, #tpu.memory_space<vmem>>, %arg3: memref<144x128xbf16, #tpu.memory_space<vmem>>) attributes {dimension_semantics = [#tpu.dimension_semantics<parallel>], iteration_bounds = array<i64: 1>, scalar_prefetch = 0 : i64, scratch_operands = 0 : i64, tpu.core_type = #tpu.core_type<tc>, window_params = [{transform_indices = @transform_0, window_bounds = array<i64: 144, 128>}, {pipeline_mode = #tpu.pipeline_mode<synchronous>, transform_indices = @transform_1, window_bounds = array<i64: 128, 256>}, {transform_indices = @transform_2, window_bounds = array<i64: 144, 128>}]} {
    %c0 = arith.constant 0 : index
    %c0_0 = arith.constant 0 : index
    %0 = vector.load %arg1[%c0, %c0_0] : memref<144x128xbf16, #tpu.memory_space<vmem>>, vector<144x128xbf16>
    %c0_1 = arith.constant 0 : index
    %c0_2 = arith.constant 0 : index
    %1 = vector.load %arg2[%c0_1, %c0_2] : memref<128x256xbf16, #tpu.memory_space<vmem>>, vector<128x256xbf16>
    %cst = arith.constant dense<0.000000e+00> : vector<144x256xf32>
    %2 = tpu.matmul %0, %1, %cst {dimension_numbers = #tpu.dot_dimension_numbers<[1], [0], [0], [1], [0, 0, 1, 1], [], []>} : vector<144x128xbf16>, vector<128x256xbf16>, vector<144x256xf32> -> vector<144x256xf32>
    %3 = vector.extract_strided_slice %2 {offsets = [0, 0], sizes = [144, 128], strides = [1, 1]} : vector<144x256xf32> to vector<144x128xf32>
    %4 = vector.extract_strided_slice %2 {offsets = [0, 128], sizes = [144, 128], strides = [1, 1]} : vector<144x256xf32> to vector<144x128xf32>
    %5 = arith.mulf %3, %3 : vector<144x128xf32>
    %6 = arith.mulf %4, %4 : vector<144x128xf32>
    %7 = arith.addf %5, %6 : vector<144x128xf32>
    %8 = math.sqrt %7 : vector<144x128xf32>
    %9 = arith.truncf %8 : vector<144x128xf32> to vector<144x128xbf16>
    %c0_3 = arith.constant 0 : index
    %c0_4 = arith.constant 0 : index
    %10 = vector.load %arg3[%c0_3, %c0_4] : memref<144x128xbf16, #tpu.memory_space<vmem>>, vector<144x128xbf16>
    tpu.vector_store %arg3[%c0_3, %c0_4], %9 {strides = array<i32>} : memref<144x128xbf16, #tpu.memory_space<vmem>>, vector<144x128xbf16>,
    return
  }
  func.func @transform_0(%arg0: i32) -> (i32, i32) {
    %c0_i32 = arith.constant 0 : i32
    %c0_i32_0 = arith.constant 0 : i32
    return %arg0, %c0_i32 : i32, i32
  }
  func.func @transform_1(%arg0: i32) -> (i32, i32) {
    %c0_i32 = arith.constant 0 : i32
    %c0_i32_0 = arith.constant 0 : i32
    %c0_i32_1 = arith.constant 0 : i32
    return %c0_i32, %c0_i32_0 : i32, i32
  }
  func.func @transform_2(%arg0: i32) -> (i32, i32) {
    %c0_i32 = arith.constant 0 : i32
    %c0_i32_0 = arith.constant 0 : i32
    return %arg0, %c0_i32 : i32, i32
  }
}

module attributes {stable_mosaic.version = 11 : i64} {
  func.func @_mm_bias_act_kernel(%arg0: i32, %arg1: memref<336x128xbf16, #tpu.memory_space<vmem>>, %arg2: memref<128x128xbf16, #tpu.memory_space<vmem>>, %arg3: memref<1x128xf32, #tpu.memory_space<vmem>>, %arg4: memref<336x128xbf16, #tpu.memory_space<vmem>>) attributes {dimension_semantics = [#tpu.dimension_semantics<parallel>], iteration_bounds = array<i64: 2>, scalar_prefetch = 0 : i64, scratch_operands = 0 : i64, tpu.core_type = #tpu.core_type<tc>, window_params = [{transform_indices = @transform_0, window_bounds = array<i64: 336, 128>}, {pipeline_mode = #tpu.pipeline_mode<synchronous>, transform_indices = @transform_1, window_bounds = array<i64: 128, 128>}, {pipeline_mode = #tpu.pipeline_mode<synchronous>, transform_indices = @transform_2, window_bounds = array<i64: 1, 128>}, {transform_indices = @transform_3, window_bounds = array<i64: 336, 128>}]} {
    %c0 = arith.constant 0 : index
    %c0_0 = arith.constant 0 : index
    %0 = vector.load %arg1[%c0, %c0_0] : memref<336x128xbf16, #tpu.memory_space<vmem>>, vector<336x128xbf16>
    %c0_1 = arith.constant 0 : index
    %c0_2 = arith.constant 0 : index
    %1 = vector.load %arg2[%c0_1, %c0_2] : memref<128x128xbf16, #tpu.memory_space<vmem>>, vector<128x128xbf16>
    %cst = arith.constant dense<0.000000e+00> : vector<336x128xf32>
    %2 = tpu.matmul %0, %1, %cst {dimension_numbers = #tpu.dot_dimension_numbers<[1], [0], [0], [1], [0, 0, 1, 1], [], []>} : vector<336x128xbf16>, vector<128x128xbf16>, vector<336x128xf32> -> vector<336x128xf32>
    %c0_3 = arith.constant 0 : index
    %c0_4 = arith.constant 0 : index
    %3 = vector.load %arg3[%c0_3, %c0_4] : memref<1x128xf32, #tpu.memory_space<vmem>>, vector<1x128xf32>
    %4 = vector.broadcast %3 : vector<1x128xf32> to vector<336x128xf32>
    %5 = arith.addf %2, %4 : vector<336x128xf32>
    %cst_5 = arith.constant 0.000000e+00 : f32
    %6 = vector.broadcast %cst_5 : f32 to vector<336x128xf32>
    %7 = arith.cmpf oge, %5, %6 : vector<336x128xf32>
    %cst_6 = arith.constant 1.000000e-01 : f32
    %8 = vector.broadcast %cst_6 : f32 to vector<336x128xf32>
    %9 = arith.mulf %8, %5 : vector<336x128xf32>
    %10 = arith.select %7, %5, %9 : vector<336x128xi1>, vector<336x128xf32>
    %11 = arith.truncf %10 : vector<336x128xf32> to vector<336x128xbf16>
    %c0_7 = arith.constant 0 : index
    %c0_8 = arith.constant 0 : index
    %12 = vector.load %arg4[%c0_7, %c0_8] : memref<336x128xbf16, #tpu.memory_space<vmem>>, vector<336x128xbf16>
    tpu.vector_store %arg4[%c0_7, %c0_8], %11 {strides = array<i32>} : memref<336x128xbf16, #tpu.memory_space<vmem>>, vector<336x128xbf16>,
    return
  }
  func.func @transform_0(%arg0: i32) -> (i32, i32) {
    %c0_i32 = arith.constant 0 : i32
    %c0_i32_0 = arith.constant 0 : i32
    return %arg0, %c0_i32 : i32, i32
  }
  func.func @transform_1(%arg0: i32) -> (i32, i32) {
    %c0_i32 = arith.constant 0 : i32
    %c0_i32_0 = arith.constant 0 : i32
    %c0_i32_1 = arith.constant 0 : i32
    return %c0_i32, %c0_i32_0 : i32, i32
  }
  func.func @transform_2(%arg0: i32) -> (i32, i32) {
    %c0_i32 = arith.constant 0 : i32
    %c0_i32_0 = arith.constant 0 : i32
    %c0_i32_1 = arith.constant 0 : i32
    return %c0_i32, %c0_i32_0 : i32, i32
  }
  func.func @transform_3(%arg0: i32) -> (i32, i32) {
    %c0_i32 = arith.constant 0 : i32
    %c0_i32_0 = arith.constant 0 : i32
    return %arg0, %c0_i32 : i32, i32
  }
}

module attributes {stable_mosaic.version = 11 : i64} {
  func.func @_mm_bias_act_kernel(%arg0: i32, %arg1: memref<320x128xbf16, #tpu.memory_space<vmem>>, %arg2: memref<128x128xbf16, #tpu.memory_space<vmem>>, %arg3: memref<1x128xf32, #tpu.memory_space<vmem>>, %arg4: memref<320x128xbf16, #tpu.memory_space<vmem>>) attributes {dimension_semantics = [#tpu.dimension_semantics<parallel>], iteration_bounds = array<i64: 2>, scalar_prefetch = 0 : i64, scratch_operands = 0 : i64, tpu.core_type = #tpu.core_type<tc>, window_params = [{transform_indices = @transform_0, window_bounds = array<i64: 320, 128>}, {pipeline_mode = #tpu.pipeline_mode<synchronous>, transform_indices = @transform_1, window_bounds = array<i64: 128, 128>}, {pipeline_mode = #tpu.pipeline_mode<synchronous>, transform_indices = @transform_2, window_bounds = array<i64: 1, 128>}, {transform_indices = @transform_3, window_bounds = array<i64: 320, 128>}]} {
    %c0 = arith.constant 0 : index
    %c0_0 = arith.constant 0 : index
    %0 = vector.load %arg1[%c0, %c0_0] : memref<320x128xbf16, #tpu.memory_space<vmem>>, vector<320x128xbf16>
    %c0_1 = arith.constant 0 : index
    %c0_2 = arith.constant 0 : index
    %1 = vector.load %arg2[%c0_1, %c0_2] : memref<128x128xbf16, #tpu.memory_space<vmem>>, vector<128x128xbf16>
    %cst = arith.constant dense<0.000000e+00> : vector<320x128xf32>
    %2 = tpu.matmul %0, %1, %cst {dimension_numbers = #tpu.dot_dimension_numbers<[1], [0], [0], [1], [0, 0, 1, 1], [], []>} : vector<320x128xbf16>, vector<128x128xbf16>, vector<320x128xf32> -> vector<320x128xf32>
    %c0_3 = arith.constant 0 : index
    %c0_4 = arith.constant 0 : index
    %3 = vector.load %arg3[%c0_3, %c0_4] : memref<1x128xf32, #tpu.memory_space<vmem>>, vector<1x128xf32>
    %4 = vector.broadcast %3 : vector<1x128xf32> to vector<320x128xf32>
    %5 = arith.addf %2, %4 : vector<320x128xf32>
    %cst_5 = arith.constant 0.000000e+00 : f32
    %6 = vector.broadcast %cst_5 : f32 to vector<320x128xf32>
    %7 = arith.cmpf oge, %5, %6 : vector<320x128xf32>
    %cst_6 = arith.constant 1.000000e-01 : f32
    %8 = vector.broadcast %cst_6 : f32 to vector<320x128xf32>
    %9 = arith.mulf %8, %5 : vector<320x128xf32>
    %10 = arith.select %7, %5, %9 : vector<320x128xi1>, vector<320x128xf32>
    %11 = arith.truncf %10 : vector<320x128xf32> to vector<320x128xbf16>
    %c0_7 = arith.constant 0 : index
    %c0_8 = arith.constant 0 : index
    %12 = vector.load %arg4[%c0_7, %c0_8] : memref<320x128xbf16, #tpu.memory_space<vmem>>, vector<320x128xbf16>
    tpu.vector_store %arg4[%c0_7, %c0_8], %11 {strides = array<i32>} : memref<320x128xbf16, #tpu.memory_space<vmem>>, vector<320x128xbf16>,
    return
  }
  func.func @transform_0(%arg0: i32) -> (i32, i32) {
    %c0_i32 = arith.constant 0 : i32
    %c0_i32_0 = arith.constant 0 : i32
    return %arg0, %c0_i32 : i32, i32
  }
  func.func @transform_1(%arg0: i32) -> (i32, i32) {
    %c0_i32 = arith.constant 0 : i32
    %c0_i32_0 = arith.constant 0 : i32
    %c0_i32_1 = arith.constant 0 : i32
    return %c0_i32, %c0_i32_0 : i32, i32
  }
  func.func @transform_2(%arg0: i32) -> (i32, i32) {
    %c0_i32 = arith.constant 0 : i32
    %c0_i32_0 = arith.constant 0 : i32
    %c0_i32_1 = arith.constant 0 : i32
    return %c0_i32, %c0_i32_0 : i32, i32
  }
  func.func @transform_3(%arg0: i32) -> (i32, i32) {
    %c0_i32 = arith.constant 0 : i32
    %c0_i32_0 = arith.constant 0 : i32
    return %arg0, %c0_i32 : i32, i32
  }
}

module attributes {stable_mosaic.version = 11 : i64} {
  func.func @_mm_bias_act_kernel(%arg0: i32, %arg1: memref<352x1024xbf16, #tpu.memory_space<vmem>>, %arg2: memref<1024x128xbf16, #tpu.memory_space<vmem>>, %arg3: memref<1x128xf32, #tpu.memory_space<vmem>>, %arg4: memref<352x128xbf16, #tpu.memory_space<vmem>>) attributes {dimension_semantics = [#tpu.dimension_semantics<parallel>], iteration_bounds = array<i64: 1>, scalar_prefetch = 0 : i64, scratch_operands = 0 : i64, tpu.core_type = #tpu.core_type<tc>, window_params = [{transform_indices = @transform_0, window_bounds = array<i64: 352, 1024>}, {pipeline_mode = #tpu.pipeline_mode<synchronous>, transform_indices = @transform_1, window_bounds = array<i64: 1024, 128>}, {pipeline_mode = #tpu.pipeline_mode<synchronous>, transform_indices = @transform_2, window_bounds = array<i64: 1, 128>}, {transform_indices = @transform_3, window_bounds = array<i64: 352, 128>}]} {
    %c0 = arith.constant 0 : index
    %c0_0 = arith.constant 0 : index
    %0 = vector.load %arg1[%c0, %c0_0] : memref<352x1024xbf16, #tpu.memory_space<vmem>>, vector<352x1024xbf16>
    %c0_1 = arith.constant 0 : index
    %c0_2 = arith.constant 0 : index
    %1 = vector.load %arg2[%c0_1, %c0_2] : memref<1024x128xbf16, #tpu.memory_space<vmem>>, vector<1024x128xbf16>
    %cst = arith.constant dense<0.000000e+00> : vector<352x128xf32>
    %2 = tpu.matmul %0, %1, %cst {dimension_numbers = #tpu.dot_dimension_numbers<[1], [0], [0], [1], [0, 0, 1, 1], [], []>} : vector<352x1024xbf16>, vector<1024x128xbf16>, vector<352x128xf32> -> vector<352x128xf32>
    %c0_3 = arith.constant 0 : index
    %c0_4 = arith.constant 0 : index
    %3 = vector.load %arg3[%c0_3, %c0_4] : memref<1x128xf32, #tpu.memory_space<vmem>>, vector<1x128xf32>
    %4 = vector.broadcast %3 : vector<1x128xf32> to vector<352x128xf32>
    %5 = arith.addf %2, %4 : vector<352x128xf32>
    %cst_5 = arith.constant 0.000000e+00 : f32
    %6 = vector.broadcast %cst_5 : f32 to vector<352x128xf32>
    %7 = arith.cmpf oge, %5, %6 : vector<352x128xf32>
    %cst_6 = arith.constant 1.000000e-01 : f32
    %8 = vector.broadcast %cst_6 : f32 to vector<352x128xf32>
    %9 = arith.mulf %8, %5 : vector<352x128xf32>
    %10 = arith.select %7, %5, %9 : vector<352x128xi1>, vector<352x128xf32>
    %11 = arith.truncf %10 : vector<352x128xf32> to vector<352x128xbf16>
    %c0_7 = arith.constant 0 : index
    %c0_8 = arith.constant 0 : index
    %12 = vector.load %arg4[%c0_7, %c0_8] : memref<352x128xbf16, #tpu.memory_space<vmem>>, vector<352x128xbf16>
    tpu.vector_store %arg4[%c0_7, %c0_8], %11 {strides = array<i32>} : memref<352x128xbf16, #tpu.memory_space<vmem>>, vector<352x128xbf16>,
    return
  }
  func.func @transform_0(%arg0: i32) -> (i32, i32) {
    %c0_i32 = arith.constant 0 : i32
    %c0_i32_0 = arith.constant 0 : i32
    return %arg0, %c0_i32 : i32, i32
  }
  func.func @transform_1(%arg0: i32) -> (i32, i32) {
    %c0_i32 = arith.constant 0 : i32
    %c0_i32_0 = arith.constant 0 : i32
    %c0_i32_1 = arith.constant 0 : i32
    return %c0_i32, %c0_i32_0 : i32, i32
  }
  func.func @transform_2(%arg0: i32) -> (i32, i32) {
    %c0_i32 = arith.constant 0 : i32
    %c0_i32_0 = arith.constant 0 : i32
    %c0_i32_1 = arith.constant 0 : i32
    return %c0_i32, %c0_i32_0 : i32, i32
  }
  func.func @transform_3(%arg0: i32) -> (i32, i32) {
    %c0_i32 = arith.constant 0 : i32
    %c0_i32_0 = arith.constant 0 : i32
    return %arg0, %c0_i32 : i32, i32
  }
}

module attributes {stable_mosaic.version = 11 : i64} {
  func.func @_mm_bias_act_kernel(%arg0: i32, %arg1: memref<112x1024xbf16, #tpu.memory_space<vmem>>, %arg2: memref<1024x128xbf16, #tpu.memory_space<vmem>>, %arg3: memref<1x128xf32, #tpu.memory_space<vmem>>, %arg4: memref<112x128xbf16, #tpu.memory_space<vmem>>) attributes {dimension_semantics = [#tpu.dimension_semantics<parallel>], iteration_bounds = array<i64: 1>, scalar_prefetch = 0 : i64, scratch_operands = 0 : i64, tpu.core_type = #tpu.core_type<tc>, window_params = [{transform_indices = @transform_0, window_bounds = array<i64: 112, 1024>}, {pipeline_mode = #tpu.pipeline_mode<synchronous>, transform_indices = @transform_1, window_bounds = array<i64: 1024, 128>}, {pipeline_mode = #tpu.pipeline_mode<synchronous>, transform_indices = @transform_2, window_bounds = array<i64: 1, 128>}, {transform_indices = @transform_3, window_bounds = array<i64: 112, 128>}]} {
    %c0 = arith.constant 0 : index
    %c0_0 = arith.constant 0 : index
    %0 = vector.load %arg1[%c0, %c0_0] : memref<112x1024xbf16, #tpu.memory_space<vmem>>, vector<112x1024xbf16>
    %c0_1 = arith.constant 0 : index
    %c0_2 = arith.constant 0 : index
    %1 = vector.load %arg2[%c0_1, %c0_2] : memref<1024x128xbf16, #tpu.memory_space<vmem>>, vector<1024x128xbf16>
    %cst = arith.constant dense<0.000000e+00> : vector<112x128xf32>
    %2 = tpu.matmul %0, %1, %cst {dimension_numbers = #tpu.dot_dimension_numbers<[1], [0], [0], [1], [0, 0, 1, 1], [], []>} : vector<112x1024xbf16>, vector<1024x128xbf16>, vector<112x128xf32> -> vector<112x128xf32>
    %c0_3 = arith.constant 0 : index
    %c0_4 = arith.constant 0 : index
    %3 = vector.load %arg3[%c0_3, %c0_4] : memref<1x128xf32, #tpu.memory_space<vmem>>, vector<1x128xf32>
    %4 = vector.broadcast %3 : vector<1x128xf32> to vector<112x128xf32>
    %5 = arith.addf %2, %4 : vector<112x128xf32>
    %cst_5 = arith.constant 0.000000e+00 : f32
    %6 = vector.broadcast %cst_5 : f32 to vector<112x128xf32>
    %7 = arith.cmpf oge, %5, %6 : vector<112x128xf32>
    %cst_6 = arith.constant 1.000000e-01 : f32
    %8 = vector.broadcast %cst_6 : f32 to vector<112x128xf32>
    %9 = arith.mulf %8, %5 : vector<112x128xf32>
    %10 = arith.select %7, %5, %9 : vector<112x128xi1>, vector<112x128xf32>
    %11 = arith.truncf %10 : vector<112x128xf32> to vector<112x128xbf16>
    %c0_7 = arith.constant 0 : index
    %c0_8 = arith.constant 0 : index
    %12 = vector.load %arg4[%c0_7, %c0_8] : memref<112x128xbf16, #tpu.memory_space<vmem>>, vector<112x128xbf16>
    tpu.vector_store %arg4[%c0_7, %c0_8], %11 {strides = array<i32>} : memref<112x128xbf16, #tpu.memory_space<vmem>>, vector<112x128xbf16>,
    return
  }
  func.func @transform_0(%arg0: i32) -> (i32, i32) {
    %c0_i32 = arith.constant 0 : i32
    %c0_i32_0 = arith.constant 0 : i32
    return %arg0, %c0_i32 : i32, i32
  }
  func.func @transform_1(%arg0: i32) -> (i32, i32) {
    %c0_i32 = arith.constant 0 : i32
    %c0_i32_0 = arith.constant 0 : i32
    %c0_i32_1 = arith.constant 0 : i32
    return %c0_i32, %c0_i32_0 : i32, i32
  }
  func.func @transform_2(%arg0: i32) -> (i32, i32) {
    %c0_i32 = arith.constant 0 : i32
    %c0_i32_0 = arith.constant 0 : i32
    %c0_i32_1 = arith.constant 0 : i32
    return %c0_i32, %c0_i32_0 : i32, i32
  }
  func.func @transform_3(%arg0: i32) -> (i32, i32) {
    %c0_i32 = arith.constant 0 : i32
    %c0_i32_0 = arith.constant 0 : i32
    return %arg0, %c0_i32 : i32, i32
  }
}

module attributes {stable_mosaic.version = 11 : i64} {
  func.func @_mm_bias_act_kernel(%arg0: i32, %arg1: memref<64x640xbf16, #tpu.memory_space<vmem>>, %arg2: memref<640x128xbf16, #tpu.memory_space<vmem>>, %arg3: memref<1x128xf32, #tpu.memory_space<vmem>>, %arg4: memref<64x128xbf16, #tpu.memory_space<vmem>>) attributes {dimension_semantics = [#tpu.dimension_semantics<parallel>], iteration_bounds = array<i64: 1>, scalar_prefetch = 0 : i64, scratch_operands = 0 : i64, tpu.core_type = #tpu.core_type<tc>, window_params = [{transform_indices = @transform_0, window_bounds = array<i64: 64, 640>}, {pipeline_mode = #tpu.pipeline_mode<synchronous>, transform_indices = @transform_1, window_bounds = array<i64: 640, 128>}, {pipeline_mode = #tpu.pipeline_mode<synchronous>, transform_indices = @transform_2, window_bounds = array<i64: 1, 128>}, {transform_indices = @transform_3, window_bounds = array<i64: 64, 128>}]} {
    %c0 = arith.constant 0 : index
    %c0_0 = arith.constant 0 : index
    %0 = vector.load %arg1[%c0, %c0_0] : memref<64x640xbf16, #tpu.memory_space<vmem>>, vector<64x640xbf16>
    %c0_1 = arith.constant 0 : index
    %c0_2 = arith.constant 0 : index
    %1 = vector.load %arg2[%c0_1, %c0_2] : memref<640x128xbf16, #tpu.memory_space<vmem>>, vector<640x128xbf16>
    %cst = arith.constant dense<0.000000e+00> : vector<64x128xf32>
    %2 = tpu.matmul %0, %1, %cst {dimension_numbers = #tpu.dot_dimension_numbers<[1], [0], [0], [1], [0, 0, 1, 1], [], []>} : vector<64x640xbf16>, vector<640x128xbf16>, vector<64x128xf32> -> vector<64x128xf32>
    %c0_3 = arith.constant 0 : index
    %c0_4 = arith.constant 0 : index
    %3 = vector.load %arg3[%c0_3, %c0_4] : memref<1x128xf32, #tpu.memory_space<vmem>>, vector<1x128xf32>
    %4 = vector.broadcast %3 : vector<1x128xf32> to vector<64x128xf32>
    %5 = arith.addf %2, %4 : vector<64x128xf32>
    %cst_5 = arith.constant 0.000000e+00 : f32
    %6 = vector.broadcast %cst_5 : f32 to vector<64x128xf32>
    %7 = arith.cmpf oge, %5, %6 : vector<64x128xf32>
    %cst_6 = arith.constant 1.000000e-01 : f32
    %8 = vector.broadcast %cst_6 : f32 to vector<64x128xf32>
    %9 = arith.mulf %8, %5 : vector<64x128xf32>
    %10 = arith.select %7, %5, %9 : vector<64x128xi1>, vector<64x128xf32>
    %11 = arith.truncf %10 : vector<64x128xf32> to vector<64x128xbf16>
    %c0_7 = arith.constant 0 : index
    %c0_8 = arith.constant 0 : index
    %12 = vector.load %arg4[%c0_7, %c0_8] : memref<64x128xbf16, #tpu.memory_space<vmem>>, vector<64x128xbf16>
    tpu.vector_store %arg4[%c0_7, %c0_8], %11 {strides = array<i32>} : memref<64x128xbf16, #tpu.memory_space<vmem>>, vector<64x128xbf16>,
    return
  }
  func.func @transform_0(%arg0: i32) -> (i32, i32) {
    %c0_i32 = arith.constant 0 : i32
    %c0_i32_0 = arith.constant 0 : i32
    return %arg0, %c0_i32 : i32, i32
  }
  func.func @transform_1(%arg0: i32) -> (i32, i32) {
    %c0_i32 = arith.constant 0 : i32
    %c0_i32_0 = arith.constant 0 : i32
    %c0_i32_1 = arith.constant 0 : i32
    return %c0_i32, %c0_i32_0 : i32, i32
  }
  func.func @transform_2(%arg0: i32) -> (i32, i32) {
    %c0_i32 = arith.constant 0 : i32
    %c0_i32_0 = arith.constant 0 : i32
    %c0_i32_1 = arith.constant 0 : i32
    return %c0_i32, %c0_i32_0 : i32, i32
  }
  func.func @transform_3(%arg0: i32) -> (i32, i32) {
    %c0_i32 = arith.constant 0 : i32
    %c0_i32_0 = arith.constant 0 : i32
    return %arg0, %c0_i32 : i32, i32
  }
}

module attributes {stable_mosaic.version = 11 : i64} {
  func.func @_mm_bias_act_kernel(%arg0: i32, %arg1: memref<32x640xbf16, #tpu.memory_space<vmem>>, %arg2: memref<640x128xbf16, #tpu.memory_space<vmem>>, %arg3: memref<1x128xf32, #tpu.memory_space<vmem>>, %arg4: memref<32x128xbf16, #tpu.memory_space<vmem>>) attributes {dimension_semantics = [#tpu.dimension_semantics<parallel>], iteration_bounds = array<i64: 1>, scalar_prefetch = 0 : i64, scratch_operands = 0 : i64, tpu.core_type = #tpu.core_type<tc>, window_params = [{transform_indices = @transform_0, window_bounds = array<i64: 32, 640>}, {pipeline_mode = #tpu.pipeline_mode<synchronous>, transform_indices = @transform_1, window_bounds = array<i64: 640, 128>}, {pipeline_mode = #tpu.pipeline_mode<synchronous>, transform_indices = @transform_2, window_bounds = array<i64: 1, 128>}, {transform_indices = @transform_3, window_bounds = array<i64: 32, 128>}]} {
    %c0 = arith.constant 0 : index
    %c0_0 = arith.constant 0 : index
    %0 = vector.load %arg1[%c0, %c0_0] : memref<32x640xbf16, #tpu.memory_space<vmem>>, vector<32x640xbf16>
    %c0_1 = arith.constant 0 : index
    %c0_2 = arith.constant 0 : index
    %1 = vector.load %arg2[%c0_1, %c0_2] : memref<640x128xbf16, #tpu.memory_space<vmem>>, vector<640x128xbf16>
    %cst = arith.constant dense<0.000000e+00> : vector<32x128xf32>
    %2 = tpu.matmul %0, %1, %cst {dimension_numbers = #tpu.dot_dimension_numbers<[1], [0], [0], [1], [0, 0, 1, 1], [], []>} : vector<32x640xbf16>, vector<640x128xbf16>, vector<32x128xf32> -> vector<32x128xf32>
    %c0_3 = arith.constant 0 : index
    %c0_4 = arith.constant 0 : index
    %3 = vector.load %arg3[%c0_3, %c0_4] : memref<1x128xf32, #tpu.memory_space<vmem>>, vector<1x128xf32>
    %4 = vector.broadcast %3 : vector<1x128xf32> to vector<32x128xf32>
    %5 = arith.addf %2, %4 : vector<32x128xf32>
    %cst_5 = arith.constant 0.000000e+00 : f32
    %6 = vector.broadcast %cst_5 : f32 to vector<32x128xf32>
    %7 = arith.cmpf oge, %5, %6 : vector<32x128xf32>
    %cst_6 = arith.constant 1.000000e-01 : f32
    %8 = vector.broadcast %cst_6 : f32 to vector<32x128xf32>
    %9 = arith.mulf %8, %5 : vector<32x128xf32>
    %10 = arith.select %7, %5, %9 : vector<32x128xi1>, vector<32x128xf32>
    %11 = arith.truncf %10 : vector<32x128xf32> to vector<32x128xbf16>
    %c0_7 = arith.constant 0 : index
    %c0_8 = arith.constant 0 : index
    %12 = vector.load %arg4[%c0_7, %c0_8] : memref<32x128xbf16, #tpu.memory_space<vmem>>, vector<32x128xbf16>
    tpu.vector_store %arg4[%c0_7, %c0_8], %11 {strides = array<i32>} : memref<32x128xbf16, #tpu.memory_space<vmem>>, vector<32x128xbf16>,
    return
  }
  func.func @transform_0(%arg0: i32) -> (i32, i32) {
    %c0_i32 = arith.constant 0 : i32
    %c0_i32_0 = arith.constant 0 : i32
    return %arg0, %c0_i32 : i32, i32
  }
  func.func @transform_1(%arg0: i32) -> (i32, i32) {
    %c0_i32 = arith.constant 0 : i32
    %c0_i32_0 = arith.constant 0 : i32
    %c0_i32_1 = arith.constant 0 : i32
    return %c0_i32, %c0_i32_0 : i32, i32
  }
  func.func @transform_2(%arg0: i32) -> (i32, i32) {
    %c0_i32 = arith.constant 0 : i32
    %c0_i32_0 = arith.constant 0 : i32
    %c0_i32_1 = arith.constant 0 : i32
    return %c0_i32, %c0_i32_0 : i32, i32
  }
  func.func @transform_3(%arg0: i32) -> (i32, i32) {
    %c0_i32 = arith.constant 0 : i32
    %c0_i32_0 = arith.constant 0 : i32
    return %arg0, %c0_i32 : i32, i32
  }
}

module attributes {stable_mosaic.version = 11 : i64} {
  func.func @_mm_bias_act_kernel(%arg0: i32, %arg1: memref<32x640xbf16, #tpu.memory_space<vmem>>, %arg2: memref<640x128xbf16, #tpu.memory_space<vmem>>, %arg3: memref<1x128xf32, #tpu.memory_space<vmem>>, %arg4: memref<32x128xbf16, #tpu.memory_space<vmem>>) attributes {dimension_semantics = [#tpu.dimension_semantics<parallel>], iteration_bounds = array<i64: 1>, scalar_prefetch = 0 : i64, scratch_operands = 0 : i64, tpu.core_type = #tpu.core_type<tc>, window_params = [{transform_indices = @transform_0, window_bounds = array<i64: 32, 640>}, {pipeline_mode = #tpu.pipeline_mode<synchronous>, transform_indices = @transform_1, window_bounds = array<i64: 640, 128>}, {pipeline_mode = #tpu.pipeline_mode<synchronous>, transform_indices = @transform_2, window_bounds = array<i64: 1, 128>}, {transform_indices = @transform_3, window_bounds = array<i64: 32, 128>}]} {
    %c0 = arith.constant 0 : index
    %c0_0 = arith.constant 0 : index
    %0 = vector.load %arg1[%c0, %c0_0] : memref<32x640xbf16, #tpu.memory_space<vmem>>, vector<32x640xbf16>
    %c0_1 = arith.constant 0 : index
    %c0_2 = arith.constant 0 : index
    %1 = vector.load %arg2[%c0_1, %c0_2] : memref<640x128xbf16, #tpu.memory_space<vmem>>, vector<640x128xbf16>
    %cst = arith.constant dense<0.000000e+00> : vector<32x128xf32>
    %2 = tpu.matmul %0, %1, %cst {dimension_numbers = #tpu.dot_dimension_numbers<[1], [0], [0], [1], [0, 0, 1, 1], [], []>} : vector<32x640xbf16>, vector<640x128xbf16>, vector<32x128xf32> -> vector<32x128xf32>
    %c0_3 = arith.constant 0 : index
    %c0_4 = arith.constant 0 : index
    %3 = vector.load %arg3[%c0_3, %c0_4] : memref<1x128xf32, #tpu.memory_space<vmem>>, vector<1x128xf32>
    %4 = vector.broadcast %3 : vector<1x128xf32> to vector<32x128xf32>
    %5 = arith.addf %2, %4 : vector<32x128xf32>
    %6 = arith.truncf %5 : vector<32x128xf32> to vector<32x128xbf16>
    %c0_5 = arith.constant 0 : index
    %c0_6 = arith.constant 0 : index
    %7 = vector.load %arg4[%c0_5, %c0_6] : memref<32x128xbf16, #tpu.memory_space<vmem>>, vector<32x128xbf16>
    tpu.vector_store %arg4[%c0_5, %c0_6], %6 {strides = array<i32>} : memref<32x128xbf16, #tpu.memory_space<vmem>>, vector<32x128xbf16>,
    return
  }
  func.func @transform_0(%arg0: i32) -> (i32, i32) {
    %c0_i32 = arith.constant 0 : i32
    %c0_i32_0 = arith.constant 0 : i32
    return %arg0, %c0_i32 : i32, i32
  }
  func.func @transform_1(%arg0: i32) -> (i32, i32) {
    %c0_i32 = arith.constant 0 : i32
    %c0_i32_0 = arith.constant 0 : i32
    %c0_i32_1 = arith.constant 0 : i32
    return %c0_i32, %c0_i32_0 : i32, i32
  }
  func.func @transform_2(%arg0: i32) -> (i32, i32) {
    %c0_i32 = arith.constant 0 : i32
    %c0_i32_0 = arith.constant 0 : i32
    %c0_i32_1 = arith.constant 0 : i32
    return %c0_i32, %c0_i32_0 : i32, i32
  }
  func.func @transform_3(%arg0: i32) -> (i32, i32) {
    %c0_i32 = arith.constant 0 : i32
    %c0_i32_0 = arith.constant 0 : i32
    return %arg0, %c0_i32 : i32, i32
  }
}

module attributes {stable_mosaic.version = 11 : i64} {
  func.func @_mm_bias_act_kernel(%arg0: i32, %arg1: memref<336x1024xbf16, #tpu.memory_space<vmem>>, %arg2: memref<1024x128xbf16, #tpu.memory_space<vmem>>, %arg3: memref<1x128xf32, #tpu.memory_space<vmem>>, %arg4: memref<336x128xbf16, #tpu.memory_space<vmem>>) attributes {dimension_semantics = [#tpu.dimension_semantics<parallel>], iteration_bounds = array<i64: 1>, scalar_prefetch = 0 : i64, scratch_operands = 0 : i64, tpu.core_type = #tpu.core_type<tc>, window_params = [{transform_indices = @transform_0, window_bounds = array<i64: 336, 1024>}, {pipeline_mode = #tpu.pipeline_mode<synchronous>, transform_indices = @transform_1, window_bounds = array<i64: 1024, 128>}, {pipeline_mode = #tpu.pipeline_mode<synchronous>, transform_indices = @transform_2, window_bounds = array<i64: 1, 128>}, {transform_indices = @transform_3, window_bounds = array<i64: 336, 128>}]} {
    %c0 = arith.constant 0 : index
    %c0_0 = arith.constant 0 : index
    %0 = vector.load %arg1[%c0, %c0_0] : memref<336x1024xbf16, #tpu.memory_space<vmem>>, vector<336x1024xbf16>
    %c0_1 = arith.constant 0 : index
    %c0_2 = arith.constant 0 : index
    %1 = vector.load %arg2[%c0_1, %c0_2] : memref<1024x128xbf16, #tpu.memory_space<vmem>>, vector<1024x128xbf16>
    %cst = arith.constant dense<0.000000e+00> : vector<336x128xf32>
    %2 = tpu.matmul %0, %1, %cst {dimension_numbers = #tpu.dot_dimension_numbers<[1], [0], [0], [1], [0, 0, 1, 1], [], []>} : vector<336x1024xbf16>, vector<1024x128xbf16>, vector<336x128xf32> -> vector<336x128xf32>
    %c0_3 = arith.constant 0 : index
    %c0_4 = arith.constant 0 : index
    %3 = vector.load %arg3[%c0_3, %c0_4] : memref<1x128xf32, #tpu.memory_space<vmem>>, vector<1x128xf32>
    %4 = vector.broadcast %3 : vector<1x128xf32> to vector<336x128xf32>
    %5 = arith.addf %2, %4 : vector<336x128xf32>
    %cst_5 = arith.constant 0.000000e+00 : f32
    %6 = vector.broadcast %cst_5 : f32 to vector<336x128xf32>
    %7 = arith.cmpf oge, %5, %6 : vector<336x128xf32>
    %cst_6 = arith.constant 1.000000e-01 : f32
    %8 = vector.broadcast %cst_6 : f32 to vector<336x128xf32>
    %9 = arith.mulf %8, %5 : vector<336x128xf32>
    %10 = arith.select %7, %5, %9 : vector<336x128xi1>, vector<336x128xf32>
    %11 = arith.truncf %10 : vector<336x128xf32> to vector<336x128xbf16>
    %c0_7 = arith.constant 0 : index
    %c0_8 = arith.constant 0 : index
    %12 = vector.load %arg4[%c0_7, %c0_8] : memref<336x128xbf16, #tpu.memory_space<vmem>>, vector<336x128xbf16>
    tpu.vector_store %arg4[%c0_7, %c0_8], %11 {strides = array<i32>} : memref<336x128xbf16, #tpu.memory_space<vmem>>, vector<336x128xbf16>,
    return
  }
  func.func @transform_0(%arg0: i32) -> (i32, i32) {
    %c0_i32 = arith.constant 0 : i32
    %c0_i32_0 = arith.constant 0 : i32
    return %arg0, %c0_i32 : i32, i32
  }
  func.func @transform_1(%arg0: i32) -> (i32, i32) {
    %c0_i32 = arith.constant 0 : i32
    %c0_i32_0 = arith.constant 0 : i32
    %c0_i32_1 = arith.constant 0 : i32
    return %c0_i32, %c0_i32_0 : i32, i32
  }
  func.func @transform_2(%arg0: i32) -> (i32, i32) {
    %c0_i32 = arith.constant 0 : i32
    %c0_i32_0 = arith.constant 0 : i32
    %c0_i32_1 = arith.constant 0 : i32
    return %c0_i32, %c0_i32_0 : i32, i32
  }
  func.func @transform_3(%arg0: i32) -> (i32, i32) {
    %c0_i32 = arith.constant 0 : i32
    %c0_i32_0 = arith.constant 0 : i32
    return %arg0, %c0_i32 : i32, i32
  }
}

module attributes {stable_mosaic.version = 11 : i64} {
  func.func @_mm_bias_act_kernel(%arg0: i32, %arg1: memref<80x640xbf16, #tpu.memory_space<vmem>>, %arg2: memref<640x128xbf16, #tpu.memory_space<vmem>>, %arg3: memref<1x128xf32, #tpu.memory_space<vmem>>, %arg4: memref<80x128xbf16, #tpu.memory_space<vmem>>) attributes {dimension_semantics = [#tpu.dimension_semantics<parallel>], iteration_bounds = array<i64: 1>, scalar_prefetch = 0 : i64, scratch_operands = 0 : i64, tpu.core_type = #tpu.core_type<tc>, window_params = [{transform_indices = @transform_0, window_bounds = array<i64: 80, 640>}, {pipeline_mode = #tpu.pipeline_mode<synchronous>, transform_indices = @transform_1, window_bounds = array<i64: 640, 128>}, {pipeline_mode = #tpu.pipeline_mode<synchronous>, transform_indices = @transform_2, window_bounds = array<i64: 1, 128>}, {transform_indices = @transform_3, window_bounds = array<i64: 80, 128>}]} {
    %c0 = arith.constant 0 : index
    %c0_0 = arith.constant 0 : index
    %0 = vector.load %arg1[%c0, %c0_0] : memref<80x640xbf16, #tpu.memory_space<vmem>>, vector<80x640xbf16>
    %c0_1 = arith.constant 0 : index
    %c0_2 = arith.constant 0 : index
    %1 = vector.load %arg2[%c0_1, %c0_2] : memref<640x128xbf16, #tpu.memory_space<vmem>>, vector<640x128xbf16>
    %cst = arith.constant dense<0.000000e+00> : vector<80x128xf32>
    %2 = tpu.matmul %0, %1, %cst {dimension_numbers = #tpu.dot_dimension_numbers<[1], [0], [0], [1], [0, 0, 1, 1], [], []>} : vector<80x640xbf16>, vector<640x128xbf16>, vector<80x128xf32> -> vector<80x128xf32>
    %c0_3 = arith.constant 0 : index
    %c0_4 = arith.constant 0 : index
    %3 = vector.load %arg3[%c0_3, %c0_4] : memref<1x128xf32, #tpu.memory_space<vmem>>, vector<1x128xf32>
    %4 = vector.broadcast %3 : vector<1x128xf32> to vector<80x128xf32>
    %5 = arith.addf %2, %4 : vector<80x128xf32>
    %cst_5 = arith.constant 0.000000e+00 : f32
    %6 = vector.broadcast %cst_5 : f32 to vector<80x128xf32>
    %7 = arith.cmpf oge, %5, %6 : vector<80x128xf32>
    %cst_6 = arith.constant 1.000000e-01 : f32
    %8 = vector.broadcast %cst_6 : f32 to vector<80x128xf32>
    %9 = arith.mulf %8, %5 : vector<80x128xf32>
    %10 = arith.select %7, %5, %9 : vector<80x128xi1>, vector<80x128xf32>
    %11 = arith.truncf %10 : vector<80x128xf32> to vector<80x128xbf16>
    %c0_7 = arith.constant 0 : index
    %c0_8 = arith.constant 0 : index
    %12 = vector.load %arg4[%c0_7, %c0_8] : memref<80x128xbf16, #tpu.memory_space<vmem>>, vector<80x128xbf16>
    tpu.vector_store %arg4[%c0_7, %c0_8], %11 {strides = array<i32>} : memref<80x128xbf16, #tpu.memory_space<vmem>>, vector<80x128xbf16>,
    return
  }
  func.func @transform_0(%arg0: i32) -> (i32, i32) {
    %c0_i32 = arith.constant 0 : i32
    %c0_i32_0 = arith.constant 0 : i32
    return %arg0, %c0_i32 : i32, i32
  }
  func.func @transform_1(%arg0: i32) -> (i32, i32) {
    %c0_i32 = arith.constant 0 : i32
    %c0_i32_0 = arith.constant 0 : i32
    %c0_i32_1 = arith.constant 0 : i32
    return %c0_i32, %c0_i32_0 : i32, i32
  }
  func.func @transform_2(%arg0: i32) -> (i32, i32) {
    %c0_i32 = arith.constant 0 : i32
    %c0_i32_0 = arith.constant 0 : i32
    %c0_i32_1 = arith.constant 0 : i32
    return %c0_i32, %c0_i32_0 : i32, i32
  }
  func.func @transform_3(%arg0: i32) -> (i32, i32) {
    %c0_i32 = arith.constant 0 : i32
    %c0_i32_0 = arith.constant 0 : i32
    return %arg0, %c0_i32 : i32, i32
  }
}

</mosaic_0001>

<llo_original>
// kernel: _lambda_.28
$region0: #{_lambda_.28}
  #allocation0 [shape = 'u32[]', space=smem, size = 0x4, offset = 0x4, fixed_abs, tag = 'smem constant byte address 0x4 - core index']
  #allocation1 [shape = 'u32[144,128]{1,0:T(1,128)}', space=vmem, size = 0x12000, scoped, tag = 'internal scratch']
  %s0 = inlined_call_operand.vmem [shape: bf16[48,128], index: 0, kind: input, shape index: {}]
  %s1 = inlined_call_operand.vmem [shape: bf16[128,256], index: 1, kind: input, shape index: {}]
  %s2 = inlined_call_operand.vmem [shape: bf16[48,128], index: 2, kind: output, shape index: {}]
  %s3 = sld [smem:[#allocation0]]
  $region18: #{_lambda_.28} parent=0
    _
  %s5 = ssub.s32 1, %s3
  %s6 = scalar_select 0, %s5, %s3
  // Predicated region
  $region2: #{_lambda_.28} parent=0 // pred_check
    _
  $region3: #{_lambda_.28} parent=0 // pred_check_branch
    %8 = sbr.rel (0) target = $region5
  $region4: #{_lambda_.28} parent=0 // pred_region
    _
  $region5: #{_lambda_.28} parent=0 // pred_fallthru
    _
  // Predicated region
  $region6: #{_lambda_.28} parent=0 // pred_check
    _
  $region7: #{_lambda_.28} parent=0 // pred_check_branch
    %10 = sbr.rel (0) target = $region9
  $region8: #{_lambda_.28} parent=0 // pred_region
    _
  $region9: #{_lambda_.28} parent=0 // pred_fallthru
    _
  %v12 = vld [vmem:[%s0] sm:$0xf]
  %v13 = vld [vmem:[%s0 + $0x4] sm:$0xf]
  %v14 = vld [vmem:[%s0 + $0x8] sm:$0xf]
  %v15 = vld [vmem:[%s0 + $0xc] sm:$0xf]
  %v16 = vld [vmem:[%s0 + $0x10] sm:$0xf]
  %v17 = vld [vmem:[%s0 + $0x14] sm:$0xf]
  %v18 = vld [vmem:[%s1] sm:$0xff]
  %v19 = vld [vmem:[%s1 + $0x8] sm:$0xff]
  %v20 = vld [vmem:[%s1 + $0x10] sm:$0xff]
  %v21 = vld [vmem:[%s1 + $0x18] sm:$0xff]
  %v22 = vld [vmem:[%s1 + $0x20] sm:$0xff]
  %v23 = vld [vmem:[%s1 + $0x28] sm:$0xff]
  %v24 = vld [vmem:[%s1 + $0x30] sm:$0xff]
  %v25 = vld [vmem:[%s1 + $0x38] sm:$0xff]
  %v26 = vld [vmem:[%s1 + $0x40] sm:$0xff]
  %v27 = vld [vmem:[%s1 + $0x48] sm:$0xff]
  %v28 = vld [vmem:[%s1 + $0x50] sm:$0xff]
  %v29 = vld [vmem:[%s1 + $0x58] sm:$0xff]
  %v30 = vld [vmem:[%s1 + $0x60] sm:$0xff]
  %v31 = vld [vmem:[%s1 + $0x68] sm:$0xff]
  %v32 = vld [vmem:[%s1 + $0x70] sm:$0xff]
  %v33 = vld [vmem:[%s1 + $0x78] sm:$0xff]
  %v40 = vunpack.c.l.b16 %v12
  %v41 = vunpack.c.l.b16 %v13
  %v42 = vunpack.c.l.b16 %v14
  %v43 = vunpack.c.l.b16 %v15
  %v44 = vunpack.c.l.b16 %v16
  %v45 = vunpack.c.l.b16 %v17
  %v46 = vpack.c.b16 %v41, %v40
  %v47 = vpack.c.b16 %v43, %v42
  %v48 = vpack.c.b16 %v45, %v44
  %v68 = vunpack.c.l.b16 %v18
  %v69 = vunpack.c.h.b16 %v18
  %v70 = vunpack.c.l.b16 %v19
  %v71 = vunpack.c.h.b16 %v19
  %v72 = vunpack.c.l.b16 %v20
  %v73 = vunpack.c.h.b16 %v20
  %v74 = vunpack.c.l.b16 %v21
  %v75 = vunpack.c.h.b16 %v21
  %v76 = vunpack.c.l.b16 %v22
  %v77 = vunpack.c.h.b16 %v22
  %v78 = vunpack.c.l.b16 %v23
  %v79 = vunpack.c.h.b16 %v23
  %v80 = vunpack.c.l.b16 %v24
  %v81 = vunpack.c.h.b16 %v24
  %v82 = vunpack.c.l.b16 %v25
  %v83 = vunpack.c.h.b16 %v25
  %v84 = vunpack.c.l.b16 %v26
  %v85 = vunpack.c.h.b16 %v26
  %v86 = vunpack.c.l.b16 %v27
  %v87 = vunpack.c.h.b16 %v27
  %v88 = vunpack.c.l.b16 %v28
  %v89 = vunpack.c.h.b16 %v28
  %v90 = vunpack.c.l.b16 %v29
  %v91 = vunpack.c.h.b16 %v29
  %v92 = vunpack.c.l.b16 %v30
  %v93 = vunpack.c.h.b16 %v30
  %v94 = vunpack.c.l.b16 %v31
  %v95 = vunpack.c.h.b16 %v31
  %v96 = vunpack.c.l.b16 %v32
  %v97 = vunpack.c.h.b16 %v32
  %v98 = vunpack.c.l.b16 %v33
  %v99 = vunpack.c.h.b16 %v33
  %v100 = vpack.c.b16 %v70, %v68
  %v101 = vpack.c.b16 %v71, %v69
  %v102 = vpack.c.b16 %v74, %v72
  %v103 = vpack.c.b16 %v75, %v73
  %v104 = vpack.c.b16 %v78, %v76
  %v105 = vpack.c.b16 %v79, %v77
  %v106 = vpack.c.b16 %v82, %v80
  %v107 = vpack.c.b16 %v83, %v81
  %v108 = vpack.c.b16 %v86, %v84
  %v109 = vpack.c.b16 %v87, %v85
  %v110 = vpack.c.b16 %v90, %v88
  %v111 = vpack.c.b16 %v91, %v89
  %v112 = vpack.c.b16 %v94, %v92
  %v113 = vpack.c.b16 %v95, %v93
  %v114 = vpack.c.b16 %v98, %v96
  %v115 = vpack.c.b16 %v99, %v97
  %132 = vmatprep.subr.bf16.mxu0 %v101
  %133 = vmatpush1.bf16.msra.mxu0 %v100
  %134 = vmatprep.subr.bf16.mxu0 %v103
  %135 = vmatpush1.bf16.msra.mxu0 %v102
  %136 = vmatprep.subr.bf16.mxu0 %v105
  %137 = vmatpush1.bf16.msra.mxu0 %v104
  %138 = vmatprep.subr.bf16.mxu0 %v107
  %139 = vmatpush1.bf16.msra.mxu0 %v106
  %140 = vmatprep.subr.bf16.mxu0 %v109
  %141 = vmatpush1.bf16.msra.mxu0 %v108
  %142 = vmatprep.subr.bf16.mxu0 %v111
  %143 = vmatpush1.bf16.msra.mxu0 %v110
  %144 = vmatprep.subr.bf16.mxu0 %v113
  %145 = vmatpush1.bf16.msra.mxu0 %v112
  %146 = vmatprep.subr.bf16.mxu0 %v115
  %147 = vmatpush1.bf16.msra.mxu0 %v114
  %148 = vmatprep.subr.bf16.mxu0 0
  %149 = vmatpush1.bf16.msra.mxu0 0
  %150 = vmatprep.subr.bf16.mxu0 0
  %151 = vmatpush1.bf16.msra.mxu0 0
  %152 = vmatprep.subr.bf16.mxu0 0
  %153 = vmatpush1.bf16.msra.mxu0 0
  %154 = vmatprep.subr.bf16.mxu0 0
  %155 = vmatpush1.bf16.msra.mxu0 0
  %156 = vmatprep.subr.bf16.mxu0 0
  %157 = vmatpush1.bf16.msra.mxu0 0
  %158 = vmatprep.subr.bf16.mxu0 0
  %159 = vmatpush1.bf16.msra.mxu0 0
  %160 = vmatprep.subr.bf16.mxu0 0
  %161 = vmatpush1.bf16.msra.mxu0 0
  %162 = vmatprep.subr.bf16.mxu0 0
  %163 = vmatpush1.bf16.msra.mxu0 0
  %164 = vmatprep.mubr.bf16.mxu0 0
  %165 = vmatmul.mubr.bf16.gmra.mrb[0].mxu0 %v46
  %v166 = vpop.f32.mrb[0].mxu0
  %v167 = vadd.f32 0.0, %v166
  %v168 = vpop.f32.mrb[0].mxu0
  %v169 = vadd.f32 0.0, %v168
  %v170 = vpop.f32.mrb[0].mxu0
  %v171 = vadd.f32 0.0, %v170
  %v172 = vpop.f32.mrb[0].mxu0
  %v173 = vadd.f32 0.0, %v172
  %174 = vmatprep.mubr.bf16.mxu0 0
  %175 = vmatmul.mubr.bf16.gmra.mrb[0].mxu0 %v47
  %v176 = vpop.f32.mrb[0].mxu0
  %v177 = vadd.f32 0.0, %v176
  %v178 = vpop.f32.mrb[0].mxu0
  %v179 = vadd.f32 0.0, %v178
  %v180 = vpop.f32.mrb[0].mxu0
  %v181 = vadd.f32 0.0, %v180
  %v182 = vpop.f32.mrb[0].mxu0
  %v183 = vadd.f32 0.0, %v182
  %184 = vmatprep.mubr.bf16.mxu0 0
  %185 = vmatmul.mubr.bf16.gmra.mrb[0].mxu0 %v48
  %v186 = vpop.f32.mrb[0].mxu0
  %v187 = vadd.f32 0.0, %v186
  %v188 = vpop.f32.mrb[0].mxu0
  %v189 = vadd.f32 0.0, %v188
  %v190 = vpop.f32.mrb[0].mxu0
  %v191 = vadd.f32 0.0, %v190
  %v192 = vpop.f32.mrb[0].mxu0
  %v193 = vadd.f32 0.0, %v192
  %194 = vdwg.mxu0
  %v195 = vmul.f32 %v167, %v167
  %v196 = vmul.f32 %v171, %v171
  %v197 = vmul.f32 %v177, %v177
  %v198 = vmul.f32 %v181, %v181
  %v199 = vmul.f32 %v187, %v187
  %v200 = vmul.f32 %v191, %v191
  %v201 = vmul.f32 %v169, %v169
  %v202 = vmul.f32 %v173, %v173
  %v203 = vmul.f32 %v179, %v179
  %v204 = vmul.f32 %v183, %v183
  %v205 = vmul.f32 %v189, %v189
  %v206 = vmul.f32 %v193, %v193
  %v207 = vadd.f32 %v195, %v201
  %v208 = vadd.f32 %v196, %v202
  %v209 = vadd.f32 %v197, %v203
  %v210 = vadd.f32 %v198, %v204
  %v211 = vadd.f32 %v199, %v205
  %v212 = vadd.f32 %v200, %v206
  %v213 = vrsqrt.pop %v207
  %v214 = vmul.f32 %v207, %v213
  %vm215 = vcmp.eq.f32.partialorder %v207, inf
  %v216 = vsel %vm215, %v207, %v214
  %vm217 = vcmp.eq.f32.partialorder %v207, 0.0
  %v218 = vand.u32 %v207, 2147483648
  %v219 = vsel %vm217, %v218, %v216
  %v220 = vrsqrt.pop %v208
  %v221 = vmul.f32 %v208, %v220
  %vm222 = vcmp.eq.f32.partialorder %v208, inf
  %v223 = vsel %vm222, %v208, %v221
  %vm224 = vcmp.eq.f32.partialorder %v208, 0.0
  %v225 = vand.u32 %v208, 2147483648
  %v226 = vsel %vm224, %v225, %v223
  %v227 = vrsqrt.pop %v209
  %v228 = vmul.f32 %v209, %v227
  %vm229 = vcmp.eq.f32.partialorder %v209, inf
  %v230 = vsel %vm229, %v209, %v228
  %vm231 = vcmp.eq.f32.partialorder %v209, 0.0
  %v232 = vand.u32 %v209, 2147483648
  %v233 = vsel %vm231, %v232, %v230
  %v234 = vrsqrt.pop %v210
  %v235 = vmul.f32 %v210, %v234
  %vm236 = vcmp.eq.f32.partialorder %v210, inf
  %v237 = vsel %vm236, %v210, %v235
  %vm238 = vcmp.eq.f32.partialorder %v210, 0.0
  %v239 = vand.u32 %v210, 2147483648
  %v240 = vsel %vm238, %v239, %v237
  %v241 = vrsqrt.pop %v211
  %v242 = vmul.f32 %v211, %v241
  %vm243 = vcmp.eq.f32.partialorder %v211, inf
  %v244 = vsel %vm243, %v211, %v242
  %vm245 = vcmp.eq.f32.partialorder %v211, 0.0
  %v246 = vand.u32 %v211, 2147483648
  %v247 = vsel %vm245, %v246, %v244
  %v248 = vrsqrt.pop %v212
  %v249 = vmul.f32 %v212, %v248
  %vm250 = vcmp.eq.f32.partialorder %v212, inf
  %v251 = vsel %vm250, %v212, %v249
  %vm252 = vcmp.eq.f32.partialorder %v212, 0.0
  %v253 = vand.u32 %v212, 2147483648
  %v254 = vsel %vm252, %v253, %v251
  %v255 = vpack.c.bf16 %v226, %v219
  %v256 = vpack.c.bf16 %v240, %v233
  %v257 = vpack.c.bf16 %v254, %v247
  %v261 = vunpack.c.l.b16 %v255
  %v262 = vunpack.c.h.b16 %v255
  %v263 = vunpack.c.l.b16 %v256
  %v264 = vunpack.c.h.b16 %v256
  %v265 = vunpack.c.l.b16 %v257
  %v266 = vunpack.c.h.b16 %v257
  %v267 = vpack.c.b16 %v261, %v261
  %v268 = vpack.c.b16 %v262, %v262
  %v269 = vpack.c.b16 %v263, %v263
  %v270 = vpack.c.b16 %v264, %v264
  %v271 = vpack.c.b16 %v265, %v265
  %v272 = vpack.c.b16 %v266, %v266
  %279 = vst [vmem:[%s2] sm:$0xf] %v267
  %280 = vst [vmem:[%s2 + $0x4] sm:$0xf] %v268
  %281 = vst [vmem:[%s2 + $0x8] sm:$0xf] %v269
  %282 = vst [vmem:[%s2 + $0xc] sm:$0xf] %v270
  %283 = vst [vmem:[%s2 + $0x10] sm:$0xf] %v271
  %284 = vst [vmem:[%s2 + $0x14] sm:$0xf] %v272
  // Predicated region
  $region10: #{_lambda_.28} parent=0 // pred_check
    _
  $region11: #{_lambda_.28} parent=0 // pred_check_branch
    %286 = sbr.rel (0) target = $region13
  $region12: #{_lambda_.28} parent=0 // pred_region
    _
  $region13: #{_lambda_.28} parent=0 // pred_fallthru
    _
  // Predicated region
  $region14: #{_lambda_.28} parent=0 // pred_check
    _
  $region15: #{_lambda_.28} parent=0 // pred_check_branch
    %288 = sbr.rel (0) target = $region17
  $region16: #{_lambda_.28} parent=0 // pred_region
    _
  $region17: #{_lambda_.28} parent=0 // pred_fallthru
    _

// kernel: _lambda_.21
$region0: #{_lambda_.21}
  #allocation0 [shape = 'u32[]', space=smem, size = 0x4, offset = 0x4, fixed_abs, tag = 'smem constant byte address 0x4 - core index']
  #allocation1 [shape = 'u32[144,128]{1,0:T(1,128)}', space=vmem, size = 0x12000, scoped, tag = 'internal scratch']
  %s0 = inlined_call_operand.vmem [shape: bf16[80,128], index: 0, kind: input, shape index: {}]
  %s1 = inlined_call_operand.vmem [shape: bf16[128,256], index: 1, kind: input, shape index: {}]
  %s2 = inlined_call_operand.vmem [shape: bf16[80,128], index: 2, kind: output, shape index: {}]
  %s3 = sld [smem:[#allocation0]]
  $region18: #{_lambda_.21} parent=0
    _
  %s5 = ssub.s32 1, %s3
  %s6 = scalar_select 0, %s5, %s3
  // Predicated region
  $region2: #{_lambda_.21} parent=0 // pred_check
    _
  $region3: #{_lambda_.21} parent=0 // pred_check_branch
    %8 = sbr.rel (0) target = $region5
  $region4: #{_lambda_.21} parent=0 // pred_region
    _
  $region5: #{_lambda_.21} parent=0 // pred_fallthru
    _
  // Predicated region
  $region6: #{_lambda_.21} parent=0 // pred_check
    _
  $region7: #{_lambda_.21} parent=0 // pred_check_branch
    %10 = sbr.rel (0) target = $region9
  $region8: #{_lambda_.21} parent=0 // pred_region
    _
  $region9: #{_lambda_.21} parent=0 // pred_fallthru
    _
  %v12 = vld [vmem:[%s0] sm:$0xf]
  %v13 = vld [vmem:[%s0 + $0x4] sm:$0xf]
  %v14 = vld [vmem:[%s0 + $0x8] sm:$0xf]
  %v15 = vld [vmem:[%s0 + $0xc] sm:$0xf]
  %v16 = vld [vmem:[%s0 + $0x10] sm:$0xf]
  %v17 = vld [vmem:[%s0 + $0x14] sm:$0xf]
  %v18 = vld [vmem:[%s0 + $0x18] sm:$0xf]
  %v19 = vld [vmem:[%s0 + $0x1c] sm:$0xf]
  %v20 = vld [vmem:[%s0 + $0x20] sm:$0xf]
  %v21 = vld [vmem:[%s0 + $0x24] sm:$0xf]
  %v22 = vld [vmem:[%s1] sm:$0xff]
  %v23 = vld [vmem:[%s1 + $0x8] sm:$0xff]
  %v24 = vld [vmem:[%s1 + $0x10] sm:$0xff]
  %v25 = vld [vmem:[%s1 + $0x18] sm:$0xff]
  %v26 = vld [vmem:[%s1 + $0x20] sm:$0xff]
  %v27 = vld [vmem:[%s1 + $0x28] sm:$0xff]
  %v28 = vld [vmem:[%s1 + $0x30] sm:$0xff]
  %v29 = vld [vmem:[%s1 + $0x38] sm:$0xff]
  %v30 = vld [vmem:[%s1 + $0x40] sm:$0xff]
  %v31 = vld [vmem:[%s1 + $0x48] sm:$0xff]
  %v32 = vld [vmem:[%s1 + $0x50] sm:$0xff]
  %v33 = vld [vmem:[%s1 + $0x58] sm:$0xff]
  %v34 = vld [vmem:[%s1 + $0x60] sm:$0xff]
  %v35 = vld [vmem:[%s1 + $0x68] sm:$0xff]
  %v36 = vld [vmem:[%s1 + $0x70] sm:$0xff]
  %v37 = vld [vmem:[%s1 + $0x78] sm:$0xff]
  %v48 = vunpack.c.l.b16 %v12
  %v49 = vunpack.c.l.b16 %v13
  %v50 = vunpack.c.l.b16 %v14
  %v51 = vunpack.c.l.b16 %v15
  %v52 = vunpack.c.l.b16 %v16
  %v53 = vunpack.c.l.b16 %v17
  %v54 = vunpack.c.l.b16 %v18
  %v55 = vunpack.c.l.b16 %v19
  %v56 = vunpack.c.l.b16 %v20
  %v57 = vunpack.c.l.b16 %v21
  %v58 = vpack.c.b16 %v49, %v48
  %v59 = vpack.c.b16 %v51, %v50
  %v60 = vpack.c.b16 %v53, %v52
  %v61 = vpack.c.b16 %v55, %v54
  %v62 = vpack.c.b16 %v57, %v56
  %v84 = vunpack.c.l.b16 %v22
  %v85 = vunpack.c.h.b16 %v22
  %v86 = vunpack.c.l.b16 %v23
  %v87 = vunpack.c.h.b16 %v23
  %v88 = vunpack.c.l.b16 %v24
  %v89 = vunpack.c.h.b16 %v24
  %v90 = vunpack.c.l.b16 %v25
  %v91 = vunpack.c.h.b16 %v25
  %v92 = vunpack.c.l.b16 %v26
  %v93 = vunpack.c.h.b16 %v26
  %v94 = vunpack.c.l.b16 %v27
  %v95 = vunpack.c.h.b16 %v27
  %v96 = vunpack.c.l.b16 %v28
  %v97 = vunpack.c.h.b16 %v28
  %v98 = vunpack.c.l.b16 %v29
  %v99 = vunpack.c.h.b16 %v29
  %v100 = vunpack.c.l.b16 %v30
  %v101 = vunpack.c.h.b16 %v30
  %v102 = vunpack.c.l.b16 %v31
  %v103 = vunpack.c.h.b16 %v31
  %v104 = vunpack.c.l.b16 %v32
  %v105 = vunpack.c.h.b16 %v32
  %v106 = vunpack.c.l.b16 %v33
  %v107 = vunpack.c.h.b16 %v33
  %v108 = vunpack.c.l.b16 %v34
  %v109 = vunpack.c.h.b16 %v34
  %v110 = vunpack.c.l.b16 %v35
  %v111 = vunpack.c.h.b16 %v35
  %v112 = vunpack.c.l.b16 %v36
  %v113 = vunpack.c.h.b16 %v36
  %v114 = vunpack.c.l.b16 %v37
  %v115 = vunpack.c.h.b16 %v37
  %v116 = vpack.c.b16 %v86, %v84
  %v117 = vpack.c.b16 %v87, %v85
  %v118 = vpack.c.b16 %v90, %v88
  %v119 = vpack.c.b16 %v91, %v89
  %v120 = vpack.c.b16 %v94, %v92
  %v121 = vpack.c.b16 %v95, %v93
  %v122 = vpack.c.b16 %v98, %v96
  %v123 = vpack.c.b16 %v99, %v97
  %v124 = vpack.c.b16 %v102, %v100
  %v125 = vpack.c.b16 %v103, %v101
  %v126 = vpack.c.b16 %v106, %v104
  %v127 = vpack.c.b16 %v107, %v105
  %v128 = vpack.c.b16 %v110, %v108
  %v129 = vpack.c.b16 %v111, %v109
  %v130 = vpack.c.b16 %v114, %v112
  %v131 = vpack.c.b16 %v115, %v113
  %148 = vmatprep.subr.bf16.mxu0 %v117
  %149 = vmatpush1.bf16.msra.mxu0 %v116
  %150 = vmatprep.subr.bf16.mxu0 %v119
  %151 = vmatpush1.bf16.msra.mxu0 %v118
  %152 = vmatprep.subr.bf16.mxu0 %v121
  %153 = vmatpush1.bf16.msra.mxu0 %v120
  %154 = vmatprep.subr.bf16.mxu0 %v123
  %155 = vmatpush1.bf16.msra.mxu0 %v122
  %156 = vmatprep.subr.bf16.mxu0 %v125
  %157 = vmatpush1.bf16.msra.mxu0 %v124
  %158 = vmatprep.subr.bf16.mxu0 %v127
  %159 = vmatpush1.bf16.msra.mxu0 %v126
  %160 = vmatprep.subr.bf16.mxu0 %v129
  %161 = vmatpush1.bf16.msra.mxu0 %v128
  %162 = vmatprep.subr.bf16.mxu0 %v131
  %163 = vmatpush1.bf16.msra.mxu0 %v130
  %164 = vmatprep.subr.bf16.mxu0 0
  %165 = vmatpush1.bf16.msra.mxu0 0
  %166 = vmatprep.subr.bf16.mxu0 0
  %167 = vmatpush1.bf16.msra.mxu0 0
  %168 = vmatprep.subr.bf16.mxu0 0
  %169 = vmatpush1.bf16.msra.mxu0 0
  %170 = vmatprep.subr.bf16.mxu0 0
  %171 = vmatpush1.bf16.msra.mxu0 0
  %172 = vmatprep.subr.bf16.mxu0 0
  %173 = vmatpush1.bf16.msra.mxu0 0
  %174 = vmatprep.subr.bf16.mxu0 0
  %175 = vmatpush1.bf16.msra.mxu0 0
  %176 = vmatprep.subr.bf16.mxu0 0
  %177 = vmatpush1.bf16.msra.mxu0 0
  %178 = vmatprep.subr.bf16.mxu0 0
  %179 = vmatpush1.bf16.msra.mxu0 0
  %180 = vmatprep.mubr.bf16.mxu0 0
  %181 = vmatmul.mubr.bf16.gmra.mrb[0].mxu0 %v58
  %v182 = vpop.f32.mrb[0].mxu0
  %v183 = vadd.f32 0.0, %v182
  %v184 = vpop.f32.mrb[0].mxu0
  %v185 = vadd.f32 0.0, %v184
  %v186 = vpop.f32.mrb[0].mxu0
  %v187 = vadd.f32 0.0, %v186
  %v188 = vpop.f32.mrb[0].mxu0
  %v189 = vadd.f32 0.0, %v188
  %190 = vmatprep.mubr.bf16.mxu0 0
  %191 = vmatmul.mubr.bf16.gmra.mrb[0].mxu0 %v59
  %v192 = vpop.f32.mrb[0].mxu0
  %v193 = vadd.f32 0.0, %v192
  %v194 = vpop.f32.mrb[0].mxu0
  %v195 = vadd.f32 0.0, %v194
  %v196 = vpop.f32.mrb[0].mxu0
  %v197 = vadd.f32 0.0, %v196
  %v198 = vpop.f32.mrb[0].mxu0
  %v199 = vadd.f32 0.0, %v198
  %200 = vmatprep.mubr.bf16.mxu0 0
  %201 = vmatmul.mubr.bf16.gmra.mrb[0].mxu0 %v60
  %v202 = vpop.f32.mrb[0].mxu0
  %v203 = vadd.f32 0.0, %v202
  %v204 = vpop.f32.mrb[0].mxu0
  %v205 = vadd.f32 0.0, %v204
  %v206 = vpop.f32.mrb[0].mxu0
  %v207 = vadd.f32 0.0, %v206
  %v208 = vpop.f32.mrb[0].mxu0
  %v209 = vadd.f32 0.0, %v208
  %210 = vmatprep.mubr.bf16.mxu0 0
  %211 = vmatmul.mubr.bf16.gmra.mrb[0].mxu0 %v61
  %v212 = vpop.f32.mrb[0].mxu0
  %v213 = vadd.f32 0.0, %v212
  %v214 = vpop.f32.mrb[0].mxu0
  %v215 = vadd.f32 0.0, %v214
  %v216 = vpop.f32.mrb[0].mxu0
  %v217 = vadd.f32 0.0, %v216
  %v218 = vpop.f32.mrb[0].mxu0
  %v219 = vadd.f32 0.0, %v218
  %220 = vmatprep.mubr.bf16.mxu0 0
  %221 = vmatmul.mubr.bf16.gmra.mrb[0].mxu0 %v62
  %v222 = vpop.f32.mrb[0].mxu0
  %v223 = vadd.f32 0.0, %v222
  %v224 = vpop.f32.mrb[0].mxu0
  %v225 = vadd.f32 0.0, %v224
  %v226 = vpop.f32.mrb[0].mxu0
  %v227 = vadd.f32 0.0, %v226
  %v228 = vpop.f32.mrb[0].mxu0
  %v229 = vadd.f32 0.0, %v228
  %230 = vdwg.mxu0
  %v231 = vmul.f32 %v183, %v183
  %v232 = vmul.f32 %v187, %v187
  %v233 = vmul.f32 %v193, %v193
  %v234 = vmul.f32 %v197, %v197
  %v235 = vmul.f32 %v203, %v203
  %v236 = vmul.f32 %v207, %v207
  %v237 = vmul.f32 %v213, %v213
  %v238 = vmul.f32 %v217, %v217
  %v239 = vmul.f32 %v223, %v223
  %v240 = vmul.f32 %v227, %v227
  %v241 = vmul.f32 %v185, %v185
  %v242 = vmul.f32 %v189, %v189
  %v243 = vmul.f32 %v195, %v195
  %v244 = vmul.f32 %v199, %v199
  %v245 = vmul.f32 %v205, %v205
  %v246 = vmul.f32 %v209, %v209
  %v247 = vmul.f32 %v215, %v215
  %v248 = vmul.f32 %v219, %v219
  %v249 = vmul.f32 %v225, %v225
  %v250 = vmul.f32 %v229, %v229
  %v251 = vadd.f32 %v231, %v241
  %v252 = vadd.f32 %v232, %v242
  %v253 = vadd.f32 %v233, %v243
  %v254 = vadd.f32 %v234, %v244
  %v255 = vadd.f32 %v235, %v245
  %v256 = vadd.f32 %v236, %v246
  %v257 = vadd.f32 %v237, %v247
  %v258 = vadd.f32 %v238, %v248
  %v259 = vadd.f32 %v239, %v249
  %v260 = vadd.f32 %v240, %v250
  %v261 = vrsqrt.pop %v251
  %v262 = vmul.f32 %v251, %v261
  %vm263 = vcmp.eq.f32.partialorder %v251, inf
  %v264 = vsel %vm263, %v251, %v262
  %vm265 = vcmp.eq.f32.partialorder %v251, 0.0
  %v266 = vand.u32 %v251, 2147483648
  %v267 = vsel %vm265, %v266, %v264
  %v268 = vrsqrt.pop %v252
  %v269 = vmul.f32 %v252, %v268
  %vm270 = vcmp.eq.f32.partialorder %v252, inf
  %v271 = vsel %vm270, %v252, %v269
  %vm272 = vcmp.eq.f32.partialorder %v252, 0.0
  %v273 = vand.u32 %v252, 2147483648
  %v274 = vsel %vm272, %v273, %v271
  %v275 = vrsqrt.pop %v253
  %v276 = vmul.f32 %v253, %v275
  %vm277 = vcmp.eq.f32.partialorder %v253, inf
  %v278 = vsel %vm277, %v253, %v276
  %vm279 = vcmp.eq.f32.partialorder %v253, 0.0
  %v280 = vand.u32 %v253, 2147483648
  %v281 = vsel %vm279, %v280, %v278
  %v282 = vrsqrt.pop %v254
  %v283 = vmul.f32 %v254, %v282
  %vm284 = vcmp.eq.f32.partialorder %v254, inf
  %v285 = vsel %vm284, %v254, %v283
  %vm286 = vcmp.eq.f32.partialorder %v254, 0.0
  %v287 = vand.u32 %v254, 2147483648
  %v288 = vsel %vm286, %v287, %v285
  %v289 = vrsqrt.pop %v255
  %v290 = vmul.f32 %v255, %v289
  %vm291 = vcmp.eq.f32.partialorder %v255, inf
  %v292 = vsel %vm291, %v255, %v290
  %vm293 = vcmp.eq.f32.partialorder %v255, 0.0
  %v294 = vand.u32 %v255, 2147483648
  %v295 = vsel %vm293, %v294, %v292
  %v296 = vrsqrt.pop %v256
  %v297 = vmul.f32 %v256, %v296
  %vm298 = vcmp.eq.f32.partialorder %v256, inf
  %v299 = vsel %vm298, %v256, %v297
  %vm300 = vcmp.eq.f32.partialorder %v256, 0.0
  %v301 = vand.u32 %v256, 2147483648
  %v302 = vsel %vm300, %v301, %v299
  %v303 = vrsqrt.pop %v257
  %v304 = vmul.f32 %v257, %v303
  %vm305 = vcmp.eq.f32.partialorder %v257, inf
  %v306 = vsel %vm305, %v257, %v304
  %vm307 = vcmp.eq.f32.partialorder %v257, 0.0
  %v308 = vand.u32 %v257, 2147483648
  %v309 = vsel %vm307, %v308, %v306
  %v310 = vrsqrt.pop %v258
  %v311 = vmul.f32 %v258, %v310
  %vm312 = vcmp.eq.f32.partialorder %v258, inf
  %v313 = vsel %vm312, %v258, %v311
  %vm314 = vcmp.eq.f32.partialorder %v258, 0.0
  %v315 = vand.u32 %v258, 2147483648
  %v316 = vsel %vm314, %v315, %v313
  %v317 = vrsqrt.pop %v259
  %v318 = vmul.f32 %v259, %v317
  %vm319 = vcmp.eq.f32.partialorder %v259, inf
  %v320 = vsel %vm319, %v259, %v318
  %vm321 = vcmp.eq.f32.partialorder %v259, 0.0
  %v322 = vand.u32 %v259, 2147483648
  %v323 = vsel %vm321, %v322, %v320
  %v324 = vrsqrt.pop %v260
  %v325 = vmul.f32 %v260, %v324
  %vm326 = vcmp.eq.f32.partialorder %v260, inf
  %v327 = vsel %vm326, %v260, %v325
  %vm328 = vcmp.eq.f32.partialorder %v260, 0.0
  %v329 = vand.u32 %v260, 2147483648
  %v330 = vsel %vm328, %v329, %v327
  %v331 = vpack.c.bf16 %v274, %v267
  %v332 = vpack.c.bf16 %v288, %v281
  %v333 = vpack.c.bf16 %v302, %v295
  %v334 = vpack.c.bf16 %v316, %v309
  %v335 = vpack.c.bf16 %v330, %v323
  %v341 = vunpack.c.l.b16 %v331
  %v342 = vunpack.c.h.b16 %v331
  %v343 = vunpack.c.l.b16 %v332
  %v344 = vunpack.c.h.b16 %v332
  %v345 = vunpack.c.l.b16 %v333
  %v346 = vunpack.c.h.b16 %v333
  %v347 = vunpack.c.l.b16 %v334
  %v348 = vunpack.c.h.b16 %v334
  %v349 = vunpack.c.l.b16 %v335
  %v350 = vunpack.c.h.b16 %v335
  %v351 = vpack.c.b16 %v341, %v341
  %v352 = vpack.c.b16 %v342, %v342
  %v353 = vpack.c.b16 %v343, %v343
  %v354 = vpack.c.b16 %v344, %v344
  %v355 = vpack.c.b16 %v345, %v345
  %v356 = vpack.c.b16 %v346, %v346
  %v357 = vpack.c.b16 %v347, %v347
  %v358 = vpack.c.b16 %v348, %v348
  %v359 = vpack.c.b16 %v349, %v349
  %v360 = vpack.c.b16 %v350, %v350
  %371 = vst [vmem:[%s2] sm:$0xf] %v351
  %372 = vst [vmem:[%s2 + $0x4] sm:$0xf] %v352
  %373 = vst [vmem:[%s2 + $0x8] sm:$0xf] %v353
  %374 = vst [vmem:[%s2 + $0xc] sm:$0xf] %v354
  %375 = vst [vmem:[%s2 + $0x10] sm:$0xf] %v355
  %376 = vst [vmem:[%s2 + $0x14] sm:$0xf] %v356
  %377 = vst [vmem:[%s2 + $0x18] sm:$0xf] %v357
  %378 = vst [vmem:[%s2 + $0x1c] sm:$0xf] %v358
  %379 = vst [vmem:[%s2 + $0x20] sm:$0xf] %v359
  %380 = vst [vmem:[%s2 + $0x24] sm:$0xf] %v360
  // Predicated region
  $region10: #{_lambda_.21} parent=0 // pred_check
    _
  $region11: #{_lambda_.21} parent=0 // pred_check_branch
    %382 = sbr.rel (0) target = $region13
  $region12: #{_lambda_.21} parent=0 // pred_region
    _
  $region13: #{_lambda_.21} parent=0 // pred_fallthru
    _
  // Predicated region
  $region14: #{_lambda_.21} parent=0 // pred_check
    _
  $region15: #{_lambda_.21} parent=0 // pred_check_branch
    %384 = sbr.rel (0) target = $region17
  $region16: #{_lambda_.21} parent=0 // pred_region
    _
  $region17: #{_lambda_.21} parent=0 // pred_fallthru
    _

// kernel: _lambda_.35
$region0: #{_lambda_.35}
  #allocation0 [shape = 'u32[]', space=smem, size = 0x4, offset = 0x4, fixed_abs, tag = 'smem constant byte address 0x4 - core index']
  #allocation1 [shape = 'u32[144,128]{1,0:T(1,128)}', space=vmem, size = 0x12000, scoped, tag = 'internal scratch']
  %s0 = inlined_call_operand.vmem [shape: bf16[144,128], index: 0, kind: input, shape index: {}]
  %s1 = inlined_call_operand.vmem [shape: bf16[128,256], index: 1, kind: input, shape index: {}]
  %s2 = inlined_call_operand.vmem [shape: bf16[144,128], index: 2, kind: output, shape index: {}]
  %s3 = sld [smem:[#allocation0]]
  $region18: #{_lambda_.35} parent=0
    _
  %s5 = ssub.s32 1, %s3
  %s6 = scalar_select 0, %s5, %s3
  // Predicated region
  $region2: #{_lambda_.35} parent=0 // pred_check
    _
  $region3: #{_lambda_.35} parent=0 // pred_check_branch
    %8 = sbr.rel (0) target = $region5
  $region4: #{_lambda_.35} parent=0 // pred_region
    _
  $region5: #{_lambda_.35} parent=0 // pred_fallthru
    _
  // Predicated region
  $region6: #{_lambda_.35} parent=0 // pred_check
    _
  $region7: #{_lambda_.35} parent=0 // pred_check_branch
    %10 = sbr.rel (0) target = $region9
  $region8: #{_lambda_.35} parent=0 // pred_region
    _
  $region9: #{_lambda_.35} parent=0 // pred_fallthru
    _
  %v12 = vld [vmem:[%s0] sm:$0xf]
  %v13 = vld [vmem:[%s0 + $0x4] sm:$0xf]
  %v14 = vld [vmem:[%s0 + $0x8] sm:$0xf]
  %v15 = vld [vmem:[%s0 + $0xc] sm:$0xf]
  %v16 = vld [vmem:[%s0 + $0x10] sm:$0xf]
  %v17 = vld [vmem:[%s0 + $0x14] sm:$0xf]
  %v18 = vld [vmem:[%s0 + $0x18] sm:$0xf]
  %v19 = vld [vmem:[%s0 + $0x1c] sm:$0xf]
  %v20 = vld [vmem:[%s0 + $0x20] sm:$0xf]
  %v21 = vld [vmem:[%s0 + $0x24] sm:$0xf]
  %v22 = vld [vmem:[%s0 + $0x28] sm:$0xf]
  %v23 = vld [vmem:[%s0 + $0x2c] sm:$0xf]
  %v24 = vld [vmem:[%s0 + $0x30] sm:$0xf]
  %v25 = vld [vmem:[%s0 + $0x34] sm:$0xf]
  %v26 = vld [vmem:[%s0 + $0x38] sm:$0xf]
  %v27 = vld [vmem:[%s0 + $0x3c] sm:$0xf]
  %v28 = vld [vmem:[%s0 + $0x40] sm:$0xf]
  %v29 = vld [vmem:[%s0 + $0x44] sm:$0xf]
  %v30 = vld [vmem:[%s1] sm:$0xff]
  %v31 = vld [vmem:[%s1 + $0x8] sm:$0xff]
  %v32 = vld [vmem:[%s1 + $0x10] sm:$0xff]
  %v33 = vld [vmem:[%s1 + $0x18] sm:$0xff]
  %v34 = vld [vmem:[%s1 + $0x20] sm:$0xff]
  %v35 = vld [vmem:[%s1 + $0x28] sm:$0xff]
  %v36 = vld [vmem:[%s1 + $0x30] sm:$0xff]
  %v37 = vld [vmem:[%s1 + $0x38] sm:$0xff]
  %v38 = vld [vmem:[%s1 + $0x40] sm:$0xff]
  %v39 = vld [vmem:[%s1 + $0x48] sm:$0xff]
  %v40 = vld [vmem:[%s1 + $0x50] sm:$0xff]
  %v41 = vld [vmem:[%s1 + $0x58] sm:$0xff]
  %v42 = vld [vmem:[%s1 + $0x60] sm:$0xff]
  %v43 = vld [vmem:[%s1 + $0x68] sm:$0xff]
  %v44 = vld [vmem:[%s1 + $0x70] sm:$0xff]
  %v45 = vld [vmem:[%s1 + $0x78] sm:$0xff]
  %v64 = vunpack.c.l.b16 %v12
  %v65 = vunpack.c.l.b16 %v13
  %v66 = vunpack.c.l.b16 %v14
  %v67 = vunpack.c.l.b16 %v15
  %v68 = vunpack.c.l.b16 %v16
  %v69 = vunpack.c.l.b16 %v17
  %v70 = vunpack.c.l.b16 %v18
  %v71 = vunpack.c.l.b16 %v19
  %v72 = vunpack.c.l.b16 %v20
  %v73 = vunpack.c.l.b16 %v21
  %v74 = vunpack.c.l.b16 %v22
  %v75 = vunpack.c.l.b16 %v23
  %v76 = vunpack.c.l.b16 %v24
  %v77 = vunpack.c.l.b16 %v25
  %v78 = vunpack.c.l.b16 %v26
  %v79 = vunpack.c.l.b16 %v27
  %v80 = vunpack.c.l.b16 %v28
  %v81 = vunpack.c.l.b16 %v29
  %v82 = vpack.c.b16 %v65, %v64
  %v83 = vpack.c.b16 %v67, %v66
  %v84 = vpack.c.b16 %v69, %v68
  %v85 = vpack.c.b16 %v71, %v70
  %v86 = vpack.c.b16 %v73, %v72
  %v87 = vpack.c.b16 %v75, %v74
  %v88 = vpack.c.b16 %v77, %v76
  %v89 = vpack.c.b16 %v79, %v78
  %v90 = vpack.c.b16 %v81, %v80
  %v116 = vunpack.c.l.b16 %v30
  %v117 = vunpack.c.h.b16 %v30
  %v118 = vunpack.c.l.b16 %v31
  %v119 = vunpack.c.h.b16 %v31
  %v120 = vunpack.c.l.b16 %v32
  %v121 = vunpack.c.h.b16 %v32
  %v122 = vunpack.c.l.b16 %v33
  %v123 = vunpack.c.h.b16 %v33
  %v124 = vunpack.c.l.b16 %v34
  %v125 = vunpack.c.h.b16 %v34
  %v126 = vunpack.c.l.b16 %v35
  %v127 = vunpack.c.h.b16 %v35
  %v128 = vunpack.c.l.b16 %v36
  %v129 = vunpack.c.h.b16 %v36
  %v130 = vunpack.c.l.b16 %v37
  %v131 = vunpack.c.h.b16 %v37
  %v132 = vunpack.c.l.b16 %v38
  %v133 = vunpack.c.h.b16 %v38
  %v134 = vunpack.c.l.b16 %v39
  %v135 = vunpack.c.h.b16 %v39
  %v136 = vunpack.c.l.b16 %v40
  %v137 = vunpack.c.h.b16 %v40
  %v138 = vunpack.c.l.b16 %v41
  %v139 = vunpack.c.h.b16 %v41
  %v140 = vunpack.c.l.b16 %v42
  %v141 = vunpack.c.h.b16 %v42
  %v142 = vunpack.c.l.b16 %v43
  %v143 = vunpack.c.h.b16 %v43
  %v144 = vunpack.c.l.b16 %v44
  %v145 = vunpack.c.h.b16 %v44
  %v146 = vunpack.c.l.b16 %v45
  %v147 = vunpack.c.h.b16 %v45
  %v148 = vpack.c.b16 %v118, %v116
  %v149 = vpack.c.b16 %v119, %v117
  %v150 = vpack.c.b16 %v122, %v120
  %v151 = vpack.c.b16 %v123, %v121
  %v152 = vpack.c.b16 %v126, %v124
  %v153 = vpack.c.b16 %v127, %v125
  %v154 = vpack.c.b16 %v130, %v128
  %v155 = vpack.c.b16 %v131, %v129
  %v156 = vpack.c.b16 %v134, %v132
  %v157 = vpack.c.b16 %v135, %v133
  %v158 = vpack.c.b16 %v138, %v136
  %v159 = vpack.c.b16 %v139, %v137
  %v160 = vpack.c.b16 %v142, %v140
  %v161 = vpack.c.b16 %v143, %v141
  %v162 = vpack.c.b16 %v146, %v144
  %v163 = vpack.c.b16 %v147, %v145
  %180 = vmatprep.subr.bf16.mxu0 %v149
  %181 = vmatpush1.bf16.msra.mxu0 %v148
  %182 = vmatprep.subr.bf16.mxu0 %v151
  %183 = vmatpush1.bf16.msra.mxu0 %v150
  %184 = vmatprep.subr.bf16.mxu0 %v153
  %185 = vmatpush1.bf16.msra.mxu0 %v152
  %186 = vmatprep.subr.bf16.mxu0 %v155
  %187 = vmatpush1.bf16.msra.mxu0 %v154
  %188 = vmatprep.subr.bf16.mxu0 %v157
  %189 = vmatpush1.bf16.msra.mxu0 %v156
  %190 = vmatprep.subr.bf16.mxu0 %v159
  %191 = vmatpush1.bf16.msra.mxu0 %v158
  %192 = vmatprep.subr.bf16.mxu0 %v161
  %193 = vmatpush1.bf16.msra.mxu0 %v160
  %194 = vmatprep.subr.bf16.mxu0 %v163
  %195 = vmatpush1.bf16.msra.mxu0 %v162
  %196 = vmatprep.subr.bf16.mxu0 0
  %197 = vmatpush1.bf16.msra.mxu0 0
  %198 = vmatprep.subr.bf16.mxu0 0
  %199 = vmatpush1.bf16.msra.mxu0 0
  %200 = vmatprep.subr.bf16.mxu0 0
  %201 = vmatpush1.bf16.msra.mxu0 0
  %202 = vmatprep.subr.bf16.mxu0 0
  %203 = vmatpush1.bf16.msra.mxu0 0
  %204 = vmatprep.subr.bf16.mxu0 0
  %205 = vmatpush1.bf16.msra.mxu0 0
  %206 = vmatprep.subr.bf16.mxu0 0
  %207 = vmatpush1.bf16.msra.mxu0 0
  %208 = vmatprep.subr.bf16.mxu0 0
  %209 = vmatpush1.bf16.msra.mxu0 0
  %210 = vmatprep.subr.bf16.mxu0 0
  %211 = vmatpush1.bf16.msra.mxu0 0
  %212 = vmatprep.mubr.bf16.mxu0 0
  %213 = vmatmul.mubr.bf16.gmra.mrb[0].mxu0 %v82
  %v214 = vpop.f32.mrb[0].mxu0
  %v215 = vadd.f32 0.0, %v214
  %v216 = vpop.f32.mrb[0].mxu0
  %v217 = vadd.f32 0.0, %v216
  %v218 = vpop.f32.mrb[0].mxu0
  %v219 = vadd.f32 0.0, %v218
  %v220 = vpop.f32.mrb[0].mxu0
  %v221 = vadd.f32 0.0, %v220
  %222 = vmatprep.mubr.bf16.mxu0 0
  %223 = vmatmul.mubr.bf16.gmra.mrb[0].mxu0 %v83
  %v224 = vpop.f32.mrb[0].mxu0
  %v225 = vadd.f32 0.0, %v224
  %v226 = vpop.f32.mrb[0].mxu0
  %v227 = vadd.f32 0.0, %v226
  %v228 = vpop.f32.mrb[0].mxu0
  %v229 = vadd.f32 0.0, %v228
  %v230 = vpop.f32.mrb[0].mxu0
  %v231 = vadd.f32 0.0, %v230
  %232 = vmatprep.mubr.bf16.mxu0 0
  %233 = vmatmul.mubr.bf16.gmra.mrb[0].mxu0 %v84
  %v234 = vpop.f32.mrb[0].mxu0
  %v235 = vadd.f32 0.0, %v234
  %v236 = vpop.f32.mrb[0].mxu0
  %v237 = vadd.f32 0.0, %v236
  %v238 = vpop.f32.mrb[0].mxu0
  %v239 = vadd.f32 0.0, %v238
  %v240 = vpop.f32.mrb[0].mxu0
  %v241 = vadd.f32 0.0, %v240
  %242 = vmatprep.mubr.bf16.mxu0 0
  %243 = vmatmul.mubr.bf16.gmra.mrb[0].mxu0 %v85
  %v244 = vpop.f32.mrb[0].mxu0
  %v245 = vadd.f32 0.0, %v244
  %v246 = vpop.f32.mrb[0].mxu0
  %v247 = vadd.f32 0.0, %v246
  %v248 = vpop.f32.mrb[0].mxu0
  %v249 = vadd.f32 0.0, %v248
  %v250 = vpop.f32.mrb[0].mxu0
  %v251 = vadd.f32 0.0, %v250
  %252 = vmatprep.mubr.bf16.mxu0 0
  %253 = vmatmul.mubr.bf16.gmra.mrb[0].mxu0 %v86
  %v254 = vpop.f32.mrb[0].mxu0
  %v255 = vadd.f32 0.0, %v254
  %v256 = vpop.f32.mrb[0].mxu0
  %v257 = vadd.f32 0.0, %v256
  %v258 = vpop.f32.mrb[0].mxu0
  %v259 = vadd.f32 0.0, %v258
  %v260 = vpop.f32.mrb[0].mxu0
  %v261 = vadd.f32 0.0, %v260
  %262 = vmatprep.mubr.bf16.mxu0 0
  %263 = vmatmul.mubr.bf16.gmra.mrb[0].mxu0 %v87
  %v264 = vpop.f32.mrb[0].mxu0
  %v265 = vadd.f32 0.0, %v264
  %v266 = vpop.f32.mrb[0].mxu0
  %v267 = vadd.f32 0.0, %v266
  %v268 = vpop.f32.mrb[0].mxu0
  %v269 = vadd.f32 0.0, %v268
  %v270 = vpop.f32.mrb[0].mxu0
  %v271 = vadd.f32 0.0, %v270
  %272 = vmatprep.mubr.bf16.mxu0 0
  %273 = vmatmul.mubr.bf16.gmra.mrb[0].mxu0 %v88
  %v274 = vpop.f32.mrb[0].mxu0
  %v275 = vadd.f32 0.0, %v274
  %v276 = vpop.f32.mrb[0].mxu0
  %v277 = vadd.f32 0.0, %v276
  %v278 = vpop.f32.mrb[0].mxu0
  %v279 = vadd.f32 0.0, %v278
  %v280 = vpop.f32.mrb[0].mxu0
  %v281 = vadd.f32 0.0, %v280
  %282 = vmatprep.mubr.bf16.mxu0 0
  %283 = vmatmul.mubr.bf16.gmra.mrb[0].mxu0 %v89
  %v284 = vpop.f32.mrb[0].mxu0
  %v285 = vadd.f32 0.0, %v284
  %v286 = vpop.f32.mrb[0].mxu0
  %v287 = vadd.f32 0.0, %v286
  %v288 = vpop.f32.mrb[0].mxu0
  %v289 = vadd.f32 0.0, %v288
  %v290 = vpop.f32.mrb[0].mxu0
  %v291 = vadd.f32 0.0, %v290
  %292 = vmatprep.mubr.bf16.mxu0 0
  %293 = vmatmul.mubr.bf16.gmra.mrb[0].mxu0 %v90
  %v294 = vpop.f32.mrb[0].mxu0
  %v295 = vadd.f32 0.0, %v294
  %v296 = vpop.f32.mrb[0].mxu0
  %v297 = vadd.f32 0.0, %v296
  %v298 = vpop.f32.mrb[0].mxu0
  %v299 = vadd.f32 0.0, %v298
  %v300 = vpop.f32.mrb[0].mxu0
  %v301 = vadd.f32 0.0, %v300
  %302 = vdwg.mxu0
  %v303 = vmul.f32 %v215, %v215
  %v304 = vmul.f32 %v219, %v219
  %v305 = vmul.f32 %v225, %v225
  %v306 = vmul.f32 %v229, %v229
  %v307 = vmul.f32 %v235, %v235
  %v308 = vmul.f32 %v239, %v239
  %v309 = vmul.f32 %v245, %v245
  %v310 = vmul.f32 %v249, %v249
  %v311 = vmul.f32 %v255, %v255
  %v312 = vmul.f32 %v259, %v259
  %v313 = vmul.f32 %v265, %v265
  %v314 = vmul.f32 %v269, %v269
  %v315 = vmul.f32 %v275, %v275
  %v316 = vmul.f32 %v279, %v279
  %v317 = vmul.f32 %v285, %v285
  %v318 = vmul.f32 %v289, %v289
  %v319 = vmul.f32 %v295, %v295
  %v320 = vmul.f32 %v299, %v299
  %v321 = vmul.f32 %v217, %v217
  %v322 = vmul.f32 %v221, %v221
  %v323 = vmul.f32 %v227, %v227
  %v324 = vmul.f32 %v231, %v231
  %v325 = vmul.f32 %v237, %v237
  %v326 = vmul.f32 %v241, %v241
  %v327 = vmul.f32 %v247, %v247
  %v328 = vmul.f32 %v251, %v251
  %v329 = vmul.f32 %v257, %v257
  %v330 = vmul.f32 %v261, %v261
  %v331 = vmul.f32 %v267, %v267
  %v332 = vmul.f32 %v271, %v271
  %v333 = vmul.f32 %v277, %v277
  %v334 = vmul.f32 %v281, %v281
  %v335 = vmul.f32 %v287, %v287
  %v336 = vmul.f32 %v291, %v291
  %v337 = vmul.f32 %v297, %v297
  %v338 = vmul.f32 %v301, %v301
  %v339 = vadd.f32 %v303, %v321
  %v340 = vadd.f32 %v304, %v322
  %v341 = vadd.f32 %v305, %v323
  %v342 = vadd.f32 %v306, %v324
  %v343 = vadd.f32 %v307, %v325
  %v344 = vadd.f32 %v308, %v326
  %v345 = vadd.f32 %v309, %v327
  %v346 = vadd.f32 %v310, %v328
  %v347 = vadd.f32 %v311, %v329
  %v348 = vadd.f32 %v312, %v330
  %v349 = vadd.f32 %v313, %v331
  %v350 = vadd.f32 %v314, %v332
  %v351 = vadd.f32 %v315, %v333
  %v352 = vadd.f32 %v316, %v334
  %v353 = vadd.f32 %v317, %v335
  %v354 = vadd.f32 %v318, %v336
  %v355 = vadd.f32 %v319, %v337
  %v356 = vadd.f32 %v320, %v338
  %v357 = vrsqrt.pop %v339
  %v358 = vmul.f32 %v339, %v357
  %vm359 = vcmp.eq.f32.partialorder %v339, inf
  %v360 = vsel %vm359, %v339, %v358
  %vm361 = vcmp.eq.f32.partialorder %v339, 0.0
  %v362 = vand.u32 %v339, 2147483648
  %v363 = vsel %vm361, %v362, %v360
  %v364 = vrsqrt.pop %v340
  %v365 = vmul.f32 %v340, %v364
  %vm366 = vcmp.eq.f32.partialorder %v340, inf
  %v367 = vsel %vm366, %v340, %v365
  %vm368 = vcmp.eq.f32.partialorder %v340, 0.0
  %v369 = vand.u32 %v340, 2147483648
  %v370 = vsel %vm368, %v369, %v367
  %v371 = vrsqrt.pop %v341
  %v372 = vmul.f32 %v341, %v371
  %vm373 = vcmp.eq.f32.partialorder %v341, inf
  %v374 = vsel %vm373, %v341, %v372
  %vm375 = vcmp.eq.f32.partialorder %v341, 0.0
  %v376 = vand.u32 %v341, 2147483648
  %v377 = vsel %vm375, %v376, %v374
  %v378 = vrsqrt.pop %v342
  %v379 = vmul.f32 %v342, %v378
  %vm380 = vcmp.eq.f32.partialorder %v342, inf
  %v381 = vsel %vm380, %v342, %v379
  %vm382 = vcmp.eq.f32.partialorder %v342, 0.0
  %v383 = vand.u32 %v342, 2147483648
  %v384 = vsel %vm382, %v383, %v381
  %v385 = vrsqrt.pop %v343
  %v386 = vmul.f32 %v343, %v385
  %vm387 = vcmp.eq.f32.partialorder %v343, inf
  %v388 = vsel %vm387, %v343, %v386
  %vm389 = vcmp.eq.f32.partialorder %v343, 0.0
  %v390 = vand.u32 %v343, 2147483648
  %v391 = vsel %vm389, %v390, %v388
  %v392 = vrsqrt.pop %v344
  %v393 = vmul.f32 %v344, %v392
  %vm394 = vcmp.eq.f32.partialorder %v344, inf
  %v395 = vsel %vm394, %v344, %v393
  %vm396 = vcmp.eq.f32.partialorder %v344, 0.0
  %v397 = vand.u32 %v344, 2147483648
  %v398 = vsel %vm396, %v397, %v395
  %v399 = vrsqrt.pop %v345
  %v400 = vmul.f32 %v345, %v399
  %vm401 = vcmp.eq.f32.partialorder %v345, inf
  %v402 = vsel %vm401, %v345, %v400
  %vm403 = vcmp.eq.f32.partialorder %v345, 0.0
  %v404 = vand.u32 %v345, 2147483648
  %v405 = vsel %vm403, %v404, %v402
  %v406 = vrsqrt.pop %v346
  %v407 = vmul.f32 %v346, %v406
  %vm408 = vcmp.eq.f32.partialorder %v346, inf
  %v409 = vsel %vm408, %v346, %v407
  %vm410 = vcmp.eq.f32.partialorder %v346, 0.0
  %v411 = vand.u32 %v346, 2147483648
  %v412 = vsel %vm410, %v411, %v409
  %v413 = vrsqrt.pop %v347
  %v414 = vmul.f32 %v347, %v413
  %vm415 = vcmp.eq.f32.partialorder %v347, inf
  %v416 = vsel %vm415, %v347, %v414
  %vm417 = vcmp.eq.f32.partialorder %v347, 0.0
  %v418 = vand.u32 %v347, 2147483648
  %v419 = vsel %vm417, %v418, %v416
  %v420 = vrsqrt.pop %v348
  %v421 = vmul.f32 %v348, %v420
  %vm422 = vcmp.eq.f32.partialorder %v348, inf
  %v423 = vsel %vm422, %v348, %v421
  %vm424 = vcmp.eq.f32.partialorder %v348, 0.0
  %v425 = vand.u32 %v348, 2147483648
  %v426 = vsel %vm424, %v425, %v423
  %v427 = vrsqrt.pop %v349
  %v428 = vmul.f32 %v349, %v427
  %vm429 = vcmp.eq.f32.partialorder %v349, inf
  %v430 = vsel %vm429, %v349, %v428
  %vm431 = vcmp.eq.f32.partialorder %v349, 0.0
  %v432 = vand.u32 %v349, 2147483648
  %v433 = vsel %vm431, %v432, %v430
  %v434 = vrsqrt.pop %v350
  %v435 = vmul.f32 %v350, %v434
  %vm436 = vcmp.eq.f32.partialorder %v350, inf
  %v437 = vsel %vm436, %v350, %v435
  %vm438 = vcmp.eq.f32.partialorder %v350, 0.0
  %v439 = vand.u32 %v350, 2147483648
  %v440 = vsel %vm438, %v439, %v437
  %v441 = vrsqrt.pop %v351
  %v442 = vmul.f32 %v351, %v441
  %vm443 = vcmp.eq.f32.partialorder %v351, inf
  %v444 = vsel %vm443, %v351, %v442
  %vm445 = vcmp.eq.f32.partialorder %v351, 0.0
  %v446 = vand.u32 %v351, 2147483648
  %v447 = vsel %vm445, %v446, %v444
  %v448 = vrsqrt.pop %v352
  %v449 = vmul.f32 %v352, %v448
  %vm450 = vcmp.eq.f32.partialorder %v352, inf
  %v451 = vsel %vm450, %v352, %v449
  %vm452 = vcmp.eq.f32.partialorder %v352, 0.0
  %v453 = vand.u32 %v352, 2147483648
  %v454 = vsel %vm452, %v453, %v451
  %v455 = vrsqrt.pop %v353
  %v456 = vmul.f32 %v353, %v455
  %vm457 = vcmp.eq.f32.partialorder %v353, inf
  %v458 = vsel %vm457, %v353, %v456
  %vm459 = vcmp.eq.f32.partialorder %v353, 0.0
  %v460 = vand.u32 %v353, 2147483648
  %v461 = vsel %vm459, %v460, %v458
  %v462 = vrsqrt.pop %v354
  %v463 = vmul.f32 %v354, %v462
  %vm464 = vcmp.eq.f32.partialorder %v354, inf
  %v465 = vsel %vm464, %v354, %v463
  %vm466 = vcmp.eq.f32.partialorder %v354, 0.0
  %v467 = vand.u32 %v354, 2147483648
  %v468 = vsel %vm466, %v467, %v465
  %v469 = vrsqrt.pop %v355
  %v470 = vmul.f32 %v355, %v469
  %vm471 = vcmp.eq.f32.partialorder %v355, inf
  %v472 = vsel %vm471, %v355, %v470
  %vm473 = vcmp.eq.f32.partialorder %v355, 0.0
  %v474 = vand.u32 %v355, 2147483648
  %v475 = vsel %vm473, %v474, %v472
  %v476 = vrsqrt.pop %v356
  %v477 = vmul.f32 %v356, %v476
  %vm478 = vcmp.eq.f32.partialorder %v356, inf
  %v479 = vsel %vm478, %v356, %v477
  %vm480 = vcmp.eq.f32.partialorder %v356, 0.0
  %v481 = vand.u32 %v356, 2147483648
  %v482 = vsel %vm480, %v481, %v479
  %v483 = vpack.c.bf16 %v370, %v363
  %v484 = vpack.c.bf16 %v384, %v377
  %v485 = vpack.c.bf16 %v398, %v391
  %v486 = vpack.c.bf16 %v412, %v405
  %v487 = vpack.c.bf16 %v426, %v419
  %v488 = vpack.c.bf16 %v440, %v433
  %v489 = vpack.c.bf16 %v454, %v447
  %v490 = vpack.c.bf16 %v468, %v461
  %v491 = vpack.c.bf16 %v482, %v475
  %v501 = vunpack.c.l.b16 %v483
  %v502 = vunpack.c.h.b16 %v483
  %v503 = vunpack.c.l.b16 %v484
  %v504 = vunpack.c.h.b16 %v484
  %v505 = vunpack.c.l.b16 %v485
  %v506 = vunpack.c.h.b16 %v485
  %v507 = vunpack.c.l.b16 %v486
  %v508 = vunpack.c.h.b16 %v486
  %v509 = vunpack.c.l.b16 %v487
  %v510 = vunpack.c.h.b16 %v487
  %v511 = vunpack.c.l.b16 %v488
  %v512 = vunpack.c.h.b16 %v488
  %v513 = vunpack.c.l.b16 %v489
  %v514 = vunpack.c.h.b16 %v489
  %v515 = vunpack.c.l.b16 %v490
  %v516 = vunpack.c.h.b16 %v490
  %v517 = vunpack.c.l.b16 %v491
  %v518 = vunpack.c.h.b16 %v491
  %v519 = vpack.c.b16 %v501, %v501
  %v520 = vpack.c.b16 %v502, %v502
  %v521 = vpack.c.b16 %v503, %v503
  %v522 = vpack.c.b16 %v504, %v504
  %v523 = vpack.c.b16 %v505, %v505
  %v524 = vpack.c.b16 %v506, %v506
  %v525 = vpack.c.b16 %v507, %v507
  %v526 = vpack.c.b16 %v508, %v508
  %v527 = vpack.c.b16 %v509, %v509
  %v528 = vpack.c.b16 %v510, %v510
  %v529 = vpack.c.b16 %v511, %v511
  %v530 = vpack.c.b16 %v512, %v512
  %v531 = vpack.c.b16 %v513, %v513
  %v532 = vpack.c.b16 %v514, %v514
  %v533 = vpack.c.b16 %v515, %v515
  %v534 = vpack.c.b16 %v516, %v516
  %v535 = vpack.c.b16 %v517, %v517
  %v536 = vpack.c.b16 %v518, %v518
  %555 = vst [vmem:[%s2] sm:$0xf] %v519
  %556 = vst [vmem:[%s2 + $0x4] sm:$0xf] %v520
  %557 = vst [vmem:[%s2 + $0x8] sm:$0xf] %v521
  %558 = vst [vmem:[%s2 + $0xc] sm:$0xf] %v522
  %559 = vst [vmem:[%s2 + $0x10] sm:$0xf] %v523
  %560 = vst [vmem:[%s2 + $0x14] sm:$0xf] %v524
  %561 = vst [vmem:[%s2 + $0x18] sm:$0xf] %v525
  %562 = vst [vmem:[%s2 + $0x1c] sm:$0xf] %v526
  %563 = vst [vmem:[%s2 + $0x20] sm:$0xf] %v527
  %564 = vst [vmem:[%s2 + $0x24] sm:$0xf] %v528
  %565 = vst [vmem:[%s2 + $0x28] sm:$0xf] %v529
  %566 = vst [vmem:[%s2 + $0x2c] sm:$0xf] %v530
  %567 = vst [vmem:[%s2 + $0x30] sm:$0xf] %v531
  %568 = vst [vmem:[%s2 + $0x34] sm:$0xf] %v532
  %569 = vst [vmem:[%s2 + $0x38] sm:$0xf] %v533
  %570 = vst [vmem:[%s2 + $0x3c] sm:$0xf] %v534
  %571 = vst [vmem:[%s2 + $0x40] sm:$0xf] %v535
  %572 = vst [vmem:[%s2 + $0x44] sm:$0xf] %v536
  // Predicated region
  $region10: #{_lambda_.35} parent=0 // pred_check
    _
  $region11: #{_lambda_.35} parent=0 // pred_check_branch
    %574 = sbr.rel (0) target = $region13
  $region12: #{_lambda_.35} parent=0 // pred_region
    _
  $region13: #{_lambda_.35} parent=0 // pred_fallthru
    _
  // Predicated region
  $region14: #{_lambda_.35} parent=0 // pred_check
    _
  $region15: #{_lambda_.35} parent=0 // pred_check_branch
    %576 = sbr.rel (0) target = $region17
  $region16: #{_lambda_.35} parent=0 // pred_region
    _
  $region17: #{_lambda_.35} parent=0 // pred_fallthru
    _

// kernel: _lambda_.29
$region0: #{_lambda_.29}
  #allocation0 [shape = 'u32[]', space=smem, size = 0x4, offset = 0x4, fixed_abs, tag = 'smem constant byte address 0x4 - core index']
  #allocation1 [shape = 'u32[144,128]{1,0:T(1,128)}', space=vmem, size = 0x12000, scoped, tag = 'internal scratch']
  %s0 = inlined_call_operand.vmem [shape: bf16[672,128], index: 0, kind: input, shape index: {}]
  %s1 = inlined_call_operand.vmem [shape: bf16[128,128], index: 1, kind: input, shape index: {}]
  %s2 = inlined_call_operand.vmem [shape: f32[1,128], index: 2, kind: input, shape index: {}]
  %s3 = inlined_call_operand.vmem [shape: bf16[672,128], index: 3, kind: output, shape index: {}]
  %s4 = sld [smem:[#allocation0]]
  $region45: #{_lambda_.29} parent=0
    _
  %s6 = ssub.s32 1, %s4
  %s7 = scalar_select 0, %s6, %s4
  loop: start=0, step=1, limit=4
  $region2: #{_lambda_.29} parent=0 // loop_pre_header
    _
  $region3: #{_lambda_.29} parent=0 // loop_header
    %s9 = sphi 0, %s13
    %p10 = scmp.ge.s32.totalorder %s9, 4
    %s19 = sphi 0, %s21
    %s22 = sphi 0, %s19
    %s23 = sphi 0, %s22
    %s39 = sphi 0, %s23
    %s43 = sphi 0, %s43
    %s45 = sphi 0, %s43
    %s46 = sphi 0, %s45
    %s60 = sphi 0, %s46
    %s64 = sphi 0, %s64
    %s66 = sphi 0, %s64
    %s67 = sphi 0, %s66
    %s81 = sphi 0, %s67
    %s87 = sphi 0, %s89
    %s90 = sphi 0, %s87
    %s91 = sphi 0, %s90
    %s107 = sphi 0, %s91
  $region4: #{_lambda_.29} parent=0 // loop_header_branch
    %12 = sbr.rel (%p10) target = $region8
  $region5: #{_lambda_.29} parent=0 // loop_body
    %s14 = ssub.s32 %s9, 1
    %s15 = ssub.s32 %s9, 2
    %s16 = sadd.s32 %s9, 1
    %s17 = ssub.s32 %s9, %s16
    %p18 = scmp.eq.s32.totalorder %s17, 0
    %s20 = sadd.s32 %s19, 1
    %s21 = scalar_select %p18, %s19, %s20
    %p24 = pneg %p18
    %p25 = scmp.eq.s32.totalorder %s9, 1
    %p26 = por %p24, %p25
    %p27 = scmp.ne.s32.totalorder %s19, %s22
    %p28 = scmp.eq.s32.totalorder %s9, 0
    %p29 = por %p27, %p28
    %p30 = scmp.ne.s32.totalorder %s19, %s22
    %p31 = scmp.eq.s32.totalorder %s14, 1
    %p32 = por %p30, %p31
    %p33 = scmp.ne.s32.totalorder %s22, %s23
    %p34 = scmp.eq.s32.totalorder %s14, 0
    %p35 = por %p33, %p34
    %p36 = scmp.ne.s32.totalorder %s22, %s23
    %p37 = scmp.eq.s32.totalorder %s15, 1
    %p38 = por %p36, %p37
    %p40 = scmp.ne.s32.totalorder %s23, %s39
    %p41 = scmp.eq.s32.totalorder %s15, 0
    %p42 = por %p40, %p41
    %s44 = sadd.s32 %s43, 1
    %p47 = scmp.eq.s32.totalorder %s9, 1
    %p48 = scmp.ne.s32.totalorder %s43, %s45
    %p49 = scmp.eq.s32.totalorder %s9, 0
    %p50 = por %p48, %p49
    %p51 = scmp.ne.s32.totalorder %s43, %s45
    %p52 = scmp.eq.s32.totalorder %s14, 1
    %p53 = por %p51, %p52
    %p54 = scmp.ne.s32.totalorder %s45, %s46
    %p55 = scmp.eq.s32.totalorder %s14, 0
    %p56 = por %p54, %p55
    %p57 = scmp.ne.s32.totalorder %s45, %s46
    %p58 = scmp.eq.s32.totalorder %s15, 1
    %p59 = por %p57, %p58
    %p61 = scmp.ne.s32.totalorder %s46, %s60
    %p62 = scmp.eq.s32.totalorder %s15, 0
    %p63 = por %p61, %p62
    %s65 = sadd.s32 %s64, 1
    %p68 = scmp.eq.s32.totalorder %s9, 1
    %p69 = scmp.ne.s32.totalorder %s64, %s66
    %p70 = scmp.eq.s32.totalorder %s9, 0
    %p71 = por %p69, %p70
    %p72 = scmp.ne.s32.totalorder %s64, %s66
    %p73 = scmp.eq.s32.totalorder %s14, 1
    %p74 = por %p72, %p73
    %p75 = scmp.ne.s32.totalorder %s66, %s67
    %p76 = scmp.eq.s32.totalorder %s14, 0
    %p77 = por %p75, %p76
    %p78 = scmp.ne.s32.totalorder %s66, %s67
    %p79 = scmp.eq.s32.totalorder %s15, 1
    %p80 = por %p78, %p79
    %p82 = scmp.ne.s32.totalorder %s67, %s81
    %p83 = scmp.eq.s32.totalorder %s15, 0
    %p84 = por %p82, %p83
    %s85 = ssub.s32 %s9, %s16
    %p86 = scmp.eq.s32.totalorder %s85, 0
    %s88 = sadd.s32 %s87, 1
    %s89 = scalar_select %p86, %s87, %s88
    %p92 = pneg %p86
    %p93 = scmp.eq.s32.totalorder %s9, 1
    %p94 = por %p92, %p93
    %p95 = scmp.ne.s32.totalorder %s87, %s90
    %p96 = scmp.eq.s32.totalorder %s9, 0
    %p97 = por %p95, %p96
    %p98 = scmp.ne.s32.totalorder %s87, %s90
    %p99 = scmp.eq.s32.totalorder %s14, 1
    %p100 = por %p98, %p99
    %p101 = scmp.ne.s32.totalorder %s90, %s91
    %p102 = scmp.eq.s32.totalorder %s14, 0
    %p103 = por %p101, %p102
    %p104 = scmp.ne.s32.totalorder %s90, %s91
    %p105 = scmp.eq.s32.totalorder %s15, 1
    %p106 = por %p104, %p105
    %p108 = scmp.ne.s32.totalorder %s91, %s107
    %p109 = scmp.eq.s32.totalorder %s15, 0
    %p110 = por %p108, %p109
    %p111 = scmp.le.s32.totalorder 1, %s9
    %p112 = scmp.lt.s32.totalorder %s9, 3
    %p113 = pnand %p111, %p112
    %p114 = pneg %p113
    // Predicated region
    $region9: #{_lambda_.29} parent=5 // pred_check
      _
    $region10: #{_lambda_.29} parent=5 // pred_check_branch
      %116 = sbr.rel (%p113) target = $region12
    $region11: #{_lambda_.29} parent=5 // pred_region
      %s117 = ssub.s32 %s9, 1
      // Predicated region
      $region13: #{_lambda_.29} parent=11 // pred_check
        %p118 = pneg %p56
      $region14: #{_lambda_.29} parent=11 // pred_check_branch
        %120 = sbr.rel (%p118) target = $region16
      $region15: #{_lambda_.29} parent=11 // pred_region
        _
      $region16: #{_lambda_.29} parent=11 // pred_fallthru
        _
      // Predicated region
      $region17: #{_lambda_.29} parent=11 // pred_check
        %p121 = pneg %p77
      $region18: #{_lambda_.29} parent=11 // pred_check_branch
        %123 = sbr.rel (%p121) target = $region20
      $region19: #{_lambda_.29} parent=11 // pred_region
        _
      $region20: #{_lambda_.29} parent=11 // pred_fallthru
        _
    $region12: #{_lambda_.29} parent=5 // pred_fallthru
      _
    %p124 = scmp.lt.s32.totalorder %s9, 2
    // Predicated region
    $region21: #{_lambda_.29} parent=5 // pred_check
      %p125 = pneg %p124
    $region22: #{_lambda_.29} parent=5 // pred_check_branch
      %127 = sbr.rel (%p125) target = $region24
    $region23: #{_lambda_.29} parent=5 // pred_region
      // Predicated region
      $region25: #{_lambda_.29} parent=23 // pred_check
        %p128 = pneg %p29
      $region26: #{_lambda_.29} parent=23 // pred_check_branch
        %130 = sbr.rel (%p128) target = $region28
      $region27: #{_lambda_.29} parent=23 // pred_region
        %s131 = smul.u32 42, %s9
        %p132 = scmp.lt.s32.totalorder %s131, 83
        %s133 = scalar_select %p132, %s131, 83
        %s134 = smul.addr %s133, 4
        %s135 = scalar_lea.vmem %s0, %s134
        %s136 = smul.u32 42, %s9
      $region28: #{_lambda_.29} parent=23 // pred_fallthru
        _
    $region24: #{_lambda_.29} parent=5 // pred_fallthru
      _
    %p137 = scmp.le.s32.totalorder 1, %s9
    %p138 = scmp.lt.s32.totalorder %s9, 3
    %p139 = pnand %p137, %p138
    %p140 = pneg %p139
    // Predicated region
    $region29: #{_lambda_.29} parent=5 // pred_check
      _
    $region30: #{_lambda_.29} parent=5 // pred_check_branch
      %142 = sbr.rel (%p139) target = $region32
    $region31: #{_lambda_.29} parent=5 // pred_region
      %s143 = ssub.s32 %s9, 1
      %s144 = smul.u32 42, %s14
      %p145 = scmp.lt.s32.totalorder %s144, 83
      %s146 = scalar_select %p145, %s144, 83
      %s147 = smul.addr %s146, 4
      %s148 = scalar_lea.vmem %s0, %s147
      %p149 = pneg %p35
      %p150 = pneg %p32
      %p151 = pneg %p56
      %p152 = pneg %p53
      %p153 = pneg %p77
      %p154 = pneg %p74
      %p155 = pneg %p103
      %p156 = pneg %p100
      %s157 = smul.u32 42, %s14
      %p158 = scmp.lt.s32.totalorder %s157, 83
      %s159 = scalar_select %p158, %s157, 83
      %s160 = smul.addr %s159, 4
      %s161 = scalar_lea.vmem %s3, %s160
      %s162 = smul.u32 42, %s14
      %p163 = scmp.lt.s32.totalorder %s162, 83
      %s164 = scalar_select %p163, %s162, 83
      %s165 = smul.addr %s164, 4
      %s166 = scalar_lea.vmem %s0, %s165
      %s167 = smul.u32 42, %s14
      %s168 = smul.u32 42, %s14
      %p169 = scmp.lt.s32.totalorder %s168, 83
      %s170 = scalar_select %p169, %s168, 83
      %s171 = smul.addr %s170, 4
      %s172 = scalar_lea.vmem %s3, %s171
      %s173 = smul.u32 42, %s14
      %v175 = vld [vmem:[%s166] sm:$0xf]
      %v176 = vld [vmem:[%s166 + $0x4] sm:$0xf]
      %v177 = vld [vmem:[%s166 + $0x8] sm:$0xf]
      %v178 = vld [vmem:[%s166 + $0xc] sm:$0xf]
      %v179 = vld [vmem:[%s166 + $0x10] sm:$0xf]
      %v180 = vld [vmem:[%s166 + $0x14] sm:$0xf]
      %v181 = vld [vmem:[%s166 + $0x18] sm:$0xf]
      %v182 = vld [vmem:[%s166 + $0x1c] sm:$0xf]
      %v183 = vld [vmem:[%s166 + $0x20] sm:$0xf]
      %v184 = vld [vmem:[%s166 + $0x24] sm:$0xf]
      %v185 = vld [vmem:[%s166 + $0x28] sm:$0xf]
      %v186 = vld [vmem:[%s166 + $0x2c] sm:$0xf]
      %v187 = vld [vmem:[%s166 + $0x30] sm:$0xf]
      %v188 = vld [vmem:[%s166 + $0x34] sm:$0xf]
      %v189 = vld [vmem:[%s166 + $0x38] sm:$0xf]
      %v190 = vld [vmem:[%s166 + $0x3c] sm:$0xf]
      %v191 = vld [vmem:[%s166 + $0x40] sm:$0xf]
      %v192 = vld [vmem:[%s166 + $0x44] sm:$0xf]
      %v193 = vld [vmem:[%s166 + $0x48] sm:$0xf]
      %v194 = vld [vmem:[%s166 + $0x4c] sm:$0xf]
      %v195 = vld [vmem:[%s166 + $0x50] sm:$0xf]
      %v196 = vld [vmem:[%s166 + $0x54] sm:$0xf]
      %v197 = vld [vmem:[%s166 + $0x58] sm:$0xf]
      %v198 = vld [vmem:[%s166 + $0x5c] sm:$0xf]
      %v199 = vld [vmem:[%s166 + $0x60] sm:$0xf]
      %v200 = vld [vmem:[%s166 + $0x64] sm:$0xf]
      %v201 = vld [vmem:[%s166 + $0x68] sm:$0xf]
      %v202 = vld [vmem:[%s166 + $0x6c] sm:$0xf]
      %v203 = vld [vmem:[%s166 + $0x70] sm:$0xf]
      %v204 = vld [vmem:[%s166 + $0x74] sm:$0xf]
      %v205 = vld [vmem:[%s166 + $0x78] sm:$0xf]
      %v206 = vld [vmem:[%s166 + $0x7c] sm:$0xf]
      %v207 = vld [vmem:[%s166 + $0x80] sm:$0xf]
      %v208 = vld [vmem:[%s166 + $0x84] sm:$0xf]
      %v209 = vld [vmem:[%s166 + $0x88] sm:$0xf]
      %v210 = vld [vmem:[%s166 + $0x8c] sm:$0xf]
      %v211 = vld [vmem:[%s166 + $0x90] sm:$0xf]
      %v212 = vld [vmem:[%s166 + $0x94] sm:$0xf]
      %v213 = vld [vmem:[%s166 + $0x98] sm:$0xf]
      %v214 = vld [vmem:[%s166 + $0x9c] sm:$0xf]
      %v215 = vld [vmem:[%s166 + $0xa0] sm:$0xf]
      %v216 = vld [vmem:[%s166 + $0xa4] sm:$0xf]
      %v217 = vld [vmem:[%s1] sm:$0xf]
      %v218 = vld [vmem:[%s1 + $0x4] sm:$0xf]
      %v219 = vld [vmem:[%s1 + $0x8] sm:$0xf]
      %v220 = vld [vmem:[%s1 + $0xc] sm:$0xf]
      %v221 = vld [vmem:[%s1 + $0x10] sm:$0xf]
      %v222 = vld [vmem:[%s1 + $0x14] sm:$0xf]
      %v223 = vld [vmem:[%s1 + $0x18] sm:$0xf]
      %v224 = vld [vmem:[%s1 + $0x1c] sm:$0xf]
      %v225 = vld [vmem:[%s1 + $0x20] sm:$0xf]
      %v226 = vld [vmem:[%s1 + $0x24] sm:$0xf]
      %v227 = vld [vmem:[%s1 + $0x28] sm:$0xf]
      %v228 = vld [vmem:[%s1 + $0x2c] sm:$0xf]
      %v229 = vld [vmem:[%s1 + $0x30] sm:$0xf]
      %v230 = vld [vmem:[%s1 + $0x34] sm:$0xf]
      %v231 = vld [vmem:[%s1 + $0x38] sm:$0xf]
      %v232 = vld [vmem:[%s1 + $0x3c] sm:$0xf]
      %v233 = vld [vmem:[%s2] sm:$0x1]
      %v235 = vlaneseq
      %v236 = vshrl.u32 %v235, 7
      %v237 = vsub.s32 0, %v236
      %v238 = vrot.slane %v233, %v237
      %v282 = vunpack.c.l.b16 %v175
      %v283 = vunpack.c.l.b16 %v176
      %v284 = vunpack.c.l.b16 %v177
      %v285 = vunpack.c.l.b16 %v178
      %v286 = vunpack.c.l.b16 %v179
      %v287 = vunpack.c.l.b16 %v180
      %v288 = vunpack.c.l.b16 %v181
      %v289 = vunpack.c.l.b16 %v182
      %v290 = vunpack.c.l.b16 %v183
      %v291 = vunpack.c.l.b16 %v184
      %v292 = vunpack.c.l.b16 %v185
      %v293 = vunpack.c.l.b16 %v186
      %v294 = vunpack.c.l.b16 %v187
      %v295 = vunpack.c.l.b16 %v188
      %v296 = vunpack.c.l.b16 %v189
      %v297 = vunpack.c.l.b16 %v190
      %v298 = vunpack.c.l.b16 %v191
      %v299 = vunpack.c.l.b16 %v192
      %v300 = vunpack.c.l.b16 %v193
      %v301 = vunpack.c.l.b16 %v194
      %v302 = vunpack.c.l.b16 %v195
      %v303 = vunpack.c.l.b16 %v196
      %v304 = vunpack.c.l.b16 %v197
      %v305 = vunpack.c.l.b16 %v198
      %v306 = vunpack.c.l.b16 %v199
      %v307 = vunpack.c.l.b16 %v200
      %v308 = vunpack.c.l.b16 %v201
      %v309 = vunpack.c.l.b16 %v202
      %v310 = vunpack.c.l.b16 %v203
      %v311 = vunpack.c.l.b16 %v204
      %v312 = vunpack.c.l.b16 %v205
      %v313 = vunpack.c.l.b16 %v206
      %v314 = vunpack.c.l.b16 %v207
      %v315 = vunpack.c.l.b16 %v208
      %v316 = vunpack.c.l.b16 %v209
      %v317 = vunpack.c.l.b16 %v210
      %v318 = vunpack.c.l.b16 %v211
      %v319 = vunpack.c.l.b16 %v212
      %v320 = vunpack.c.l.b16 %v213
      %v321 = vunpack.c.l.b16 %v214
      %v322 = vunpack.c.l.b16 %v215
      %v323 = vunpack.c.l.b16 %v216
      %v324 = vpack.c.b16 %v283, %v282
      %v325 = vpack.c.b16 %v285, %v284
      %v326 = vpack.c.b16 %v287, %v286
      %v327 = vpack.c.b16 %v289, %v288
      %v328 = vpack.c.b16 %v291, %v290
      %v329 = vpack.c.b16 %v293, %v292
      %v330 = vpack.c.b16 %v295, %v294
      %v331 = vpack.c.b16 %v297, %v296
      %v332 = vpack.c.b16 %v299, %v298
      %v333 = vpack.c.b16 %v301, %v300
      %v334 = vpack.c.b16 %v303, %v302
      %v335 = vpack.c.b16 %v305, %v304
      %v336 = vpack.c.b16 %v307, %v306
      %v337 = vpack.c.b16 %v309, %v308
      %v338 = vpack.c.b16 %v311, %v310
      %v339 = vpack.c.b16 %v313, %v312
      %v340 = vpack.c.b16 %v315, %v314
      %v341 = vpack.c.b16 %v317, %v316
      %v342 = vpack.c.b16 %v319, %v318
      %v343 = vpack.c.b16 %v321, %v320
      %v344 = vpack.c.b16 %v323, %v322
      %v382 = vunpack.c.l.b16 %v217
      %v383 = vunpack.c.l.b16 %v218
      %v384 = vunpack.c.l.b16 %v219
      %v385 = vunpack.c.l.b16 %v220
      %v386 = vunpack.c.l.b16 %v221
      %v387 = vunpack.c.l.b16 %v222
      %v388 = vunpack.c.l.b16 %v223
      %v389 = vunpack.c.l.b16 %v224
      %v390 = vunpack.c.l.b16 %v225
      %v391 = vunpack.c.l.b16 %v226
      %v392 = vunpack.c.l.b16 %v227
      %v393 = vunpack.c.l.b16 %v228
      %v394 = vunpack.c.l.b16 %v229
      %v395 = vunpack.c.l.b16 %v230
      %v396 = vunpack.c.l.b16 %v231
      %v397 = vunpack.c.l.b16 %v232
      %v398 = vpack.c.b16 %v383, %v382
      %v399 = vpack.c.b16 %v385, %v384
      %v400 = vpack.c.b16 %v387, %v386
      %v401 = vpack.c.b16 %v389, %v388
      %v402 = vpack.c.b16 %v391, %v390
      %v403 = vpack.c.b16 %v393, %v392
      %v404 = vpack.c.b16 %v395, %v394
      %v405 = vpack.c.b16 %v397, %v396
      %414 = vmatprep.subr.bf16.mxu0 0
      %415 = vmatpush1.bf16.msra.mxu0 %v398
      %416 = vmatprep.subr.bf16.mxu0 0
      %417 = vmatpush1.bf16.msra.mxu0 %v399
      %418 = vmatprep.subr.bf16.mxu0 0
      %419 = vmatpush1.bf16.msra.mxu0 %v400
      %420 = vmatprep.subr.bf16.mxu0 0
      %421 = vmatpush1.bf16.msra.mxu0 %v401
      %422 = vmatprep.subr.bf16.mxu0 0
      %423 = vmatpush1.bf16.msra.mxu0 %v402
      %424 = vmatprep.subr.bf16.mxu0 0
      %425 = vmatpush1.bf16.msra.mxu0 %v403
      %426 = vmatprep.subr.bf16.mxu0 0
      %427 = vmatpush1.bf16.msra.mxu0 %v404
      %428 = vmatprep.subr.bf16.mxu0 0
      %429 = vmatpush1.bf16.msra.mxu0 %v405
      %430 = vmatprep.subr.bf16.mxu0 0
      %431 = vmatpush1.bf16.msra.mxu0 0
      %432 = vmatprep.subr.bf16.mxu0 0
      %433 = vmatpush1.bf16.msra.mxu0 0
      %434 = vmatprep.subr.bf16.mxu0 0
      %435 = vmatpush1.bf16.msra.mxu0 0
      %436 = vmatprep.subr.bf16.mxu0 0
      %437 = vmatpush1.bf16.msra.mxu0 0
      %438 = vmatprep.subr.bf16.mxu0 0
      %439 = vmatpush1.bf16.msra.mxu0 0
      %440 = vmatprep.subr.bf16.mxu0 0
      %441 = vmatpush1.bf16.msra.mxu0 0
      %442 = vmatprep.subr.bf16.mxu0 0
      %443 = vmatpush1.bf16.msra.mxu0 0
      %444 = vmatprep.subr.bf16.mxu0 0
      %445 = vmatpush1.bf16.msra.mxu0 0
      %446 = vmatprep.mubr.bf16.mxu0 0
      %447 = vmatmul.mubr.bf16.gmra.mrb[0].mxu0 %v324
      %v448 = vpop.f32.mrb[0].mxu0
      %v449 = vadd.f32 %v238, %v448
      %v450 = vpop.f32.mrb[0].mxu0
      %v451 = vpop.f32.mrb[0].mxu0
      %v452 = vadd.f32 %v238, %v451
      %v453 = vpop.f32.mrb[0].mxu0
      %454 = vmatprep.mubr.bf16.mxu0 0
      %455 = vmatmul.mubr.bf16.gmra.mrb[0].mxu0 %v325
      %v456 = vpop.f32.mrb[0].mxu0
      %v457 = vadd.f32 %v238, %v456
      %v458 = vpop.f32.mrb[0].mxu0
      %v459 = vpop.f32.mrb[0].mxu0
      %v460 = vadd.f32 %v238, %v459
      %v461 = vpop.f32.mrb[0].mxu0
      %462 = vmatprep.mubr.bf16.mxu0 0
      %463 = vmatmul.mubr.bf16.gmra.mrb[0].mxu0 %v326
      %v464 = vpop.f32.mrb[0].mxu0
      %v465 = vadd.f32 %v238, %v464
      %v466 = vpop.f32.mrb[0].mxu0
      %v467 = vpop.f32.mrb[0].mxu0
      %v468 = vadd.f32 %v238, %v467
      %v469 = vpop.f32.mrb[0].mxu0
      %470 = vmatprep.mubr.bf16.mxu0 0
      %471 = vmatmul.mubr.bf16.gmra.mrb[0].mxu0 %v327
      %v472 = vpop.f32.mrb[0].mxu0
      %v473 = vadd.f32 %v238, %v472
      %v474 = vpop.f32.mrb[0].mxu0
      %v475 = vpop.f32.mrb[0].mxu0
      %v476 = vadd.f32 %v238, %v475
      %v477 = vpop.f32.mrb[0].mxu0
      %478 = vmatprep.mubr.bf16.mxu0 0
      %479 = vmatmul.mubr.bf16.gmra.mrb[0].mxu0 %v328
      %v480 = vpop.f32.mrb[0].mxu0
      %v481 = vadd.f32 %v238, %v480
      %v482 = vpop.f32.mrb[0].mxu0
      %v483 = vpop.f32.mrb[0].mxu0
      %v484 = vadd.f32 %v238, %v483
      %v485 = vpop.f32.mrb[0].mxu0
      %486 = vmatprep.mubr.bf16.mxu0 0
      %487 = vmatmul.mubr.bf16.gmra.mrb[0].mxu0 %v329
      %v488 = vpop.f32.mrb[0].mxu0
      %v489 = vadd.f32 %v238, %v488
      %v490 = vpop.f32.mrb[0].mxu0
      %v491 = vpop.f32.mrb[0].mxu0
      %v492 = vadd.f32 %v238, %v491
      %v493 = vpop.f32.mrb[0].mxu0
      %494 = vmatprep.mubr.bf16.mxu0 0
      %495 = vmatmul.mubr.bf16.gmra.mrb[0].mxu0 %v330
      %v496 = vpop.f32.mrb[0].mxu0
      %v497 = vadd.f32 %v238, %v496
      %v498 = vpop.f32.mrb[0].mxu0
      %v499 = vpop.f32.mrb[0].mxu0
      %v500 = vadd.f32 %v238, %v499
      %v501 = vpop.f32.mrb[0].mxu0
      %502 = vmatprep.mubr.bf16.mxu0 0
      %503 = vmatmul.mubr.bf16.gmra.mrb[0].mxu0 %v331
      %v504 = vpop.f32.mrb[0].mxu0
      %v505 = vadd.f32 %v238, %v504
      %v506 = vpop.f32.mrb[0].mxu0
      %v507 = vpop.f32.mrb[0].mxu0
      %v508 = vadd.f32 %v238, %v507
      %v509 = vpop.f32.mrb[0].mxu0
      %510 = vmatprep.mubr.bf16.mxu0 0
      %511 = vmatmul.mubr.bf16.gmra.mrb[0].mxu0 %v332
      %v512 = vpop.f32.mrb[0].mxu0
      %v513 = vadd.f32 %v238, %v512
      %v514 = vpop.f32.mrb[0].mxu0
      %v515 = vpop.f32.mrb[0].mxu0
      %v516 = vadd.f32 %v238, %v515
      %v517 = vpop.f32.mrb[0].mxu0
      %518 = vmatprep.mubr.bf16.mxu0 0
      %519 = vmatmul.mubr.bf16.gmra.mrb[0].mxu0 %v333
      %v520 = vpop.f32.mrb[0].mxu0
      %v521 = vadd.f32 %v238, %v520
      %v522 = vpop.f32.mrb[0].mxu0
      %v523 = vpop.f32.mrb[0].mxu0
      %v524 = vadd.f32 %v238, %v523
      %v525 = vpop.f32.mrb[0].mxu0
      %526 = vmatprep.mubr.bf16.mxu0 0
      %527 = vmatmul.mubr.bf16.gmra.mrb[0].mxu0 %v334
      %v528 = vpop.f32.mrb[0].mxu0
      %v529 = vadd.f32 %v238, %v528
      %v530 = vpop.f32.mrb[0].mxu0
      %v531 = vpop.f32.mrb[0].mxu0
      %v532 = vadd.f32 %v238, %v531
      %v533 = vpop.f32.mrb[0].mxu0
      %534 = vmatprep.mubr.bf16.mxu0 0
      %535 = vmatmul.mubr.bf16.gmra.mrb[0].mxu0 %v335
      %v536 = vpop.f32.mrb[0].mxu0
      %v537 = vadd.f32 %v238, %v536
      %v538 = vpop.f32.mrb[0].mxu0
      %v539 = vpop.f32.mrb[0].mxu0
      %v540 = vadd.f32 %v238, %v539
      %v541 = vpop.f32.mrb[0].mxu0
      %542 = vmatprep.mubr.bf16.mxu0 0
      %543 = vmatmul.mubr.bf16.gmra.mrb[0].mxu0 %v336
      %v544 = vpop.f32.mrb[0].mxu0
      %v545 = vadd.f32 %v238, %v544
      %v546 = vpop.f32.mrb[0].mxu0
      %v547 = vpop.f32.mrb[0].mxu0
      %v548 = vadd.f32 %v238, %v547
      %v549 = vpop.f32.mrb[0].mxu0
      %550 = vmatprep.mubr.bf16.mxu0 0
      %551 = vmatmul.mubr.bf16.gmra.mrb[0].mxu0 %v337
      %v552 = vpop.f32.mrb[0].mxu0
      %v553 = vadd.f32 %v238, %v552
      %v554 = vpop.f32.mrb[0].mxu0
      %v555 = vpop.f32.mrb[0].mxu0
      %v556 = vadd.f32 %v238, %v555
      %v557 = vpop.f32.mrb[0].mxu0
      %558 = vmatprep.mubr.bf16.mxu0 0
      %559 = vmatmul.mubr.bf16.gmra.mrb[0].mxu0 %v338
      %v560 = vpop.f32.mrb[0].mxu0
      %v561 = vadd.f32 %v238, %v560
      %v562 = vpop.f32.mrb[0].mxu0
      %v563 = vpop.f32.mrb[0].mxu0
      %v564 = vadd.f32 %v238, %v563
      %v565 = vpop.f32.mrb[0].mxu0
      %566 = vmatprep.mubr.bf16.mxu0 0
      %567 = vmatmul.mubr.bf16.gmra.mrb[0].mxu0 %v339
      %v568 = vpop.f32.mrb[0].mxu0
      %v569 = vadd.f32 %v238, %v568
      %v570 = vpop.f32.mrb[0].mxu0
      %v571 = vpop.f32.mrb[0].mxu0
      %v572 = vadd.f32 %v238, %v571
      %v573 = vpop.f32.mrb[0].mxu0
      %574 = vmatprep.mubr.bf16.mxu0 0
      %575 = vmatmul.mubr.bf16.gmra.mrb[0].mxu0 %v340
      %v576 = vpop.f32.mrb[0].mxu0
      %v577 = vadd.f32 %v238, %v576
      %v578 = vpop.f32.mrb[0].mxu0
      %v579 = vpop.f32.mrb[0].mxu0
      %v580 = vadd.f32 %v238, %v579
      %v581 = vpop.f32.mrb[0].mxu0
      %582 = vmatprep.mubr.bf16.mxu0 0
      %583 = vmatmul.mubr.bf16.gmra.mrb[0].mxu0 %v341
      %v584 = vpop.f32.mrb[0].mxu0
      %v585 = vadd.f32 %v238, %v584
      %v586 = vpop.f32.mrb[0].mxu0
      %v587 = vpop.f32.mrb[0].mxu0
      %v588 = vadd.f32 %v238, %v587
      %v589 = vpop.f32.mrb[0].mxu0
      %590 = vmatprep.mubr.bf16.mxu0 0
      %591 = vmatmul.mubr.bf16.gmra.mrb[0].mxu0 %v342
      %v592 = vpop.f32.mrb[0].mxu0
      %v593 = vadd.f32 %v238, %v592
      %v594 = vpop.f32.mrb[0].mxu0
      %v595 = vpop.f32.mrb[0].mxu0
      %v596 = vadd.f32 %v238, %v595
      %v597 = vpop.f32.mrb[0].mxu0
      %598 = vmatprep.mubr.bf16.mxu0 0
      %599 = vmatmul.mubr.bf16.gmra.mrb[0].mxu0 %v343
      %v600 = vpop.f32.mrb[0].mxu0
      %v601 = vadd.f32 %v238, %v600
      %v602 = vpop.f32.mrb[0].mxu0
      %v603 = vpop.f32.mrb[0].mxu0
      %v604 = vadd.f32 %v238, %v603
      %v605 = vpop.f32.mrb[0].mxu0
      %606 = vmatprep.mubr.bf16.mxu0 0
      %607 = vmatmul.mubr.bf16.gmra.mrb[0].mxu0 %v344
      %v608 = vpop.f32.mrb[0].mxu0
      %v609 = vadd.f32 %v238, %v608
      %v610 = vpop.f32.mrb[0].mxu0
      %v611 = vpop.f32.mrb[0].mxu0
      %v612 = vadd.f32 %v238, %v611
      %v613 = vpop.f32.mrb[0].mxu0
      %614 = vdwg.mxu0
      %vm615 = vcmp.ge.f32.partialorder %v449, 0.0
      %vm616 = vcmp.ge.f32.partialorder %v452, 0.0
      %vm617 = vcmp.ge.f32.partialorder %v457, 0.0
      %vm618 = vcmp.ge.f32.partialorder %v460, 0.0
      %vm619 = vcmp.ge.f32.partialorder %v465, 0.0
      %vm620 = vcmp.ge.f32.partialorder %v468, 0.0
      %vm621 = vcmp.ge.f32.partialorder %v473, 0.0
      %vm622 = vcmp.ge.f32.partialorder %v476, 0.0
      %vm623 = vcmp.ge.f32.partialorder %v481, 0.0
      %vm624 = vcmp.ge.f32.partialorder %v484, 0.0
      %vm625 = vcmp.ge.f32.partialorder %v489, 0.0
      %vm626 = vcmp.ge.f32.partialorder %v492, 0.0
      %vm627 = vcmp.ge.f32.partialorder %v497, 0.0
      %vm628 = vcmp.ge.f32.partialorder %v500, 0.0
      %vm629 = vcmp.ge.f32.partialorder %v505, 0.0
      %vm630 = vcmp.ge.f32.partialorder %v508, 0.0
      %vm631 = vcmp.ge.f32.partialorder %v513, 0.0
      %vm632 = vcmp.ge.f32.partialorder %v516, 0.0
      %vm633 = vcmp.ge.f32.partialorder %v521, 0.0
      %vm634 = vcmp.ge.f32.partialorder %v524, 0.0
      %vm635 = vcmp.ge.f32.partialorder %v529, 0.0
      %vm636 = vcmp.ge.f32.partialorder %v532, 0.0
      %vm637 = vcmp.ge.f32.partialorder %v537, 0.0
      %vm638 = vcmp.ge.f32.partialorder %v540, 0.0
      %vm639 = vcmp.ge.f32.partialorder %v545, 0.0
      %vm640 = vcmp.ge.f32.partialorder %v548, 0.0
      %vm641 = vcmp.ge.f32.partialorder %v553, 0.0
      %vm642 = vcmp.ge.f32.partialorder %v556, 0.0
      %vm643 = vcmp.ge.f32.partialorder %v561, 0.0
      %vm644 = vcmp.ge.f32.partialorder %v564, 0.0
      %vm645 = vcmp.ge.f32.partialorder %v569, 0.0
      %vm646 = vcmp.ge.f32.partialorder %v572, 0.0
      %vm647 = vcmp.ge.f32.partialorder %v577, 0.0
      %vm648 = vcmp.ge.f32.partialorder %v580, 0.0
      %vm649 = vcmp.ge.f32.partialorder %v585, 0.0
      %vm650 = vcmp.ge.f32.partialorder %v588, 0.0
      %vm651 = vcmp.ge.f32.partialorder %v593, 0.0
      %vm652 = vcmp.ge.f32.partialorder %v596, 0.0
      %vm653 = vcmp.ge.f32.partialorder %v601, 0.0
      %vm654 = vcmp.ge.f32.partialorder %v604, 0.0
      %vm655 = vcmp.ge.f32.partialorder %v609, 0.0
      %vm656 = vcmp.ge.f32.partialorder %v612, 0.0
      %v657 = vmul.f32 %v449, 0.1
      %v658 = vmul.f32 %v452, 0.1
      %v659 = vmul.f32 %v457, 0.1
      %v660 = vmul.f32 %v460, 0.1
      %v661 = vmul.f32 %v465, 0.1
      %v662 = vmul.f32 %v468, 0.1
      %v663 = vmul.f32 %v473, 0.1
      %v664 = vmul.f32 %v476, 0.1
      %v665 = vmul.f32 %v481, 0.1
      %v666 = vmul.f32 %v484, 0.1
      %v667 = vmul.f32 %v489, 0.1
      %v668 = vmul.f32 %v492, 0.1
      %v669 = vmul.f32 %v497, 0.1
      %v670 = vmul.f32 %v500, 0.1
      %v671 = vmul.f32 %v505, 0.1
      %v672 = vmul.f32 %v508, 0.1
      %v673 = vmul.f32 %v513, 0.1
      %v674 = vmul.f32 %v516, 0.1
      %v675 = vmul.f32 %v521, 0.1
      %v676 = vmul.f32 %v524, 0.1
      %v677 = vmul.f32 %v529, 0.1
      %v678 = vmul.f32 %v532, 0.1
      %v679 = vmul.f32 %v537, 0.1
      %v680 = vmul.f32 %v540, 0.1
      %v681 = vmul.f32 %v545, 0.1
      %v682 = vmul.f32 %v548, 0.1
      %v683 = vmul.f32 %v553, 0.1
      %v684 = vmul.f32 %v556, 0.1
      %v685 = vmul.f32 %v561, 0.1
      %v686 = vmul.f32 %v564, 0.1
      %v687 = vmul.f32 %v569, 0.1
      %v688 = vmul.f32 %v572, 0.1
      %v689 = vmul.f32 %v577, 0.1
      %v690 = vmul.f32 %v580, 0.1
      %v691 = vmul.f32 %v585, 0.1
      %v692 = vmul.f32 %v588, 0.1
      %v693 = vmul.f32 %v593, 0.1
      %v694 = vmul.f32 %v596, 0.1
      %v695 = vmul.f32 %v601, 0.1
      %v696 = vmul.f32 %v604, 0.1
      %v697 = vmul.f32 %v609, 0.1
      %v698 = vmul.f32 %v612, 0.1
      %v699 = vsel %vm615, %v449, %v657
      %v700 = vsel %vm616, %v452, %v658
      %v701 = vsel %vm617, %v457, %v659
      %v702 = vsel %vm618, %v460, %v660
      %v703 = vsel %vm619, %v465, %v661
      %v704 = vsel %vm620, %v468, %v662
      %v705 = vsel %vm621, %v473, %v663
      %v706 = vsel %vm622, %v476, %v664
      %v707 = vsel %vm623, %v481, %v665
      %v708 = vsel %vm624, %v484, %v666
      %v709 = vsel %vm625, %v489, %v667
      %v710 = vsel %vm626, %v492, %v668
      %v711 = vsel %vm627, %v497, %v669
      %v712 = vsel %vm628, %v500, %v670
      %v713 = vsel %vm629, %v505, %v671
      %v714 = vsel %vm630, %v508, %v672
      %v715 = vsel %vm631, %v513, %v673
      %v716 = vsel %vm632, %v516, %v674
      %v717 = vsel %vm633, %v521, %v675
      %v718 = vsel %vm634, %v524, %v676
      %v719 = vsel %vm635, %v529, %v677
      %v720 = vsel %vm636, %v532, %v678
      %v721 = vsel %vm637, %v537, %v679
      %v722 = vsel %vm638, %v540, %v680
      %v723 = vsel %vm639, %v545, %v681
      %v724 = vsel %vm640, %v548, %v682
      %v725 = vsel %vm641, %v553, %v683
      %v726 = vsel %vm642, %v556, %v684
      %v727 = vsel %vm643, %v561, %v685
      %v728 = vsel %vm644, %v564, %v686
      %v729 = vsel %vm645, %v569, %v687
      %v730 = vsel %vm646, %v572, %v688
      %v731 = vsel %vm647, %v577, %v689
      %v732 = vsel %vm648, %v580, %v690
      %v733 = vsel %vm649, %v585, %v691
      %v734 = vsel %vm650, %v588, %v692
      %v735 = vsel %vm651, %v593, %v693
      %v736 = vsel %vm652, %v596, %v694
      %v737 = vsel %vm653, %v601, %v695
      %v738 = vsel %vm654, %v604, %v696
      %v739 = vsel %vm655, %v609, %v697
      %v740 = vsel %vm656, %v612, %v698
      %v741 = vpack.c.bf16 %v700, %v699
      %v742 = vpack.c.bf16 %v702, %v701
      %v743 = vpack.c.bf16 %v704, %v703
      %v744 = vpack.c.bf16 %v706, %v705
      %v745 = vpack.c.bf16 %v708, %v707
      %v746 = vpack.c.bf16 %v710, %v709
      %v747 = vpack.c.bf16 %v712, %v711
      %v748 = vpack.c.bf16 %v714, %v713
      %v749 = vpack.c.bf16 %v716, %v715
      %v750 = vpack.c.bf16 %v718, %v717
      %v751 = vpack.c.bf16 %v720, %v719
      %v752 = vpack.c.bf16 %v722, %v721
      %v753 = vpack.c.bf16 %v724, %v723
      %v754 = vpack.c.bf16 %v726, %v725
      %v755 = vpack.c.bf16 %v728, %v727
      %v756 = vpack.c.bf16 %v730, %v729
      %v757 = vpack.c.bf16 %v732, %v731
      %v758 = vpack.c.bf16 %v734, %v733
      %v759 = vpack.c.bf16 %v736, %v735
      %v760 = vpack.c.bf16 %v738, %v737
      %v761 = vpack.c.bf16 %v740, %v739
      %v783 = vunpack.c.l.b16 %v741
      %v784 = vunpack.c.h.b16 %v741
      %v785 = vunpack.c.l.b16 %v742
      %v786 = vunpack.c.h.b16 %v742
      %v787 = vunpack.c.l.b16 %v743
      %v788 = vunpack.c.h.b16 %v743
      %v789 = vunpack.c.l.b16 %v744
      %v790 = vunpack.c.h.b16 %v744
      %v791 = vunpack.c.l.b16 %v745
      %v792 = vunpack.c.h.b16 %v745
      %v793 = vunpack.c.l.b16 %v746
      %v794 = vunpack.c.h.b16 %v746
      %v795 = vunpack.c.l.b16 %v747
      %v796 = vunpack.c.h.b16 %v747
      %v797 = vunpack.c.l.b16 %v748
      %v798 = vunpack.c.h.b16 %v748
      %v799 = vunpack.c.l.b16 %v749
      %v800 = vunpack.c.h.b16 %v749
      %v801 = vunpack.c.l.b16 %v750
      %v802 = vunpack.c.h.b16 %v750
      %v803 = vunpack.c.l.b16 %v751
      %v804 = vunpack.c.h.b16 %v751
      %v805 = vunpack.c.l.b16 %v752
      %v806 = vunpack.c.h.b16 %v752
      %v807 = vunpack.c.l.b16 %v753
      %v808 = vunpack.c.h.b16 %v753
      %v809 = vunpack.c.l.b16 %v754
      %v810 = vunpack.c.h.b16 %v754
      %v811 = vunpack.c.l.b16 %v755
      %v812 = vunpack.c.h.b16 %v755
      %v813 = vunpack.c.l.b16 %v756
      %v814 = vunpack.c.h.b16 %v756
      %v815 = vunpack.c.l.b16 %v757
      %v816 = vunpack.c.h.b16 %v757
      %v817 = vunpack.c.l.b16 %v758
      %v818 = vunpack.c.h.b16 %v758
      %v819 = vunpack.c.l.b16 %v759
      %v820 = vunpack.c.h.b16 %v759
      %v821 = vunpack.c.l.b16 %v760
      %v822 = vunpack.c.h.b16 %v760
      %v823 = vunpack.c.l.b16 %v761
      %v824 = vunpack.c.h.b16 %v761
      %v825 = vpack.c.b16 %v783, %v783
      %v826 = vpack.c.b16 %v784, %v784
      %v827 = vpack.c.b16 %v785, %v785
      %v828 = vpack.c.b16 %v786, %v786
      %v829 = vpack.c.b16 %v787, %v787
      %v830 = vpack.c.b16 %v788, %v788
      %v831 = vpack.c.b16 %v789, %v789
      %v832 = vpack.c.b16 %v790, %v790
      %v833 = vpack.c.b16 %v791, %v791
      %v834 = vpack.c.b16 %v792, %v792
      %v835 = vpack.c.b16 %v793, %v793
      %v836 = vpack.c.b16 %v794, %v794
      %v837 = vpack.c.b16 %v795, %v795
      %v838 = vpack.c.b16 %v796, %v796
      %v839 = vpack.c.b16 %v797, %v797
      %v840 = vpack.c.b16 %v798, %v798
      %v841 = vpack.c.b16 %v799, %v799
      %v842 = vpack.c.b16 %v800, %v800
      %v843 = vpack.c.b16 %v801, %v801
      %v844 = vpack.c.b16 %v802, %v802
      %v845 = vpack.c.b16 %v803, %v803
      %v846 = vpack.c.b16 %v804, %v804
      %v847 = vpack.c.b16 %v805, %v805
      %v848 = vpack.c.b16 %v806, %v806
      %v849 = vpack.c.b16 %v807, %v807
      %v850 = vpack.c.b16 %v808, %v808
      %v851 = vpack.c.b16 %v809, %v809
      %v852 = vpack.c.b16 %v810, %v810
      %v853 = vpack.c.b16 %v811, %v811
      %v854 = vpack.c.b16 %v812, %v812
      %v855 = vpack.c.b16 %v813, %v813
      %v856 = vpack.c.b16 %v814, %v814
      %v857 = vpack.c.b16 %v815, %v815
      %v858 = vpack.c.b16 %v816, %v816
      %v859 = vpack.c.b16 %v817, %v817
      %v860 = vpack.c.b16 %v818, %v818
      %v861 = vpack.c.b16 %v819, %v819
      %v862 = vpack.c.b16 %v820, %v820
      %v863 = vpack.c.b16 %v821, %v821
      %v864 = vpack.c.b16 %v822, %v822
      %v865 = vpack.c.b16 %v823, %v823
      %v866 = vpack.c.b16 %v824, %v824
      %909 = vst [vmem:[%s172] sm:$0xf] %v825
      %910 = vst [vmem:[%s172 + $0x4] sm:$0xf] %v826
      %911 = vst [vmem:[%s172 + $0x8] sm:$0xf] %v827
      %912 = vst [vmem:[%s172 + $0xc] sm:$0xf] %v828
      %913 = vst [vmem:[%s172 + $0x10] sm:$0xf] %v829
      %914 = vst [vmem:[%s172 + $0x14] sm:$0xf] %v830
      %915 = vst [vmem:[%s172 + $0x18] sm:$0xf] %v831
      %916 = vst [vmem:[%s172 + $0x1c] sm:$0xf] %v832
      %917 = vst [vmem:[%s172 + $0x20] sm:$0xf] %v833
      %918 = vst [vmem:[%s172 + $0x24] sm:$0xf] %v834
      %919 = vst [vmem:[%s172 + $0x28] sm:$0xf] %v835
      %920 = vst [vmem:[%s172 + $0x2c] sm:$0xf] %v836
      %921 = vst [vmem:[%s172 + $0x30] sm:$0xf] %v837
      %922 = vst [vmem:[%s172 + $0x34] sm:$0xf] %v838
      %923 = vst [vmem:[%s172 + $0x38] sm:$0xf] %v839
      %924 = vst [vmem:[%s172 + $0x3c] sm:$0xf] %v840
      %925 = vst [vmem:[%s172 + $0x40] sm:$0xf] %v841
      %926 = vst [vmem:[%s172 + $0x44] sm:$0xf] %v842
      %927 = vst [vmem:[%s172 + $0x48] sm:$0xf] %v843
      %928 = vst [vmem:[%s172 + $0x4c] sm:$0xf] %v844
      %929 = vst [vmem:[%s172 + $0x50] sm:$0xf] %v845
      %930 = vst [vmem:[%s172 + $0x54] sm:$0xf] %v846
      %931 = vst [vmem:[%s172 + $0x58] sm:$0xf] %v847
      %932 = vst [vmem:[%s172 + $0x5c] sm:$0xf] %v848
      %933 = vst [vmem:[%s172 + $0x60] sm:$0xf] %v849
      %934 = vst [vmem:[%s172 + $0x64] sm:$0xf] %v850
      %935 = vst [vmem:[%s172 + $0x68] sm:$0xf] %v851
      %936 = vst [vmem:[%s172 + $0x6c] sm:$0xf] %v852
      %937 = vst [vmem:[%s172 + $0x70] sm:$0xf] %v853
      %938 = vst [vmem:[%s172 + $0x74] sm:$0xf] %v854
      %939 = vst [vmem:[%s172 + $0x78] sm:$0xf] %v855
      %940 = vst [vmem:[%s172 + $0x7c] sm:$0xf] %v856
      %941 = vst [vmem:[%s172 + $0x80] sm:$0xf] %v857
      %942 = vst [vmem:[%s172 + $0x84] sm:$0xf] %v858
      %943 = vst [vmem:[%s172 + $0x88] sm:$0xf] %v859
      %944 = vst [vmem:[%s172 + $0x8c] sm:$0xf] %v860
      %945 = vst [vmem:[%s172 + $0x90] sm:$0xf] %v861
      %946 = vst [vmem:[%s172 + $0x94] sm:$0xf] %v862
      %947 = vst [vmem:[%s172 + $0x98] sm:$0xf] %v863
      %948 = vst [vmem:[%s172 + $0x9c] sm:$0xf] %v864
      %949 = vst [vmem:[%s172 + $0xa0] sm:$0xf] %v865
      %950 = vst [vmem:[%s172 + $0xa4] sm:$0xf] %v866
      %s951 = smul.u32 42, %s14
      %p952 = scmp.lt.s32.totalorder %s951, 83
      %s953 = scalar_select %p952, %s951, 83
      %s954 = smul.addr %s953, 4
      %s955 = scalar_lea.vmem %s3, %s954
      // Predicated region
      $region33: #{_lambda_.29} parent=31 // pred_check
        %p956 = pneg %p100
      $region34: #{_lambda_.29} parent=31 // pred_check_branch
        %958 = sbr.rel (%p956) target = $region36
      $region35: #{_lambda_.29} parent=31 // pred_region
        %s959 = smul.u32 42, %s14
      $region36: #{_lambda_.29} parent=31 // pred_fallthru
        _
    $region32: #{_lambda_.29} parent=5 // pred_fallthru
      _
    %p960 = scmp.le.s32.totalorder 2, %s9
    // Predicated region
    $region37: #{_lambda_.29} parent=5 // pred_check
      %p961 = pneg %p960
    $region38: #{_lambda_.29} parent=5 // pred_check_branch
      %963 = sbr.rel (%p961) target = $region40
    $region39: #{_lambda_.29} parent=5 // pred_region
      %s964 = ssub.s32 %s9, 2
      // Predicated region
      $region41: #{_lambda_.29} parent=39 // pred_check
        %p965 = pneg %p106
      $region42: #{_lambda_.29} parent=39 // pred_check_branch
        %967 = sbr.rel (%p965) target = $region44
      $region43: #{_lambda_.29} parent=39 // pred_region
        %s968 = smul.u32 42, %s15
        %p969 = scmp.lt.s32.totalorder %s968, 83
        %s970 = scalar_select %p969, %s968, 83
        %s971 = smul.addr %s970, 4
        %s972 = scalar_lea.vmem %s3, %s971
      $region44: #{_lambda_.29} parent=39 // pred_fallthru
        _
    $region40: #{_lambda_.29} parent=5 // pred_fallthru
      _
  $region6: #{_lambda_.29} parent=0 // loop_footer
    %s13 = sadd.s32 1, %s9
  $region7: #{_lambda_.29} parent=0 // loop_footer_branch
    %8 = sbr.rel target = $region3
  $region8: #{_lambda_.29} parent=0 // loop_exit
    _

// kernel: _lambda_.36
$region0: #{_lambda_.36}
  #allocation0 [shape = 'u32[]', space=smem, size = 0x4, offset = 0x4, fixed_abs, tag = 'smem constant byte address 0x4 - core index']
  #allocation1 [shape = 'u32[144,128]{1,0:T(1,128)}', space=vmem, size = 0x12000, scoped, tag = 'internal scratch']
  %s0 = inlined_call_operand.vmem [shape: bf16[640,128], index: 0, kind: input, shape index: {}]
  %s1 = inlined_call_operand.vmem [shape: bf16[128,128], index: 1, kind: input, shape index: {}]
  %s2 = inlined_call_operand.vmem [shape: f32[1,128], index: 2, kind: input, shape index: {}]
  %s3 = inlined_call_operand.vmem [shape: bf16[640,128], index: 3, kind: output, shape index: {}]
  %s4 = sld [smem:[#allocation0]]
  $region45: #{_lambda_.36} parent=0
    _
  %s6 = ssub.s32 1, %s4
  %s7 = scalar_select 0, %s6, %s4
  loop: start=0, step=1, limit=4
  $region2: #{_lambda_.36} parent=0 // loop_pre_header
    _
  $region3: #{_lambda_.36} parent=0 // loop_header
    %s9 = sphi 0, %s13
    %p10 = scmp.ge.s32.totalorder %s9, 4
    %s19 = sphi 0, %s21
    %s22 = sphi 0, %s19
    %s23 = sphi 0, %s22
    %s39 = sphi 0, %s23
    %s43 = sphi 0, %s43
    %s45 = sphi 0, %s43
    %s46 = sphi 0, %s45
    %s60 = sphi 0, %s46
    %s64 = sphi 0, %s64
    %s66 = sphi 0, %s64
    %s67 = sphi 0, %s66
    %s81 = sphi 0, %s67
    %s87 = sphi 0, %s89
    %s90 = sphi 0, %s87
    %s91 = sphi 0, %s90
    %s107 = sphi 0, %s91
  $region4: #{_lambda_.36} parent=0 // loop_header_branch
    %12 = sbr.rel (%p10) target = $region8
  $region5: #{_lambda_.36} parent=0 // loop_body
    %s14 = ssub.s32 %s9, 1
    %s15 = ssub.s32 %s9, 2
    %s16 = sadd.s32 %s9, 1
    %s17 = ssub.s32 %s9, %s16
    %p18 = scmp.eq.s32.totalorder %s17, 0
    %s20 = sadd.s32 %s19, 1
    %s21 = scalar_select %p18, %s19, %s20
    %p24 = pneg %p18
    %p25 = scmp.eq.s32.totalorder %s9, 1
    %p26 = por %p24, %p25
    %p27 = scmp.ne.s32.totalorder %s19, %s22
    %p28 = scmp.eq.s32.totalorder %s9, 0
    %p29 = por %p27, %p28
    %p30 = scmp.ne.s32.totalorder %s19, %s22
    %p31 = scmp.eq.s32.totalorder %s14, 1
    %p32 = por %p30, %p31
    %p33 = scmp.ne.s32.totalorder %s22, %s23
    %p34 = scmp.eq.s32.totalorder %s14, 0
    %p35 = por %p33, %p34
    %p36 = scmp.ne.s32.totalorder %s22, %s23
    %p37 = scmp.eq.s32.totalorder %s15, 1
    %p38 = por %p36, %p37
    %p40 = scmp.ne.s32.totalorder %s23, %s39
    %p41 = scmp.eq.s32.totalorder %s15, 0
    %p42 = por %p40, %p41
    %s44 = sadd.s32 %s43, 1
    %p47 = scmp.eq.s32.totalorder %s9, 1
    %p48 = scmp.ne.s32.totalorder %s43, %s45
    %p49 = scmp.eq.s32.totalorder %s9, 0
    %p50 = por %p48, %p49
    %p51 = scmp.ne.s32.totalorder %s43, %s45
    %p52 = scmp.eq.s32.totalorder %s14, 1
    %p53 = por %p51, %p52
    %p54 = scmp.ne.s32.totalorder %s45, %s46
    %p55 = scmp.eq.s32.totalorder %s14, 0
    %p56 = por %p54, %p55
    %p57 = scmp.ne.s32.totalorder %s45, %s46
    %p58 = scmp.eq.s32.totalorder %s15, 1
    %p59 = por %p57, %p58
    %p61 = scmp.ne.s32.totalorder %s46, %s60
    %p62 = scmp.eq.s32.totalorder %s15, 0
    %p63 = por %p61, %p62
    %s65 = sadd.s32 %s64, 1
    %p68 = scmp.eq.s32.totalorder %s9, 1
    %p69 = scmp.ne.s32.totalorder %s64, %s66
    %p70 = scmp.eq.s32.totalorder %s9, 0
    %p71 = por %p69, %p70
    %p72 = scmp.ne.s32.totalorder %s64, %s66
    %p73 = scmp.eq.s32.totalorder %s14, 1
    %p74 = por %p72, %p73
    %p75 = scmp.ne.s32.totalorder %s66, %s67
    %p76 = scmp.eq.s32.totalorder %s14, 0
    %p77 = por %p75, %p76
    %p78 = scmp.ne.s32.totalorder %s66, %s67
    %p79 = scmp.eq.s32.totalorder %s15, 1
    %p80 = por %p78, %p79
    %p82 = scmp.ne.s32.totalorder %s67, %s81
    %p83 = scmp.eq.s32.totalorder %s15, 0
    %p84 = por %p82, %p83
    %s85 = ssub.s32 %s9, %s16
    %p86 = scmp.eq.s32.totalorder %s85, 0
    %s88 = sadd.s32 %s87, 1
    %s89 = scalar_select %p86, %s87, %s88
    %p92 = pneg %p86
    %p93 = scmp.eq.s32.totalorder %s9, 1
    %p94 = por %p92, %p93
    %p95 = scmp.ne.s32.totalorder %s87, %s90
    %p96 = scmp.eq.s32.totalorder %s9, 0
    %p97 = por %p95, %p96
    %p98 = scmp.ne.s32.totalorder %s87, %s90
    %p99 = scmp.eq.s32.totalorder %s14, 1
    %p100 = por %p98, %p99
    %p101 = scmp.ne.s32.totalorder %s90, %s91
    %p102 = scmp.eq.s32.totalorder %s14, 0
    %p103 = por %p101, %p102
    %p104 = scmp.ne.s32.totalorder %s90, %s91
    %p105 = scmp.eq.s32.totalorder %s15, 1
    %p106 = por %p104, %p105
    %p108 = scmp.ne.s32.totalorder %s91, %s107
    %p109 = scmp.eq.s32.totalorder %s15, 0
    %p110 = por %p108, %p109
    %p111 = scmp.le.s32.totalorder 1, %s9
    %p112 = scmp.lt.s32.totalorder %s9, 3
    %p113 = pnand %p111, %p112
    %p114 = pneg %p113
    // Predicated region
    $region9: #{_lambda_.36} parent=5 // pred_check
      _
    $region10: #{_lambda_.36} parent=5 // pred_check_branch
      %116 = sbr.rel (%p113) target = $region12
    $region11: #{_lambda_.36} parent=5 // pred_region
      %s117 = ssub.s32 %s9, 1
      // Predicated region
      $region13: #{_lambda_.36} parent=11 // pred_check
        %p118 = pneg %p56
      $region14: #{_lambda_.36} parent=11 // pred_check_branch
        %120 = sbr.rel (%p118) target = $region16
      $region15: #{_lambda_.36} parent=11 // pred_region
        _
      $region16: #{_lambda_.36} parent=11 // pred_fallthru
        _
      // Predicated region
      $region17: #{_lambda_.36} parent=11 // pred_check
        %p121 = pneg %p77
      $region18: #{_lambda_.36} parent=11 // pred_check_branch
        %123 = sbr.rel (%p121) target = $region20
      $region19: #{_lambda_.36} parent=11 // pred_region
        _
      $region20: #{_lambda_.36} parent=11 // pred_fallthru
        _
    $region12: #{_lambda_.36} parent=5 // pred_fallthru
      _
    %p124 = scmp.lt.s32.totalorder %s9, 2
    // Predicated region
    $region21: #{_lambda_.36} parent=5 // pred_check
      %p125 = pneg %p124
    $region22: #{_lambda_.36} parent=5 // pred_check_branch
      %127 = sbr.rel (%p125) target = $region24
    $region23: #{_lambda_.36} parent=5 // pred_region
      // Predicated region
      $region25: #{_lambda_.36} parent=23 // pred_check
        %p128 = pneg %p29
      $region26: #{_lambda_.36} parent=23 // pred_check_branch
        %130 = sbr.rel (%p128) target = $region28
      $region27: #{_lambda_.36} parent=23 // pred_region
        %s131 = smul.u32 40, %s9
        %p132 = scmp.lt.s32.totalorder %s131, 79
        %s133 = scalar_select %p132, %s131, 79
        %s134 = smul.addr %s133, 4
        %s135 = scalar_lea.vmem %s0, %s134
        %s136 = smul.u32 40, %s9
      $region28: #{_lambda_.36} parent=23 // pred_fallthru
        _
    $region24: #{_lambda_.36} parent=5 // pred_fallthru
      _
    %p137 = scmp.le.s32.totalorder 1, %s9
    %p138 = scmp.lt.s32.totalorder %s9, 3
    %p139 = pnand %p137, %p138
    %p140 = pneg %p139
    // Predicated region
    $region29: #{_lambda_.36} parent=5 // pred_check
      _
    $region30: #{_lambda_.36} parent=5 // pred_check_branch
      %142 = sbr.rel (%p139) target = $region32
    $region31: #{_lambda_.36} parent=5 // pred_region
      %s143 = ssub.s32 %s9, 1
      %s144 = smul.u32 40, %s14
      %p145 = scmp.lt.s32.totalorder %s144, 79
      %s146 = scalar_select %p145, %s144, 79
      %s147 = smul.addr %s146, 4
      %s148 = scalar_lea.vmem %s0, %s147
      %p149 = pneg %p35
      %p150 = pneg %p32
      %p151 = pneg %p56
      %p152 = pneg %p53
      %p153 = pneg %p77
      %p154 = pneg %p74
      %p155 = pneg %p103
      %p156 = pneg %p100
      %s157 = smul.u32 40, %s14
      %p158 = scmp.lt.s32.totalorder %s157, 79
      %s159 = scalar_select %p158, %s157, 79
      %s160 = smul.addr %s159, 4
      %s161 = scalar_lea.vmem %s3, %s160
      %s162 = smul.u32 40, %s14
      %p163 = scmp.lt.s32.totalorder %s162, 79
      %s164 = scalar_select %p163, %s162, 79
      %s165 = smul.addr %s164, 4
      %s166 = scalar_lea.vmem %s0, %s165
      %s167 = smul.u32 40, %s14
      %s168 = smul.u32 40, %s14
      %p169 = scmp.lt.s32.totalorder %s168, 79
      %s170 = scalar_select %p169, %s168, 79
      %s171 = smul.addr %s170, 4
      %s172 = scalar_lea.vmem %s3, %s171
      %s173 = smul.u32 40, %s14
      %v175 = vld [vmem:[%s166] sm:$0xf]
      %v176 = vld [vmem:[%s166 + $0x4] sm:$0xf]
      %v177 = vld [vmem:[%s166 + $0x8] sm:$0xf]
      %v178 = vld [vmem:[%s166 + $0xc] sm:$0xf]
      %v179 = vld [vmem:[%s166 + $0x10] sm:$0xf]
      %v180 = vld [vmem:[%s166 + $0x14] sm:$0xf]
      %v181 = vld [vmem:[%s166 + $0x18] sm:$0xf]
      %v182 = vld [vmem:[%s166 + $0x1c] sm:$0xf]
      %v183 = vld [vmem:[%s166 + $0x20] sm:$0xf]
      %v184 = vld [vmem:[%s166 + $0x24] sm:$0xf]
      %v185 = vld [vmem:[%s166 + $0x28] sm:$0xf]
      %v186 = vld [vmem:[%s166 + $0x2c] sm:$0xf]
      %v187 = vld [vmem:[%s166 + $0x30] sm:$0xf]
      %v188 = vld [vmem:[%s166 + $0x34] sm:$0xf]
      %v189 = vld [vmem:[%s166 + $0x38] sm:$0xf]
      %v190 = vld [vmem:[%s166 + $0x3c] sm:$0xf]
      %v191 = vld [vmem:[%s166 + $0x40] sm:$0xf]
      %v192 = vld [vmem:[%s166 + $0x44] sm:$0xf]
      %v193 = vld [vmem:[%s166 + $0x48] sm:$0xf]
      %v194 = vld [vmem:[%s166 + $0x4c] sm:$0xf]
      %v195 = vld [vmem:[%s166 + $0x50] sm:$0xf]
      %v196 = vld [vmem:[%s166 + $0x54] sm:$0xf]
      %v197 = vld [vmem:[%s166 + $0x58] sm:$0xf]
      %v198 = vld [vmem:[%s166 + $0x5c] sm:$0xf]
      %v199 = vld [vmem:[%s166 + $0x60] sm:$0xf]
      %v200 = vld [vmem:[%s166 + $0x64] sm:$0xf]
      %v201 = vld [vmem:[%s166 + $0x68] sm:$0xf]
      %v202 = vld [vmem:[%s166 + $0x6c] sm:$0xf]
      %v203 = vld [vmem:[%s166 + $0x70] sm:$0xf]
      %v204 = vld [vmem:[%s166 + $0x74] sm:$0xf]
      %v205 = vld [vmem:[%s166 + $0x78] sm:$0xf]
      %v206 = vld [vmem:[%s166 + $0x7c] sm:$0xf]
      %v207 = vld [vmem:[%s166 + $0x80] sm:$0xf]
      %v208 = vld [vmem:[%s166 + $0x84] sm:$0xf]
      %v209 = vld [vmem:[%s166 + $0x88] sm:$0xf]
      %v210 = vld [vmem:[%s166 + $0x8c] sm:$0xf]
      %v211 = vld [vmem:[%s166 + $0x90] sm:$0xf]
      %v212 = vld [vmem:[%s166 + $0x94] sm:$0xf]
      %v213 = vld [vmem:[%s166 + $0x98] sm:$0xf]
      %v214 = vld [vmem:[%s166 + $0x9c] sm:$0xf]
      %v215 = vld [vmem:[%s1] sm:$0xf]
      %v216 = vld [vmem:[%s1 + $0x4] sm:$0xf]
      %v217 = vld [vmem:[%s1 + $0x8] sm:$0xf]
      %v218 = vld [vmem:[%s1 + $0xc] sm:$0xf]
      %v219 = vld [vmem:[%s1 + $0x10] sm:$0xf]
      %v220 = vld [vmem:[%s1 + $0x14] sm:$0xf]
      %v221 = vld [vmem:[%s1 + $0x18] sm:$0xf]
      %v222 = vld [vmem:[%s1 + $0x1c] sm:$0xf]
      %v223 = vld [vmem:[%s1 + $0x20] sm:$0xf]
      %v224 = vld [vmem:[%s1 + $0x24] sm:$0xf]
      %v225 = vld [vmem:[%s1 + $0x28] sm:$0xf]
      %v226 = vld [vmem:[%s1 + $0x2c] sm:$0xf]
      %v227 = vld [vmem:[%s1 + $0x30] sm:$0xf]
      %v228 = vld [vmem:[%s1 + $0x34] sm:$0xf]
      %v229 = vld [vmem:[%s1 + $0x38] sm:$0xf]
      %v230 = vld [vmem:[%s1 + $0x3c] sm:$0xf]
      %v231 = vld [vmem:[%s2] sm:$0x1]
      %v233 = vlaneseq
      %v234 = vshrl.u32 %v233, 7
      %v235 = vsub.s32 0, %v234
      %v236 = vrot.slane %v231, %v235
      %v278 = vunpack.c.l.b16 %v175
      %v279 = vunpack.c.l.b16 %v176
      %v280 = vunpack.c.l.b16 %v177
      %v281 = vunpack.c.l.b16 %v178
      %v282 = vunpack.c.l.b16 %v179
      %v283 = vunpack.c.l.b16 %v180
      %v284 = vunpack.c.l.b16 %v181
      %v285 = vunpack.c.l.b16 %v182
      %v286 = vunpack.c.l.b16 %v183
      %v287 = vunpack.c.l.b16 %v184
      %v288 = vunpack.c.l.b16 %v185
      %v289 = vunpack.c.l.b16 %v186
      %v290 = vunpack.c.l.b16 %v187
      %v291 = vunpack.c.l.b16 %v188
      %v292 = vunpack.c.l.b16 %v189
      %v293 = vunpack.c.l.b16 %v190
      %v294 = vunpack.c.l.b16 %v191
      %v295 = vunpack.c.l.b16 %v192
      %v296 = vunpack.c.l.b16 %v193
      %v297 = vunpack.c.l.b16 %v194
      %v298 = vunpack.c.l.b16 %v195
      %v299 = vunpack.c.l.b16 %v196
      %v300 = vunpack.c.l.b16 %v197
      %v301 = vunpack.c.l.b16 %v198
      %v302 = vunpack.c.l.b16 %v199
      %v303 = vunpack.c.l.b16 %v200
      %v304 = vunpack.c.l.b16 %v201
      %v305 = vunpack.c.l.b16 %v202
      %v306 = vunpack.c.l.b16 %v203
      %v307 = vunpack.c.l.b16 %v204
      %v308 = vunpack.c.l.b16 %v205
      %v309 = vunpack.c.l.b16 %v206
      %v310 = vunpack.c.l.b16 %v207
      %v311 = vunpack.c.l.b16 %v208
      %v312 = vunpack.c.l.b16 %v209
      %v313 = vunpack.c.l.b16 %v210
      %v314 = vunpack.c.l.b16 %v211
      %v315 = vunpack.c.l.b16 %v212
      %v316 = vunpack.c.l.b16 %v213
      %v317 = vunpack.c.l.b16 %v214
      %v318 = vpack.c.b16 %v279, %v278
      %v319 = vpack.c.b16 %v281, %v280
      %v320 = vpack.c.b16 %v283, %v282
      %v321 = vpack.c.b16 %v285, %v284
      %v322 = vpack.c.b16 %v287, %v286
      %v323 = vpack.c.b16 %v289, %v288
      %v324 = vpack.c.b16 %v291, %v290
      %v325 = vpack.c.b16 %v293, %v292
      %v326 = vpack.c.b16 %v295, %v294
      %v327 = vpack.c.b16 %v297, %v296
      %v328 = vpack.c.b16 %v299, %v298
      %v329 = vpack.c.b16 %v301, %v300
      %v330 = vpack.c.b16 %v303, %v302
      %v331 = vpack.c.b16 %v305, %v304
      %v332 = vpack.c.b16 %v307, %v306
      %v333 = vpack.c.b16 %v309, %v308
      %v334 = vpack.c.b16 %v311, %v310
      %v335 = vpack.c.b16 %v313, %v312
      %v336 = vpack.c.b16 %v315, %v314
      %v337 = vpack.c.b16 %v317, %v316
      %v374 = vunpack.c.l.b16 %v215
      %v375 = vunpack.c.l.b16 %v216
      %v376 = vunpack.c.l.b16 %v217
      %v377 = vunpack.c.l.b16 %v218
      %v378 = vunpack.c.l.b16 %v219
      %v379 = vunpack.c.l.b16 %v220
      %v380 = vunpack.c.l.b16 %v221
      %v381 = vunpack.c.l.b16 %v222
      %v382 = vunpack.c.l.b16 %v223
      %v383 = vunpack.c.l.b16 %v224
      %v384 = vunpack.c.l.b16 %v225
      %v385 = vunpack.c.l.b16 %v226
      %v386 = vunpack.c.l.b16 %v227
      %v387 = vunpack.c.l.b16 %v228
      %v388 = vunpack.c.l.b16 %v229
      %v389 = vunpack.c.l.b16 %v230
      %v390 = vpack.c.b16 %v375, %v374
      %v391 = vpack.c.b16 %v377, %v376
      %v392 = vpack.c.b16 %v379, %v378
      %v393 = vpack.c.b16 %v381, %v380
      %v394 = vpack.c.b16 %v383, %v382
      %v395 = vpack.c.b16 %v385, %v384
      %v396 = vpack.c.b16 %v387, %v386
      %v397 = vpack.c.b16 %v389, %v388
      %406 = vmatprep.subr.bf16.mxu0 0
      %407 = vmatpush1.bf16.msra.mxu0 %v390
      %408 = vmatprep.subr.bf16.mxu0 0
      %409 = vmatpush1.bf16.msra.mxu0 %v391
      %410 = vmatprep.subr.bf16.mxu0 0
      %411 = vmatpush1.bf16.msra.mxu0 %v392
      %412 = vmatprep.subr.bf16.mxu0 0
      %413 = vmatpush1.bf16.msra.mxu0 %v393
      %414 = vmatprep.subr.bf16.mxu0 0
      %415 = vmatpush1.bf16.msra.mxu0 %v394
      %416 = vmatprep.subr.bf16.mxu0 0
      %417 = vmatpush1.bf16.msra.mxu0 %v395
      %418 = vmatprep.subr.bf16.mxu0 0
      %419 = vmatpush1.bf16.msra.mxu0 %v396
      %420 = vmatprep.subr.bf16.mxu0 0
      %421 = vmatpush1.bf16.msra.mxu0 %v397
      %422 = vmatprep.subr.bf16.mxu0 0
      %423 = vmatpush1.bf16.msra.mxu0 0
      %424 = vmatprep.subr.bf16.mxu0 0
      %425 = vmatpush1.bf16.msra.mxu0 0
      %426 = vmatprep.subr.bf16.mxu0 0
      %427 = vmatpush1.bf16.msra.mxu0 0
      %428 = vmatprep.subr.bf16.mxu0 0
      %429 = vmatpush1.bf16.msra.mxu0 0
      %430 = vmatprep.subr.bf16.mxu0 0
      %431 = vmatpush1.bf16.msra.mxu0 0
      %432 = vmatprep.subr.bf16.mxu0 0
      %433 = vmatpush1.bf16.msra.mxu0 0
      %434 = vmatprep.subr.bf16.mxu0 0
      %435 = vmatpush1.bf16.msra.mxu0 0
      %436 = vmatprep.subr.bf16.mxu0 0
      %437 = vmatpush1.bf16.msra.mxu0 0
      %438 = vmatprep.mubr.bf16.mxu0 0
      %439 = vmatmul.mubr.bf16.gmra.mrb[0].mxu0 %v318
      %v440 = vpop.f32.mrb[0].mxu0
      %v441 = vadd.f32 %v236, %v440
      %v442 = vpop.f32.mrb[0].mxu0
      %v443 = vpop.f32.mrb[0].mxu0
      %v444 = vadd.f32 %v236, %v443
      %v445 = vpop.f32.mrb[0].mxu0
      %446 = vmatprep.mubr.bf16.mxu0 0
      %447 = vmatmul.mubr.bf16.gmra.mrb[0].mxu0 %v319
      %v448 = vpop.f32.mrb[0].mxu0
      %v449 = vadd.f32 %v236, %v448
      %v450 = vpop.f32.mrb[0].mxu0
      %v451 = vpop.f32.mrb[0].mxu0
      %v452 = vadd.f32 %v236, %v451
      %v453 = vpop.f32.mrb[0].mxu0
      %454 = vmatprep.mubr.bf16.mxu0 0
      %455 = vmatmul.mubr.bf16.gmra.mrb[0].mxu0 %v320
      %v456 = vpop.f32.mrb[0].mxu0
      %v457 = vadd.f32 %v236, %v456
      %v458 = vpop.f32.mrb[0].mxu0
      %v459 = vpop.f32.mrb[0].mxu0
      %v460 = vadd.f32 %v236, %v459
      %v461 = vpop.f32.mrb[0].mxu0
      %462 = vmatprep.mubr.bf16.mxu0 0
      %463 = vmatmul.mubr.bf16.gmra.mrb[0].mxu0 %v321
      %v464 = vpop.f32.mrb[0].mxu0
      %v465 = vadd.f32 %v236, %v464
      %v466 = vpop.f32.mrb[0].mxu0
      %v467 = vpop.f32.mrb[0].mxu0
      %v468 = vadd.f32 %v236, %v467
      %v469 = vpop.f32.mrb[0].mxu0
      %470 = vmatprep.mubr.bf16.mxu0 0
      %471 = vmatmul.mubr.bf16.gmra.mrb[0].mxu0 %v322
      %v472 = vpop.f32.mrb[0].mxu0
      %v473 = vadd.f32 %v236, %v472
      %v474 = vpop.f32.mrb[0].mxu0
      %v475 = vpop.f32.mrb[0].mxu0
      %v476 = vadd.f32 %v236, %v475
      %v477 = vpop.f32.mrb[0].mxu0
      %478 = vmatprep.mubr.bf16.mxu0 0
      %479 = vmatmul.mubr.bf16.gmra.mrb[0].mxu0 %v323
      %v480 = vpop.f32.mrb[0].mxu0
      %v481 = vadd.f32 %v236, %v480
      %v482 = vpop.f32.mrb[0].mxu0
      %v483 = vpop.f32.mrb[0].mxu0
      %v484 = vadd.f32 %v236, %v483
      %v485 = vpop.f32.mrb[0].mxu0
      %486 = vmatprep.mubr.bf16.mxu0 0
      %487 = vmatmul.mubr.bf16.gmra.mrb[0].mxu0 %v324
      %v488 = vpop.f32.mrb[0].mxu0
      %v489 = vadd.f32 %v236, %v488
      %v490 = vpop.f32.mrb[0].mxu0
      %v491 = vpop.f32.mrb[0].mxu0
      %v492 = vadd.f32 %v236, %v491
      %v493 = vpop.f32.mrb[0].mxu0
      %494 = vmatprep.mubr.bf16.mxu0 0
      %495 = vmatmul.mubr.bf16.gmra.mrb[0].mxu0 %v325
      %v496 = vpop.f32.mrb[0].mxu0
      %v497 = vadd.f32 %v236, %v496
      %v498 = vpop.f32.mrb[0].mxu0
      %v499 = vpop.f32.mrb[0].mxu0
      %v500 = vadd.f32 %v236, %v499
      %v501 = vpop.f32.mrb[0].mxu0
      %502 = vmatprep.mubr.bf16.mxu0 0
      %503 = vmatmul.mubr.bf16.gmra.mrb[0].mxu0 %v326
      %v504 = vpop.f32.mrb[0].mxu0
      %v505 = vadd.f32 %v236, %v504
      %v506 = vpop.f32.mrb[0].mxu0
      %v507 = vpop.f32.mrb[0].mxu0
      %v508 = vadd.f32 %v236, %v507
      %v509 = vpop.f32.mrb[0].mxu0
      %510 = vmatprep.mubr.bf16.mxu0 0
      %511 = vmatmul.mubr.bf16.gmra.mrb[0].mxu0 %v327
      %v512 = vpop.f32.mrb[0].mxu0
      %v513 = vadd.f32 %v236, %v512
      %v514 = vpop.f32.mrb[0].mxu0
      %v515 = vpop.f32.mrb[0].mxu0
      %v516 = vadd.f32 %v236, %v515
      %v517 = vpop.f32.mrb[0].mxu0
      %518 = vmatprep.mubr.bf16.mxu0 0
      %519 = vmatmul.mubr.bf16.gmra.mrb[0].mxu0 %v328
      %v520 = vpop.f32.mrb[0].mxu0
      %v521 = vadd.f32 %v236, %v520
      %v522 = vpop.f32.mrb[0].mxu0
      %v523 = vpop.f32.mrb[0].mxu0
      %v524 = vadd.f32 %v236, %v523
      %v525 = vpop.f32.mrb[0].mxu0
      %526 = vmatprep.mubr.bf16.mxu0 0
      %527 = vmatmul.mubr.bf16.gmra.mrb[0].mxu0 %v329
      %v528 = vpop.f32.mrb[0].mxu0
      %v529 = vadd.f32 %v236, %v528
      %v530 = vpop.f32.mrb[0].mxu0
      %v531 = vpop.f32.mrb[0].mxu0
      %v532 = vadd.f32 %v236, %v531
      %v533 = vpop.f32.mrb[0].mxu0
      %534 = vmatprep.mubr.bf16.mxu0 0
      %535 = vmatmul.mubr.bf16.gmra.mrb[0].mxu0 %v330
      %v536 = vpop.f32.mrb[0].mxu0
      %v537 = vadd.f32 %v236, %v536
      %v538 = vpop.f32.mrb[0].mxu0
      %v539 = vpop.f32.mrb[0].mxu0
      %v540 = vadd.f32 %v236, %v539
      %v541 = vpop.f32.mrb[0].mxu0
      %542 = vmatprep.mubr.bf16.mxu0 0
      %543 = vmatmul.mubr.bf16.gmra.mrb[0].mxu0 %v331
      %v544 = vpop.f32.mrb[0].mxu0
      %v545 = vadd.f32 %v236, %v544
      %v546 = vpop.f32.mrb[0].mxu0
      %v547 = vpop.f32.mrb[0].mxu0
      %v548 = vadd.f32 %v236, %v547
      %v549 = vpop.f32.mrb[0].mxu0
      %550 = vmatprep.mubr.bf16.mxu0 0
      %551 = vmatmul.mubr.bf16.gmra.mrb[0].mxu0 %v332
      %v552 = vpop.f32.mrb[0].mxu0
      %v553 = vadd.f32 %v236, %v552
      %v554 = vpop.f32.mrb[0].mxu0
      %v555 = vpop.f32.mrb[0].mxu0
      %v556 = vadd.f32 %v236, %v555
      %v557 = vpop.f32.mrb[0].mxu0
      %558 = vmatprep.mubr.bf16.mxu0 0
      %559 = vmatmul.mubr.bf16.gmra.mrb[0].mxu0 %v333
      %v560 = vpop.f32.mrb[0].mxu0
      %v561 = vadd.f32 %v236, %v560
      %v562 = vpop.f32.mrb[0].mxu0
      %v563 = vpop.f32.mrb[0].mxu0
      %v564 = vadd.f32 %v236, %v563
      %v565 = vpop.f32.mrb[0].mxu0
      %566 = vmatprep.mubr.bf16.mxu0 0
      %567 = vmatmul.mubr.bf16.gmra.mrb[0].mxu0 %v334
      %v568 = vpop.f32.mrb[0].mxu0
      %v569 = vadd.f32 %v236, %v568
      %v570 = vpop.f32.mrb[0].mxu0
      %v571 = vpop.f32.mrb[0].mxu0
      %v572 = vadd.f32 %v236, %v571
      %v573 = vpop.f32.mrb[0].mxu0
      %574 = vmatprep.mubr.bf16.mxu0 0
      %575 = vmatmul.mubr.bf16.gmra.mrb[0].mxu0 %v335
      %v576 = vpop.f32.mrb[0].mxu0
      %v577 = vadd.f32 %v236, %v576
      %v578 = vpop.f32.mrb[0].mxu0
      %v579 = vpop.f32.mrb[0].mxu0
      %v580 = vadd.f32 %v236, %v579
      %v581 = vpop.f32.mrb[0].mxu0
      %582 = vmatprep.mubr.bf16.mxu0 0
      %583 = vmatmul.mubr.bf16.gmra.mrb[0].mxu0 %v336
      %v584 = vpop.f32.mrb[0].mxu0
      %v585 = vadd.f32 %v236, %v584
      %v586 = vpop.f32.mrb[0].mxu0
      %v587 = vpop.f32.mrb[0].mxu0
      %v588 = vadd.f32 %v236, %v587
      %v589 = vpop.f32.mrb[0].mxu0
      %590 = vmatprep.mubr.bf16.mxu0 0
      %591 = vmatmul.mubr.bf16.gmra.mrb[0].mxu0 %v337
      %v592 = vpop.f32.mrb[0].mxu0
      %v593 = vadd.f32 %v236, %v592
      %v594 = vpop.f32.mrb[0].mxu0
      %v595 = vpop.f32.mrb[0].mxu0
      %v596 = vadd.f32 %v236, %v595
      %v597 = vpop.f32.mrb[0].mxu0
      %598 = vdwg.mxu0
      %vm599 = vcmp.ge.f32.partialorder %v441, 0.0
      %vm600 = vcmp.ge.f32.partialorder %v444, 0.0
      %vm601 = vcmp.ge.f32.partialorder %v449, 0.0
      %vm602 = vcmp.ge.f32.partialorder %v452, 0.0
      %vm603 = vcmp.ge.f32.partialorder %v457, 0.0
      %vm604 = vcmp.ge.f32.partialorder %v460, 0.0
      %vm605 = vcmp.ge.f32.partialorder %v465, 0.0
      %vm606 = vcmp.ge.f32.partialorder %v468, 0.0
      %vm607 = vcmp.ge.f32.partialorder %v473, 0.0
      %vm608 = vcmp.ge.f32.partialorder %v476, 0.0
      %vm609 = vcmp.ge.f32.partialorder %v481, 0.0
      %vm610 = vcmp.ge.f32.partialorder %v484, 0.0
      %vm611 = vcmp.ge.f32.partialorder %v489, 0.0
      %vm612 = vcmp.ge.f32.partialorder %v492, 0.0
      %vm613 = vcmp.ge.f32.partialorder %v497, 0.0
      %vm614 = vcmp.ge.f32.partialorder %v500, 0.0
      %vm615 = vcmp.ge.f32.partialorder %v505, 0.0
      %vm616 = vcmp.ge.f32.partialorder %v508, 0.0
      %vm617 = vcmp.ge.f32.partialorder %v513, 0.0
      %vm618 = vcmp.ge.f32.partialorder %v516, 0.0
      %vm619 = vcmp.ge.f32.partialorder %v521, 0.0
      %vm620 = vcmp.ge.f32.partialorder %v524, 0.0
      %vm621 = vcmp.ge.f32.partialorder %v529, 0.0
      %vm622 = vcmp.ge.f32.partialorder %v532, 0.0
      %vm623 = vcmp.ge.f32.partialorder %v537, 0.0
      %vm624 = vcmp.ge.f32.partialorder %v540, 0.0
      %vm625 = vcmp.ge.f32.partialorder %v545, 0.0
      %vm626 = vcmp.ge.f32.partialorder %v548, 0.0
      %vm627 = vcmp.ge.f32.partialorder %v553, 0.0
      %vm628 = vcmp.ge.f32.partialorder %v556, 0.0
      %vm629 = vcmp.ge.f32.partialorder %v561, 0.0
      %vm630 = vcmp.ge.f32.partialorder %v564, 0.0
      %vm631 = vcmp.ge.f32.partialorder %v569, 0.0
      %vm632 = vcmp.ge.f32.partialorder %v572, 0.0
      %vm633 = vcmp.ge.f32.partialorder %v577, 0.0
      %vm634 = vcmp.ge.f32.partialorder %v580, 0.0
      %vm635 = vcmp.ge.f32.partialorder %v585, 0.0
      %vm636 = vcmp.ge.f32.partialorder %v588, 0.0
      %vm637 = vcmp.ge.f32.partialorder %v593, 0.0
      %vm638 = vcmp.ge.f32.partialorder %v596, 0.0
      %v639 = vmul.f32 %v441, 0.1
      %v640 = vmul.f32 %v444, 0.1
      %v641 = vmul.f32 %v449, 0.1
      %v642 = vmul.f32 %v452, 0.1
      %v643 = vmul.f32 %v457, 0.1
      %v644 = vmul.f32 %v460, 0.1
      %v645 = vmul.f32 %v465, 0.1
      %v646 = vmul.f32 %v468, 0.1
      %v647 = vmul.f32 %v473, 0.1
      %v648 = vmul.f32 %v476, 0.1
      %v649 = vmul.f32 %v481, 0.1
      %v650 = vmul.f32 %v484, 0.1
      %v651 = vmul.f32 %v489, 0.1
      %v652 = vmul.f32 %v492, 0.1
      %v653 = vmul.f32 %v497, 0.1
      %v654 = vmul.f32 %v500, 0.1
      %v655 = vmul.f32 %v505, 0.1
      %v656 = vmul.f32 %v508, 0.1
      %v657 = vmul.f32 %v513, 0.1
      %v658 = vmul.f32 %v516, 0.1
      %v659 = vmul.f32 %v521, 0.1
      %v660 = vmul.f32 %v524, 0.1
      %v661 = vmul.f32 %v529, 0.1
      %v662 = vmul.f32 %v532, 0.1
      %v663 = vmul.f32 %v537, 0.1
      %v664 = vmul.f32 %v540, 0.1
      %v665 = vmul.f32 %v545, 0.1
      %v666 = vmul.f32 %v548, 0.1
      %v667 = vmul.f32 %v553, 0.1
      %v668 = vmul.f32 %v556, 0.1
      %v669 = vmul.f32 %v561, 0.1
      %v670 = vmul.f32 %v564, 0.1
      %v671 = vmul.f32 %v569, 0.1
      %v672 = vmul.f32 %v572, 0.1
      %v673 = vmul.f32 %v577, 0.1
      %v674 = vmul.f32 %v580, 0.1
      %v675 = vmul.f32 %v585, 0.1
      %v676 = vmul.f32 %v588, 0.1
      %v677 = vmul.f32 %v593, 0.1
      %v678 = vmul.f32 %v596, 0.1
      %v679 = vsel %vm599, %v441, %v639
      %v680 = vsel %vm600, %v444, %v640
      %v681 = vsel %vm601, %v449, %v641
      %v682 = vsel %vm602, %v452, %v642
      %v683 = vsel %vm603, %v457, %v643
      %v684 = vsel %vm604, %v460, %v644
      %v685 = vsel %vm605, %v465, %v645
      %v686 = vsel %vm606, %v468, %v646
      %v687 = vsel %vm607, %v473, %v647
      %v688 = vsel %vm608, %v476, %v648
      %v689 = vsel %vm609, %v481, %v649
      %v690 = vsel %vm610, %v484, %v650
      %v691 = vsel %vm611, %v489, %v651
      %v692 = vsel %vm612, %v492, %v652
      %v693 = vsel %vm613, %v497, %v653
      %v694 = vsel %vm614, %v500, %v654
      %v695 = vsel %vm615, %v505, %v655
      %v696 = vsel %vm616, %v508, %v656
      %v697 = vsel %vm617, %v513, %v657
      %v698 = vsel %vm618, %v516, %v658
      %v699 = vsel %vm619, %v521, %v659
      %v700 = vsel %vm620, %v524, %v660
      %v701 = vsel %vm621, %v529, %v661
      %v702 = vsel %vm622, %v532, %v662
      %v703 = vsel %vm623, %v537, %v663
      %v704 = vsel %vm624, %v540, %v664
      %v705 = vsel %vm625, %v545, %v665
      %v706 = vsel %vm626, %v548, %v666
      %v707 = vsel %vm627, %v553, %v667
      %v708 = vsel %vm628, %v556, %v668
      %v709 = vsel %vm629, %v561, %v669
      %v710 = vsel %vm630, %v564, %v670
      %v711 = vsel %vm631, %v569, %v671
      %v712 = vsel %vm632, %v572, %v672
      %v713 = vsel %vm633, %v577, %v673
      %v714 = vsel %vm634, %v580, %v674
      %v715 = vsel %vm635, %v585, %v675
      %v716 = vsel %vm636, %v588, %v676
      %v717 = vsel %vm637, %v593, %v677
      %v718 = vsel %vm638, %v596, %v678
      %v719 = vpack.c.bf16 %v680, %v679
      %v720 = vpack.c.bf16 %v682, %v681
      %v721 = vpack.c.bf16 %v684, %v683
      %v722 = vpack.c.bf16 %v686, %v685
      %v723 = vpack.c.bf16 %v688, %v687
      %v724 = vpack.c.bf16 %v690, %v689
      %v725 = vpack.c.bf16 %v692, %v691
      %v726 = vpack.c.bf16 %v694, %v693
      %v727 = vpack.c.bf16 %v696, %v695
      %v728 = vpack.c.bf16 %v698, %v697
      %v729 = vpack.c.bf16 %v700, %v699
      %v730 = vpack.c.bf16 %v702, %v701
      %v731 = vpack.c.bf16 %v704, %v703
      %v732 = vpack.c.bf16 %v706, %v705
      %v733 = vpack.c.bf16 %v708, %v707
      %v734 = vpack.c.bf16 %v710, %v709
      %v735 = vpack.c.bf16 %v712, %v711
      %v736 = vpack.c.bf16 %v714, %v713
      %v737 = vpack.c.bf16 %v716, %v715
      %v738 = vpack.c.bf16 %v718, %v717
      %v759 = vunpack.c.l.b16 %v719
      %v760 = vunpack.c.h.b16 %v719
      %v761 = vunpack.c.l.b16 %v720
      %v762 = vunpack.c.h.b16 %v720
      %v763 = vunpack.c.l.b16 %v721
      %v764 = vunpack.c.h.b16 %v721
      %v765 = vunpack.c.l.b16 %v722
      %v766 = vunpack.c.h.b16 %v722
      %v767 = vunpack.c.l.b16 %v723
      %v768 = vunpack.c.h.b16 %v723
      %v769 = vunpack.c.l.b16 %v724
      %v770 = vunpack.c.h.b16 %v724
      %v771 = vunpack.c.l.b16 %v725
      %v772 = vunpack.c.h.b16 %v725
      %v773 = vunpack.c.l.b16 %v726
      %v774 = vunpack.c.h.b16 %v726
      %v775 = vunpack.c.l.b16 %v727
      %v776 = vunpack.c.h.b16 %v727
      %v777 = vunpack.c.l.b16 %v728
      %v778 = vunpack.c.h.b16 %v728
      %v779 = vunpack.c.l.b16 %v729
      %v780 = vunpack.c.h.b16 %v729
      %v781 = vunpack.c.l.b16 %v730
      %v782 = vunpack.c.h.b16 %v730
      %v783 = vunpack.c.l.b16 %v731
      %v784 = vunpack.c.h.b16 %v731
      %v785 = vunpack.c.l.b16 %v732
      %v786 = vunpack.c.h.b16 %v732
      %v787 = vunpack.c.l.b16 %v733
      %v788 = vunpack.c.h.b16 %v733
      %v789 = vunpack.c.l.b16 %v734
      %v790 = vunpack.c.h.b16 %v734
      %v791 = vunpack.c.l.b16 %v735
      %v792 = vunpack.c.h.b16 %v735
      %v793 = vunpack.c.l.b16 %v736
      %v794 = vunpack.c.h.b16 %v736
      %v795 = vunpack.c.l.b16 %v737
      %v796 = vunpack.c.h.b16 %v737
      %v797 = vunpack.c.l.b16 %v738
      %v798 = vunpack.c.h.b16 %v738
      %v799 = vpack.c.b16 %v759, %v759
      %v800 = vpack.c.b16 %v760, %v760
      %v801 = vpack.c.b16 %v761, %v761
      %v802 = vpack.c.b16 %v762, %v762
      %v803 = vpack.c.b16 %v763, %v763
      %v804 = vpack.c.b16 %v764, %v764
      %v805 = vpack.c.b16 %v765, %v765
      %v806 = vpack.c.b16 %v766, %v766
      %v807 = vpack.c.b16 %v767, %v767
      %v808 = vpack.c.b16 %v768, %v768
      %v809 = vpack.c.b16 %v769, %v769
      %v810 = vpack.c.b16 %v770, %v770
      %v811 = vpack.c.b16 %v771, %v771
      %v812 = vpack.c.b16 %v772, %v772
      %v813 = vpack.c.b16 %v773, %v773
      %v814 = vpack.c.b16 %v774, %v774
      %v815 = vpack.c.b16 %v775, %v775
      %v816 = vpack.c.b16 %v776, %v776
      %v817 = vpack.c.b16 %v777, %v777
      %v818 = vpack.c.b16 %v778, %v778
      %v819 = vpack.c.b16 %v779, %v779
      %v820 = vpack.c.b16 %v780, %v780
      %v821 = vpack.c.b16 %v781, %v781
      %v822 = vpack.c.b16 %v782, %v782
      %v823 = vpack.c.b16 %v783, %v783
      %v824 = vpack.c.b16 %v784, %v784
      %v825 = vpack.c.b16 %v785, %v785
      %v826 = vpack.c.b16 %v786, %v786
      %v827 = vpack.c.b16 %v787, %v787
      %v828 = vpack.c.b16 %v788, %v788
      %v829 = vpack.c.b16 %v789, %v789
      %v830 = vpack.c.b16 %v790, %v790
      %v831 = vpack.c.b16 %v791, %v791
      %v832 = vpack.c.b16 %v792, %v792
      %v833 = vpack.c.b16 %v793, %v793
      %v834 = vpack.c.b16 %v794, %v794
      %v835 = vpack.c.b16 %v795, %v795
      %v836 = vpack.c.b16 %v796, %v796
      %v837 = vpack.c.b16 %v797, %v797
      %v838 = vpack.c.b16 %v798, %v798
      %879 = vst [vmem:[%s172] sm:$0xf] %v799
      %880 = vst [vmem:[%s172 + $0x4] sm:$0xf] %v800
      %881 = vst [vmem:[%s172 + $0x8] sm:$0xf] %v801
      %882 = vst [vmem:[%s172 + $0xc] sm:$0xf] %v802
      %883 = vst [vmem:[%s172 + $0x10] sm:$0xf] %v803
      %884 = vst [vmem:[%s172 + $0x14] sm:$0xf] %v804
      %885 = vst [vmem:[%s172 + $0x18] sm:$0xf] %v805
      %886 = vst [vmem:[%s172 + $0x1c] sm:$0xf] %v806
      %887 = vst [vmem:[%s172 + $0x20] sm:$0xf] %v807
      %888 = vst [vmem:[%s172 + $0x24] sm:$0xf] %v808
      %889 = vst [vmem:[%s172 + $0x28] sm:$0xf] %v809
      %890 = vst [vmem:[%s172 + $0x2c] sm:$0xf] %v810
      %891 = vst [vmem:[%s172 + $0x30] sm:$0xf] %v811
      %892 = vst [vmem:[%s172 + $0x34] sm:$0xf] %v812
      %893 = vst [vmem:[%s172 + $0x38] sm:$0xf] %v813
      %894 = vst [vmem:[%s172 + $0x3c] sm:$0xf] %v814
      %895 = vst [vmem:[%s172 + $0x40] sm:$0xf] %v815
      %896 = vst [vmem:[%s172 + $0x44] sm:$0xf] %v816
      %897 = vst [vmem:[%s172 + $0x48] sm:$0xf] %v817
      %898 = vst [vmem:[%s172 + $0x4c] sm:$0xf] %v818
      %899 = vst [vmem:[%s172 + $0x50] sm:$0xf] %v819
      %900 = vst [vmem:[%s172 + $0x54] sm:$0xf] %v820
      %901 = vst [vmem:[%s172 + $0x58] sm:$0xf] %v821
      %902 = vst [vmem:[%s172 + $0x5c] sm:$0xf] %v822
      %903 = vst [vmem:[%s172 + $0x60] sm:$0xf] %v823
      %904 = vst [vmem:[%s172 + $0x64] sm:$0xf] %v824
      %905 = vst [vmem:[%s172 + $0x68] sm:$0xf] %v825
      %906 = vst [vmem:[%s172 + $0x6c] sm:$0xf] %v826
      %907 = vst [vmem:[%s172 + $0x70] sm:$0xf] %v827
      %908 = vst [vmem:[%s172 + $0x74] sm:$0xf] %v828
      %909 = vst [vmem:[%s172 + $0x78] sm:$0xf] %v829
      %910 = vst [vmem:[%s172 + $0x7c] sm:$0xf] %v830
      %911 = vst [vmem:[%s172 + $0x80] sm:$0xf] %v831
      %912 = vst [vmem:[%s172 + $0x84] sm:$0xf] %v832
      %913 = vst [vmem:[%s172 + $0x88] sm:$0xf] %v833
      %914 = vst [vmem:[%s172 + $0x8c] sm:$0xf] %v834
      %915 = vst [vmem:[%s172 + $0x90] sm:$0xf] %v835
      %916 = vst [vmem:[%s172 + $0x94] sm:$0xf] %v836
      %917 = vst [vmem:[%s172 + $0x98] sm:$0xf] %v837
      %918 = vst [vmem:[%s172 + $0x9c] sm:$0xf] %v838
      %s919 = smul.u32 40, %s14
      %p920 = scmp.lt.s32.totalorder %s919, 79
      %s921 = scalar_select %p920, %s919, 79
      %s922 = smul.addr %s921, 4
      %s923 = scalar_lea.vmem %s3, %s922
      // Predicated region
      $region33: #{_lambda_.36} parent=31 // pred_check
        %p924 = pneg %p100
      $region34: #{_lambda_.36} parent=31 // pred_check_branch
        %926 = sbr.rel (%p924) target = $region36
      $region35: #{_lambda_.36} parent=31 // pred_region
        %s927 = smul.u32 40, %s14
      $region36: #{_lambda_.36} parent=31 // pred_fallthru
        _
    $region32: #{_lambda_.36} parent=5 // pred_fallthru
      _
    %p928 = scmp.le.s32.totalorder 2, %s9
    // Predicated region
    $region37: #{_lambda_.36} parent=5 // pred_check
      %p929 = pneg %p928
    $region38: #{_lambda_.36} parent=5 // pred_check_branch
      %931 = sbr.rel (%p929) target = $region40
    $region39: #{_lambda_.36} parent=5 // pred_region
      %s932 = ssub.s32 %s9, 2
      // Predicated region
      $region41: #{_lambda_.36} parent=39 // pred_check
        %p933 = pneg %p106
      $region42: #{_lambda_.36} parent=39 // pred_check_branch
        %935 = sbr.rel (%p933) target = $region44
      $region43: #{_lambda_.36} parent=39 // pred_region
        %s936 = smul.u32 40, %s15
        %p937 = scmp.lt.s32.totalorder %s936, 79
        %s938 = scalar_select %p937, %s936, 79
        %s939 = smul.addr %s938, 4
        %s940 = scalar_lea.vmem %s3, %s939
      $region44: #{_lambda_.36} parent=39 // pred_fallthru
        _
    $region40: #{_lambda_.36} parent=5 // pred_fallthru
      _
  $region6: #{_lambda_.36} parent=0 // loop_footer
    %s13 = sadd.s32 1, %s9
  $region7: #{_lambda_.36} parent=0 // loop_footer_branch
    %8 = sbr.rel target = $region3
  $region8: #{_lambda_.36} parent=0 // loop_exit
    _

// kernel: _lambda_.30
$region0: #{_lambda_.30}
  #allocation0 [shape = 'u32[]', space=smem, size = 0x4, offset = 0x4, fixed_abs, tag = 'smem constant byte address 0x4 - core index']
  #allocation1 [shape = 'u32[144,128]{1,0:T(1,128)}', space=vmem, size = 0x12000, scoped, tag = 'internal scratch']
  %s0 = inlined_call_operand.vmem [shape: bf16[352,1024], index: 0, kind: input, shape index: {}]
  %s1 = inlined_call_operand.vmem [shape: bf16[1024,128], index: 1, kind: input, shape index: {}]
  %s2 = inlined_call_operand.vmem [shape: f32[1,128], index: 2, kind: input, shape index: {}]
  %s3 = inlined_call_operand.vmem [shape: bf16[352,128], index: 3, kind: output, shape index: {}]
  %s4 = sld [smem:[#allocation0]]
  $region22: #{_lambda_.30} parent=0
    _
  %s6 = ssub.s32 1, %s4
  %s7 = scalar_select 0, %s6, %s4
  // Predicated region
  $region2: #{_lambda_.30} parent=0 // pred_check
    _
  $region3: #{_lambda_.30} parent=0 // pred_check_branch
    %9 = sbr.rel (0) target = $region5
  $region4: #{_lambda_.30} parent=0 // pred_region
    _
  $region5: #{_lambda_.30} parent=0 // pred_fallthru
    _
  // Predicated region
  $region6: #{_lambda_.30} parent=0 // pred_check
    _
  $region7: #{_lambda_.30} parent=0 // pred_check_branch
    %11 = sbr.rel (0) target = $region9
  $region8: #{_lambda_.30} parent=0 // pred_region
    _
  $region9: #{_lambda_.30} parent=0 // pred_fallthru
    _
  // Predicated region
  $region10: #{_lambda_.30} parent=0 // pred_check
    _
  $region11: #{_lambda_.30} parent=0 // pred_check_branch
    %13 = sbr.rel (0) target = $region13
  $region12: #{_lambda_.30} parent=0 // pred_region
    _
  $region13: #{_lambda_.30} parent=0 // pred_fallthru
    _
  %v15 = vld [vmem:[%s0] sm:$0xff]
  %v16 = vld [vmem:[%s0 + $0x8] sm:$0xff]
  %v17 = vld [vmem:[%s0 + $0x10] sm:$0xff]
  %v18 = vld [vmem:[%s0 + $0x18] sm:$0xff]
  %v19 = vld [vmem:[%s0 + $0x20] sm:$0xff]
  %v20 = vld [vmem:[%s0 + $0x28] sm:$0xff]
  %v21 = vld [vmem:[%s0 + $0x30] sm:$0xff]
  %v22 = vld [vmem:[%s0 + $0x38] sm:$0xff]
  %v23 = vld [vmem:[%s0 + $0x40] sm:$0xff]
  %v24 = vld [vmem:[%s0 + $0x48] sm:$0xff]
  %v25 = vld [vmem:[%s0 + $0x50] sm:$0xff]
  %v26 = vld [vmem:[%s0 + $0x58] sm:$0xff]
  %v27 = vld [vmem:[%s0 + $0x60] sm:$0xff]
  %v28 = vld [vmem:[%s0 + $0x68] sm:$0xff]
  %v29 = vld [vmem:[%s0 + $0x70] sm:$0xff]
  %v30 = vld [vmem:[%s0 + $0x78] sm:$0xff]
  %v31 = vld [vmem:[%s0 + $0x80] sm:$0xff]
  %v32 = vld [vmem:[%s0 + $0x88] sm:$0xff]
  %v33 = vld [vmem:[%s0 + $0x90] sm:$0xff]
  %v34 = vld [vmem:[%s0 + $0x98] sm:$0xff]
  %v35 = vld [vmem:[%s0 + $0xa0] sm:$0xff]
  %v36 = vld [vmem:[%s0 + $0xa8] sm:$0xff]
  %v37 = vld [vmem:[%s0 + $0xb0] sm:$0xff]
  %v38 = vld [vmem:[%s0 + $0xb8] sm:$0xff]
  %v39 = vld [vmem:[%s0 + $0xc0] sm:$0xff]
  %v40 = vld [vmem:[%s0 + $0xc8] sm:$0xff]
  %v41 = vld [vmem:[%s0 + $0xd0] sm:$0xff]
  %v42 = vld [vmem:[%s0 + $0xd8] sm:$0xff]
  %v43 = vld [vmem:[%s0 + $0xe0] sm:$0xff]
  %v44 = vld [vmem:[%s0 + $0xe8] sm:$0xff]
  %v45 = vld [vmem:[%s0 + $0xf0] sm:$0xff]
  %v46 = vld [vmem:[%s0 + $0xf8] sm:$0xff]
  %v47 = vld [vmem:[%s0 + $0x100] sm:$0xff]
  %v48 = vld [vmem:[%s0 + $0x108] sm:$0xff]
  %v49 = vld [vmem:[%s0 + $0x110] sm:$0xff]
  %v50 = vld [vmem:[%s0 + $0x118] sm:$0xff]
  %v51 = vld [vmem:[%s0 + $0x120] sm:$0xff]
  %v52 = vld [vmem:[%s0 + $0x128] sm:$0xff]
  %v53 = vld [vmem:[%s0 + $0x130] sm:$0xff]
  %v54 = vld [vmem:[%s0 + $0x138] sm:$0xff]
  %v55 = vld [vmem:[%s0 + $0x140] sm:$0xff]
  %v56 = vld [vmem:[%s0 + $0x148] sm:$0xff]
  %v57 = vld [vmem:[%s0 + $0x150] sm:$0xff]
  %v58 = vld [vmem:[%s0 + $0x158] sm:$0xff]
  %v59 = vld [vmem:[%s0 + $0x160] sm:$0xff]
  %v60 = vld [vmem:[%s0 + $0x168] sm:$0xff]
  %v61 = vld [vmem:[%s0 + $0x170] sm:$0xff]
  %v62 = vld [vmem:[%s0 + $0x178] sm:$0xff]
  %v63 = vld [vmem:[%s0 + $0x180] sm:$0xff]
  %v64 = vld [vmem:[%s0 + $0x188] sm:$0xff]
  %v65 = vld [vmem:[%s0 + $0x190] sm:$0xff]
  %v66 = vld [vmem:[%s0 + $0x198] sm:$0xff]
  %v67 = vld [vmem:[%s0 + $0x1a0] sm:$0xff]
  %v68 = vld [vmem:[%s0 + $0x1a8] sm:$0xff]
  %v69 = vld [vmem:[%s0 + $0x1b0] sm:$0xff]
  %v70 = vld [vmem:[%s0 + $0x1b8] sm:$0xff]
  %v71 = vld [vmem:[%s0 + $0x1c0] sm:$0xff]
  %v72 = vld [vmem:[%s0 + $0x1c8] sm:$0xff]
  %v73 = vld [vmem:[%s0 + $0x1d0] sm:$0xff]
  %v74 = vld [vmem:[%s0 + $0x1d8] sm:$0xff]
  %v75 = vld [vmem:[%s0 + $0x1e0] sm:$0xff]
  %v76 = vld [vmem:[%s0 + $0x1e8] sm:$0xff]
  %v77 = vld [vmem:[%s0 + $0x1f0] sm:$0xff]
  %v78 = vld [vmem:[%s0 + $0x1f8] sm:$0xff]
  %v79 = vld [vmem:[%s0 + $0x200] sm:$0xff]
  %v80 = vld [vmem:[%s0 + $0x208] sm:$0xff]
  %v81 = vld [vmem:[%s0 + $0x210] sm:$0xff]
  %v82 = vld [vmem:[%s0 + $0x218] sm:$0xff]
  %v83 = vld [vmem:[%s0 + $0x220] sm:$0xff]
  %v84 = vld [vmem:[%s0 + $0x228] sm:$0xff]
  %v85 = vld [vmem:[%s0 + $0x230] sm:$0xff]
  %v86 = vld [vmem:[%s0 + $0x238] sm:$0xff]
  %v87 = vld [vmem:[%s0 + $0x240] sm:$0xff]
  %v88 = vld [vmem:[%s0 + $0x248] sm:$0xff]
  %v89 = vld [vmem:[%s0 + $0x250] sm:$0xff]
  %v90 = vld [vmem:[%s0 + $0x258] sm:$0xff]
  %v91 = vld [vmem:[%s0 + $0x260] sm:$0xff]
  %v92 = vld [vmem:[%s0 + $0x268] sm:$0xff]
  %v93 = vld [vmem:[%s0 + $0x270] sm:$0xff]
  %v94 = vld [vmem:[%s0 + $0x278] sm:$0xff]
  %v95 = vld [vmem:[%s0 + $0x280] sm:$0xff]
  %v96 = vld [vmem:[%s0 + $0x288] sm:$0xff]
  %v97 = vld [vmem:[%s0 + $0x290] sm:$0xff]
  %v98 = vld [vmem:[%s0 + $0x298] sm:$0xff]
  %v99 = vld [vmem:[%s0 + $0x2a0] sm:$0xff]
  %v100 = vld [vmem:[%s0 + $0x2a8] sm:$0xff]
  %v101 = vld [vmem:[%s0 + $0x2b0] sm:$0xff]
  %v102 = vld [vmem:[%s0 + $0x2b8] sm:$0xff]
  %v103 = vld [vmem:[%s0 + $0x2c0] sm:$0xff]
  %v104 = vld [vmem:[%s0 + $0x2c8] sm:$0xff]
  %v105 = vld [vmem:[%s0 + $0x2d0] sm:$0xff]
  %v106 = vld [vmem:[%s0 + $0x2d8] sm:$0xff]
  %v107 = vld [vmem:[%s0 + $0x2e0] sm:$0xff]
  %v108 = vld [vmem:[%s0 + $0x2e8] sm:$0xff]
  %v109 = vld [vmem:[%s0 + $0x2f0] sm:$0xff]
  %v110 = vld [vmem:[%s0 + $0x2f8] sm:$0xff]
  %v111 = vld [vmem:[%s0 + $0x300] sm:$0xff]
  %v112 = vld [vmem:[%s0 + $0x308] sm:$0xff]
  %v113 = vld [vmem:[%s0 + $0x310] sm:$0xff]
  %v114 = vld [vmem:[%s0 + $0x318] sm:$0xff]
  %v115 = vld [vmem:[%s0 + $0x320] sm:$0xff]
  %v116 = vld [vmem:[%s0 + $0x328] sm:$0xff]
  %v117 = vld [vmem:[%s0 + $0x330] sm:$0xff]
  %v118 = vld [vmem:[%s0 + $0x338] sm:$0xff]
  %v119 = vld [vmem:[%s0 + $0x340] sm:$0xff]
  %v120 = vld [vmem:[%s0 + $0x348] sm:$0xff]
  %v121 = vld [vmem:[%s0 + $0x350] sm:$0xff]
  %v122 = vld [vmem:[%s0 + $0x358] sm:$0xff]
  %v123 = vld [vmem:[%s0 + $0x360] sm:$0xff]
  %v124 = vld [vmem:[%s0 + $0x368] sm:$0xff]
  %v125 = vld [vmem:[%s0 + $0x370] sm:$0xff]
  %v126 = vld [vmem:[%s0 + $0x378] sm:$0xff]
  %v127 = vld [vmem:[%s0 + $0x380] sm:$0xff]
  %v128 = vld [vmem:[%s0 + $0x388] sm:$0xff]
  %v129 = vld [vmem:[%s0 + $0x390] sm:$0xff]
  %v130 = vld [vmem:[%s0 + $0x398] sm:$0xff]
  %v131 = vld [vmem:[%s0 + $0x3a0] sm:$0xff]
  %v132 = vld [vmem:[%s0 + $0x3a8] sm:$0xff]
  %v133 = vld [vmem:[%s0 + $0x3b0] sm:$0xff]
  %v134 = vld [vmem:[%s0 + $0x3b8] sm:$0xff]
  %v135 = vld [vmem:[%s0 + $0x3c0] sm:$0xff]
  %v136 = vld [vmem:[%s0 + $0x3c8] sm:$0xff]
  %v137 = vld [vmem:[%s0 + $0x3d0] sm:$0xff]
  %v138 = vld [vmem:[%s0 + $0x3d8] sm:$0xff]
  %v139 = vld [vmem:[%s0 + $0x3e0] sm:$0xff]
  %v140 = vld [vmem:[%s0 + $0x3e8] sm:$0xff]
  %v141 = vld [vmem:[%s0 + $0x3f0] sm:$0xff]
  %v142 = vld [vmem:[%s0 + $0x3f8] sm:$0xff]
  %v143 = vld [vmem:[%s0 + $0x400] sm:$0xff]
  %v144 = vld [vmem:[%s0 + $0x408] sm:$0xff]
  %v145 = vld [vmem:[%s0 + $0x410] sm:$0xff]
  %v146 = vld [vmem:[%s0 + $0x418] sm:$0xff]
  %v147 = vld [vmem:[%s0 + $0x420] sm:$0xff]
  %v148 = vld [vmem:[%s0 + $0x428] sm:$0xff]
  %v149 = vld [vmem:[%s0 + $0x430] sm:$0xff]
  %v150 = vld [vmem:[%s0 + $0x438] sm:$0xff]
  %v151 = vld [vmem:[%s0 + $0x440] sm:$0xff]
  %v152 = vld [vmem:[%s0 + $0x448] sm:$0xff]
  %v153 = vld [vmem:[%s0 + $0x450] sm:$0xff]
  %v154 = vld [vmem:[%s0 + $0x458] sm:$0xff]
  %v155 = vld [vmem:[%s0 + $0x460] sm:$0xff]
  %v156 = vld [vmem:[%s0 + $0x468] sm:$0xff]
  %v157 = vld [vmem:[%s0 + $0x470] sm:$0xff]
  %v158 = vld [vmem:[%s0 + $0x478] sm:$0xff]
  %v159 = vld [vmem:[%s0 + $0x480] sm:$0xff]
  %v160 = vld [vmem:[%s0 + $0x488] sm:$0xff]
  %v161 = vld [vmem:[%s0 + $0x490] sm:$0xff]
  %v162 = vld [vmem:[%s0 + $0x498] sm:$0xff]
  %v163 = vld [vmem:[%s0 + $0x4a0] sm:$0xff]
  %v164 = vld [vmem:[%s0 + $0x4a8] sm:$0xff]
  %v165 = vld [vmem:[%s0 + $0x4b0] sm:$0xff]
  %v166 = vld [vmem:[%s0 + $0x4b8] sm:$0xff]
  %v167 = vld [vmem:[%s0 + $0x4c0] sm:$0xff]
  %v168 = vld [vmem:[%s0 + $0x4c8] sm:$0xff]
  %v169 = vld [vmem:[%s0 + $0x4d0] sm:$0xff]
  %v170 = vld [vmem:[%s0 + $0x4d8] sm:$0xff]
  %v171 = vld [vmem:[%s0 + $0x4e0] sm:$0xff]
  %v172 = vld [vmem:[%s0 + $0x4e8] sm:$0xff]
  %v173 = vld [vmem:[%s0 + $0x4f0] sm:$0xff]
  %v174 = vld [vmem:[%s0 + $0x4f8] sm:$0xff]
  %v175 = vld [vmem:[%s0 + $0x500] sm:$0xff]
  %v176 = vld [vmem:[%s0 + $0x508] sm:$0xff]
  %v177 = vld [vmem:[%s0 + $0x510] sm:$0xff]
  %v178 = vld [vmem:[%s0 + $0x518] sm:$0xff]
  %v179 = vld [vmem:[%s0 + $0x520] sm:$0xff]
  %v180 = vld [vmem:[%s0 + $0x528] sm:$0xff]
  %v181 = vld [vmem:[%s0 + $0x530] sm:$0xff]
  %v182 = vld [vmem:[%s0 + $0x538] sm:$0xff]
  %v183 = vld [vmem:[%s0 + $0x540] sm:$0xff]
  %v184 = vld [vmem:[%s0 + $0x548] sm:$0xff]
  %v185 = vld [vmem:[%s0 + $0x550] sm:$0xff]
  %v186 = vld [vmem:[%s0 + $0x558] sm:$0xff]
  %v187 = vld [vmem:[%s0 + $0x560] sm:$0xff]
  %v188 = vld [vmem:[%s0 + $0x568] sm:$0xff]
  %v189 = vld [vmem:[%s0 + $0x570] sm:$0xff]
  %v190 = vld [vmem:[%s0 + $0x578] sm:$0xff]
  %v191 = vld [vmem:[%s1] sm:$0xf]
  %v192 = vld [vmem:[%s1 + $0x4] sm:$0xf]
  %v193 = vld [vmem:[%s1 + $0x8] sm:$0xf]
  %v194 = vld [vmem:[%s1 + $0xc] sm:$0xf]
  %v195 = vld [vmem:[%s1 + $0x10] sm:$0xf]
  %v196 = vld [vmem:[%s1 + $0x14] sm:$0xf]
  %v197 = vld [vmem:[%s1 + $0x18] sm:$0xf]
  %v198 = vld [vmem:[%s1 + $0x1c] sm:$0xf]
  %v199 = vld [vmem:[%s1 + $0x20] sm:$0xf]
  %v200 = vld [vmem:[%s1 + $0x24] sm:$0xf]
  %v201 = vld [vmem:[%s1 + $0x28] sm:$0xf]
  %v202 = vld [vmem:[%s1 + $0x2c] sm:$0xf]
  %v203 = vld [vmem:[%s1 + $0x30] sm:$0xf]
  %v204 = vld [vmem:[%s1 + $0x34] sm:$0xf]
  %v205 = vld [vmem:[%s1 + $0x38] sm:$0xf]
  %v206 = vld [vmem:[%s1 + $0x3c] sm:$0xf]
  %v207 = vld [vmem:[%s1 + $0x40] sm:$0xf]
  %v208 = vld [vmem:[%s1 + $0x44] sm:$0xf]
  %v209 = vld [vmem:[%s1 + $0x48] sm:$0xf]
  %v210 = vld [vmem:[%s1 + $0x4c] sm:$0xf]
  %v211 = vld [vmem:[%s1 + $0x50] sm:$0xf]
  %v212 = vld [vmem:[%s1 + $0x54] sm:$0xf]
  %v213 = vld [vmem:[%s1 + $0x58] sm:$0xf]
  %v214 = vld [vmem:[%s1 + $0x5c] sm:$0xf]
  %v215 = vld [vmem:[%s1 + $0x60] sm:$0xf]
  %v216 = vld [vmem:[%s1 + $0x64] sm:$0xf]
  %v217 = vld [vmem:[%s1 + $0x68] sm:$0xf]
  %v218 = vld [vmem:[%s1 + $0x6c] sm:$0xf]
  %v219 = vld [vmem:[%s1 + $0x70] sm:$0xf]
  %v220 = vld [vmem:[%s1 + $0x74] sm:$0xf]
  %v221 = vld [vmem:[%s1 + $0x78] sm:$0xf]
  %v222 = vld [vmem:[%s1 + $0x7c] sm:$0xf]
  %v223 = vld [vmem:[%s1 + $0x80] sm:$0xf]
  %v224 = vld [vmem:[%s1 + $0x84] sm:$0xf]
  %v225 = vld [vmem:[%s1 + $0x88] sm:$0xf]
  %v226 = vld [vmem:[%s1 + $0x8c] sm:$0xf]
  %v227 = vld [vmem:[%s1 + $0x90] sm:$0xf]
  %v228 = vld [vmem:[%s1 + $0x94] sm:$0xf]
  %v229 = vld [vmem:[%s1 + $0x98] sm:$0xf]
  %v230 = vld [vmem:[%s1 + $0x9c] sm:$0xf]
  %v231 = vld [vmem:[%s1 + $0xa0] sm:$0xf]
  %v232 = vld [vmem:[%s1 + $0xa4] sm:$0xf]
  %v233 = vld [vmem:[%s1 + $0xa8] sm:$0xf]
  %v234 = vld [vmem:[%s1 + $0xac] sm:$0xf]
  %v235 = vld [vmem:[%s1 + $0xb0] sm:$0xf]
  %v236 = vld [vmem:[%s1 + $0xb4] sm:$0xf]
  %v237 = vld [vmem:[%s1 + $0xb8] sm:$0xf]
  %v238 = vld [vmem:[%s1 + $0xbc] sm:$0xf]
  %v239 = vld [vmem:[%s1 + $0xc0] sm:$0xf]
  %v240 = vld [vmem:[%s1 + $0xc4] sm:$0xf]
  %v241 = vld [vmem:[%s1 + $0xc8] sm:$0xf]
  %v242 = vld [vmem:[%s1 + $0xcc] sm:$0xf]
  %v243 = vld [vmem:[%s1 + $0xd0] sm:$0xf]
  %v244 = vld [vmem:[%s1 + $0xd4] sm:$0xf]
  %v245 = vld [vmem:[%s1 + $0xd8] sm:$0xf]
  %v246 = vld [vmem:[%s1 + $0xdc] sm:$0xf]
  %v247 = vld [vmem:[%s1 + $0xe0] sm:$0xf]
  %v248 = vld [vmem:[%s1 + $0xe4] sm:$0xf]
  %v249 = vld [vmem:[%s1 + $0xe8] sm:$0xf]
  %v250 = vld [vmem:[%s1 + $0xec] sm:$0xf]
  %v251 = vld [vmem:[%s1 + $0xf0] sm:$0xf]
  %v252 = vld [vmem:[%s1 + $0xf4] sm:$0xf]
  %v253 = vld [vmem:[%s1 + $0xf8] sm:$0xf]
  %v254 = vld [vmem:[%s1 + $0xfc] sm:$0xf]
  %v255 = vld [vmem:[%s1 + $0x100] sm:$0xf]
  %v256 = vld [vmem:[%s1 + $0x104] sm:$0xf]
  %v257 = vld [vmem:[%s1 + $0x108] sm:$0xf]
  %v258 = vld [vmem:[%s1 + $0x10c] sm:$0xf]
  %v259 = vld [vmem:[%s1 + $0x110] sm:$0xf]
  %v260 = vld [vmem:[%s1 + $0x114] sm:$0xf]
  %v261 = vld [vmem:[%s1 + $0x118] sm:$0xf]
  %v262 = vld [vmem:[%s1 + $0x11c] sm:$0xf]
  %v263 = vld [vmem:[%s1 + $0x120] sm:$0xf]
  %v264 = vld [vmem:[%s1 + $0x124] sm:$0xf]
  %v265 = vld [vmem:[%s1 + $0x128] sm:$0xf]
  %v266 = vld [vmem:[%s1 + $0x12c] sm:$0xf]
  %v267 = vld [vmem:[%s1 + $0x130] sm:$0xf]
  %v268 = vld [vmem:[%s1 + $0x134] sm:$0xf]
  %v269 = vld [vmem:[%s1 + $0x138] sm:$0xf]
  %v270 = vld [vmem:[%s1 + $0x13c] sm:$0xf]
  %v271 = vld [vmem:[%s1 + $0x140] sm:$0xf]
  %v272 = vld [vmem:[%s1 + $0x144] sm:$0xf]
  %v273 = vld [vmem:[%s1 + $0x148] sm:$0xf]
  %v274 = vld [vmem:[%s1 + $0x14c] sm:$0xf]
  %v275 = vld [vmem:[%s1 + $0x150] sm:$0xf]
  %v276 = vld [vmem:[%s1 + $0x154] sm:$0xf]
  %v277 = vld [vmem:[%s1 + $0x158] sm:$0xf]
  %v278 = vld [vmem:[%s1 + $0x15c] sm:$0xf]
  %v279 = vld [vmem:[%s1 + $0x160] sm:$0xf]
  %v280 = vld [vmem:[%s1 + $0x164] sm:$0xf]
  %v281 = vld [vmem:[%s1 + $0x168] sm:$0xf]
  %v282 = vld [vmem:[%s1 + $0x16c] sm:$0xf]
  %v283 = vld [vmem:[%s1 + $0x170] sm:$0xf]
  %v284 = vld [vmem:[%s1 + $0x174] sm:$0xf]
  %v285 = vld [vmem:[%s1 + $0x178] sm:$0xf]
  %v286 = vld [vmem:[%s1 + $0x17c] sm:$0xf]
  %v287 = vld [vmem:[%s1 + $0x180] sm:$0xf]
  %v288 = vld [vmem:[%s1 + $0x184] sm:$0xf]
  %v289 = vld [vmem:[%s1 + $0x188] sm:$0xf]
  %v290 = vld [vmem:[%s1 + $0x18c] sm:$0xf]
  %v291 = vld [vmem:[%s1 + $0x190] sm:$0xf]
  %v292 = vld [vmem:[%s1 + $0x194] sm:$0xf]
  %v293 = vld [vmem:[%s1 + $0x198] sm:$0xf]
  %v294 = vld [vmem:[%s1 + $0x19c] sm:$0xf]
  %v295 = vld [vmem:[%s1 + $0x1a0] sm:$0xf]
  %v296 = vld [vmem:[%s1 + $0x1a4] sm:$0xf]
  %v297 = vld [vmem:[%s1 + $0x1a8] sm:$0xf]
  %v298 = vld [vmem:[%s1 + $0x1ac] sm:$0xf]
  %v299 = vld [vmem:[%s1 + $0x1b0] sm:$0xf]
  %v300 = vld [vmem:[%s1 + $0x1b4] sm:$0xf]
  %v301 = vld [vmem:[%s1 + $0x1b8] sm:$0xf]
  %v302 = vld [vmem:[%s1 + $0x1bc] sm:$0xf]
  %v303 = vld [vmem:[%s1 + $0x1c0] sm:$0xf]
  %v304 = vld [vmem:[%s1 + $0x1c4] sm:$0xf]
  %v305 = vld [vmem:[%s1 + $0x1c8] sm:$0xf]
  %v306 = vld [vmem:[%s1 + $0x1cc] sm:$0xf]
  %v307 = vld [vmem:[%s1 + $0x1d0] sm:$0xf]
  %v308 = vld [vmem:[%s1 + $0x1d4] sm:$0xf]
  %v309 = vld [vmem:[%s1 + $0x1d8] sm:$0xf]
  %v310 = vld [vmem:[%s1 + $0x1dc] sm:$0xf]
  %v311 = vld [vmem:[%s1 + $0x1e0] sm:$0xf]
  %v312 = vld [vmem:[%s1 + $0x1e4] sm:$0xf]
  %v313 = vld [vmem:[%s1 + $0x1e8] sm:$0xf]
  %v314 = vld [vmem:[%s1 + $0x1ec] sm:$0xf]
  %v315 = vld [vmem:[%s1 + $0x1f0] sm:$0xf]
  %v316 = vld [vmem:[%s1 + $0x1f4] sm:$0xf]
  %v317 = vld [vmem:[%s1 + $0x1f8] sm:$0xf]
  %v318 = vld [vmem:[%s1 + $0x1fc] sm:$0xf]
  %v319 = vld [vmem:[%s2] sm:$0x1]
  %v321 = vlaneseq
  %v322 = vshrl.u32 %v321, 7
  %v323 = vsub.s32 0, %v322
  %v324 = vrot.slane %v319, %v323
  %v502 = vunpack.c.l.b16 %v15
  %v503 = vunpack.c.h.b16 %v15
  %v504 = vunpack.c.l.b16 %v16
  %v505 = vunpack.c.h.b16 %v16
  %v506 = vunpack.c.l.b16 %v17
  %v507 = vunpack.c.h.b16 %v17
  %v508 = vunpack.c.l.b16 %v18
  %v509 = vunpack.c.h.b16 %v18
  %v510 = vunpack.c.l.b16 %v19
  %v511 = vunpack.c.h.b16 %v19
  %v512 = vunpack.c.l.b16 %v20
  %v513 = vunpack.c.h.b16 %v20
  %v514 = vunpack.c.l.b16 %v21
  %v515 = vunpack.c.h.b16 %v21
  %v516 = vunpack.c.l.b16 %v22
  %v517 = vunpack.c.h.b16 %v22
  %v518 = vunpack.c.l.b16 %v23
  %v519 = vunpack.c.h.b16 %v23
  %v520 = vunpack.c.l.b16 %v24
  %v521 = vunpack.c.h.b16 %v24
  %v522 = vunpack.c.l.b16 %v25
  %v523 = vunpack.c.h.b16 %v25
  %v524 = vunpack.c.l.b16 %v26
  %v525 = vunpack.c.h.b16 %v26
  %v526 = vunpack.c.l.b16 %v27
  %v527 = vunpack.c.h.b16 %v27
  %v528 = vunpack.c.l.b16 %v28
  %v529 = vunpack.c.h.b16 %v28
  %v530 = vunpack.c.l.b16 %v29
  %v531 = vunpack.c.h.b16 %v29
  %v532 = vunpack.c.l.b16 %v30
  %v533 = vunpack.c.h.b16 %v30
  %v534 = vunpack.c.l.b16 %v31
  %v535 = vunpack.c.h.b16 %v31
  %v536 = vunpack.c.l.b16 %v32
  %v537 = vunpack.c.h.b16 %v32
  %v538 = vunpack.c.l.b16 %v33
  %v539 = vunpack.c.h.b16 %v33
  %v540 = vunpack.c.l.b16 %v34
  %v541 = vunpack.c.h.b16 %v34
  %v542 = vunpack.c.l.b16 %v35
  %v543 = vunpack.c.h.b16 %v35
  %v544 = vunpack.c.l.b16 %v36
  %v545 = vunpack.c.h.b16 %v36
  %v546 = vunpack.c.l.b16 %v37
  %v547 = vunpack.c.h.b16 %v37
  %v548 = vunpack.c.l.b16 %v38
  %v549 = vunpack.c.h.b16 %v38
  %v550 = vunpack.c.l.b16 %v39
  %v551 = vunpack.c.h.b16 %v39
  %v552 = vunpack.c.l.b16 %v40
  %v553 = vunpack.c.h.b16 %v40
  %v554 = vunpack.c.l.b16 %v41
  %v555 = vunpack.c.h.b16 %v41
  %v556 = vunpack.c.l.b16 %v42
  %v557 = vunpack.c.h.b16 %v42
  %v558 = vunpack.c.l.b16 %v43
  %v559 = vunpack.c.h.b16 %v43
  %v560 = vunpack.c.l.b16 %v44
  %v561 = vunpack.c.h.b16 %v44
  %v562 = vunpack.c.l.b16 %v45
  %v563 = vunpack.c.h.b16 %v45
  %v564 = vunpack.c.l.b16 %v46
  %v565 = vunpack.c.h.b16 %v46
  %v566 = vunpack.c.l.b16 %v47
  %v567 = vunpack.c.h.b16 %v47
  %v568 = vunpack.c.l.b16 %v48
  %v569 = vunpack.c.h.b16 %v48
  %v570 = vunpack.c.l.b16 %v49
  %v571 = vunpack.c.h.b16 %v49
  %v572 = vunpack.c.l.b16 %v50
  %v573 = vunpack.c.h.b16 %v50
  %v574 = vunpack.c.l.b16 %v51
  %v575 = vunpack.c.h.b16 %v51
  %v576 = vunpack.c.l.b16 %v52
  %v577 = vunpack.c.h.b16 %v52
  %v578 = vunpack.c.l.b16 %v53
  %v579 = vunpack.c.h.b16 %v53
  %v580 = vunpack.c.l.b16 %v54
  %v581 = vunpack.c.h.b16 %v54
  %v582 = vunpack.c.l.b16 %v55
  %v583 = vunpack.c.h.b16 %v55
  %v584 = vunpack.c.l.b16 %v56
  %v585 = vunpack.c.h.b16 %v56
  %v586 = vunpack.c.l.b16 %v57
  %v587 = vunpack.c.h.b16 %v57
  %v588 = vunpack.c.l.b16 %v58
  %v589 = vunpack.c.h.b16 %v58
  %v590 = vunpack.c.l.b16 %v59
  %v591 = vunpack.c.h.b16 %v59
  %v592 = vunpack.c.l.b16 %v60
  %v593 = vunpack.c.h.b16 %v60
  %v594 = vunpack.c.l.b16 %v61
  %v595 = vunpack.c.h.b16 %v61
  %v596 = vunpack.c.l.b16 %v62
  %v597 = vunpack.c.h.b16 %v62
  %v598 = vunpack.c.l.b16 %v63
  %v599 = vunpack.c.h.b16 %v63
  %v600 = vunpack.c.l.b16 %v64
  %v601 = vunpack.c.h.b16 %v64
  %v602 = vunpack.c.l.b16 %v65
  %v603 = vunpack.c.h.b16 %v65
  %v604 = vunpack.c.l.b16 %v66
  %v605 = vunpack.c.h.b16 %v66
  %v606 = vunpack.c.l.b16 %v67
  %v607 = vunpack.c.h.b16 %v67
  %v608 = vunpack.c.l.b16 %v68
  %v609 = vunpack.c.h.b16 %v68
  %v610 = vunpack.c.l.b16 %v69
  %v611 = vunpack.c.h.b16 %v69
  %v612 = vunpack.c.l.b16 %v70
  %v613 = vunpack.c.h.b16 %v70
  %v614 = vunpack.c.l.b16 %v71
  %v615 = vunpack.c.h.b16 %v71
  %v616 = vunpack.c.l.b16 %v72
  %v617 = vunpack.c.h.b16 %v72
  %v618 = vunpack.c.l.b16 %v73
  %v619 = vunpack.c.h.b16 %v73
  %v620 = vunpack.c.l.b16 %v74
  %v621 = vunpack.c.h.b16 %v74
  %v622 = vunpack.c.l.b16 %v75
  %v623 = vunpack.c.h.b16 %v75
  %v624 = vunpack.c.l.b16 %v76
  %v625 = vunpack.c.h.b16 %v76
  %v626 = vunpack.c.l.b16 %v77
  %v627 = vunpack.c.h.b16 %v77
  %v628 = vunpack.c.l.b16 %v78
  %v629 = vunpack.c.h.b16 %v78
  %v630 = vunpack.c.l.b16 %v79
  %v631 = vunpack.c.h.b16 %v79
  %v632 = vunpack.c.l.b16 %v80
  %v633 = vunpack.c.h.b16 %v80
  %v634 = vunpack.c.l.b16 %v81
  %v635 = vunpack.c.h.b16 %v81
  %v636 = vunpack.c.l.b16 %v82
  %v637 = vunpack.c.h.b16 %v82
  %v638 = vunpack.c.l.b16 %v83
  %v639 = vunpack.c.h.b16 %v83
  %v640 = vunpack.c.l.b16 %v84
  %v641 = vunpack.c.h.b16 %v84
  %v642 = vunpack.c.l.b16 %v85
  %v643 = vunpack.c.h.b16 %v85
  %v644 = vunpack.c.l.b16 %v86
  %v645 = vunpack.c.h.b16 %v86
  %v646 = vunpack.c.l.b16 %v87
  %v647 = vunpack.c.h.b16 %v87
  %v648 = vunpack.c.l.b16 %v88
  %v649 = vunpack.c.h.b16 %v88
  %v650 = vunpack.c.l.b16 %v89
  %v651 = vunpack.c.h.b16 %v89
  %v652 = vunpack.c.l.b16 %v90
  %v653 = vunpack.c.h.b16 %v90
  %v654 = vunpack.c.l.b16 %v91
  %v655 = vunpack.c.h.b16 %v91
  %v656 = vunpack.c.l.b16 %v92
  %v657 = vunpack.c.h.b16 %v92
  %v658 = vunpack.c.l.b16 %v93
  %v659 = vunpack.c.h.b16 %v93
  %v660 = vunpack.c.l.b16 %v94
  %v661 = vunpack.c.h.b16 %v94
  %v662 = vunpack.c.l.b16 %v95
  %v663 = vunpack.c.h.b16 %v95
  %v664 = vunpack.c.l.b16 %v96
  %v665 = vunpack.c.h.b16 %v96
  %v666 = vunpack.c.l.b16 %v97
  %v667 = vunpack.c.h.b16 %v97
  %v668 = vunpack.c.l.b16 %v98
  %v669 = vunpack.c.h.b16 %v98
  %v670 = vunpack.c.l.b16 %v99
  %v671 = vunpack.c.h.b16 %v99
  %v672 = vunpack.c.l.b16 %v100
  %v673 = vunpack.c.h.b16 %v100
  %v674 = vunpack.c.l.b16 %v101
  %v675 = vunpack.c.h.b16 %v101
  %v676 = vunpack.c.l.b16 %v102
  %v677 = vunpack.c.h.b16 %v102
  %v678 = vunpack.c.l.b16 %v103
  %v679 = vunpack.c.h.b16 %v103
  %v680 = vunpack.c.l.b16 %v104
  %v681 = vunpack.c.h.b16 %v104
  %v682 = vunpack.c.l.b16 %v105
  %v683 = vunpack.c.h.b16 %v105
  %v684 = vunpack.c.l.b16 %v106
  %v685 = vunpack.c.h.b16 %v106
  %v686 = vunpack.c.l.b16 %v107
  %v687 = vunpack.c.h.b16 %v107
  %v688 = vunpack.c.l.b16 %v108
  %v689 = vunpack.c.h.b16 %v108
  %v690 = vunpack.c.l.b16 %v109
  %v691 = vunpack.c.h.b16 %v109
  %v692 = vunpack.c.l.b16 %v110
  %v693 = vunpack.c.h.b16 %v110
  %v694 = vunpack.c.l.b16 %v111
  %v695 = vunpack.c.h.b16 %v111
  %v696 = vunpack.c.l.b16 %v112
  %v697 = vunpack.c.h.b16 %v112
  %v698 = vunpack.c.l.b16 %v113
  %v699 = vunpack.c.h.b16 %v113
  %v700 = vunpack.c.l.b16 %v114
  %v701 = vunpack.c.h.b16 %v114
  %v702 = vunpack.c.l.b16 %v115
  %v703 = vunpack.c.h.b16 %v115
  %v704 = vunpack.c.l.b16 %v116
  %v705 = vunpack.c.h.b16 %v116
  %v706 = vunpack.c.l.b16 %v117
  %v707 = vunpack.c.h.b16 %v117
  %v708 = vunpack.c.l.b16 %v118
  %v709 = vunpack.c.h.b16 %v118
  %v710 = vunpack.c.l.b16 %v119
  %v711 = vunpack.c.h.b16 %v119
  %v712 = vunpack.c.l.b16 %v120
  %v713 = vunpack.c.h.b16 %v120
  %v714 = vunpack.c.l.b16 %v121
  %v715 = vunpack.c.h.b16 %v121
  %v716 = vunpack.c.l.b16 %v122
  %v717 = vunpack.c.h.b16 %v122
  %v718 = vunpack.c.l.b16 %v123
  %v719 = vunpack.c.h.b16 %v123
  %v720 = vunpack.c.l.b16 %v124
  %v721 = vunpack.c.h.b16 %v124
  %v722 = vunpack.c.l.b16 %v125
  %v723 = vunpack.c.h.b16 %v125
  %v724 = vunpack.c.l.b16 %v126
  %v725 = vunpack.c.h.b16 %v126
  %v726 = vunpack.c.l.b16 %v127
  %v727 = vunpack.c.h.b16 %v127
  %v728 = vunpack.c.l.b16 %v128
  %v729 = vunpack.c.h.b16 %v128
  %v730 = vunpack.c.l.b16 %v129
  %v731 = vunpack.c.h.b16 %v129
  %v732 = vunpack.c.l.b16 %v130
  %v733 = vunpack.c.h.b16 %v130
  %v734 = vunpack.c.l.b16 %v131
  %v735 = vunpack.c.h.b16 %v131
  %v736 = vunpack.c.l.b16 %v132
  %v737 = vunpack.c.h.b16 %v132
  %v738 = vunpack.c.l.b16 %v133
  %v739 = vunpack.c.h.b16 %v133
  %v740 = vunpack.c.l.b16 %v134
  %v741 = vunpack.c.h.b16 %v134
  %v742 = vunpack.c.l.b16 %v135
  %v743 = vunpack.c.h.b16 %v135
  %v744 = vunpack.c.l.b16 %v136
  %v745 = vunpack.c.h.b16 %v136
  %v746 = vunpack.c.l.b16 %v137
  %v747 = vunpack.c.h.b16 %v137
  %v748 = vunpack.c.l.b16 %v138
  %v749 = vunpack.c.h.b16 %v138
  %v750 = vunpack.c.l.b16 %v139
  %v751 = vunpack.c.h.b16 %v139
  %v752 = vunpack.c.l.b16 %v140
  %v753 = vunpack.c.h.b16 %v140
  %v754 = vunpack.c.l.b16 %v141
  %v755 = vunpack.c.h.b16 %v141
  %v756 = vunpack.c.l.b16 %v142
  %v757 = vunpack.c.h.b16 %v142
  %v758 = vunpack.c.l.b16 %v143
  %v759 = vunpack.c.h.b16 %v143
  %v760 = vunpack.c.l.b16 %v144
  %v761 = vunpack.c.h.b16 %v144
  %v762 = vunpack.c.l.b16 %v145
  %v763 = vunpack.c.h.b16 %v145
  %v764 = vunpack.c.l.b16 %v146
  %v765 = vunpack.c.h.b16 %v146
  %v766 = vunpack.c.l.b16 %v147
  %v767 = vunpack.c.h.b16 %v147
  %v768 = vunpack.c.l.b16 %v148
  %v769 = vunpack.c.h.b16 %v148
  %v770 = vunpack.c.l.b16 %v149
  %v771 = vunpack.c.h.b16 %v149
  %v772 = vunpack.c.l.b16 %v150
  %v773 = vunpack.c.h.b16 %v150
  %v774 = vunpack.c.l.b16 %v151
  %v775 = vunpack.c.h.b16 %v151
  %v776 = vunpack.c.l.b16 %v152
  %v777 = vunpack.c.h.b16 %v152
  %v778 = vunpack.c.l.b16 %v153
  %v779 = vunpack.c.h.b16 %v153
  %v780 = vunpack.c.l.b16 %v154
  %v781 = vunpack.c.h.b16 %v154
  %v782 = vunpack.c.l.b16 %v155
  %v783 = vunpack.c.h.b16 %v155
  %v784 = vunpack.c.l.b16 %v156
  %v785 = vunpack.c.h.b16 %v156
  %v786 = vunpack.c.l.b16 %v157
  %v787 = vunpack.c.h.b16 %v157
  %v788 = vunpack.c.l.b16 %v158
  %v789 = vunpack.c.h.b16 %v158
  %v790 = vunpack.c.l.b16 %v159
  %v791 = vunpack.c.h.b16 %v159
  %v792 = vunpack.c.l.b16 %v160
  %v793 = vunpack.c.h.b16 %v160
  %v794 = vunpack.c.l.b16 %v161
  %v795 = vunpack.c.h.b16 %v161
  %v796 = vunpack.c.l.b16 %v162
  %v797 = vunpack.c.h.b16 %v162
  %v798 = vunpack.c.l.b16 %v163
  %v799 = vunpack.c.h.b16 %v163
  %v800 = vunpack.c.l.b16 %v164
  %v801 = vunpack.c.h.b16 %v164
  %v802 = vunpack.c.l.b16 %v165
  %v803 = vunpack.c.h.b16 %v165
  %v804 = vunpack.c.l.b16 %v166
  %v805 = vunpack.c.h.b16 %v166
  %v806 = vunpack.c.l.b16 %v167
  %v807 = vunpack.c.h.b16 %v167
  %v808 = vunpack.c.l.b16 %v168
  %v809 = vunpack.c.h.b16 %v168
  %v810 = vunpack.c.l.b16 %v169
  %v811 = vunpack.c.h.b16 %v169
  %v812 = vunpack.c.l.b16 %v170
  %v813 = vunpack.c.h.b16 %v170
  %v814 = vunpack.c.l.b16 %v171
  %v815 = vunpack.c.h.b16 %v171
  %v816 = vunpack.c.l.b16 %v172
  %v817 = vunpack.c.h.b16 %v172
  %v818 = vunpack.c.l.b16 %v173
  %v819 = vunpack.c.h.b16 %v173
  %v820 = vunpack.c.l.b16 %v174
  %v821 = vunpack.c.h.b16 %v174
  %v822 = vunpack.c.l.b16 %v175
  %v823 = vunpack.c.h.b16 %v175
  %v824 = vunpack.c.l.b16 %v176
  %v825 = vunpack.c.h.b16 %v176
  %v826 = vunpack.c.l.b16 %v177
  %v827 = vunpack.c.h.b16 %v177
  %v828 = vunpack.c.l.b16 %v178
  %v829 = vunpack.c.h.b16 %v178
  %v830 = vunpack.c.l.b16 %v179
  %v831 = vunpack.c.h.b16 %v179
  %v832 = vunpack.c.l.b16 %v180
  %v833 = vunpack.c.h.b16 %v180
  %v834 = vunpack.c.l.b16 %v181
  %v835 = vunpack.c.h.b16 %v181
  %v836 = vunpack.c.l.b16 %v182
  %v837 = vunpack.c.h.b16 %v182
  %v838 = vunpack.c.l.b16 %v183
  %v839 = vunpack.c.h.b16 %v183
  %v840 = vunpack.c.l.b16 %v184
  %v841 = vunpack.c.h.b16 %v184
  %v842 = vunpack.c.l.b16 %v185
  %v843 = vunpack.c.h.b16 %v185
  %v844 = vunpack.c.l.b16 %v186
  %v845 = vunpack.c.h.b16 %v186
  %v846 = vunpack.c.l.b16 %v187
  %v847 = vunpack.c.h.b16 %v187
  %v848 = vunpack.c.l.b16 %v188
  %v849 = vunpack.c.h.b16 %v188
  %v850 = vunpack.c.l.b16 %v189
  %v851 = vunpack.c.h.b16 %v189
  %v852 = vunpack.c.l.b16 %v190
  %v853 = vunpack.c.h.b16 %v190
  %v854 = vpack.c.b16 %v510, %v502
  %v855 = vpack.c.b16 %v511, %v503
  %v856 = vpack.c.b16 %v512, %v504
  %v857 = vpack.c.b16 %v513, %v505
  %v858 = vpack.c.b16 %v514, %v506
  %v859 = vpack.c.b16 %v515, %v507
  %v860 = vpack.c.b16 %v516, %v508
  %v861 = vpack.c.b16 %v517, %v509
  %v862 = vpack.c.b16 %v526, %v518
  %v863 = vpack.c.b16 %v527, %v519
  %v864 = vpack.c.b16 %v528, %v520
  %v865 = vpack.c.b16 %v529, %v521
  %v866 = vpack.c.b16 %v530, %v522
  %v867 = vpack.c.b16 %v531, %v523
  %v868 = vpack.c.b16 %v532, %v524
  %v869 = vpack.c.b16 %v533, %v525
  %v870 = vpack.c.b16 %v542, %v534
  %v871 = vpack.c.b16 %v543, %v535
  %v872 = vpack.c.b16 %v544, %v536
  %v873 = vpack.c.b16 %v545, %v537
  %v874 = vpack.c.b16 %v546, %v538
  %v875 = vpack.c.b16 %v547, %v539
  %v876 = vpack.c.b16 %v548, %v540
  %v877 = vpack.c.b16 %v549, %v541
  %v878 = vpack.c.b16 %v558, %v550
  %v879 = vpack.c.b16 %v559, %v551
  %v880 = vpack.c.b16 %v560, %v552
  %v881 = vpack.c.b16 %v561, %v553
  %v882 = vpack.c.b16 %v562, %v554
  %v883 = vpack.c.b16 %v563, %v555
  %v884 = vpack.c.b16 %v564, %v556
  %v885 = vpack.c.b16 %v565, %v557
  %v886 = vpack.c.b16 %v574, %v566
  %v887 = vpack.c.b16 %v575, %v567
  %v888 = vpack.c.b16 %v576, %v568
  %v889 = vpack.c.b16 %v577, %v569
  %v890 = vpack.c.b16 %v578, %v570
  %v891 = vpack.c.b16 %v579, %v571
  %v892 = vpack.c.b16 %v580, %v572
  %v893 = vpack.c.b16 %v581, %v573
  %v894 = vpack.c.b16 %v590, %v582
  %v895 = vpack.c.b16 %v591, %v583
  %v896 = vpack.c.b16 %v592, %v584
  %v897 = vpack.c.b16 %v593, %v585
  %v898 = vpack.c.b16 %v594, %v586
  %v899 = vpack.c.b16 %v595, %v587
  %v900 = vpack.c.b16 %v596, %v588
  %v901 = vpack.c.b16 %v597, %v589
  %v902 = vpack.c.b16 %v606, %v598
  %v903 = vpack.c.b16 %v607, %v599
  %v904 = vpack.c.b16 %v608, %v600
  %v905 = vpack.c.b16 %v609, %v601
  %v906 = vpack.c.b16 %v610, %v602
  %v907 = vpack.c.b16 %v611, %v603
  %v908 = vpack.c.b16 %v612, %v604
  %v909 = vpack.c.b16 %v613, %v605
  %v910 = vpack.c.b16 %v622, %v614
  %v911 = vpack.c.b16 %v623, %v615
  %v912 = vpack.c.b16 %v624, %v616
  %v913 = vpack.c.b16 %v625, %v617
  %v914 = vpack.c.b16 %v626, %v618
  %v915 = vpack.c.b16 %v627, %v619
  %v916 = vpack.c.b16 %v628, %v620
  %v917 = vpack.c.b16 %v629, %v621
  %v918 = vpack.c.b16 %v638, %v630
  %v919 = vpack.c.b16 %v639, %v631
  %v920 = vpack.c.b16 %v640, %v632
  %v921 = vpack.c.b16 %v641, %v633
  %v922 = vpack.c.b16 %v642, %v634
  %v923 = vpack.c.b16 %v643, %v635
  %v924 = vpack.c.b16 %v644, %v636
  %v925 = vpack.c.b16 %v645, %v637
  %v926 = vpack.c.b16 %v654, %v646
  %v927 = vpack.c.b16 %v655, %v647
  %v928 = vpack.c.b16 %v656, %v648
  %v929 = vpack.c.b16 %v657, %v649
  %v930 = vpack.c.b16 %v658, %v650
  %v931 = vpack.c.b16 %v659, %v651
  %v932 = vpack.c.b16 %v660, %v652
  %v933 = vpack.c.b16 %v661, %v653
  %v934 = vpack.c.b16 %v670, %v662
  %v935 = vpack.c.b16 %v671, %v663
  %v936 = vpack.c.b16 %v672, %v664
  %v937 = vpack.c.b16 %v673, %v665
  %v938 = vpack.c.b16 %v674, %v666
  %v939 = vpack.c.b16 %v675, %v667
  %v940 = vpack.c.b16 %v676, %v668
  %v941 = vpack.c.b16 %v677, %v669
  %v942 = vpack.c.b16 %v686, %v678
  %v943 = vpack.c.b16 %v687, %v679
  %v944 = vpack.c.b16 %v688, %v680
  %v945 = vpack.c.b16 %v689, %v681
  %v946 = vpack.c.b16 %v690, %v682
  %v947 = vpack.c.b16 %v691, %v683
  %v948 = vpack.c.b16 %v692, %v684
  %v949 = vpack.c.b16 %v693, %v685
  %v950 = vpack.c.b16 %v702, %v694
  %v951 = vpack.c.b16 %v703, %v695
  %v952 = vpack.c.b16 %v704, %v696
  %v953 = vpack.c.b16 %v705, %v697
  %v954 = vpack.c.b16 %v706, %v698
  %v955 = vpack.c.b16 %v707, %v699
  %v956 = vpack.c.b16 %v708, %v700
  %v957 = vpack.c.b16 %v709, %v701
  %v958 = vpack.c.b16 %v718, %v710
  %v959 = vpack.c.b16 %v719, %v711
  %v960 = vpack.c.b16 %v720, %v712
  %v961 = vpack.c.b16 %v721, %v713
  %v962 = vpack.c.b16 %v722, %v714
  %v963 = vpack.c.b16 %v723, %v715
  %v964 = vpack.c.b16 %v724, %v716
  %v965 = vpack.c.b16 %v725, %v717
  %v966 = vpack.c.b16 %v734, %v726
  %v967 = vpack.c.b16 %v735, %v727
  %v968 = vpack.c.b16 %v736, %v728
  %v969 = vpack.c.b16 %v737, %v729
  %v970 = vpack.c.b16 %v738, %v730
  %v971 = vpack.c.b16 %v739, %v731
  %v972 = vpack.c.b16 %v740, %v732
  %v973 = vpack.c.b16 %v741, %v733
  %v974 = vpack.c.b16 %v750, %v742
  %v975 = vpack.c.b16 %v751, %v743
  %v976 = vpack.c.b16 %v752, %v744
  %v977 = vpack.c.b16 %v753, %v745
  %v978 = vpack.c.b16 %v754, %v746
  %v979 = vpack.c.b16 %v755, %v747
  %v980 = vpack.c.b16 %v756, %v748
  %v981 = vpack.c.b16 %v757, %v749
  %v982 = vpack.c.b16 %v766, %v758
  %v983 = vpack.c.b16 %v767, %v759
  %v984 = vpack.c.b16 %v768, %v760
  %v985 = vpack.c.b16 %v769, %v761
  %v986 = vpack.c.b16 %v770, %v762
  %v987 = vpack.c.b16 %v771, %v763
  %v988 = vpack.c.b16 %v772, %v764
  %v989 = vpack.c.b16 %v773, %v765
  %v990 = vpack.c.b16 %v782, %v774
  %v991 = vpack.c.b16 %v783, %v775
  %v992 = vpack.c.b16 %v784, %v776
  %v993 = vpack.c.b16 %v785, %v777
  %v994 = vpack.c.b16 %v786, %v778
  %v995 = vpack.c.b16 %v787, %v779
  %v996 = vpack.c.b16 %v788, %v780
  %v997 = vpack.c.b16 %v789, %v781
  %v998 = vpack.c.b16 %v798, %v790
  %v999 = vpack.c.b16 %v799, %v791
  %v1000 = vpack.c.b16 %v800, %v792
  %v1001 = vpack.c.b16 %v801, %v793
  %v1002 = vpack.c.b16 %v802, %v794
  %v1003 = vpack.c.b16 %v803, %v795
  %v1004 = vpack.c.b16 %v804, %v796
  %v1005 = vpack.c.b16 %v805, %v797
  %v1006 = vpack.c.b16 %v814, %v806
  %v1007 = vpack.c.b16 %v815, %v807
  %v1008 = vpack.c.b16 %v816, %v808
  %v1009 = vpack.c.b16 %v817, %v809
  %v1010 = vpack.c.b16 %v818, %v810
  %v1011 = vpack.c.b16 %v819, %v811
  %v1012 = vpack.c.b16 %v820, %v812
  %v1013 = vpack.c.b16 %v821, %v813
  %v1014 = vpack.c.b16 %v830, %v822
  %v1015 = vpack.c.b16 %v831, %v823
  %v1016 = vpack.c.b16 %v832, %v824
  %v1017 = vpack.c.b16 %v833, %v825
  %v1018 = vpack.c.b16 %v834, %v826
  %v1019 = vpack.c.b16 %v835, %v827
  %v1020 = vpack.c.b16 %v836, %v828
  %v1021 = vpack.c.b16 %v837, %v829
  %v1022 = vpack.c.b16 %v846, %v838
  %v1023 = vpack.c.b16 %v847, %v839
  %v1024 = vpack.c.b16 %v848, %v840
  %v1025 = vpack.c.b16 %v849, %v841
  %v1026 = vpack.c.b16 %v850, %v842
  %v1027 = vpack.c.b16 %v851, %v843
  %v1028 = vpack.c.b16 %v852, %v844
  %v1029 = vpack.c.b16 %v853, %v845
  %v1334 = vunpack.c.l.b16 %v191
  %v1335 = vunpack.c.l.b16 %v192
  %v1336 = vunpack.c.l.b16 %v193
  %v1337 = vunpack.c.l.b16 %v194
  %v1338 = vunpack.c.l.b16 %v195
  %v1339 = vunpack.c.l.b16 %v196
  %v1340 = vunpack.c.l.b16 %v197
  %v1341 = vunpack.c.l.b16 %v198
  %v1342 = vunpack.c.l.b16 %v199
  %v1343 = vunpack.c.l.b16 %v200
  %v1344 = vunpack.c.l.b16 %v201
  %v1345 = vunpack.c.l.b16 %v202
  %v1346 = vunpack.c.l.b16 %v203
  %v1347 = vunpack.c.l.b16 %v204
  %v1348 = vunpack.c.l.b16 %v205
  %v1349 = vunpack.c.l.b16 %v206
  %v1350 = vunpack.c.l.b16 %v207
  %v1351 = vunpack.c.l.b16 %v208
  %v1352 = vunpack.c.l.b16 %v209
  %v1353 = vunpack.c.l.b16 %v210
  %v1354 = vunpack.c.l.b16 %v211
  %v1355 = vunpack.c.l.b16 %v212
  %v1356 = vunpack.c.l.b16 %v213
  %v1357 = vunpack.c.l.b16 %v214
  %v1358 = vunpack.c.l.b16 %v215
  %v1359 = vunpack.c.l.b16 %v216
  %v1360 = vunpack.c.l.b16 %v217
  %v1361 = vunpack.c.l.b16 %v218
  %v1362 = vunpack.c.l.b16 %v219
  %v1363 = vunpack.c.l.b16 %v220
  %v1364 = vunpack.c.l.b16 %v221
  %v1365 = vunpack.c.l.b16 %v222
  %v1366 = vunpack.c.l.b16 %v223
  %v1367 = vunpack.c.l.b16 %v224
  %v1368 = vunpack.c.l.b16 %v225
  %v1369 = vunpack.c.l.b16 %v226
  %v1370 = vunpack.c.l.b16 %v227
  %v1371 = vunpack.c.l.b16 %v228
  %v1372 = vunpack.c.l.b16 %v229
  %v1373 = vunpack.c.l.b16 %v230
  %v1374 = vunpack.c.l.b16 %v231
  %v1375 = vunpack.c.l.b16 %v232
  %v1376 = vunpack.c.l.b16 %v233
  %v1377 = vunpack.c.l.b16 %v234
  %v1378 = vunpack.c.l.b16 %v235
  %v1379 = vunpack.c.l.b16 %v236
  %v1380 = vunpack.c.l.b16 %v237
  %v1381 = vunpack.c.l.b16 %v238
  %v1382 = vunpack.c.l.b16 %v239
  %v1383 = vunpack.c.l.b16 %v240
  %v1384 = vunpack.c.l.b16 %v241
  %v1385 = vunpack.c.l.b16 %v242
  %v1386 = vunpack.c.l.b16 %v243
  %v1387 = vunpack.c.l.b16 %v244
  %v1388 = vunpack.c.l.b16 %v245
  %v1389 = vunpack.c.l.b16 %v246
  %v1390 = vunpack.c.l.b16 %v247
  %v1391 = vunpack.c.l.b16 %v248
  %v1392 = vunpack.c.l.b16 %v249
  %v1393 = vunpack.c.l.b16 %v250
  %v1394 = vunpack.c.l.b16 %v251
  %v1395 = vunpack.c.l.b16 %v252
  %v1396 = vunpack.c.l.b16 %v253
  %v1397 = vunpack.c.l.b16 %v254
  %v1398 = vunpack.c.l.b16 %v255
  %v1399 = vunpack.c.l.b16 %v256
  %v1400 = vunpack.c.l.b16 %v257
  %v1401 = vunpack.c.l.b16 %v258
  %v1402 = vunpack.c.l.b16 %v259
  %v1403 = vunpack.c.l.b16 %v260
  %v1404 = vunpack.c.l.b16 %v261
  %v1405 = vunpack.c.l.b16 %v262
  %v1406 = vunpack.c.l.b16 %v263
  %v1407 = vunpack.c.l.b16 %v264
  %v1408 = vunpack.c.l.b16 %v265
  %v1409 = vunpack.c.l.b16 %v266
  %v1410 = vunpack.c.l.b16 %v267
  %v1411 = vunpack.c.l.b16 %v268
  %v1412 = vunpack.c.l.b16 %v269
  %v1413 = vunpack.c.l.b16 %v270
  %v1414 = vunpack.c.l.b16 %v271
  %v1415 = vunpack.c.l.b16 %v272
  %v1416 = vunpack.c.l.b16 %v273
  %v1417 = vunpack.c.l.b16 %v274
  %v1418 = vunpack.c.l.b16 %v275
  %v1419 = vunpack.c.l.b16 %v276
  %v1420 = vunpack.c.l.b16 %v277
  %v1421 = vunpack.c.l.b16 %v278
  %v1422 = vunpack.c.l.b16 %v279
  %v1423 = vunpack.c.l.b16 %v280
  %v1424 = vunpack.c.l.b16 %v281
  %v1425 = vunpack.c.l.b16 %v282
  %v1426 = vunpack.c.l.b16 %v283
  %v1427 = vunpack.c.l.b16 %v284
  %v1428 = vunpack.c.l.b16 %v285
  %v1429 = vunpack.c.l.b16 %v286
  %v1430 = vunpack.c.l.b16 %v287
  %v1431 = vunpack.c.l.b16 %v288
  %v1432 = vunpack.c.l.b16 %v289
  %v1433 = vunpack.c.l.b16 %v290
  %v1434 = vunpack.c.l.b16 %v291
  %v1435 = vunpack.c.l.b16 %v292
  %v1436 = vunpack.c.l.b16 %v293
  %v1437 = vunpack.c.l.b16 %v294
  %v1438 = vunpack.c.l.b16 %v295
  %v1439 = vunpack.c.l.b16 %v296
  %v1440 = vunpack.c.l.b16 %v297
  %v1441 = vunpack.c.l.b16 %v298
  %v1442 = vunpack.c.l.b16 %v299
  %v1443 = vunpack.c.l.b16 %v300
  %v1444 = vunpack.c.l.b16 %v301
  %v1445 = vunpack.c.l.b16 %v302
  %v1446 = vunpack.c.l.b16 %v303
  %v1447 = vunpack.c.l.b16 %v304
  %v1448 = vunpack.c.l.b16 %v305
  %v1449 = vunpack.c.l.b16 %v306
  %v1450 = vunpack.c.l.b16 %v307
  %v1451 = vunpack.c.l.b16 %v308
  %v1452 = vunpack.c.l.b16 %v309
  %v1453 = vunpack.c.l.b16 %v310
  %v1454 = vunpack.c.l.b16 %v311
  %v1455 = vunpack.c.l.b16 %v312
  %v1456 = vunpack.c.l.b16 %v313
  %v1457 = vunpack.c.l.b16 %v314
  %v1458 = vunpack.c.l.b16 %v315
  %v1459 = vunpack.c.l.b16 %v316
  %v1460 = vunpack.c.l.b16 %v317
  %v1461 = vunpack.c.l.b16 %v318
  %v1462 = vpack.c.b16 %v1335, %v1334
  %v1463 = vpack.c.b16 %v1337, %v1336
  %v1464 = vpack.c.b16 %v1339, %v1338
  %v1465 = vpack.c.b16 %v1341, %v1340
  %v1466 = vpack.c.b16 %v1343, %v1342
  %v1467 = vpack.c.b16 %v1345, %v1344
  %v1468 = vpack.c.b16 %v1347, %v1346
  %v1469 = vpack.c.b16 %v1349, %v1348
  %v1470 = vpack.c.b16 %v1351, %v1350
  %v1471 = vpack.c.b16 %v1353, %v1352
  %v1472 = vpack.c.b16 %v1355, %v1354
  %v1473 = vpack.c.b16 %v1357, %v1356
  %v1474 = vpack.c.b16 %v1359, %v1358
  %v1475 = vpack.c.b16 %v1361, %v1360
  %v1476 = vpack.c.b16 %v1363, %v1362
  %v1477 = vpack.c.b16 %v1365, %v1364
  %v1478 = vpack.c.b16 %v1367, %v1366
  %v1479 = vpack.c.b16 %v1369, %v1368
  %v1480 = vpack.c.b16 %v1371, %v1370
  %v1481 = vpack.c.b16 %v1373, %v1372
  %v1482 = vpack.c.b16 %v1375, %v1374
  %v1483 = vpack.c.b16 %v1377, %v1376
  %v1484 = vpack.c.b16 %v1379, %v1378
  %v1485 = vpack.c.b16 %v1381, %v1380
  %v1486 = vpack.c.b16 %v1383, %v1382
  %v1487 = vpack.c.b16 %v1385, %v1384
  %v1488 = vpack.c.b16 %v1387, %v1386
  %v1489 = vpack.c.b16 %v1389, %v1388
  %v1490 = vpack.c.b16 %v1391, %v1390
  %v1491 = vpack.c.b16 %v1393, %v1392
  %v1492 = vpack.c.b16 %v1395, %v1394
  %v1493 = vpack.c.b16 %v1397, %v1396
  %v1494 = vpack.c.b16 %v1399, %v1398
  %v1495 = vpack.c.b16 %v1401, %v1400
  %v1496 = vpack.c.b16 %v1403, %v1402
  %v1497 = vpack.c.b16 %v1405, %v1404
  %v1498 = vpack.c.b16 %v1407, %v1406
  %v1499 = vpack.c.b16 %v1409, %v1408
  %v1500 = vpack.c.b16 %v1411, %v1410
  %v1501 = vpack.c.b16 %v1413, %v1412
  %v1502 = vpack.c.b16 %v1415, %v1414
  %v1503 = vpack.c.b16 %v1417, %v1416
  %v1504 = vpack.c.b16 %v1419, %v1418
  %v1505 = vpack.c.b16 %v1421, %v1420
  %v1506 = vpack.c.b16 %v1423, %v1422
  %v1507 = vpack.c.b16 %v1425, %v1424
  %v1508 = vpack.c.b16 %v1427, %v1426
  %v1509 = vpack.c.b16 %v1429, %v1428
  %v1510 = vpack.c.b16 %v1431, %v1430
  %v1511 = vpack.c.b16 %v1433, %v1432
  %v1512 = vpack.c.b16 %v1435, %v1434
  %v1513 = vpack.c.b16 %v1437, %v1436
  %v1514 = vpack.c.b16 %v1439, %v1438
  %v1515 = vpack.c.b16 %v1441, %v1440
  %v1516 = vpack.c.b16 %v1443, %v1442
  %v1517 = vpack.c.b16 %v1445, %v1444
  %v1518 = vpack.c.b16 %v1447, %v1446
  %v1519 = vpack.c.b16 %v1449, %v1448
  %v1520 = vpack.c.b16 %v1451, %v1450
  %v1521 = vpack.c.b16 %v1453, %v1452
  %v1522 = vpack.c.b16 %v1455, %v1454
  %v1523 = vpack.c.b16 %v1457, %v1456
  %v1524 = vpack.c.b16 %v1459, %v1458
  %v1525 = vpack.c.b16 %v1461, %v1460
  %1590 = vmatprep.subr.bf16.mxu0 0
  %1591 = vmatpush1.bf16.msra.mxu0 %v1462
  %1592 = vmatprep.subr.bf16.mxu0 0
  %1593 = vmatpush1.bf16.msra.mxu0 %v1463
  %1594 = vmatprep.subr.bf16.mxu0 0
  %1595 = vmatpush1.bf16.msra.mxu0 %v1464
  %1596 = vmatprep.subr.bf16.mxu0 0
  %1597 = vmatpush1.bf16.msra.mxu0 %v1465
  %1598 = vmatprep.subr.bf16.mxu0 0
  %1599 = vmatpush1.bf16.msra.mxu0 %v1466
  %1600 = vmatprep.subr.bf16.mxu0 0
  %1601 = vmatpush1.bf16.msra.mxu0 %v1467
  %1602 = vmatprep.subr.bf16.mxu0 0
  %1603 = vmatpush1.bf16.msra.mxu0 %v1468
  %1604 = vmatprep.subr.bf16.mxu0 0
  %1605 = vmatpush1.bf16.msra.mxu0 %v1469
  %1606 = vmatprep.subr.bf16.mxu0 0
  %1607 = vmatpush1.bf16.msra.mxu0 %v1470
  %1608 = vmatprep.subr.bf16.mxu0 0
  %1609 = vmatpush1.bf16.msra.mxu0 %v1471
  %1610 = vmatprep.subr.bf16.mxu0 0
  %1611 = vmatpush1.bf16.msra.mxu0 %v1472
  %1612 = vmatprep.subr.bf16.mxu0 0
  %1613 = vmatpush1.bf16.msra.mxu0 %v1473
  %1614 = vmatprep.subr.bf16.mxu0 0
  %1615 = vmatpush1.bf16.msra.mxu0 %v1474
  %1616 = vmatprep.subr.bf16.mxu0 0
  %1617 = vmatpush1.bf16.msra.mxu0 %v1475
  %1618 = vmatprep.subr.bf16.mxu0 0
  %1619 = vmatpush1.bf16.msra.mxu0 %v1476
  %1620 = vmatprep.subr.bf16.mxu0 0
  %1621 = vmatpush1.bf16.msra.mxu0 %v1477
  %1622 = vmatprep.mubr.bf16.mxu0 %v855
  %1623 = vmatmul.mubr.bf16.gmra.mrb[0].mxu0 %v854
  %v1624 = vpop.f32.mrb[0].mxu0
  %v1625 = vadd.f32 %v324, %v1624
  %v1626 = vpop.f32.mrb[0].mxu0
  %v1627 = vpop.f32.mrb[0].mxu0
  %v1628 = vadd.f32 %v324, %v1627
  %v1629 = vpop.f32.mrb[0].mxu0
  %1630 = vmatprep.mubr.bf16.mxu0 %v863
  %1631 = vmatmul.mubr.bf16.gmra.mrb[0].mxu0 %v862
  %v1632 = vpop.f32.mrb[0].mxu0
  %v1633 = vadd.f32 %v324, %v1632
  %v1634 = vpop.f32.mrb[0].mxu0
  %v1635 = vpop.f32.mrb[0].mxu0
  %v1636 = vadd.f32 %v324, %v1635
  %v1637 = vpop.f32.mrb[0].mxu0
  %1638 = vmatprep.mubr.bf16.mxu0 %v871
  %1639 = vmatmul.mubr.bf16.gmra.mrb[0].mxu0 %v870
  %v1640 = vpop.f32.mrb[0].mxu0
  %v1641 = vadd.f32 %v324, %v1640
  %v1642 = vpop.f32.mrb[0].mxu0
  %v1643 = vpop.f32.mrb[0].mxu0
  %v1644 = vadd.f32 %v324, %v1643
  %v1645 = vpop.f32.mrb[0].mxu0
  %1646 = vmatprep.mubr.bf16.mxu0 %v879
  %1647 = vmatmul.mubr.bf16.gmra.mrb[0].mxu0 %v878
  %v1648 = vpop.f32.mrb[0].mxu0
  %v1649 = vadd.f32 %v324, %v1648
  %v1650 = vpop.f32.mrb[0].mxu0
  %v1651 = vpop.f32.mrb[0].mxu0
  %v1652 = vadd.f32 %v324, %v1651
  %v1653 = vpop.f32.mrb[0].mxu0
  %1654 = vmatprep.mubr.bf16.mxu0 %v887
  %1655 = vmatmul.mubr.bf16.gmra.mrb[0].mxu0 %v886
  %v1656 = vpop.f32.mrb[0].mxu0
  %v1657 = vadd.f32 %v324, %v1656
  %v1658 = vpop.f32.mrb[0].mxu0
  %v1659 = vpop.f32.mrb[0].mxu0
  %v1660 = vadd.f32 %v324, %v1659
  %v1661 = vpop.f32.mrb[0].mxu0
  %1662 = vmatprep.mubr.bf16.mxu0 %v895
  %1663 = vmatmul.mubr.bf16.gmra.mrb[0].mxu0 %v894
  %v1664 = vpop.f32.mrb[0].mxu0
  %v1665 = vadd.f32 %v324, %v1664
  %v1666 = vpop.f32.mrb[0].mxu0
  %v1667 = vpop.f32.mrb[0].mxu0
  %v1668 = vadd.f32 %v324, %v1667
  %v1669 = vpop.f32.mrb[0].mxu0
  %1670 = vmatprep.mubr.bf16.mxu0 %v903
  %1671 = vmatmul.mubr.bf16.gmra.mrb[0].mxu0 %v902
  %v1672 = vpop.f32.mrb[0].mxu0
  %v1673 = vadd.f32 %v324, %v1672
  %v1674 = vpop.f32.mrb[0].mxu0
  %v1675 = vpop.f32.mrb[0].mxu0
  %v1676 = vadd.f32 %v324, %v1675
  %v1677 = vpop.f32.mrb[0].mxu0
  %1678 = vmatprep.mubr.bf16.mxu0 %v911
  %1679 = vmatmul.mubr.bf16.gmra.mrb[0].mxu0 %v910
  %v1680 = vpop.f32.mrb[0].mxu0
  %v1681 = vadd.f32 %v324, %v1680
  %v1682 = vpop.f32.mrb[0].mxu0
  %v1683 = vpop.f32.mrb[0].mxu0
  %v1684 = vadd.f32 %v324, %v1683
  %v1685 = vpop.f32.mrb[0].mxu0
  %1686 = vmatprep.mubr.bf16.mxu0 %v919
  %1687 = vmatmul.mubr.bf16.gmra.mrb[0].mxu0 %v918
  %v1688 = vpop.f32.mrb[0].mxu0
  %v1689 = vadd.f32 %v324, %v1688
  %v1690 = vpop.f32.mrb[0].mxu0
  %v1691 = vpop.f32.mrb[0].mxu0
  %v1692 = vadd.f32 %v324, %v1691
  %v1693 = vpop.f32.mrb[0].mxu0
  %1694 = vmatprep.mubr.bf16.mxu0 %v927
  %1695 = vmatmul.mubr.bf16.gmra.mrb[0].mxu0 %v926
  %v1696 = vpop.f32.mrb[0].mxu0
  %v1697 = vadd.f32 %v324, %v1696
  %v1698 = vpop.f32.mrb[0].mxu0
  %v1699 = vpop.f32.mrb[0].mxu0
  %v1700 = vadd.f32 %v324, %v1699
  %v1701 = vpop.f32.mrb[0].mxu0
  %1702 = vmatprep.mubr.bf16.mxu0 %v935
  %1703 = vmatmul.mubr.bf16.gmra.mrb[0].mxu0 %v934
  %v1704 = vpop.f32.mrb[0].mxu0
  %v1705 = vadd.f32 %v324, %v1704
  %v1706 = vpop.f32.mrb[0].mxu0
  %v1707 = vpop.f32.mrb[0].mxu0
  %v1708 = vadd.f32 %v324, %v1707
  %v1709 = vpop.f32.mrb[0].mxu0
  %1710 = vmatprep.mubr.bf16.mxu0 %v943
  %1711 = vmatmul.mubr.bf16.gmra.mrb[0].mxu0 %v942
  %v1712 = vpop.f32.mrb[0].mxu0
  %v1713 = vadd.f32 %v324, %v1712
  %v1714 = vpop.f32.mrb[0].mxu0
  %v1715 = vpop.f32.mrb[0].mxu0
  %v1716 = vadd.f32 %v324, %v1715
  %v1717 = vpop.f32.mrb[0].mxu0
  %1718 = vmatprep.mubr.bf16.mxu0 %v951
  %1719 = vmatmul.mubr.bf16.gmra.mrb[0].mxu0 %v950
  %v1720 = vpop.f32.mrb[0].mxu0
  %v1721 = vadd.f32 %v324, %v1720
  %v1722 = vpop.f32.mrb[0].mxu0
  %v1723 = vpop.f32.mrb[0].mxu0
  %v1724 = vadd.f32 %v324, %v1723
  %v1725 = vpop.f32.mrb[0].mxu0
  %1726 = vmatprep.mubr.bf16.mxu0 %v959
  %1727 = vmatmul.mubr.bf16.gmra.mrb[0].mxu0 %v958
  %v1728 = vpop.f32.mrb[0].mxu0
  %v1729 = vadd.f32 %v324, %v1728
  %v1730 = vpop.f32.mrb[0].mxu0
  %v1731 = vpop.f32.mrb[0].mxu0
  %v1732 = vadd.f32 %v324, %v1731
  %v1733 = vpop.f32.mrb[0].mxu0
  %1734 = vmatprep.mubr.bf16.mxu0 %v967
  %1735 = vmatmul.mubr.bf16.gmra.mrb[0].mxu0 %v966
  %v1736 = vpop.f32.mrb[0].mxu0
  %v1737 = vadd.f32 %v324, %v1736
  %v1738 = vpop.f32.mrb[0].mxu0
  %v1739 = vpop.f32.mrb[0].mxu0
  %v1740 = vadd.f32 %v324, %v1739
  %v1741 = vpop.f32.mrb[0].mxu0
  %1742 = vmatprep.mubr.bf16.mxu0 %v975
  %1743 = vmatmul.mubr.bf16.gmra.mrb[0].mxu0 %v974
  %v1744 = vpop.f32.mrb[0].mxu0
  %v1745 = vadd.f32 %v324, %v1744
  %v1746 = vpop.f32.mrb[0].mxu0
  %v1747 = vpop.f32.mrb[0].mxu0
  %v1748 = vadd.f32 %v324, %v1747
  %v1749 = vpop.f32.mrb[0].mxu0
  %1750 = vmatprep.mubr.bf16.mxu0 %v983
  %1751 = vmatmul.mubr.bf16.gmra.mrb[0].mxu0 %v982
  %v1752 = vpop.f32.mrb[0].mxu0
  %v1753 = vadd.f32 %v324, %v1752
  %v1754 = vpop.f32.mrb[0].mxu0
  %v1755 = vpop.f32.mrb[0].mxu0
  %v1756 = vadd.f32 %v324, %v1755
  %v1757 = vpop.f32.mrb[0].mxu0
  %1758 = vmatprep.mubr.bf16.mxu0 %v991
  %1759 = vmatmul.mubr.bf16.gmra.mrb[0].mxu0 %v990
  %v1760 = vpop.f32.mrb[0].mxu0
  %v1761 = vadd.f32 %v324, %v1760
  %v1762 = vpop.f32.mrb[0].mxu0
  %v1763 = vpop.f32.mrb[0].mxu0
  %v1764 = vadd.f32 %v324, %v1763
  %v1765 = vpop.f32.mrb[0].mxu0
  %1766 = vmatprep.mubr.bf16.mxu0 %v999
  %1767 = vmatmul.mubr.bf16.gmra.mrb[0].mxu0 %v998
  %v1768 = vpop.f32.mrb[0].mxu0
  %v1769 = vadd.f32 %v324, %v1768
  %v1770 = vpop.f32.mrb[0].mxu0
  %v1771 = vpop.f32.mrb[0].mxu0
  %v1772 = vadd.f32 %v324, %v1771
  %v1773 = vpop.f32.mrb[0].mxu0
  %1774 = vmatprep.mubr.bf16.mxu0 %v1007
  %1775 = vmatmul.mubr.bf16.gmra.mrb[0].mxu0 %v1006
  %v1776 = vpop.f32.mrb[0].mxu0
  %v1777 = vadd.f32 %v324, %v1776
  %v1778 = vpop.f32.mrb[0].mxu0
  %v1779 = vpop.f32.mrb[0].mxu0
  %v1780 = vadd.f32 %v324, %v1779
  %v1781 = vpop.f32.mrb[0].mxu0
  %1782 = vmatprep.mubr.bf16.mxu0 %v1015
  %1783 = vmatmul.mubr.bf16.gmra.mrb[0].mxu0 %v1014
  %v1784 = vpop.f32.mrb[0].mxu0
  %v1785 = vadd.f32 %v324, %v1784
  %v1786 = vpop.f32.mrb[0].mxu0
  %v1787 = vpop.f32.mrb[0].mxu0
  %v1788 = vadd.f32 %v324, %v1787
  %v1789 = vpop.f32.mrb[0].mxu0
  %1790 = vmatprep.mubr.bf16.mxu0 %v1023
  %1791 = vmatmul.mubr.bf16.gmra.mrb[0].mxu0 %v1022
  %v1792 = vpop.f32.mrb[0].mxu0
  %v1793 = vadd.f32 %v324, %v1792
  %v1794 = vpop.f32.mrb[0].mxu0
  %v1795 = vpop.f32.mrb[0].mxu0
  %v1796 = vadd.f32 %v324, %v1795
  %v1797 = vpop.f32.mrb[0].mxu0
  %1798 = vdwg.mxu0
  %1799 = vmatprep.subr.bf16.mxu0 0
  %1800 = vmatpush1.bf16.msra.mxu0 %v1478
  %1801 = vmatprep.subr.bf16.mxu0 0
  %1802 = vmatpush1.bf16.msra.mxu0 %v1479
  %1803 = vmatprep.subr.bf16.mxu0 0
  %1804 = vmatpush1.bf16.msra.mxu0 %v1480
  %1805 = vmatprep.subr.bf16.mxu0 0
  %1806 = vmatpush1.bf16.msra.mxu0 %v1481
  %1807 = vmatprep.subr.bf16.mxu0 0
  %1808 = vmatpush1.bf16.msra.mxu0 %v1482
  %1809 = vmatprep.subr.bf16.mxu0 0
  %1810 = vmatpush1.bf16.msra.mxu0 %v1483
  %1811 = vmatprep.subr.bf16.mxu0 0
  %1812 = vmatpush1.bf16.msra.mxu0 %v1484
  %1813 = vmatprep.subr.bf16.mxu0 0
  %1814 = vmatpush1.bf16.msra.mxu0 %v1485
  %1815 = vmatprep.subr.bf16.mxu0 0
  %1816 = vmatpush1.bf16.msra.mxu0 %v1486
  %1817 = vmatprep.subr.bf16.mxu0 0
  %1818 = vmatpush1.bf16.msra.mxu0 %v1487
  %1819 = vmatprep.subr.bf16.mxu0 0
  %1820 = vmatpush1.bf16.msra.mxu0 %v1488
  %1821 = vmatprep.subr.bf16.mxu0 0
  %1822 = vmatpush1.bf16.msra.mxu0 %v1489
  %1823 = vmatprep.subr.bf16.mxu0 0
  %1824 = vmatpush1.bf16.msra.mxu0 %v1490
  %1825 = vmatprep.subr.bf16.mxu0 0
  %1826 = vmatpush1.bf16.msra.mxu0 %v1491
  %1827 = vmatprep.subr.bf16.mxu0 0
  %1828 = vmatpush1.bf16.msra.mxu0 %v1492
  %1829 = vmatprep.subr.bf16.mxu0 0
  %1830 = vmatpush1.bf16.msra.mxu0 %v1493
  %1831 = vmatprep.mubr.bf16.mxu0 %v857
  %1832 = vmatmul.mubr.bf16.gmra.mrb[0].mxu0 %v856
  %v1833 = vpop.f32.mrb[0].mxu0
  %v1834 = vadd.f32 %v1625, %v1833
  %v1835 = vpop.f32.mrb[0].mxu0
  %v1836 = vpop.f32.mrb[0].mxu0
  %v1837 = vadd.f32 %v1628, %v1836
  %v1838 = vpop.f32.mrb[0].mxu0
  %1839 = vmatprep.mubr.bf16.mxu0 %v865
  %1840 = vmatmul.mubr.bf16.gmra.mrb[0].mxu0 %v864
  %v1841 = vpop.f32.mrb[0].mxu0
  %v1842 = vadd.f32 %v1633, %v1841
  %v1843 = vpop.f32.mrb[0].mxu0
  %v1844 = vpop.f32.mrb[0].mxu0
  %v1845 = vadd.f32 %v1636, %v1844
  %v1846 = vpop.f32.mrb[0].mxu0
  %1847 = vmatprep.mubr.bf16.mxu0 %v873
  %1848 = vmatmul.mubr.bf16.gmra.mrb[0].mxu0 %v872
  %v1849 = vpop.f32.mrb[0].mxu0
  %v1850 = vadd.f32 %v1641, %v1849
  %v1851 = vpop.f32.mrb[0].mxu0
  %v1852 = vpop.f32.mrb[0].mxu0
  %v1853 = vadd.f32 %v1644, %v1852
  %v1854 = vpop.f32.mrb[0].mxu0
  %1855 = vmatprep.mubr.bf16.mxu0 %v881
  %1856 = vmatmul.mubr.bf16.gmra.mrb[0].mxu0 %v880
  %v1857 = vpop.f32.mrb[0].mxu0
  %v1858 = vadd.f32 %v1649, %v1857
  %v1859 = vpop.f32.mrb[0].mxu0
  %v1860 = vpop.f32.mrb[0].mxu0
  %v1861 = vadd.f32 %v1652, %v1860
  %v1862 = vpop.f32.mrb[0].mxu0
  %1863 = vmatprep.mubr.bf16.mxu0 %v889
  %1864 = vmatmul.mubr.bf16.gmra.mrb[0].mxu0 %v888
  %v1865 = vpop.f32.mrb[0].mxu0
  %v1866 = vadd.f32 %v1657, %v1865
  %v1867 = vpop.f32.mrb[0].mxu0
  %v1868 = vpop.f32.mrb[0].mxu0
  %v1869 = vadd.f32 %v1660, %v1868
  %v1870 = vpop.f32.mrb[0].mxu0
  %1871 = vmatprep.mubr.bf16.mxu0 %v897
  %1872 = vmatmul.mubr.bf16.gmra.mrb[0].mxu0 %v896
  %v1873 = vpop.f32.mrb[0].mxu0
  %v1874 = vadd.f32 %v1665, %v1873
  %v1875 = vpop.f32.mrb[0].mxu0
  %v1876 = vpop.f32.mrb[0].mxu0
  %v1877 = vadd.f32 %v1668, %v1876
  %v1878 = vpop.f32.mrb[0].mxu0
  %1879 = vmatprep.mubr.bf16.mxu0 %v905
  %1880 = vmatmul.mubr.bf16.gmra.mrb[0].mxu0 %v904
  %v1881 = vpop.f32.mrb[0].mxu0
  %v1882 = vadd.f32 %v1673, %v1881
  %v1883 = vpop.f32.mrb[0].mxu0
  %v1884 = vpop.f32.mrb[0].mxu0
  %v1885 = vadd.f32 %v1676, %v1884
  %v1886 = vpop.f32.mrb[0].mxu0
  %1887 = vmatprep.mubr.bf16.mxu0 %v913
  %1888 = vmatmul.mubr.bf16.gmra.mrb[0].mxu0 %v912
  %v1889 = vpop.f32.mrb[0].mxu0
  %v1890 = vadd.f32 %v1681, %v1889
  %v1891 = vpop.f32.mrb[0].mxu0
  %v1892 = vpop.f32.mrb[0].mxu0
  %v1893 = vadd.f32 %v1684, %v1892
  %v1894 = vpop.f32.mrb[0].mxu0
  %1895 = vmatprep.mubr.bf16.mxu0 %v921
  %1896 = vmatmul.mubr.bf16.gmra.mrb[0].mxu0 %v920
  %v1897 = vpop.f32.mrb[0].mxu0
  %v1898 = vadd.f32 %v1689, %v1897
  %v1899 = vpop.f32.mrb[0].mxu0
  %v1900 = vpop.f32.mrb[0].mxu0
  %v1901 = vadd.f32 %v1692, %v1900
  %v1902 = vpop.f32.mrb[0].mxu0
  %1903 = vmatprep.mubr.bf16.mxu0 %v929
  %1904 = vmatmul.mubr.bf16.gmra.mrb[0].mxu0 %v928
  %v1905 = vpop.f32.mrb[0].mxu0
  %v1906 = vadd.f32 %v1697, %v1905
  %v1907 = vpop.f32.mrb[0].mxu0
  %v1908 = vpop.f32.mrb[0].mxu0
  %v1909 = vadd.f32 %v1700, %v1908
  %v1910 = vpop.f32.mrb[0].mxu0
  %1911 = vmatprep.mubr.bf16.mxu0 %v937
  %1912 = vmatmul.mubr.bf16.gmra.mrb[0].mxu0 %v936
  %v1913 = vpop.f32.mrb[0].mxu0
  %v1914 = vadd.f32 %v1705, %v1913
  %v1915 = vpop.f32.mrb[0].mxu0
  %v1916 = vpop.f32.mrb[0].mxu0
  %v1917 = vadd.f32 %v1708, %v1916
  %v1918 = vpop.f32.mrb[0].mxu0
  %1919 = vmatprep.mubr.bf16.mxu0 %v945
  %1920 = vmatmul.mubr.bf16.gmra.mrb[0].mxu0 %v944
  %v1921 = vpop.f32.mrb[0].mxu0
  %v1922 = vadd.f32 %v1713, %v1921
  %v1923 = vpop.f32.mrb[0].mxu0
  %v1924 = vpop.f32.mrb[0].mxu0
  %v1925 = vadd.f32 %v1716, %v1924
  %v1926 = vpop.f32.mrb[0].mxu0
  %1927 = vmatprep.mubr.bf16.mxu0 %v953
  %1928 = vmatmul.mubr.bf16.gmra.mrb[0].mxu0 %v952
  %v1929 = vpop.f32.mrb[0].mxu0
  %v1930 = vadd.f32 %v1721, %v1929
  %v1931 = vpop.f32.mrb[0].mxu0
  %v1932 = vpop.f32.mrb[0].mxu0
  %v1933 = vadd.f32 %v1724, %v1932
  %v1934 = vpop.f32.mrb[0].mxu0
  %1935 = vmatprep.mubr.bf16.mxu0 %v961
  %1936 = vmatmul.mubr.bf16.gmra.mrb[0].mxu0 %v960
  %v1937 = vpop.f32.mrb[0].mxu0
  %v1938 = vadd.f32 %v1729, %v1937
  %v1939 = vpop.f32.mrb[0].mxu0
  %v1940 = vpop.f32.mrb[0].mxu0
  %v1941 = vadd.f32 %v1732, %v1940
  %v1942 = vpop.f32.mrb[0].mxu0
  %1943 = vmatprep.mubr.bf16.mxu0 %v969
  %1944 = vmatmul.mubr.bf16.gmra.mrb[0].mxu0 %v968
  %v1945 = vpop.f32.mrb[0].mxu0
  %v1946 = vadd.f32 %v1737, %v1945
  %v1947 = vpop.f32.mrb[0].mxu0
  %v1948 = vpop.f32.mrb[0].mxu0
  %v1949 = vadd.f32 %v1740, %v1948
  %v1950 = vpop.f32.mrb[0].mxu0
  %1951 = vmatprep.mubr.bf16.mxu0 %v977
  %1952 = vmatmul.mubr.bf16.gmra.mrb[0].mxu0 %v976
  %v1953 = vpop.f32.mrb[0].mxu0
  %v1954 = vadd.f32 %v1745, %v1953
  %v1955 = vpop.f32.mrb[0].mxu0
  %v1956 = vpop.f32.mrb[0].mxu0
  %v1957 = vadd.f32 %v1748, %v1956
  %v1958 = vpop.f32.mrb[0].mxu0
  %1959 = vmatprep.mubr.bf16.mxu0 %v985
  %1960 = vmatmul.mubr.bf16.gmra.mrb[0].mxu0 %v984
  %v1961 = vpop.f32.mrb[0].mxu0
  %v1962 = vadd.f32 %v1753, %v1961
  %v1963 = vpop.f32.mrb[0].mxu0
  %v1964 = vpop.f32.mrb[0].mxu0
  %v1965 = vadd.f32 %v1756, %v1964
  %v1966 = vpop.f32.mrb[0].mxu0
  %1967 = vmatprep.mubr.bf16.mxu0 %v993
  %1968 = vmatmul.mubr.bf16.gmra.mrb[0].mxu0 %v992
  %v1969 = vpop.f32.mrb[0].mxu0
  %v1970 = vadd.f32 %v1761, %v1969
  %v1971 = vpop.f32.mrb[0].mxu0
  %v1972 = vpop.f32.mrb[0].mxu0
  %v1973 = vadd.f32 %v1764, %v1972
  %v1974 = vpop.f32.mrb[0].mxu0
  %1975 = vmatprep.mubr.bf16.mxu0 %v1001
  %1976 = vmatmul.mubr.bf16.gmra.mrb[0].mxu0 %v1000
  %v1977 = vpop.f32.mrb[0].mxu0
  %v1978 = vadd.f32 %v1769, %v1977
  %v1979 = vpop.f32.mrb[0].mxu0
  %v1980 = vpop.f32.mrb[0].mxu0
  %v1981 = vadd.f32 %v1772, %v1980
  %v1982 = vpop.f32.mrb[0].mxu0
  %1983 = vmatprep.mubr.bf16.mxu0 %v1009
  %1984 = vmatmul.mubr.bf16.gmra.mrb[0].mxu0 %v1008
  %v1985 = vpop.f32.mrb[0].mxu0
  %v1986 = vadd.f32 %v1777, %v1985
  %v1987 = vpop.f32.mrb[0].mxu0
  %v1988 = vpop.f32.mrb[0].mxu0
  %v1989 = vadd.f32 %v1780, %v1988
  %v1990 = vpop.f32.mrb[0].mxu0
  %1991 = vmatprep.mubr.bf16.mxu0 %v1017
  %1992 = vmatmul.mubr.bf16.gmra.mrb[0].mxu0 %v1016
  %v1993 = vpop.f32.mrb[0].mxu0
  %v1994 = vadd.f32 %v1785, %v1993
  %v1995 = vpop.f32.mrb[0].mxu0
  %v1996 = vpop.f32.mrb[0].mxu0
  %v1997 = vadd.f32 %v1788, %v1996
  %v1998 = vpop.f32.mrb[0].mxu0
  %1999 = vmatprep.mubr.bf16.mxu0 %v1025
  %2000 = vmatmul.mubr.bf16.gmra.mrb[0].mxu0 %v1024
  %v2001 = vpop.f32.mrb[0].mxu0
  %v2002 = vadd.f32 %v1793, %v2001
  %v2003 = vpop.f32.mrb[0].mxu0
  %v2004 = vpop.f32.mrb[0].mxu0
  %v2005 = vadd.f32 %v1796, %v2004
  %v2006 = vpop.f32.mrb[0].mxu0
  %2007 = vdwg.mxu0
  %2008 = vmatprep.subr.bf16.mxu0 0
  %2009 = vmatpush1.bf16.msra.mxu0 %v1494
  %2010 = vmatprep.subr.bf16.mxu0 0
  %2011 = vmatpush1.bf16.msra.mxu0 %v1495
  %2012 = vmatprep.subr.bf16.mxu0 0
  %2013 = vmatpush1.bf16.msra.mxu0 %v1496
  %2014 = vmatprep.subr.bf16.mxu0 0
  %2015 = vmatpush1.bf16.msra.mxu0 %v1497
  %2016 = vmatprep.subr.bf16.mxu0 0
  %2017 = vmatpush1.bf16.msra.mxu0 %v1498
  %2018 = vmatprep.subr.bf16.mxu0 0
  %2019 = vmatpush1.bf16.msra.mxu0 %v1499
  %2020 = vmatprep.subr.bf16.mxu0 0
  %2021 = vmatpush1.bf16.msra.mxu0 %v1500
  %2022 = vmatprep.subr.bf16.mxu0 0
  %2023 = vmatpush1.bf16.msra.mxu0 %v1501
  %2024 = vmatprep.subr.bf16.mxu0 0
  %2025 = vmatpush1.bf16.msra.mxu0 %v1502
  %2026 = vmatprep.subr.bf16.mxu0 0
  %2027 = vmatpush1.bf16.msra.mxu0 %v1503
  %2028 = vmatprep.subr.bf16.mxu0 0
  %2029 = vmatpush1.bf16.msra.mxu0 %v1504
  %2030 = vmatprep.subr.bf16.mxu0 0
  %2031 = vmatpush1.bf16.msra.mxu0 %v1505
  %2032 = vmatprep.subr.bf16.mxu0 0
  %2033 = vmatpush1.bf16.msra.mxu0 %v1506
  %2034 = vmatprep.subr.bf16.mxu0 0
  %2035 = vmatpush1.bf16.msra.mxu0 %v1507
  %2036 = vmatprep.subr.bf16.mxu0 0
  %2037 = vmatpush1.bf16.msra.mxu0 %v1508
  %2038 = vmatprep.subr.bf16.mxu0 0
  %2039 = vmatpush1.bf16.msra.mxu0 %v1509
  %2040 = vmatprep.mubr.bf16.mxu0 %v859
  %2041 = vmatmul.mubr.bf16.gmra.mrb[0].mxu0 %v858
  %v2042 = vpop.f32.mrb[0].mxu0
  %v2043 = vadd.f32 %v1834, %v2042
  %v2044 = vpop.f32.mrb[0].mxu0
  %v2045 = vpop.f32.mrb[0].mxu0
  %v2046 = vadd.f32 %v1837, %v2045
  %v2047 = vpop.f32.mrb[0].mxu0
  %2048 = vmatprep.mubr.bf16.mxu0 %v867
  %2049 = vmatmul.mubr.bf16.gmra.mrb[0].mxu0 %v866
  %v2050 = vpop.f32.mrb[0].mxu0
  %v2051 = vadd.f32 %v1842, %v2050
  %v2052 = vpop.f32.mrb[0].mxu0
  %v2053 = vpop.f32.mrb[0].mxu0
  %v2054 = vadd.f32 %v1845, %v2053
  %v2055 = vpop.f32.mrb[0].mxu0
  %2056 = vmatprep.mubr.bf16.mxu0 %v875
  %2057 = vmatmul.mubr.bf16.gmra.mrb[0].mxu0 %v874
  %v2058 = vpop.f32.mrb[0].mxu0
  %v2059 = vadd.f32 %v1850, %v2058
  %v2060 = vpop.f32.mrb[0].mxu0
  %v2061 = vpop.f32.mrb[0].mxu0
  %v2062 = vadd.f32 %v1853, %v2061
  %v2063 = vpop.f32.mrb[0].mxu0
  %2064 = vmatprep.mubr.bf16.mxu0 %v883
  %2065 = vmatmul.mubr.bf16.gmra.mrb[0].mxu0 %v882
  %v2066 = vpop.f32.mrb[0].mxu0
  %v2067 = vadd.f32 %v1858, %v2066
  %v2068 = vpop.f32.mrb[0].mxu0
  %v2069 = vpop.f32.mrb[0].mxu0
  %v2070 = vadd.f32 %v1861, %v2069
  %v2071 = vpop.f32.mrb[0].mxu0
  %2072 = vmatprep.mubr.bf16.mxu0 %v891
  %2073 = vmatmul.mubr.bf16.gmra.mrb[0].mxu0 %v890
  %v2074 = vpop.f32.mrb[0].mxu0
  %v2075 = vadd.f32 %v1866, %v2074
  %v2076 = vpop.f32.mrb[0].mxu0
  %v2077 = vpop.f32.mrb[0].mxu0
  %v2078 = vadd.f32 %v1869, %v2077
  %v2079 = vpop.f32.mrb[0].mxu0
  %2080 = vmatprep.mubr.bf16.mxu0 %v899
  %2081 = vmatmul.mubr.bf16.gmra.mrb[0].mxu0 %v898
  %v2082 = vpop.f32.mrb[0].mxu0
  %v2083 = vadd.f32 %v1874, %v2082
  %v2084 = vpop.f32.mrb[0].mxu0
  %v2085 = vpop.f32.mrb[0].mxu0
  %v2086 = vadd.f32 %v1877, %v2085
  %v2087 = vpop.f32.mrb[0].mxu0
  %2088 = vmatprep.mubr.bf16.mxu0 %v907
  %2089 = vmatmul.mubr.bf16.gmra.mrb[0].mxu0 %v906
  %v2090 = vpop.f32.mrb[0].mxu0
  %v2091 = vadd.f32 %v1882, %v2090
  %v2092 = vpop.f32.mrb[0].mxu0
  %v2093 = vpop.f32.mrb[0].mxu0
  %v2094 = vadd.f32 %v1885, %v2093
  %v2095 = vpop.f32.mrb[0].mxu0
  %2096 = vmatprep.mubr.bf16.mxu0 %v915
  %2097 = vmatmul.mubr.bf16.gmra.mrb[0].mxu0 %v914
  %v2098 = vpop.f32.mrb[0].mxu0
  %v2099 = vadd.f32 %v1890, %v2098
  %v2100 = vpop.f32.mrb[0].mxu0
  %v2101 = vpop.f32.mrb[0].mxu0
  %v2102 = vadd.f32 %v1893, %v2101
  %v2103 = vpop.f32.mrb[0].mxu0
  %2104 = vmatprep.mubr.bf16.mxu0 %v923
  %2105 = vmatmul.mubr.bf16.gmra.mrb[0].mxu0 %v922
  %v2106 = vpop.f32.mrb[0].mxu0
  %v2107 = vadd.f32 %v1898, %v2106
  %v2108 = vpop.f32.mrb[0].mxu0
  %v2109 = vpop.f32.mrb[0].mxu0
  %v2110 = vadd.f32 %v1901, %v2109
  %v2111 = vpop.f32.mrb[0].mxu0
  %2112 = vmatprep.mubr.bf16.mxu0 %v931
  %2113 = vmatmul.mubr.bf16.gmra.mrb[0].mxu0 %v930
  %v2114 = vpop.f32.mrb[0].mxu0
  %v2115 = vadd.f32 %v1906, %v2114
  %v2116 = vpop.f32.mrb[0].mxu0
  %v2117 = vpop.f32.mrb[0].mxu0
  %v2118 = vadd.f32 %v1909, %v2117
  %v2119 = vpop.f32.mrb[0].mxu0
  %2120 = vmatprep.mubr.bf16.mxu0 %v939
  %2121 = vmatmul.mubr.bf16.gmra.mrb[0].mxu0 %v938
  %v2122 = vpop.f32.mrb[0].mxu0
  %v2123 = vadd.f32 %v1914, %v2122
  %v2124 = vpop.f32.mrb[0].mxu0
  %v2125 = vpop.f32.mrb[0].mxu0
  %v2126 = vadd.f32 %v1917, %v2125
  %v2127 = vpop.f32.mrb[0].mxu0
  %2128 = vmatprep.mubr.bf16.mxu0 %v947
  %2129 = vmatmul.mubr.bf16.gmra.mrb[0].mxu0 %v946
  %v2130 = vpop.f32.mrb[0].mxu0
  %v2131 = vadd.f32 %v1922, %v2130
  %v2132 = vpop.f32.mrb[0].mxu0
  %v2133 = vpop.f32.mrb[0].mxu0
  %v2134 = vadd.f32 %v1925, %v2133
  %v2135 = vpop.f32.mrb[0].mxu0
  %2136 = vmatprep.mubr.bf16.mxu0 %v955
  %2137 = vmatmul.mubr.bf16.gmra.mrb[0].mxu0 %v954
  %v2138 = vpop.f32.mrb[0].mxu0
  %v2139 = vadd.f32 %v1930, %v2138
  %v2140 = vpop.f32.mrb[0].mxu0
  %v2141 = vpop.f32.mrb[0].mxu0
  %v2142 = vadd.f32 %v1933, %v2141
  %v2143 = vpop.f32.mrb[0].mxu0
  %2144 = vmatprep.mubr.bf16.mxu0 %v963
  %2145 = vmatmul.mubr.bf16.gmra.mrb[0].mxu0 %v962
  %v2146 = vpop.f32.mrb[0].mxu0
  %v2147 = vadd.f32 %v1938, %v2146
  %v2148 = vpop.f32.mrb[0].mxu0
  %v2149 = vpop.f32.mrb[0].mxu0
  %v2150 = vadd.f32 %v1941, %v2149
  %v2151 = vpop.f32.mrb[0].mxu0
  %2152 = vmatprep.mubr.bf16.mxu0 %v971
  %2153 = vmatmul.mubr.bf16.gmra.mrb[0].mxu0 %v970
  %v2154 = vpop.f32.mrb[0].mxu0
  %v2155 = vadd.f32 %v1946, %v2154
  %v2156 = vpop.f32.mrb[0].mxu0
  %v2157 = vpop.f32.mrb[0].mxu0
  %v2158 = vadd.f32 %v1949, %v2157
  %v2159 = vpop.f32.mrb[0].mxu0
  %2160 = vmatprep.mubr.bf16.mxu0 %v979
  %2161 = vmatmul.mubr.bf16.gmra.mrb[0].mxu0 %v978
  %v2162 = vpop.f32.mrb[0].mxu0
  %v2163 = vadd.f32 %v1954, %v2162
  %v2164 = vpop.f32.mrb[0].mxu0
  %v2165 = vpop.f32.mrb[0].mxu0
  %v2166 = vadd.f32 %v1957, %v2165
  %v2167 = vpop.f32.mrb[0].mxu0
  %2168 = vmatprep.mubr.bf16.mxu0 %v987
  %2169 = vmatmul.mubr.bf16.gmra.mrb[0].mxu0 %v986
  %v2170 = vpop.f32.mrb[0].mxu0
  %v2171 = vadd.f32 %v1962, %v2170
  %v2172 = vpop.f32.mrb[0].mxu0
  %v2173 = vpop.f32.mrb[0].mxu0
  %v2174 = vadd.f32 %v1965, %v2173
  %v2175 = vpop.f32.mrb[0].mxu0
  %2176 = vmatprep.mubr.bf16.mxu0 %v995
  %2177 = vmatmul.mubr.bf16.gmra.mrb[0].mxu0 %v994
  %v2178 = vpop.f32.mrb[0].mxu0
  %v2179 = vadd.f32 %v1970, %v2178
  %v2180 = vpop.f32.mrb[0].mxu0
  %v2181 = vpop.f32.mrb[0].mxu0
  %v2182 = vadd.f32 %v1973, %v2181
  %v2183 = vpop.f32.mrb[0].mxu0
  %2184 = vmatprep.mubr.bf16.mxu0 %v1003
  %2185 = vmatmul.mubr.bf16.gmra.mrb[0].mxu0 %v1002
  %v2186 = vpop.f32.mrb[0].mxu0
  %v2187 = vadd.f32 %v1978, %v2186
  %v2188 = vpop.f32.mrb[0].mxu0
  %v2189 = vpop.f32.mrb[0].mxu0
  %v2190 = vadd.f32 %v1981, %v2189
  %v2191 = vpop.f32.mrb[0].mxu0
  %2192 = vmatprep.mubr.bf16.mxu0 %v1011
  %2193 = vmatmul.mubr.bf16.gmra.mrb[0].mxu0 %v1010
  %v2194 = vpop.f32.mrb[0].mxu0
  %v2195 = vadd.f32 %v1986, %v2194
  %v2196 = vpop.f32.mrb[0].mxu0
  %v2197 = vpop.f32.mrb[0].mxu0
  %v2198 = vadd.f32 %v1989, %v2197
  %v2199 = vpop.f32.mrb[0].mxu0
  %2200 = vmatprep.mubr.bf16.mxu0 %v1019
  %2201 = vmatmul.mubr.bf16.gmra.mrb[0].mxu0 %v1018
  %v2202 = vpop.f32.mrb[0].mxu0
  %v2203 = vadd.f32 %v1994, %v2202
  %v2204 = vpop.f32.mrb[0].mxu0
  %v2205 = vpop.f32.mrb[0].mxu0
  %v2206 = vadd.f32 %v1997, %v2205
  %v2207 = vpop.f32.mrb[0].mxu0
  %2208 = vmatprep.mubr.bf16.mxu0 %v1027
  %2209 = vmatmul.mubr.bf16.gmra.mrb[0].mxu0 %v1026
  %v2210 = vpop.f32.mrb[0].mxu0
  %v2211 = vadd.f32 %v2002, %v2210
  %v2212 = vpop.f32.mrb[0].mxu0
  %v2213 = vpop.f32.mrb[0].mxu0
  %v2214 = vadd.f32 %v2005, %v2213
  %v2215 = vpop.f32.mrb[0].mxu0
  %2216 = vdwg.mxu0
  %2217 = vmatprep.subr.bf16.mxu0 0
  %2218 = vmatpush1.bf16.msra.mxu0 %v1510
  %2219 = vmatprep.subr.bf16.mxu0 0
  %2220 = vmatpush1.bf16.msra.mxu0 %v1511
  %2221 = vmatprep.subr.bf16.mxu0 0
  %2222 = vmatpush1.bf16.msra.mxu0 %v1512
  %2223 = vmatprep.subr.bf16.mxu0 0
  %2224 = vmatpush1.bf16.msra.mxu0 %v1513
  %2225 = vmatprep.subr.bf16.mxu0 0
  %2226 = vmatpush1.bf16.msra.mxu0 %v1514
  %2227 = vmatprep.subr.bf16.mxu0 0
  %2228 = vmatpush1.bf16.msra.mxu0 %v1515
  %2229 = vmatprep.subr.bf16.mxu0 0
  %2230 = vmatpush1.bf16.msra.mxu0 %v1516
  %2231 = vmatprep.subr.bf16.mxu0 0
  %2232 = vmatpush1.bf16.msra.mxu0 %v1517
  %2233 = vmatprep.subr.bf16.mxu0 0
  %2234 = vmatpush1.bf16.msra.mxu0 %v1518
  %2235 = vmatprep.subr.bf16.mxu0 0
  %2236 = vmatpush1.bf16.msra.mxu0 %v1519
  %2237 = vmatprep.subr.bf16.mxu0 0
  %2238 = vmatpush1.bf16.msra.mxu0 %v1520
  %2239 = vmatprep.subr.bf16.mxu0 0
  %2240 = vmatpush1.bf16.msra.mxu0 %v1521
  %2241 = vmatprep.subr.bf16.mxu0 0
  %2242 = vmatpush1.bf16.msra.mxu0 %v1522
  %2243 = vmatprep.subr.bf16.mxu0 0
  %2244 = vmatpush1.bf16.msra.mxu0 %v1523
  %2245 = vmatprep.subr.bf16.mxu0 0
  %2246 = vmatpush1.bf16.msra.mxu0 %v1524
  %2247 = vmatprep.subr.bf16.mxu0 0
  %2248 = vmatpush1.bf16.msra.mxu0 %v1525
  %2249 = vmatprep.mubr.bf16.mxu0 %v861
  %2250 = vmatmul.mubr.bf16.gmra.mrb[0].mxu0 %v860
  %v2251 = vpop.f32.mrb[0].mxu0
  %v2252 = vadd.f32 %v2043, %v2251
  %v2253 = vpop.f32.mrb[0].mxu0
  %v2254 = vpop.f32.mrb[0].mxu0
  %v2255 = vadd.f32 %v2046, %v2254
  %v2256 = vpop.f32.mrb[0].mxu0
  %2257 = vmatprep.mubr.bf16.mxu0 %v869
  %2258 = vmatmul.mubr.bf16.gmra.mrb[0].mxu0 %v868
  %v2259 = vpop.f32.mrb[0].mxu0
  %v2260 = vadd.f32 %v2051, %v2259
  %v2261 = vpop.f32.mrb[0].mxu0
  %v2262 = vpop.f32.mrb[0].mxu0
  %v2263 = vadd.f32 %v2054, %v2262
  %v2264 = vpop.f32.mrb[0].mxu0
  %2265 = vmatprep.mubr.bf16.mxu0 %v877
  %2266 = vmatmul.mubr.bf16.gmra.mrb[0].mxu0 %v876
  %v2267 = vpop.f32.mrb[0].mxu0
  %v2268 = vadd.f32 %v2059, %v2267
  %v2269 = vpop.f32.mrb[0].mxu0
  %v2270 = vpop.f32.mrb[0].mxu0
  %v2271 = vadd.f32 %v2062, %v2270
  %v2272 = vpop.f32.mrb[0].mxu0
  %2273 = vmatprep.mubr.bf16.mxu0 %v885
  %2274 = vmatmul.mubr.bf16.gmra.mrb[0].mxu0 %v884
  %v2275 = vpop.f32.mrb[0].mxu0
  %v2276 = vadd.f32 %v2067, %v2275
  %v2277 = vpop.f32.mrb[0].mxu0
  %v2278 = vpop.f32.mrb[0].mxu0
  %v2279 = vadd.f32 %v2070, %v2278
  %v2280 = vpop.f32.mrb[0].mxu0
  %2281 = vmatprep.mubr.bf16.mxu0 %v893
  %2282 = vmatmul.mubr.bf16.gmra.mrb[0].mxu0 %v892
  %v2283 = vpop.f32.mrb[0].mxu0
  %v2284 = vadd.f32 %v2075, %v2283
  %v2285 = vpop.f32.mrb[0].mxu0
  %v2286 = vpop.f32.mrb[0].mxu0
  %v2287 = vadd.f32 %v2078, %v2286
  %v2288 = vpop.f32.mrb[0].mxu0
  %2289 = vmatprep.mubr.bf16.mxu0 %v901
  %2290 = vmatmul.mubr.bf16.gmra.mrb[0].mxu0 %v900
  %v2291 = vpop.f32.mrb[0].mxu0
  %v2292 = vadd.f32 %v2083, %v2291
  %v2293 = vpop.f32.mrb[0].mxu0
  %v2294 = vpop.f32.mrb[0].mxu0
  %v2295 = vadd.f32 %v2086, %v2294
  %v2296 = vpop.f32.mrb[0].mxu0
  %2297 = vmatprep.mubr.bf16.mxu0 %v909
  %2298 = vmatmul.mubr.bf16.gmra.mrb[0].mxu0 %v908
  %v2299 = vpop.f32.mrb[0].mxu0
  %v2300 = vadd.f32 %v2091, %v2299
  %v2301 = vpop.f32.mrb[0].mxu0
  %v2302 = vpop.f32.mrb[0].mxu0
  %v2303 = vadd.f32 %v2094, %v2302
  %v2304 = vpop.f32.mrb[0].mxu0
  %2305 = vmatprep.mubr.bf16.mxu0 %v917
  %2306 = vmatmul.mubr.bf16.gmra.mrb[0].mxu0 %v916
  %v2307 = vpop.f32.mrb[0].mxu0
  %v2308 = vadd.f32 %v2099, %v2307
  %v2309 = vpop.f32.mrb[0].mxu0
  %v2310 = vpop.f32.mrb[0].mxu0
  %v2311 = vadd.f32 %v2102, %v2310
  %v2312 = vpop.f32.mrb[0].mxu0
  %2313 = vmatprep.mubr.bf16.mxu0 %v925
  %2314 = vmatmul.mubr.bf16.gmra.mrb[0].mxu0 %v924
  %v2315 = vpop.f32.mrb[0].mxu0
  %v2316 = vadd.f32 %v2107, %v2315
  %v2317 = vpop.f32.mrb[0].mxu0
  %v2318 = vpop.f32.mrb[0].mxu0
  %v2319 = vadd.f32 %v2110, %v2318
  %v2320 = vpop.f32.mrb[0].mxu0
  %2321 = vmatprep.mubr.bf16.mxu0 %v933
  %2322 = vmatmul.mubr.bf16.gmra.mrb[0].mxu0 %v932
  %v2323 = vpop.f32.mrb[0].mxu0
  %v2324 = vadd.f32 %v2115, %v2323
  %v2325 = vpop.f32.mrb[0].mxu0
  %v2326 = vpop.f32.mrb[0].mxu0
  %v2327 = vadd.f32 %v2118, %v2326
  %v2328 = vpop.f32.mrb[0].mxu0
  %2329 = vmatprep.mubr.bf16.mxu0 %v941
  %2330 = vmatmul.mubr.bf16.gmra.mrb[0].mxu0 %v940
  %v2331 = vpop.f32.mrb[0].mxu0
  %v2332 = vadd.f32 %v2123, %v2331
  %v2333 = vpop.f32.mrb[0].mxu0
  %v2334 = vpop.f32.mrb[0].mxu0
  %v2335 = vadd.f32 %v2126, %v2334
  %v2336 = vpop.f32.mrb[0].mxu0
  %2337 = vmatprep.mubr.bf16.mxu0 %v949
  %2338 = vmatmul.mubr.bf16.gmra.mrb[0].mxu0 %v948
  %v2339 = vpop.f32.mrb[0].mxu0
  %v2340 = vadd.f32 %v2131, %v2339
  %v2341 = vpop.f32.mrb[0].mxu0
  %v2342 = vpop.f32.mrb[0].mxu0
  %v2343 = vadd.f32 %v2134, %v2342
  %v2344 = vpop.f32.mrb[0].mxu0
  %2345 = vmatprep.mubr.bf16.mxu0 %v957
  %2346 = vmatmul.mubr.bf16.gmra.mrb[0].mxu0 %v956
  %v2347 = vpop.f32.mrb[0].mxu0
  %v2348 = vadd.f32 %v2139, %v2347
  %v2349 = vpop.f32.mrb[0].mxu0
  %v2350 = vpop.f32.mrb[0].mxu0
  %v2351 = vadd.f32 %v2142, %v2350
  %v2352 = vpop.f32.mrb[0].mxu0
  %2353 = vmatprep.mubr.bf16.mxu0 %v965
  %2354 = vmatmul.mubr.bf16.gmra.mrb[0].mxu0 %v964
  %v2355 = vpop.f32.mrb[0].mxu0
  %v2356 = vadd.f32 %v2147, %v2355
  %v2357 = vpop.f32.mrb[0].mxu0
  %v2358 = vpop.f32.mrb[0].mxu0
  %v2359 = vadd.f32 %v2150, %v2358
  %v2360 = vpop.f32.mrb[0].mxu0
  %2361 = vmatprep.mubr.bf16.mxu0 %v973
  %2362 = vmatmul.mubr.bf16.gmra.mrb[0].mxu0 %v972
  %v2363 = vpop.f32.mrb[0].mxu0
  %v2364 = vadd.f32 %v2155, %v2363
  %v2365 = vpop.f32.mrb[0].mxu0
  %v2366 = vpop.f32.mrb[0].mxu0
  %v2367 = vadd.f32 %v2158, %v2366
  %v2368 = vpop.f32.mrb[0].mxu0
  %2369 = vmatprep.mubr.bf16.mxu0 %v981
  %2370 = vmatmul.mubr.bf16.gmra.mrb[0].mxu0 %v980
  %v2371 = vpop.f32.mrb[0].mxu0
  %v2372 = vadd.f32 %v2163, %v2371
  %v2373 = vpop.f32.mrb[0].mxu0
  %v2374 = vpop.f32.mrb[0].mxu0
  %v2375 = vadd.f32 %v2166, %v2374
  %v2376 = vpop.f32.mrb[0].mxu0
  %2377 = vmatprep.mubr.bf16.mxu0 %v989
  %2378 = vmatmul.mubr.bf16.gmra.mrb[0].mxu0 %v988
  %v2379 = vpop.f32.mrb[0].mxu0
  %v2380 = vadd.f32 %v2171, %v2379
  %v2381 = vpop.f32.mrb[0].mxu0
  %v2382 = vpop.f32.mrb[0].mxu0
  %v2383 = vadd.f32 %v2174, %v2382
  %v2384 = vpop.f32.mrb[0].mxu0
  %2385 = vmatprep.mubr.bf16.mxu0 %v997
  %2386 = vmatmul.mubr.bf16.gmra.mrb[0].mxu0 %v996
  %v2387 = vpop.f32.mrb[0].mxu0
  %v2388 = vadd.f32 %v2179, %v2387
  %v2389 = vpop.f32.mrb[0].mxu0
  %v2390 = vpop.f32.mrb[0].mxu0
  %v2391 = vadd.f32 %v2182, %v2390
  %v2392 = vpop.f32.mrb[0].mxu0
  %2393 = vmatprep.mubr.bf16.mxu0 %v1005
  %2394 = vmatmul.mubr.bf16.gmra.mrb[0].mxu0 %v1004
  %v2395 = vpop.f32.mrb[0].mxu0
  %v2396 = vadd.f32 %v2187, %v2395
  %v2397 = vpop.f32.mrb[0].mxu0
  %v2398 = vpop.f32.mrb[0].mxu0
  %v2399 = vadd.f32 %v2190, %v2398
  %v2400 = vpop.f32.mrb[0].mxu0
  %2401 = vmatprep.mubr.bf16.mxu0 %v1013
  %2402 = vmatmul.mubr.bf16.gmra.mrb[0].mxu0 %v1012
  %v2403 = vpop.f32.mrb[0].mxu0
  %v2404 = vadd.f32 %v2195, %v2403
  %v2405 = vpop.f32.mrb[0].mxu0
  %v2406 = vpop.f32.mrb[0].mxu0
  %v2407 = vadd.f32 %v2198, %v2406
  %v2408 = vpop.f32.mrb[0].mxu0
  %2409 = vmatprep.mubr.bf16.mxu0 %v1021
  %2410 = vmatmul.mubr.bf16.gmra.mrb[0].mxu0 %v1020
  %v2411 = vpop.f32.mrb[0].mxu0
  %v2412 = vadd.f32 %v2203, %v2411
  %v2413 = vpop.f32.mrb[0].mxu0
  %v2414 = vpop.f32.mrb[0].mxu0
  %v2415 = vadd.f32 %v2206, %v2414
  %v2416 = vpop.f32.mrb[0].mxu0
  %2417 = vmatprep.mubr.bf16.mxu0 %v1029
  %2418 = vmatmul.mubr.bf16.gmra.mrb[0].mxu0 %v1028
  %v2419 = vpop.f32.mrb[0].mxu0
  %v2420 = vadd.f32 %v2211, %v2419
  %v2421 = vpop.f32.mrb[0].mxu0
  %v2422 = vpop.f32.mrb[0].mxu0
  %v2423 = vadd.f32 %v2214, %v2422
  %v2424 = vpop.f32.mrb[0].mxu0
  %2425 = vdwg.mxu0
  %vm2426 = vcmp.ge.f32.partialorder %v2252, 0.0
  %vm2427 = vcmp.ge.f32.partialorder %v2255, 0.0
  %vm2428 = vcmp.ge.f32.partialorder %v2260, 0.0
  %vm2429 = vcmp.ge.f32.partialorder %v2263, 0.0
  %vm2430 = vcmp.ge.f32.partialorder %v2268, 0.0
  %vm2431 = vcmp.ge.f32.partialorder %v2271, 0.0
  %vm2432 = vcmp.ge.f32.partialorder %v2276, 0.0
  %vm2433 = vcmp.ge.f32.partialorder %v2279, 0.0
  %vm2434 = vcmp.ge.f32.partialorder %v2284, 0.0
  %vm2435 = vcmp.ge.f32.partialorder %v2287, 0.0
  %vm2436 = vcmp.ge.f32.partialorder %v2292, 0.0
  %vm2437 = vcmp.ge.f32.partialorder %v2295, 0.0
  %vm2438 = vcmp.ge.f32.partialorder %v2300, 0.0
  %vm2439 = vcmp.ge.f32.partialorder %v2303, 0.0
  %vm2440 = vcmp.ge.f32.partialorder %v2308, 0.0
  %vm2441 = vcmp.ge.f32.partialorder %v2311, 0.0
  %vm2442 = vcmp.ge.f32.partialorder %v2316, 0.0
  %vm2443 = vcmp.ge.f32.partialorder %v2319, 0.0
  %vm2444 = vcmp.ge.f32.partialorder %v2324, 0.0
  %vm2445 = vcmp.ge.f32.partialorder %v2327, 0.0
  %vm2446 = vcmp.ge.f32.partialorder %v2332, 0.0
  %vm2447 = vcmp.ge.f32.partialorder %v2335, 0.0
  %vm2448 = vcmp.ge.f32.partialorder %v2340, 0.0
  %vm2449 = vcmp.ge.f32.partialorder %v2343, 0.0
  %vm2450 = vcmp.ge.f32.partialorder %v2348, 0.0
  %vm2451 = vcmp.ge.f32.partialorder %v2351, 0.0
  %vm2452 = vcmp.ge.f32.partialorder %v2356, 0.0
  %vm2453 = vcmp.ge.f32.partialorder %v2359, 0.0
  %vm2454 = vcmp.ge.f32.partialorder %v2364, 0.0
  %vm2455 = vcmp.ge.f32.partialorder %v2367, 0.0
  %vm2456 = vcmp.ge.f32.partialorder %v2372, 0.0
  %vm2457 = vcmp.ge.f32.partialorder %v2375, 0.0
  %vm2458 = vcmp.ge.f32.partialorder %v2380, 0.0
  %vm2459 = vcmp.ge.f32.partialorder %v2383, 0.0
  %vm2460 = vcmp.ge.f32.partialorder %v2388, 0.0
  %vm2461 = vcmp.ge.f32.partialorder %v2391, 0.0
  %vm2462 = vcmp.ge.f32.partialorder %v2396, 0.0
  %vm2463 = vcmp.ge.f32.partialorder %v2399, 0.0
  %vm2464 = vcmp.ge.f32.partialorder %v2404, 0.0
  %vm2465 = vcmp.ge.f32.partialorder %v2407, 0.0
  %vm2466 = vcmp.ge.f32.partialorder %v2412, 0.0
  %vm2467 = vcmp.ge.f32.partialorder %v2415, 0.0
  %vm2468 = vcmp.ge.f32.partialorder %v2420, 0.0
  %vm2469 = vcmp.ge.f32.partialorder %v2423, 0.0
  %v2470 = vmul.f32 %v2252, 0.1
  %v2471 = vmul.f32 %v2255, 0.1
  %v2472 = vmul.f32 %v2260, 0.1
  %v2473 = vmul.f32 %v2263, 0.1
  %v2474 = vmul.f32 %v2268, 0.1
  %v2475 = vmul.f32 %v2271, 0.1
  %v2476 = vmul.f32 %v2276, 0.1
  %v2477 = vmul.f32 %v2279, 0.1
  %v2478 = vmul.f32 %v2284, 0.1
  %v2479 = vmul.f32 %v2287, 0.1
  %v2480 = vmul.f32 %v2292, 0.1
  %v2481 = vmul.f32 %v2295, 0.1
  %v2482 = vmul.f32 %v2300, 0.1
  %v2483 = vmul.f32 %v2303, 0.1
  %v2484 = vmul.f32 %v2308, 0.1
  %v2485 = vmul.f32 %v2311, 0.1
  %v2486 = vmul.f32 %v2316, 0.1
  %v2487 = vmul.f32 %v2319, 0.1
  %v2488 = vmul.f32 %v2324, 0.1
  %v2489 = vmul.f32 %v2327, 0.1
  %v2490 = vmul.f32 %v2332, 0.1
  %v2491 = vmul.f32 %v2335, 0.1
  %v2492 = vmul.f32 %v2340, 0.1
  %v2493 = vmul.f32 %v2343, 0.1
  %v2494 = vmul.f32 %v2348, 0.1
  %v2495 = vmul.f32 %v2351, 0.1
  %v2496 = vmul.f32 %v2356, 0.1
  %v2497 = vmul.f32 %v2359, 0.1
  %v2498 = vmul.f32 %v2364, 0.1
  %v2499 = vmul.f32 %v2367, 0.1
  %v2500 = vmul.f32 %v2372, 0.1
  %v2501 = vmul.f32 %v2375, 0.1
  %v2502 = vmul.f32 %v2380, 0.1
  %v2503 = vmul.f32 %v2383, 0.1
  %v2504 = vmul.f32 %v2388, 0.1
  %v2505 = vmul.f32 %v2391, 0.1
  %v2506 = vmul.f32 %v2396, 0.1
  %v2507 = vmul.f32 %v2399, 0.1
  %v2508 = vmul.f32 %v2404, 0.1
  %v2509 = vmul.f32 %v2407, 0.1
  %v2510 = vmul.f32 %v2412, 0.1
  %v2511 = vmul.f32 %v2415, 0.1
  %v2512 = vmul.f32 %v2420, 0.1
  %v2513 = vmul.f32 %v2423, 0.1
  %v2514 = vsel %vm2426, %v2252, %v2470
  %v2515 = vsel %vm2427, %v2255, %v2471
  %v2516 = vsel %vm2428, %v2260, %v2472
  %v2517 = vsel %vm2429, %v2263, %v2473
  %v2518 = vsel %vm2430, %v2268, %v2474
  %v2519 = vsel %vm2431, %v2271, %v2475
  %v2520 = vsel %vm2432, %v2276, %v2476
  %v2521 = vsel %vm2433, %v2279, %v2477
  %v2522 = vsel %vm2434, %v2284, %v2478
  %v2523 = vsel %vm2435, %v2287, %v2479
  %v2524 = vsel %vm2436, %v2292, %v2480
  %v2525 = vsel %vm2437, %v2295, %v2481
  %v2526 = vsel %vm2438, %v2300, %v2482
  %v2527 = vsel %vm2439, %v2303, %v2483
  %v2528 = vsel %vm2440, %v2308, %v2484
  %v2529 = vsel %vm2441, %v2311, %v2485
  %v2530 = vsel %vm2442, %v2316, %v2486
  %v2531 = vsel %vm2443, %v2319, %v2487
  %v2532 = vsel %vm2444, %v2324, %v2488
  %v2533 = vsel %vm2445, %v2327, %v2489
  %v2534 = vsel %vm2446, %v2332, %v2490
  %v2535 = vsel %vm2447, %v2335, %v2491
  %v2536 = vsel %vm2448, %v2340, %v2492
  %v2537 = vsel %vm2449, %v2343, %v2493
  %v2538 = vsel %vm2450, %v2348, %v2494
  %v2539 = vsel %vm2451, %v2351, %v2495
  %v2540 = vsel %vm2452, %v2356, %v2496
  %v2541 = vsel %vm2453, %v2359, %v2497
  %v2542 = vsel %vm2454, %v2364, %v2498
  %v2543 = vsel %vm2455, %v2367, %v2499
  %v2544 = vsel %vm2456, %v2372, %v2500
  %v2545 = vsel %vm2457, %v2375, %v2501
  %v2546 = vsel %vm2458, %v2380, %v2502
  %v2547 = vsel %vm2459, %v2383, %v2503
  %v2548 = vsel %vm2460, %v2388, %v2504
  %v2549 = vsel %vm2461, %v2391, %v2505
  %v2550 = vsel %vm2462, %v2396, %v2506
  %v2551 = vsel %vm2463, %v2399, %v2507
  %v2552 = vsel %vm2464, %v2404, %v2508
  %v2553 = vsel %vm2465, %v2407, %v2509
  %v2554 = vsel %vm2466, %v2412, %v2510
  %v2555 = vsel %vm2467, %v2415, %v2511
  %v2556 = vsel %vm2468, %v2420, %v2512
  %v2557 = vsel %vm2469, %v2423, %v2513
  %v2558 = vpack.c.bf16 %v2515, %v2514
  %v2559 = vpack.c.bf16 %v2517, %v2516
  %v2560 = vpack.c.bf16 %v2519, %v2518
  %v2561 = vpack.c.bf16 %v2521, %v2520
  %v2562 = vpack.c.bf16 %v2523, %v2522
  %v2563 = vpack.c.bf16 %v2525, %v2524
  %v2564 = vpack.c.bf16 %v2527, %v2526
  %v2565 = vpack.c.bf16 %v2529, %v2528
  %v2566 = vpack.c.bf16 %v2531, %v2530
  %v2567 = vpack.c.bf16 %v2533, %v2532
  %v2568 = vpack.c.bf16 %v2535, %v2534
  %v2569 = vpack.c.bf16 %v2537, %v2536
  %v2570 = vpack.c.bf16 %v2539, %v2538
  %v2571 = vpack.c.bf16 %v2541, %v2540
  %v2572 = vpack.c.bf16 %v2543, %v2542
  %v2573 = vpack.c.bf16 %v2545, %v2544
  %v2574 = vpack.c.bf16 %v2547, %v2546
  %v2575 = vpack.c.bf16 %v2549, %v2548
  %v2576 = vpack.c.bf16 %v2551, %v2550
  %v2577 = vpack.c.bf16 %v2553, %v2552
  %v2578 = vpack.c.bf16 %v2555, %v2554
  %v2579 = vpack.c.bf16 %v2557, %v2556
  %v2602 = vunpack.c.l.b16 %v2558
  %v2603 = vunpack.c.h.b16 %v2558
  %v2604 = vunpack.c.l.b16 %v2559
  %v2605 = vunpack.c.h.b16 %v2559
  %v2606 = vunpack.c.l.b16 %v2560
  %v2607 = vunpack.c.h.b16 %v2560
  %v2608 = vunpack.c.l.b16 %v2561
  %v2609 = vunpack.c.h.b16 %v2561
  %v2610 = vunpack.c.l.b16 %v2562
  %v2611 = vunpack.c.h.b16 %v2562
  %v2612 = vunpack.c.l.b16 %v2563
  %v2613 = vunpack.c.h.b16 %v2563
  %v2614 = vunpack.c.l.b16 %v2564
  %v2615 = vunpack.c.h.b16 %v2564
  %v2616 = vunpack.c.l.b16 %v2565
  %v2617 = vunpack.c.h.b16 %v2565
  %v2618 = vunpack.c.l.b16 %v2566
  %v2619 = vunpack.c.h.b16 %v2566
  %v2620 = vunpack.c.l.b16 %v2567
  %v2621 = vunpack.c.h.b16 %v2567
  %v2622 = vunpack.c.l.b16 %v2568
  %v2623 = vunpack.c.h.b16 %v2568
  %v2624 = vunpack.c.l.b16 %v2569
  %v2625 = vunpack.c.h.b16 %v2569
  %v2626 = vunpack.c.l.b16 %v2570
  %v2627 = vunpack.c.h.b16 %v2570
  %v2628 = vunpack.c.l.b16 %v2571
  %v2629 = vunpack.c.h.b16 %v2571
  %v2630 = vunpack.c.l.b16 %v2572
  %v2631 = vunpack.c.h.b16 %v2572
  %v2632 = vunpack.c.l.b16 %v2573
  %v2633 = vunpack.c.h.b16 %v2573
  %v2634 = vunpack.c.l.b16 %v2574
  %v2635 = vunpack.c.h.b16 %v2574
  %v2636 = vunpack.c.l.b16 %v2575
  %v2637 = vunpack.c.h.b16 %v2575
  %v2638 = vunpack.c.l.b16 %v2576
  %v2639 = vunpack.c.h.b16 %v2576
  %v2640 = vunpack.c.l.b16 %v2577
  %v2641 = vunpack.c.h.b16 %v2577
  %v2642 = vunpack.c.l.b16 %v2578
  %v2643 = vunpack.c.h.b16 %v2578
  %v2644 = vunpack.c.l.b16 %v2579
  %v2645 = vunpack.c.h.b16 %v2579
  %v2646 = vpack.c.b16 %v2602, %v2602
  %v2647 = vpack.c.b16 %v2603, %v2603
  %v2648 = vpack.c.b16 %v2604, %v2604
  %v2649 = vpack.c.b16 %v2605, %v2605
  %v2650 = vpack.c.b16 %v2606, %v2606
  %v2651 = vpack.c.b16 %v2607, %v2607
  %v2652 = vpack.c.b16 %v2608, %v2608
  %v2653 = vpack.c.b16 %v2609, %v2609
  %v2654 = vpack.c.b16 %v2610, %v2610
  %v2655 = vpack.c.b16 %v2611, %v2611
  %v2656 = vpack.c.b16 %v2612, %v2612
  %v2657 = vpack.c.b16 %v2613, %v2613
  %v2658 = vpack.c.b16 %v2614, %v2614
  %v2659 = vpack.c.b16 %v2615, %v2615
  %v2660 = vpack.c.b16 %v2616, %v2616
  %v2661 = vpack.c.b16 %v2617, %v2617
  %v2662 = vpack.c.b16 %v2618, %v2618
  %v2663 = vpack.c.b16 %v2619, %v2619
  %v2664 = vpack.c.b16 %v2620, %v2620
  %v2665 = vpack.c.b16 %v2621, %v2621
  %v2666 = vpack.c.b16 %v2622, %v2622
  %v2667 = vpack.c.b16 %v2623, %v2623
  %v2668 = vpack.c.b16 %v2624, %v2624
  %v2669 = vpack.c.b16 %v2625, %v2625
  %v2670 = vpack.c.b16 %v2626, %v2626
  %v2671 = vpack.c.b16 %v2627, %v2627
  %v2672 = vpack.c.b16 %v2628, %v2628
  %v2673 = vpack.c.b16 %v2629, %v2629
  %v2674 = vpack.c.b16 %v2630, %v2630
  %v2675 = vpack.c.b16 %v2631, %v2631
  %v2676 = vpack.c.b16 %v2632, %v2632
  %v2677 = vpack.c.b16 %v2633, %v2633
  %v2678 = vpack.c.b16 %v2634, %v2634
  %v2679 = vpack.c.b16 %v2635, %v2635
  %v2680 = vpack.c.b16 %v2636, %v2636
  %v2681 = vpack.c.b16 %v2637, %v2637
  %v2682 = vpack.c.b16 %v2638, %v2638
  %v2683 = vpack.c.b16 %v2639, %v2639
  %v2684 = vpack.c.b16 %v2640, %v2640
  %v2685 = vpack.c.b16 %v2641, %v2641
  %v2686 = vpack.c.b16 %v2642, %v2642
  %v2687 = vpack.c.b16 %v2643, %v2643
  %v2688 = vpack.c.b16 %v2644, %v2644
  %v2689 = vpack.c.b16 %v2645, %v2645
  %2734 = vst [vmem:[%s3] sm:$0xf] %v2646
  %2735 = vst [vmem:[%s3 + $0x4] sm:$0xf] %v2647
  %2736 = vst [vmem:[%s3 + $0x8] sm:$0xf] %v2648
  %2737 = vst [vmem:[%s3 + $0xc] sm:$0xf] %v2649
  %2738 = vst [vmem:[%s3 + $0x10] sm:$0xf] %v2650
  %2739 = vst [vmem:[%s3 + $0x14] sm:$0xf] %v2651
  %2740 = vst [vmem:[%s3 + $0x18] sm:$0xf] %v2652
  %2741 = vst [vmem:[%s3 + $0x1c] sm:$0xf] %v2653
  %2742 = vst [vmem:[%s3 + $0x20] sm:$0xf] %v2654
  %2743 = vst [vmem:[%s3 + $0x24] sm:$0xf] %v2655
  %2744 = vst [vmem:[%s3 + $0x28] sm:$0xf] %v2656
  %2745 = vst [vmem:[%s3 + $0x2c] sm:$0xf] %v2657
  %2746 = vst [vmem:[%s3 + $0x30] sm:$0xf] %v2658
  %2747 = vst [vmem:[%s3 + $0x34] sm:$0xf] %v2659
  %2748 = vst [vmem:[%s3 + $0x38] sm:$0xf] %v2660
  %2749 = vst [vmem:[%s3 + $0x3c] sm:$0xf] %v2661
  %2750 = vst [vmem:[%s3 + $0x40] sm:$0xf] %v2662
  %2751 = vst [vmem:[%s3 + $0x44] sm:$0xf] %v2663
  %2752 = vst [vmem:[%s3 + $0x48] sm:$0xf] %v2664
  %2753 = vst [vmem:[%s3 + $0x4c] sm:$0xf] %v2665
  %2754 = vst [vmem:[%s3 + $0x50] sm:$0xf] %v2666
  %2755 = vst [vmem:[%s3 + $0x54] sm:$0xf] %v2667
  %2756 = vst [vmem:[%s3 + $0x58] sm:$0xf] %v2668
  %2757 = vst [vmem:[%s3 + $0x5c] sm:$0xf] %v2669
  %2758 = vst [vmem:[%s3 + $0x60] sm:$0xf] %v2670
  %2759 = vst [vmem:[%s3 + $0x64] sm:$0xf] %v2671
  %2760 = vst [vmem:[%s3 + $0x68] sm:$0xf] %v2672
  %2761 = vst [vmem:[%s3 + $0x6c] sm:$0xf] %v2673
  %2762 = vst [vmem:[%s3 + $0x70] sm:$0xf] %v2674
  %2763 = vst [vmem:[%s3 + $0x74] sm:$0xf] %v2675
  %2764 = vst [vmem:[%s3 + $0x78] sm:$0xf] %v2676
  %2765 = vst [vmem:[%s3 + $0x7c] sm:$0xf] %v2677
  %2766 = vst [vmem:[%s3 + $0x80] sm:$0xf] %v2678
  %2767 = vst [vmem:[%s3 + $0x84] sm:$0xf] %v2679
  %2768 = vst [vmem:[%s3 + $0x88] sm:$0xf] %v2680
  %2769 = vst [vmem:[%s3 + $0x8c] sm:$0xf] %v2681
  %2770 = vst [vmem:[%s3 + $0x90] sm:$0xf] %v2682
  %2771 = vst [vmem:[%s3 + $0x94] sm:$0xf] %v2683
  %2772 = vst [vmem:[%s3 + $0x98] sm:$0xf] %v2684
  %2773 = vst [vmem:[%s3 + $0x9c] sm:$0xf] %v2685
  %2774 = vst [vmem:[%s3 + $0xa0] sm:$0xf] %v2686
  %2775 = vst [vmem:[%s3 + $0xa4] sm:$0xf] %v2687
  %2776 = vst [vmem:[%s3 + $0xa8] sm:$0xf] %v2688
  %2777 = vst [vmem:[%s3 + $0xac] sm:$0xf] %v2689
  // Predicated region
  $region14: #{_lambda_.30} parent=0 // pred_check
    _
  $region15: #{_lambda_.30} parent=0 // pred_check_branch
    %2779 = sbr.rel (0) target = $region17
  $region16: #{_lambda_.30} parent=0 // pred_region
    _
  $region17: #{_lambda_.30} parent=0 // pred_fallthru
    _
  // Predicated region
  $region18: #{_lambda_.30} parent=0 // pred_check
    _
  $region19: #{_lambda_.30} parent=0 // pred_check_branch
    %2781 = sbr.rel (0) target = $region21
  $region20: #{_lambda_.30} parent=0 // pred_region
    _
  $region21: #{_lambda_.30} parent=0 // pred_fallthru
    _

// kernel: _lambda_.31
$region0: #{_lambda_.31}
  #allocation0 [shape = 'u32[]', space=smem, size = 0x4, offset = 0x4, fixed_abs, tag = 'smem constant byte address 0x4 - core index']
  #allocation1 [shape = 'u32[144,128]{1,0:T(1,128)}', space=vmem, size = 0x12000, scoped, tag = 'internal scratch']
  %s0 = inlined_call_operand.vmem [shape: bf16[112,1024], index: 0, kind: input, shape index: {}]
  %s1 = inlined_call_operand.vmem [shape: bf16[1024,128], index: 1, kind: input, shape index: {}]
  %s2 = inlined_call_operand.vmem [shape: f32[1,128], index: 2, kind: input, shape index: {}]
  %s3 = inlined_call_operand.vmem [shape: bf16[112,128], index: 3, kind: output, shape index: {}]
  %s4 = sld [smem:[#allocation0]]
  $region22: #{_lambda_.31} parent=0
    _
  %s6 = ssub.s32 1, %s4
  %s7 = scalar_select 0, %s6, %s4
  // Predicated region
  $region2: #{_lambda_.31} parent=0 // pred_check
    _
  $region3: #{_lambda_.31} parent=0 // pred_check_branch
    %9 = sbr.rel (0) target = $region5
  $region4: #{_lambda_.31} parent=0 // pred_region
    _
  $region5: #{_lambda_.31} parent=0 // pred_fallthru
    _
  // Predicated region
  $region6: #{_lambda_.31} parent=0 // pred_check
    _
  $region7: #{_lambda_.31} parent=0 // pred_check_branch
    %11 = sbr.rel (0) target = $region9
  $region8: #{_lambda_.31} parent=0 // pred_region
    _
  $region9: #{_lambda_.31} parent=0 // pred_fallthru
    _
  // Predicated region
  $region10: #{_lambda_.31} parent=0 // pred_check
    _
  $region11: #{_lambda_.31} parent=0 // pred_check_branch
    %13 = sbr.rel (0) target = $region13
  $region12: #{_lambda_.31} parent=0 // pred_region
    _
  $region13: #{_lambda_.31} parent=0 // pred_fallthru
    _
  %v15 = vld [vmem:[%s0] sm:$0xff]
  %v16 = vld [vmem:[%s0 + $0x8] sm:$0xff]
  %v17 = vld [vmem:[%s0 + $0x10] sm:$0xff]
  %v18 = vld [vmem:[%s0 + $0x18] sm:$0xff]
  %v19 = vld [vmem:[%s0 + $0x20] sm:$0xff]
  %v20 = vld [vmem:[%s0 + $0x28] sm:$0xff]
  %v21 = vld [vmem:[%s0 + $0x30] sm:$0xff]
  %v22 = vld [vmem:[%s0 + $0x38] sm:$0xff]
  %v23 = vld [vmem:[%s0 + $0x40] sm:$0xff]
  %v24 = vld [vmem:[%s0 + $0x48] sm:$0xff]
  %v25 = vld [vmem:[%s0 + $0x50] sm:$0xff]
  %v26 = vld [vmem:[%s0 + $0x58] sm:$0xff]
  %v27 = vld [vmem:[%s0 + $0x60] sm:$0xff]
  %v28 = vld [vmem:[%s0 + $0x68] sm:$0xff]
  %v29 = vld [vmem:[%s0 + $0x70] sm:$0xff]
  %v30 = vld [vmem:[%s0 + $0x78] sm:$0xff]
  %v31 = vld [vmem:[%s0 + $0x80] sm:$0xff]
  %v32 = vld [vmem:[%s0 + $0x88] sm:$0xff]
  %v33 = vld [vmem:[%s0 + $0x90] sm:$0xff]
  %v34 = vld [vmem:[%s0 + $0x98] sm:$0xff]
  %v35 = vld [vmem:[%s0 + $0xa0] sm:$0xff]
  %v36 = vld [vmem:[%s0 + $0xa8] sm:$0xff]
  %v37 = vld [vmem:[%s0 + $0xb0] sm:$0xff]
  %v38 = vld [vmem:[%s0 + $0xb8] sm:$0xff]
  %v39 = vld [vmem:[%s0 + $0xc0] sm:$0xff]
  %v40 = vld [vmem:[%s0 + $0xc8] sm:$0xff]
  %v41 = vld [vmem:[%s0 + $0xd0] sm:$0xff]
  %v42 = vld [vmem:[%s0 + $0xd8] sm:$0xff]
  %v43 = vld [vmem:[%s0 + $0xe0] sm:$0xff]
  %v44 = vld [vmem:[%s0 + $0xe8] sm:$0xff]
  %v45 = vld [vmem:[%s0 + $0xf0] sm:$0xff]
  %v46 = vld [vmem:[%s0 + $0xf8] sm:$0xff]
  %v47 = vld [vmem:[%s0 + $0x100] sm:$0xff]
  %v48 = vld [vmem:[%s0 + $0x108] sm:$0xff]
  %v49 = vld [vmem:[%s0 + $0x110] sm:$0xff]
  %v50 = vld [vmem:[%s0 + $0x118] sm:$0xff]
  %v51 = vld [vmem:[%s0 + $0x120] sm:$0xff]
  %v52 = vld [vmem:[%s0 + $0x128] sm:$0xff]
  %v53 = vld [vmem:[%s0 + $0x130] sm:$0xff]
  %v54 = vld [vmem:[%s0 + $0x138] sm:$0xff]
  %v55 = vld [vmem:[%s0 + $0x140] sm:$0xff]
  %v56 = vld [vmem:[%s0 + $0x148] sm:$0xff]
  %v57 = vld [vmem:[%s0 + $0x150] sm:$0xff]
  %v58 = vld [vmem:[%s0 + $0x158] sm:$0xff]
  %v59 = vld [vmem:[%s0 + $0x160] sm:$0xff]
  %v60 = vld [vmem:[%s0 + $0x168] sm:$0xff]
  %v61 = vld [vmem:[%s0 + $0x170] sm:$0xff]
  %v62 = vld [vmem:[%s0 + $0x178] sm:$0xff]
  %v63 = vld [vmem:[%s0 + $0x180] sm:$0xff]
  %v64 = vld [vmem:[%s0 + $0x188] sm:$0xff]
  %v65 = vld [vmem:[%s0 + $0x190] sm:$0xff]
  %v66 = vld [vmem:[%s0 + $0x198] sm:$0xff]
  %v67 = vld [vmem:[%s0 + $0x1a0] sm:$0xff]
  %v68 = vld [vmem:[%s0 + $0x1a8] sm:$0xff]
  %v69 = vld [vmem:[%s0 + $0x1b0] sm:$0xff]
  %v70 = vld [vmem:[%s0 + $0x1b8] sm:$0xff]
  %v71 = vld [vmem:[%s1] sm:$0xf]
  %v72 = vld [vmem:[%s1 + $0x4] sm:$0xf]
  %v73 = vld [vmem:[%s1 + $0x8] sm:$0xf]
  %v74 = vld [vmem:[%s1 + $0xc] sm:$0xf]
  %v75 = vld [vmem:[%s1 + $0x10] sm:$0xf]
  %v76 = vld [vmem:[%s1 + $0x14] sm:$0xf]
  %v77 = vld [vmem:[%s1 + $0x18] sm:$0xf]
  %v78 = vld [vmem:[%s1 + $0x1c] sm:$0xf]
  %v79 = vld [vmem:[%s1 + $0x20] sm:$0xf]
  %v80 = vld [vmem:[%s1 + $0x24] sm:$0xf]
  %v81 = vld [vmem:[%s1 + $0x28] sm:$0xf]
  %v82 = vld [vmem:[%s1 + $0x2c] sm:$0xf]
  %v83 = vld [vmem:[%s1 + $0x30] sm:$0xf]
  %v84 = vld [vmem:[%s1 + $0x34] sm:$0xf]
  %v85 = vld [vmem:[%s1 + $0x38] sm:$0xf]
  %v86 = vld [vmem:[%s1 + $0x3c] sm:$0xf]
  %v87 = vld [vmem:[%s1 + $0x40] sm:$0xf]
  %v88 = vld [vmem:[%s1 + $0x44] sm:$0xf]
  %v89 = vld [vmem:[%s1 + $0x48] sm:$0xf]
  %v90 = vld [vmem:[%s1 + $0x4c] sm:$0xf]
  %v91 = vld [vmem:[%s1 + $0x50] sm:$0xf]
  %v92 = vld [vmem:[%s1 + $0x54] sm:$0xf]
  %v93 = vld [vmem:[%s1 + $0x58] sm:$0xf]
  %v94 = vld [vmem:[%s1 + $0x5c] sm:$0xf]
  %v95 = vld [vmem:[%s1 + $0x60] sm:$0xf]
  %v96 = vld [vmem:[%s1 + $0x64] sm:$0xf]
  %v97 = vld [vmem:[%s1 + $0x68] sm:$0xf]
  %v98 = vld [vmem:[%s1 + $0x6c] sm:$0xf]
  %v99 = vld [vmem:[%s1 + $0x70] sm:$0xf]
  %v100 = vld [vmem:[%s1 + $0x74] sm:$0xf]
  %v101 = vld [vmem:[%s1 + $0x78] sm:$0xf]
  %v102 = vld [vmem:[%s1 + $0x7c] sm:$0xf]
  %v103 = vld [vmem:[%s1 + $0x80] sm:$0xf]
  %v104 = vld [vmem:[%s1 + $0x84] sm:$0xf]
  %v105 = vld [vmem:[%s1 + $0x88] sm:$0xf]
  %v106 = vld [vmem:[%s1 + $0x8c] sm:$0xf]
  %v107 = vld [vmem:[%s1 + $0x90] sm:$0xf]
  %v108 = vld [vmem:[%s1 + $0x94] sm:$0xf]
  %v109 = vld [vmem:[%s1 + $0x98] sm:$0xf]
  %v110 = vld [vmem:[%s1 + $0x9c] sm:$0xf]
  %v111 = vld [vmem:[%s1 + $0xa0] sm:$0xf]
  %v112 = vld [vmem:[%s1 + $0xa4] sm:$0xf]
  %v113 = vld [vmem:[%s1 + $0xa8] sm:$0xf]
  %v114 = vld [vmem:[%s1 + $0xac] sm:$0xf]
  %v115 = vld [vmem:[%s1 + $0xb0] sm:$0xf]
  %v116 = vld [vmem:[%s1 + $0xb4] sm:$0xf]
  %v117 = vld [vmem:[%s1 + $0xb8] sm:$0xf]
  %v118 = vld [vmem:[%s1 + $0xbc] sm:$0xf]
  %v119 = vld [vmem:[%s1 + $0xc0] sm:$0xf]
  %v120 = vld [vmem:[%s1 + $0xc4] sm:$0xf]
  %v121 = vld [vmem:[%s1 + $0xc8] sm:$0xf]
  %v122 = vld [vmem:[%s1 + $0xcc] sm:$0xf]
  %v123 = vld [vmem:[%s1 + $0xd0] sm:$0xf]
  %v124 = vld [vmem:[%s1 + $0xd4] sm:$0xf]
  %v125 = vld [vmem:[%s1 + $0xd8] sm:$0xf]
  %v126 = vld [vmem:[%s1 + $0xdc] sm:$0xf]
  %v127 = vld [vmem:[%s1 + $0xe0] sm:$0xf]
  %v128 = vld [vmem:[%s1 + $0xe4] sm:$0xf]
  %v129 = vld [vmem:[%s1 + $0xe8] sm:$0xf]
  %v130 = vld [vmem:[%s1 + $0xec] sm:$0xf]
  %v131 = vld [vmem:[%s1 + $0xf0] sm:$0xf]
  %v132 = vld [vmem:[%s1 + $0xf4] sm:$0xf]
  %v133 = vld [vmem:[%s1 + $0xf8] sm:$0xf]
  %v134 = vld [vmem:[%s1 + $0xfc] sm:$0xf]
  %v135 = vld [vmem:[%s1 + $0x100] sm:$0xf]
  %v136 = vld [vmem:[%s1 + $0x104] sm:$0xf]
  %v137 = vld [vmem:[%s1 + $0x108] sm:$0xf]
  %v138 = vld [vmem:[%s1 + $0x10c] sm:$0xf]
  %v139 = vld [vmem:[%s1 + $0x110] sm:$0xf]
  %v140 = vld [vmem:[%s1 + $0x114] sm:$0xf]
  %v141 = vld [vmem:[%s1 + $0x118] sm:$0xf]
  %v142 = vld [vmem:[%s1 + $0x11c] sm:$0xf]
  %v143 = vld [vmem:[%s1 + $0x120] sm:$0xf]
  %v144 = vld [vmem:[%s1 + $0x124] sm:$0xf]
  %v145 = vld [vmem:[%s1 + $0x128] sm:$0xf]
  %v146 = vld [vmem:[%s1 + $0x12c] sm:$0xf]
  %v147 = vld [vmem:[%s1 + $0x130] sm:$0xf]
  %v148 = vld [vmem:[%s1 + $0x134] sm:$0xf]
  %v149 = vld [vmem:[%s1 + $0x138] sm:$0xf]
  %v150 = vld [vmem:[%s1 + $0x13c] sm:$0xf]
  %v151 = vld [vmem:[%s1 + $0x140] sm:$0xf]
  %v152 = vld [vmem:[%s1 + $0x144] sm:$0xf]
  %v153 = vld [vmem:[%s1 + $0x148] sm:$0xf]
  %v154 = vld [vmem:[%s1 + $0x14c] sm:$0xf]
  %v155 = vld [vmem:[%s1 + $0x150] sm:$0xf]
  %v156 = vld [vmem:[%s1 + $0x154] sm:$0xf]
  %v157 = vld [vmem:[%s1 + $0x158] sm:$0xf]
  %v158 = vld [vmem:[%s1 + $0x15c] sm:$0xf]
  %v159 = vld [vmem:[%s1 + $0x160] sm:$0xf]
  %v160 = vld [vmem:[%s1 + $0x164] sm:$0xf]
  %v161 = vld [vmem:[%s1 + $0x168] sm:$0xf]
  %v162 = vld [vmem:[%s1 + $0x16c] sm:$0xf]
  %v163 = vld [vmem:[%s1 + $0x170] sm:$0xf]
  %v164 = vld [vmem:[%s1 + $0x174] sm:$0xf]
  %v165 = vld [vmem:[%s1 + $0x178] sm:$0xf]
  %v166 = vld [vmem:[%s1 + $0x17c] sm:$0xf]
  %v167 = vld [vmem:[%s1 + $0x180] sm:$0xf]
  %v168 = vld [vmem:[%s1 + $0x184] sm:$0xf]
  %v169 = vld [vmem:[%s1 + $0x188] sm:$0xf]
  %v170 = vld [vmem:[%s1 + $0x18c] sm:$0xf]
  %v171 = vld [vmem:[%s1 + $0x190] sm:$0xf]
  %v172 = vld [vmem:[%s1 + $0x194] sm:$0xf]
  %v173 = vld [vmem:[%s1 + $0x198] sm:$0xf]
  %v174 = vld [vmem:[%s1 + $0x19c] sm:$0xf]
  %v175 = vld [vmem:[%s1 + $0x1a0] sm:$0xf]
  %v176 = vld [vmem:[%s1 + $0x1a4] sm:$0xf]
  %v177 = vld [vmem:[%s1 + $0x1a8] sm:$0xf]
  %v178 = vld [vmem:[%s1 + $0x1ac] sm:$0xf]
  %v179 = vld [vmem:[%s1 + $0x1b0] sm:$0xf]
  %v180 = vld [vmem:[%s1 + $0x1b4] sm:$0xf]
  %v181 = vld [vmem:[%s1 + $0x1b8] sm:$0xf]
  %v182 = vld [vmem:[%s1 + $0x1bc] sm:$0xf]
  %v183 = vld [vmem:[%s1 + $0x1c0] sm:$0xf]
  %v184 = vld [vmem:[%s1 + $0x1c4] sm:$0xf]
  %v185 = vld [vmem:[%s1 + $0x1c8] sm:$0xf]
  %v186 = vld [vmem:[%s1 + $0x1cc] sm:$0xf]
  %v187 = vld [vmem:[%s1 + $0x1d0] sm:$0xf]
  %v188 = vld [vmem:[%s1 + $0x1d4] sm:$0xf]
  %v189 = vld [vmem:[%s1 + $0x1d8] sm:$0xf]
  %v190 = vld [vmem:[%s1 + $0x1dc] sm:$0xf]
  %v191 = vld [vmem:[%s1 + $0x1e0] sm:$0xf]
  %v192 = vld [vmem:[%s1 + $0x1e4] sm:$0xf]
  %v193 = vld [vmem:[%s1 + $0x1e8] sm:$0xf]
  %v194 = vld [vmem:[%s1 + $0x1ec] sm:$0xf]
  %v195 = vld [vmem:[%s1 + $0x1f0] sm:$0xf]
  %v196 = vld [vmem:[%s1 + $0x1f4] sm:$0xf]
  %v197 = vld [vmem:[%s1 + $0x1f8] sm:$0xf]
  %v198 = vld [vmem:[%s1 + $0x1fc] sm:$0xf]
  %v199 = vld [vmem:[%s2] sm:$0x1]
  %v201 = vlaneseq
  %v202 = vshrl.u32 %v201, 7
  %v203 = vsub.s32 0, %v202
  %v204 = vrot.slane %v199, %v203
  %v262 = vunpack.c.l.b16 %v15
  %v263 = vunpack.c.h.b16 %v15
  %v264 = vunpack.c.l.b16 %v16
  %v265 = vunpack.c.h.b16 %v16
  %v266 = vunpack.c.l.b16 %v17
  %v267 = vunpack.c.h.b16 %v17
  %v268 = vunpack.c.l.b16 %v18
  %v269 = vunpack.c.h.b16 %v18
  %v270 = vunpack.c.l.b16 %v19
  %v271 = vunpack.c.h.b16 %v19
  %v272 = vunpack.c.l.b16 %v20
  %v273 = vunpack.c.h.b16 %v20
  %v274 = vunpack.c.l.b16 %v21
  %v275 = vunpack.c.h.b16 %v21
  %v276 = vunpack.c.l.b16 %v22
  %v277 = vunpack.c.h.b16 %v22
  %v278 = vunpack.c.l.b16 %v23
  %v279 = vunpack.c.h.b16 %v23
  %v280 = vunpack.c.l.b16 %v24
  %v281 = vunpack.c.h.b16 %v24
  %v282 = vunpack.c.l.b16 %v25
  %v283 = vunpack.c.h.b16 %v25
  %v284 = vunpack.c.l.b16 %v26
  %v285 = vunpack.c.h.b16 %v26
  %v286 = vunpack.c.l.b16 %v27
  %v287 = vunpack.c.h.b16 %v27
  %v288 = vunpack.c.l.b16 %v28
  %v289 = vunpack.c.h.b16 %v28
  %v290 = vunpack.c.l.b16 %v29
  %v291 = vunpack.c.h.b16 %v29
  %v292 = vunpack.c.l.b16 %v30
  %v293 = vunpack.c.h.b16 %v30
  %v294 = vunpack.c.l.b16 %v31
  %v295 = vunpack.c.h.b16 %v31
  %v296 = vunpack.c.l.b16 %v32
  %v297 = vunpack.c.h.b16 %v32
  %v298 = vunpack.c.l.b16 %v33
  %v299 = vunpack.c.h.b16 %v33
  %v300 = vunpack.c.l.b16 %v34
  %v301 = vunpack.c.h.b16 %v34
  %v302 = vunpack.c.l.b16 %v35
  %v303 = vunpack.c.h.b16 %v35
  %v304 = vunpack.c.l.b16 %v36
  %v305 = vunpack.c.h.b16 %v36
  %v306 = vunpack.c.l.b16 %v37
  %v307 = vunpack.c.h.b16 %v37
  %v308 = vunpack.c.l.b16 %v38
  %v309 = vunpack.c.h.b16 %v38
  %v310 = vunpack.c.l.b16 %v39
  %v311 = vunpack.c.h.b16 %v39
  %v312 = vunpack.c.l.b16 %v40
  %v313 = vunpack.c.h.b16 %v40
  %v314 = vunpack.c.l.b16 %v41
  %v315 = vunpack.c.h.b16 %v41
  %v316 = vunpack.c.l.b16 %v42
  %v317 = vunpack.c.h.b16 %v42
  %v318 = vunpack.c.l.b16 %v43
  %v319 = vunpack.c.h.b16 %v43
  %v320 = vunpack.c.l.b16 %v44
  %v321 = vunpack.c.h.b16 %v44
  %v322 = vunpack.c.l.b16 %v45
  %v323 = vunpack.c.h.b16 %v45
  %v324 = vunpack.c.l.b16 %v46
  %v325 = vunpack.c.h.b16 %v46
  %v326 = vunpack.c.l.b16 %v47
  %v327 = vunpack.c.h.b16 %v47
  %v328 = vunpack.c.l.b16 %v48
  %v329 = vunpack.c.h.b16 %v48
  %v330 = vunpack.c.l.b16 %v49
  %v331 = vunpack.c.h.b16 %v49
  %v332 = vunpack.c.l.b16 %v50
  %v333 = vunpack.c.h.b16 %v50
  %v334 = vunpack.c.l.b16 %v51
  %v335 = vunpack.c.h.b16 %v51
  %v336 = vunpack.c.l.b16 %v52
  %v337 = vunpack.c.h.b16 %v52
  %v338 = vunpack.c.l.b16 %v53
  %v339 = vunpack.c.h.b16 %v53
  %v340 = vunpack.c.l.b16 %v54
  %v341 = vunpack.c.h.b16 %v54
  %v342 = vunpack.c.l.b16 %v55
  %v343 = vunpack.c.h.b16 %v55
  %v344 = vunpack.c.l.b16 %v56
  %v345 = vunpack.c.h.b16 %v56
  %v346 = vunpack.c.l.b16 %v57
  %v347 = vunpack.c.h.b16 %v57
  %v348 = vunpack.c.l.b16 %v58
  %v349 = vunpack.c.h.b16 %v58
  %v350 = vunpack.c.l.b16 %v59
  %v351 = vunpack.c.h.b16 %v59
  %v352 = vunpack.c.l.b16 %v60
  %v353 = vunpack.c.h.b16 %v60
  %v354 = vunpack.c.l.b16 %v61
  %v355 = vunpack.c.h.b16 %v61
  %v356 = vunpack.c.l.b16 %v62
  %v357 = vunpack.c.h.b16 %v62
  %v358 = vunpack.c.l.b16 %v63
  %v359 = vunpack.c.h.b16 %v63
  %v360 = vunpack.c.l.b16 %v64
  %v361 = vunpack.c.h.b16 %v64
  %v362 = vunpack.c.l.b16 %v65
  %v363 = vunpack.c.h.b16 %v65
  %v364 = vunpack.c.l.b16 %v66
  %v365 = vunpack.c.h.b16 %v66
  %v366 = vunpack.c.l.b16 %v67
  %v367 = vunpack.c.h.b16 %v67
  %v368 = vunpack.c.l.b16 %v68
  %v369 = vunpack.c.h.b16 %v68
  %v370 = vunpack.c.l.b16 %v69
  %v371 = vunpack.c.h.b16 %v69
  %v372 = vunpack.c.l.b16 %v70
  %v373 = vunpack.c.h.b16 %v70
  %v374 = vpack.c.b16 %v270, %v262
  %v375 = vpack.c.b16 %v271, %v263
  %v376 = vpack.c.b16 %v272, %v264
  %v377 = vpack.c.b16 %v273, %v265
  %v378 = vpack.c.b16 %v274, %v266
  %v379 = vpack.c.b16 %v275, %v267
  %v380 = vpack.c.b16 %v276, %v268
  %v381 = vpack.c.b16 %v277, %v269
  %v382 = vpack.c.b16 %v286, %v278
  %v383 = vpack.c.b16 %v287, %v279
  %v384 = vpack.c.b16 %v288, %v280
  %v385 = vpack.c.b16 %v289, %v281
  %v386 = vpack.c.b16 %v290, %v282
  %v387 = vpack.c.b16 %v291, %v283
  %v388 = vpack.c.b16 %v292, %v284
  %v389 = vpack.c.b16 %v293, %v285
  %v390 = vpack.c.b16 %v302, %v294
  %v391 = vpack.c.b16 %v303, %v295
  %v392 = vpack.c.b16 %v304, %v296
  %v393 = vpack.c.b16 %v305, %v297
  %v394 = vpack.c.b16 %v306, %v298
  %v395 = vpack.c.b16 %v307, %v299
  %v396 = vpack.c.b16 %v308, %v300
  %v397 = vpack.c.b16 %v309, %v301
  %v398 = vpack.c.b16 %v318, %v310
  %v399 = vpack.c.b16 %v319, %v311
  %v400 = vpack.c.b16 %v320, %v312
  %v401 = vpack.c.b16 %v321, %v313
  %v402 = vpack.c.b16 %v322, %v314
  %v403 = vpack.c.b16 %v323, %v315
  %v404 = vpack.c.b16 %v324, %v316
  %v405 = vpack.c.b16 %v325, %v317
  %v406 = vpack.c.b16 %v334, %v326
  %v407 = vpack.c.b16 %v335, %v327
  %v408 = vpack.c.b16 %v336, %v328
  %v409 = vpack.c.b16 %v337, %v329
  %v410 = vpack.c.b16 %v338, %v330
  %v411 = vpack.c.b16 %v339, %v331
  %v412 = vpack.c.b16 %v340, %v332
  %v413 = vpack.c.b16 %v341, %v333
  %v414 = vpack.c.b16 %v350, %v342
  %v415 = vpack.c.b16 %v351, %v343
  %v416 = vpack.c.b16 %v352, %v344
  %v417 = vpack.c.b16 %v353, %v345
  %v418 = vpack.c.b16 %v354, %v346
  %v419 = vpack.c.b16 %v355, %v347
  %v420 = vpack.c.b16 %v356, %v348
  %v421 = vpack.c.b16 %v357, %v349
  %v422 = vpack.c.b16 %v366, %v358
  %v423 = vpack.c.b16 %v367, %v359
  %v424 = vpack.c.b16 %v368, %v360
  %v425 = vpack.c.b16 %v369, %v361
  %v426 = vpack.c.b16 %v370, %v362
  %v427 = vpack.c.b16 %v371, %v363
  %v428 = vpack.c.b16 %v372, %v364
  %v429 = vpack.c.b16 %v373, %v365
  %v614 = vunpack.c.l.b16 %v71
  %v615 = vunpack.c.l.b16 %v72
  %v616 = vunpack.c.l.b16 %v73
  %v617 = vunpack.c.l.b16 %v74
  %v618 = vunpack.c.l.b16 %v75
  %v619 = vunpack.c.l.b16 %v76
  %v620 = vunpack.c.l.b16 %v77
  %v621 = vunpack.c.l.b16 %v78
  %v622 = vunpack.c.l.b16 %v79
  %v623 = vunpack.c.l.b16 %v80
  %v624 = vunpack.c.l.b16 %v81
  %v625 = vunpack.c.l.b16 %v82
  %v626 = vunpack.c.l.b16 %v83
  %v627 = vunpack.c.l.b16 %v84
  %v628 = vunpack.c.l.b16 %v85
  %v629 = vunpack.c.l.b16 %v86
  %v630 = vunpack.c.l.b16 %v87
  %v631 = vunpack.c.l.b16 %v88
  %v632 = vunpack.c.l.b16 %v89
  %v633 = vunpack.c.l.b16 %v90
  %v634 = vunpack.c.l.b16 %v91
  %v635 = vunpack.c.l.b16 %v92
  %v636 = vunpack.c.l.b16 %v93
  %v637 = vunpack.c.l.b16 %v94
  %v638 = vunpack.c.l.b16 %v95
  %v639 = vunpack.c.l.b16 %v96
  %v640 = vunpack.c.l.b16 %v97
  %v641 = vunpack.c.l.b16 %v98
  %v642 = vunpack.c.l.b16 %v99
  %v643 = vunpack.c.l.b16 %v100
  %v644 = vunpack.c.l.b16 %v101
  %v645 = vunpack.c.l.b16 %v102
  %v646 = vunpack.c.l.b16 %v103
  %v647 = vunpack.c.l.b16 %v104
  %v648 = vunpack.c.l.b16 %v105
  %v649 = vunpack.c.l.b16 %v106
  %v650 = vunpack.c.l.b16 %v107
  %v651 = vunpack.c.l.b16 %v108
  %v652 = vunpack.c.l.b16 %v109
  %v653 = vunpack.c.l.b16 %v110
  %v654 = vunpack.c.l.b16 %v111
  %v655 = vunpack.c.l.b16 %v112
  %v656 = vunpack.c.l.b16 %v113
  %v657 = vunpack.c.l.b16 %v114
  %v658 = vunpack.c.l.b16 %v115
  %v659 = vunpack.c.l.b16 %v116
  %v660 = vunpack.c.l.b16 %v117
  %v661 = vunpack.c.l.b16 %v118
  %v662 = vunpack.c.l.b16 %v119
  %v663 = vunpack.c.l.b16 %v120
  %v664 = vunpack.c.l.b16 %v121
  %v665 = vunpack.c.l.b16 %v122
  %v666 = vunpack.c.l.b16 %v123
  %v667 = vunpack.c.l.b16 %v124
  %v668 = vunpack.c.l.b16 %v125
  %v669 = vunpack.c.l.b16 %v126
  %v670 = vunpack.c.l.b16 %v127
  %v671 = vunpack.c.l.b16 %v128
  %v672 = vunpack.c.l.b16 %v129
  %v673 = vunpack.c.l.b16 %v130
  %v674 = vunpack.c.l.b16 %v131
  %v675 = vunpack.c.l.b16 %v132
  %v676 = vunpack.c.l.b16 %v133
  %v677 = vunpack.c.l.b16 %v134
  %v678 = vunpack.c.l.b16 %v135
  %v679 = vunpack.c.l.b16 %v136
  %v680 = vunpack.c.l.b16 %v137
  %v681 = vunpack.c.l.b16 %v138
  %v682 = vunpack.c.l.b16 %v139
  %v683 = vunpack.c.l.b16 %v140
  %v684 = vunpack.c.l.b16 %v141
  %v685 = vunpack.c.l.b16 %v142
  %v686 = vunpack.c.l.b16 %v143
  %v687 = vunpack.c.l.b16 %v144
  %v688 = vunpack.c.l.b16 %v145
  %v689 = vunpack.c.l.b16 %v146
  %v690 = vunpack.c.l.b16 %v147
  %v691 = vunpack.c.l.b16 %v148
  %v692 = vunpack.c.l.b16 %v149
  %v693 = vunpack.c.l.b16 %v150
  %v694 = vunpack.c.l.b16 %v151
  %v695 = vunpack.c.l.b16 %v152
  %v696 = vunpack.c.l.b16 %v153
  %v697 = vunpack.c.l.b16 %v154
  %v698 = vunpack.c.l.b16 %v155
  %v699 = vunpack.c.l.b16 %v156
  %v700 = vunpack.c.l.b16 %v157
  %v701 = vunpack.c.l.b16 %v158
  %v702 = vunpack.c.l.b16 %v159
  %v703 = vunpack.c.l.b16 %v160
  %v704 = vunpack.c.l.b16 %v161
  %v705 = vunpack.c.l.b16 %v162
  %v706 = vunpack.c.l.b16 %v163
  %v707 = vunpack.c.l.b16 %v164
  %v708 = vunpack.c.l.b16 %v165
  %v709 = vunpack.c.l.b16 %v166
  %v710 = vunpack.c.l.b16 %v167
  %v711 = vunpack.c.l.b16 %v168
  %v712 = vunpack.c.l.b16 %v169
  %v713 = vunpack.c.l.b16 %v170
  %v714 = vunpack.c.l.b16 %v171
  %v715 = vunpack.c.l.b16 %v172
  %v716 = vunpack.c.l.b16 %v173
  %v717 = vunpack.c.l.b16 %v174
  %v718 = vunpack.c.l.b16 %v175
  %v719 = vunpack.c.l.b16 %v176
  %v720 = vunpack.c.l.b16 %v177
  %v721 = vunpack.c.l.b16 %v178
  %v722 = vunpack.c.l.b16 %v179
  %v723 = vunpack.c.l.b16 %v180
  %v724 = vunpack.c.l.b16 %v181
  %v725 = vunpack.c.l.b16 %v182
  %v726 = vunpack.c.l.b16 %v183
  %v727 = vunpack.c.l.b16 %v184
  %v728 = vunpack.c.l.b16 %v185
  %v729 = vunpack.c.l.b16 %v186
  %v730 = vunpack.c.l.b16 %v187
  %v731 = vunpack.c.l.b16 %v188
  %v732 = vunpack.c.l.b16 %v189
  %v733 = vunpack.c.l.b16 %v190
  %v734 = vunpack.c.l.b16 %v191
  %v735 = vunpack.c.l.b16 %v192
  %v736 = vunpack.c.l.b16 %v193
  %v737 = vunpack.c.l.b16 %v194
  %v738 = vunpack.c.l.b16 %v195
  %v739 = vunpack.c.l.b16 %v196
  %v740 = vunpack.c.l.b16 %v197
  %v741 = vunpack.c.l.b16 %v198
  %v742 = vpack.c.b16 %v615, %v614
  %v743 = vpack.c.b16 %v617, %v616
  %v744 = vpack.c.b16 %v619, %v618
  %v745 = vpack.c.b16 %v621, %v620
  %v746 = vpack.c.b16 %v623, %v622
  %v747 = vpack.c.b16 %v625, %v624
  %v748 = vpack.c.b16 %v627, %v626
  %v749 = vpack.c.b16 %v629, %v628
  %v750 = vpack.c.b16 %v631, %v630
  %v751 = vpack.c.b16 %v633, %v632
  %v752 = vpack.c.b16 %v635, %v634
  %v753 = vpack.c.b16 %v637, %v636
  %v754 = vpack.c.b16 %v639, %v638
  %v755 = vpack.c.b16 %v641, %v640
  %v756 = vpack.c.b16 %v643, %v642
  %v757 = vpack.c.b16 %v645, %v644
  %v758 = vpack.c.b16 %v647, %v646
  %v759 = vpack.c.b16 %v649, %v648
  %v760 = vpack.c.b16 %v651, %v650
  %v761 = vpack.c.b16 %v653, %v652
  %v762 = vpack.c.b16 %v655, %v654
  %v763 = vpack.c.b16 %v657, %v656
  %v764 = vpack.c.b16 %v659, %v658
  %v765 = vpack.c.b16 %v661, %v660
  %v766 = vpack.c.b16 %v663, %v662
  %v767 = vpack.c.b16 %v665, %v664
  %v768 = vpack.c.b16 %v667, %v666
  %v769 = vpack.c.b16 %v669, %v668
  %v770 = vpack.c.b16 %v671, %v670
  %v771 = vpack.c.b16 %v673, %v672
  %v772 = vpack.c.b16 %v675, %v674
  %v773 = vpack.c.b16 %v677, %v676
  %v774 = vpack.c.b16 %v679, %v678
  %v775 = vpack.c.b16 %v681, %v680
  %v776 = vpack.c.b16 %v683, %v682
  %v777 = vpack.c.b16 %v685, %v684
  %v778 = vpack.c.b16 %v687, %v686
  %v779 = vpack.c.b16 %v689, %v688
  %v780 = vpack.c.b16 %v691, %v690
  %v781 = vpack.c.b16 %v693, %v692
  %v782 = vpack.c.b16 %v695, %v694
  %v783 = vpack.c.b16 %v697, %v696
  %v784 = vpack.c.b16 %v699, %v698
  %v785 = vpack.c.b16 %v701, %v700
  %v786 = vpack.c.b16 %v703, %v702
  %v787 = vpack.c.b16 %v705, %v704
  %v788 = vpack.c.b16 %v707, %v706
  %v789 = vpack.c.b16 %v709, %v708
  %v790 = vpack.c.b16 %v711, %v710
  %v791 = vpack.c.b16 %v713, %v712
  %v792 = vpack.c.b16 %v715, %v714
  %v793 = vpack.c.b16 %v717, %v716
  %v794 = vpack.c.b16 %v719, %v718
  %v795 = vpack.c.b16 %v721, %v720
  %v796 = vpack.c.b16 %v723, %v722
  %v797 = vpack.c.b16 %v725, %v724
  %v798 = vpack.c.b16 %v727, %v726
  %v799 = vpack.c.b16 %v729, %v728
  %v800 = vpack.c.b16 %v731, %v730
  %v801 = vpack.c.b16 %v733, %v732
  %v802 = vpack.c.b16 %v735, %v734
  %v803 = vpack.c.b16 %v737, %v736
  %v804 = vpack.c.b16 %v739, %v738
  %v805 = vpack.c.b16 %v741, %v740
  %870 = vmatprep.subr.bf16.mxu0 0
  %871 = vmatpush1.bf16.msra.mxu0 %v742
  %872 = vmatprep.subr.bf16.mxu0 0
  %873 = vmatpush1.bf16.msra.mxu0 %v743
  %874 = vmatprep.subr.bf16.mxu0 0
  %875 = vmatpush1.bf16.msra.mxu0 %v744
  %876 = vmatprep.subr.bf16.mxu0 0
  %877 = vmatpush1.bf16.msra.mxu0 %v745
  %878 = vmatprep.subr.bf16.mxu0 0
  %879 = vmatpush1.bf16.msra.mxu0 %v746
  %880 = vmatprep.subr.bf16.mxu0 0
  %881 = vmatpush1.bf16.msra.mxu0 %v747
  %882 = vmatprep.subr.bf16.mxu0 0
  %883 = vmatpush1.bf16.msra.mxu0 %v748
  %884 = vmatprep.subr.bf16.mxu0 0
  %885 = vmatpush1.bf16.msra.mxu0 %v749
  %886 = vmatprep.subr.bf16.mxu0 0
  %887 = vmatpush1.bf16.msra.mxu0 %v750
  %888 = vmatprep.subr.bf16.mxu0 0
  %889 = vmatpush1.bf16.msra.mxu0 %v751
  %890 = vmatprep.subr.bf16.mxu0 0
  %891 = vmatpush1.bf16.msra.mxu0 %v752
  %892 = vmatprep.subr.bf16.mxu0 0
  %893 = vmatpush1.bf16.msra.mxu0 %v753
  %894 = vmatprep.subr.bf16.mxu0 0
  %895 = vmatpush1.bf16.msra.mxu0 %v754
  %896 = vmatprep.subr.bf16.mxu0 0
  %897 = vmatpush1.bf16.msra.mxu0 %v755
  %898 = vmatprep.subr.bf16.mxu0 0
  %899 = vmatpush1.bf16.msra.mxu0 %v756
  %900 = vmatprep.subr.bf16.mxu0 0
  %901 = vmatpush1.bf16.msra.mxu0 %v757
  %902 = vmatprep.mubr.bf16.mxu0 %v375
  %903 = vmatmul.mubr.bf16.gmra.mrb[0].mxu0 %v374
  %v904 = vpop.f32.mrb[0].mxu0
  %v905 = vadd.f32 %v204, %v904
  %v906 = vpop.f32.mrb[0].mxu0
  %v907 = vpop.f32.mrb[0].mxu0
  %v908 = vadd.f32 %v204, %v907
  %v909 = vpop.f32.mrb[0].mxu0
  %910 = vmatprep.mubr.bf16.mxu0 %v383
  %911 = vmatmul.mubr.bf16.gmra.mrb[0].mxu0 %v382
  %v912 = vpop.f32.mrb[0].mxu0
  %v913 = vadd.f32 %v204, %v912
  %v914 = vpop.f32.mrb[0].mxu0
  %v915 = vpop.f32.mrb[0].mxu0
  %v916 = vadd.f32 %v204, %v915
  %v917 = vpop.f32.mrb[0].mxu0
  %918 = vmatprep.mubr.bf16.mxu0 %v391
  %919 = vmatmul.mubr.bf16.gmra.mrb[0].mxu0 %v390
  %v920 = vpop.f32.mrb[0].mxu0
  %v921 = vadd.f32 %v204, %v920
  %v922 = vpop.f32.mrb[0].mxu0
  %v923 = vpop.f32.mrb[0].mxu0
  %v924 = vadd.f32 %v204, %v923
  %v925 = vpop.f32.mrb[0].mxu0
  %926 = vmatprep.mubr.bf16.mxu0 %v399
  %927 = vmatmul.mubr.bf16.gmra.mrb[0].mxu0 %v398
  %v928 = vpop.f32.mrb[0].mxu0
  %v929 = vadd.f32 %v204, %v928
  %v930 = vpop.f32.mrb[0].mxu0
  %v931 = vpop.f32.mrb[0].mxu0
  %v932 = vadd.f32 %v204, %v931
  %v933 = vpop.f32.mrb[0].mxu0
  %934 = vmatprep.mubr.bf16.mxu0 %v407
  %935 = vmatmul.mubr.bf16.gmra.mrb[0].mxu0 %v406
  %v936 = vpop.f32.mrb[0].mxu0
  %v937 = vadd.f32 %v204, %v936
  %v938 = vpop.f32.mrb[0].mxu0
  %v939 = vpop.f32.mrb[0].mxu0
  %v940 = vadd.f32 %v204, %v939
  %v941 = vpop.f32.mrb[0].mxu0
  %942 = vmatprep.mubr.bf16.mxu0 %v415
  %943 = vmatmul.mubr.bf16.gmra.mrb[0].mxu0 %v414
  %v944 = vpop.f32.mrb[0].mxu0
  %v945 = vadd.f32 %v204, %v944
  %v946 = vpop.f32.mrb[0].mxu0
  %v947 = vpop.f32.mrb[0].mxu0
  %v948 = vadd.f32 %v204, %v947
  %v949 = vpop.f32.mrb[0].mxu0
  %950 = vmatprep.mubr.bf16.mxu0 %v423
  %951 = vmatmul.mubr.bf16.gmra.mrb[0].mxu0 %v422
  %v952 = vpop.f32.mrb[0].mxu0
  %v953 = vadd.f32 %v204, %v952
  %v954 = vpop.f32.mrb[0].mxu0
  %v955 = vpop.f32.mrb[0].mxu0
  %v956 = vadd.f32 %v204, %v955
  %v957 = vpop.f32.mrb[0].mxu0
  %958 = vdwg.mxu0
  %959 = vmatprep.subr.bf16.mxu0 0
  %960 = vmatpush1.bf16.msra.mxu0 %v758
  %961 = vmatprep.subr.bf16.mxu0 0
  %962 = vmatpush1.bf16.msra.mxu0 %v759
  %963 = vmatprep.subr.bf16.mxu0 0
  %964 = vmatpush1.bf16.msra.mxu0 %v760
  %965 = vmatprep.subr.bf16.mxu0 0
  %966 = vmatpush1.bf16.msra.mxu0 %v761
  %967 = vmatprep.subr.bf16.mxu0 0
  %968 = vmatpush1.bf16.msra.mxu0 %v762
  %969 = vmatprep.subr.bf16.mxu0 0
  %970 = vmatpush1.bf16.msra.mxu0 %v763
  %971 = vmatprep.subr.bf16.mxu0 0
  %972 = vmatpush1.bf16.msra.mxu0 %v764
  %973 = vmatprep.subr.bf16.mxu0 0
  %974 = vmatpush1.bf16.msra.mxu0 %v765
  %975 = vmatprep.subr.bf16.mxu0 0
  %976 = vmatpush1.bf16.msra.mxu0 %v766
  %977 = vmatprep.subr.bf16.mxu0 0
  %978 = vmatpush1.bf16.msra.mxu0 %v767
  %979 = vmatprep.subr.bf16.mxu0 0
  %980 = vmatpush1.bf16.msra.mxu0 %v768
  %981 = vmatprep.subr.bf16.mxu0 0
  %982 = vmatpush1.bf16.msra.mxu0 %v769
  %983 = vmatprep.subr.bf16.mxu0 0
  %984 = vmatpush1.bf16.msra.mxu0 %v770
  %985 = vmatprep.subr.bf16.mxu0 0
  %986 = vmatpush1.bf16.msra.mxu0 %v771
  %987 = vmatprep.subr.bf16.mxu0 0
  %988 = vmatpush1.bf16.msra.mxu0 %v772
  %989 = vmatprep.subr.bf16.mxu0 0
  %990 = vmatpush1.bf16.msra.mxu0 %v773
  %991 = vmatprep.mubr.bf16.mxu0 %v377
  %992 = vmatmul.mubr.bf16.gmra.mrb[0].mxu0 %v376
  %v993 = vpop.f32.mrb[0].mxu0
  %v994 = vadd.f32 %v905, %v993
  %v995 = vpop.f32.mrb[0].mxu0
  %v996 = vpop.f32.mrb[0].mxu0
  %v997 = vadd.f32 %v908, %v996
  %v998 = vpop.f32.mrb[0].mxu0
  %999 = vmatprep.mubr.bf16.mxu0 %v385
  %1000 = vmatmul.mubr.bf16.gmra.mrb[0].mxu0 %v384
  %v1001 = vpop.f32.mrb[0].mxu0
  %v1002 = vadd.f32 %v913, %v1001
  %v1003 = vpop.f32.mrb[0].mxu0
  %v1004 = vpop.f32.mrb[0].mxu0
  %v1005 = vadd.f32 %v916, %v1004
  %v1006 = vpop.f32.mrb[0].mxu0
  %1007 = vmatprep.mubr.bf16.mxu0 %v393
  %1008 = vmatmul.mubr.bf16.gmra.mrb[0].mxu0 %v392
  %v1009 = vpop.f32.mrb[0].mxu0
  %v1010 = vadd.f32 %v921, %v1009
  %v1011 = vpop.f32.mrb[0].mxu0
  %v1012 = vpop.f32.mrb[0].mxu0
  %v1013 = vadd.f32 %v924, %v1012
  %v1014 = vpop.f32.mrb[0].mxu0
  %1015 = vmatprep.mubr.bf16.mxu0 %v401
  %1016 = vmatmul.mubr.bf16.gmra.mrb[0].mxu0 %v400
  %v1017 = vpop.f32.mrb[0].mxu0
  %v1018 = vadd.f32 %v929, %v1017
  %v1019 = vpop.f32.mrb[0].mxu0
  %v1020 = vpop.f32.mrb[0].mxu0
  %v1021 = vadd.f32 %v932, %v1020
  %v1022 = vpop.f32.mrb[0].mxu0
  %1023 = vmatprep.mubr.bf16.mxu0 %v409
  %1024 = vmatmul.mubr.bf16.gmra.mrb[0].mxu0 %v408
  %v1025 = vpop.f32.mrb[0].mxu0
  %v1026 = vadd.f32 %v937, %v1025
  %v1027 = vpop.f32.mrb[0].mxu0
  %v1028 = vpop.f32.mrb[0].mxu0
  %v1029 = vadd.f32 %v940, %v1028
  %v1030 = vpop.f32.mrb[0].mxu0
  %1031 = vmatprep.mubr.bf16.mxu0 %v417
  %1032 = vmatmul.mubr.bf16.gmra.mrb[0].mxu0 %v416
  %v1033 = vpop.f32.mrb[0].mxu0
  %v1034 = vadd.f32 %v945, %v1033
  %v1035 = vpop.f32.mrb[0].mxu0
  %v1036 = vpop.f32.mrb[0].mxu0
  %v1037 = vadd.f32 %v948, %v1036
  %v1038 = vpop.f32.mrb[0].mxu0
  %1039 = vmatprep.mubr.bf16.mxu0 %v425
  %1040 = vmatmul.mubr.bf16.gmra.mrb[0].mxu0 %v424
  %v1041 = vpop.f32.mrb[0].mxu0
  %v1042 = vadd.f32 %v953, %v1041
  %v1043 = vpop.f32.mrb[0].mxu0
  %v1044 = vpop.f32.mrb[0].mxu0
  %v1045 = vadd.f32 %v956, %v1044
  %v1046 = vpop.f32.mrb[0].mxu0
  %1047 = vdwg.mxu0
  %1048 = vmatprep.subr.bf16.mxu0 0
  %1049 = vmatpush1.bf16.msra.mxu0 %v774
  %1050 = vmatprep.subr.bf16.mxu0 0
  %1051 = vmatpush1.bf16.msra.mxu0 %v775
  %1052 = vmatprep.subr.bf16.mxu0 0
  %1053 = vmatpush1.bf16.msra.mxu0 %v776
  %1054 = vmatprep.subr.bf16.mxu0 0
  %1055 = vmatpush1.bf16.msra.mxu0 %v777
  %1056 = vmatprep.subr.bf16.mxu0 0
  %1057 = vmatpush1.bf16.msra.mxu0 %v778
  %1058 = vmatprep.subr.bf16.mxu0 0
  %1059 = vmatpush1.bf16.msra.mxu0 %v779
  %1060 = vmatprep.subr.bf16.mxu0 0
  %1061 = vmatpush1.bf16.msra.mxu0 %v780
  %1062 = vmatprep.subr.bf16.mxu0 0
  %1063 = vmatpush1.bf16.msra.mxu0 %v781
  %1064 = vmatprep.subr.bf16.mxu0 0
  %1065 = vmatpush1.bf16.msra.mxu0 %v782
  %1066 = vmatprep.subr.bf16.mxu0 0
  %1067 = vmatpush1.bf16.msra.mxu0 %v783
  %1068 = vmatprep.subr.bf16.mxu0 0
  %1069 = vmatpush1.bf16.msra.mxu0 %v784
  %1070 = vmatprep.subr.bf16.mxu0 0
  %1071 = vmatpush1.bf16.msra.mxu0 %v785
  %1072 = vmatprep.subr.bf16.mxu0 0
  %1073 = vmatpush1.bf16.msra.mxu0 %v786
  %1074 = vmatprep.subr.bf16.mxu0 0
  %1075 = vmatpush1.bf16.msra.mxu0 %v787
  %1076 = vmatprep.subr.bf16.mxu0 0
  %1077 = vmatpush1.bf16.msra.mxu0 %v788
  %1078 = vmatprep.subr.bf16.mxu0 0
  %1079 = vmatpush1.bf16.msra.mxu0 %v789
  %1080 = vmatprep.mubr.bf16.mxu0 %v379
  %1081 = vmatmul.mubr.bf16.gmra.mrb[0].mxu0 %v378
  %v1082 = vpop.f32.mrb[0].mxu0
  %v1083 = vadd.f32 %v994, %v1082
  %v1084 = vpop.f32.mrb[0].mxu0
  %v1085 = vpop.f32.mrb[0].mxu0
  %v1086 = vadd.f32 %v997, %v1085
  %v1087 = vpop.f32.mrb[0].mxu0
  %1088 = vmatprep.mubr.bf16.mxu0 %v387
  %1089 = vmatmul.mubr.bf16.gmra.mrb[0].mxu0 %v386
  %v1090 = vpop.f32.mrb[0].mxu0
  %v1091 = vadd.f32 %v1002, %v1090
  %v1092 = vpop.f32.mrb[0].mxu0
  %v1093 = vpop.f32.mrb[0].mxu0
  %v1094 = vadd.f32 %v1005, %v1093
  %v1095 = vpop.f32.mrb[0].mxu0
  %1096 = vmatprep.mubr.bf16.mxu0 %v395
  %1097 = vmatmul.mubr.bf16.gmra.mrb[0].mxu0 %v394
  %v1098 = vpop.f32.mrb[0].mxu0
  %v1099 = vadd.f32 %v1010, %v1098
  %v1100 = vpop.f32.mrb[0].mxu0
  %v1101 = vpop.f32.mrb[0].mxu0
  %v1102 = vadd.f32 %v1013, %v1101
  %v1103 = vpop.f32.mrb[0].mxu0
  %1104 = vmatprep.mubr.bf16.mxu0 %v403
  %1105 = vmatmul.mubr.bf16.gmra.mrb[0].mxu0 %v402
  %v1106 = vpop.f32.mrb[0].mxu0
  %v1107 = vadd.f32 %v1018, %v1106
  %v1108 = vpop.f32.mrb[0].mxu0
  %v1109 = vpop.f32.mrb[0].mxu0
  %v1110 = vadd.f32 %v1021, %v1109
  %v1111 = vpop.f32.mrb[0].mxu0
  %1112 = vmatprep.mubr.bf16.mxu0 %v411
  %1113 = vmatmul.mubr.bf16.gmra.mrb[0].mxu0 %v410
  %v1114 = vpop.f32.mrb[0].mxu0
  %v1115 = vadd.f32 %v1026, %v1114
  %v1116 = vpop.f32.mrb[0].mxu0
  %v1117 = vpop.f32.mrb[0].mxu0
  %v1118 = vadd.f32 %v1029, %v1117
  %v1119 = vpop.f32.mrb[0].mxu0
  %1120 = vmatprep.mubr.bf16.mxu0 %v419
  %1121 = vmatmul.mubr.bf16.gmra.mrb[0].mxu0 %v418
  %v1122 = vpop.f32.mrb[0].mxu0
  %v1123 = vadd.f32 %v1034, %v1122
  %v1124 = vpop.f32.mrb[0].mxu0
  %v1125 = vpop.f32.mrb[0].mxu0
  %v1126 = vadd.f32 %v1037, %v1125
  %v1127 = vpop.f32.mrb[0].mxu0
  %1128 = vmatprep.mubr.bf16.mxu0 %v427
  %1129 = vmatmul.mubr.bf16.gmra.mrb[0].mxu0 %v426
  %v1130 = vpop.f32.mrb[0].mxu0
  %v1131 = vadd.f32 %v1042, %v1130
  %v1132 = vpop.f32.mrb[0].mxu0
  %v1133 = vpop.f32.mrb[0].mxu0
  %v1134 = vadd.f32 %v1045, %v1133
  %v1135 = vpop.f32.mrb[0].mxu0
  %1136 = vdwg.mxu0
  %1137 = vmatprep.subr.bf16.mxu0 0
  %1138 = vmatpush1.bf16.msra.mxu0 %v790
  %1139 = vmatprep.subr.bf16.mxu0 0
  %1140 = vmatpush1.bf16.msra.mxu0 %v791
  %1141 = vmatprep.subr.bf16.mxu0 0
  %1142 = vmatpush1.bf16.msra.mxu0 %v792
  %1143 = vmatprep.subr.bf16.mxu0 0
  %1144 = vmatpush1.bf16.msra.mxu0 %v793
  %1145 = vmatprep.subr.bf16.mxu0 0
  %1146 = vmatpush1.bf16.msra.mxu0 %v794
  %1147 = vmatprep.subr.bf16.mxu0 0
  %1148 = vmatpush1.bf16.msra.mxu0 %v795
  %1149 = vmatprep.subr.bf16.mxu0 0
  %1150 = vmatpush1.bf16.msra.mxu0 %v796
  %1151 = vmatprep.subr.bf16.mxu0 0
  %1152 = vmatpush1.bf16.msra.mxu0 %v797
  %1153 = vmatprep.subr.bf16.mxu0 0
  %1154 = vmatpush1.bf16.msra.mxu0 %v798
  %1155 = vmatprep.subr.bf16.mxu0 0
  %1156 = vmatpush1.bf16.msra.mxu0 %v799
  %1157 = vmatprep.subr.bf16.mxu0 0
  %1158 = vmatpush1.bf16.msra.mxu0 %v800
  %1159 = vmatprep.subr.bf16.mxu0 0
  %1160 = vmatpush1.bf16.msra.mxu0 %v801
  %1161 = vmatprep.subr.bf16.mxu0 0
  %1162 = vmatpush1.bf16.msra.mxu0 %v802
  %1163 = vmatprep.subr.bf16.mxu0 0
  %1164 = vmatpush1.bf16.msra.mxu0 %v803
  %1165 = vmatprep.subr.bf16.mxu0 0
  %1166 = vmatpush1.bf16.msra.mxu0 %v804
  %1167 = vmatprep.subr.bf16.mxu0 0
  %1168 = vmatpush1.bf16.msra.mxu0 %v805
  %1169 = vmatprep.mubr.bf16.mxu0 %v381
  %1170 = vmatmul.mubr.bf16.gmra.mrb[0].mxu0 %v380
  %v1171 = vpop.f32.mrb[0].mxu0
  %v1172 = vadd.f32 %v1083, %v1171
  %v1173 = vpop.f32.mrb[0].mxu0
  %v1174 = vpop.f32.mrb[0].mxu0
  %v1175 = vadd.f32 %v1086, %v1174
  %v1176 = vpop.f32.mrb[0].mxu0
  %1177 = vmatprep.mubr.bf16.mxu0 %v389
  %1178 = vmatmul.mubr.bf16.gmra.mrb[0].mxu0 %v388
  %v1179 = vpop.f32.mrb[0].mxu0
  %v1180 = vadd.f32 %v1091, %v1179
  %v1181 = vpop.f32.mrb[0].mxu0
  %v1182 = vpop.f32.mrb[0].mxu0
  %v1183 = vadd.f32 %v1094, %v1182
  %v1184 = vpop.f32.mrb[0].mxu0
  %1185 = vmatprep.mubr.bf16.mxu0 %v397
  %1186 = vmatmul.mubr.bf16.gmra.mrb[0].mxu0 %v396
  %v1187 = vpop.f32.mrb[0].mxu0
  %v1188 = vadd.f32 %v1099, %v1187
  %v1189 = vpop.f32.mrb[0].mxu0
  %v1190 = vpop.f32.mrb[0].mxu0
  %v1191 = vadd.f32 %v1102, %v1190
  %v1192 = vpop.f32.mrb[0].mxu0
  %1193 = vmatprep.mubr.bf16.mxu0 %v405
  %1194 = vmatmul.mubr.bf16.gmra.mrb[0].mxu0 %v404
  %v1195 = vpop.f32.mrb[0].mxu0
  %v1196 = vadd.f32 %v1107, %v1195
  %v1197 = vpop.f32.mrb[0].mxu0
  %v1198 = vpop.f32.mrb[0].mxu0
  %v1199 = vadd.f32 %v1110, %v1198
  %v1200 = vpop.f32.mrb[0].mxu0
  %1201 = vmatprep.mubr.bf16.mxu0 %v413
  %1202 = vmatmul.mubr.bf16.gmra.mrb[0].mxu0 %v412
  %v1203 = vpop.f32.mrb[0].mxu0
  %v1204 = vadd.f32 %v1115, %v1203
  %v1205 = vpop.f32.mrb[0].mxu0
  %v1206 = vpop.f32.mrb[0].mxu0
  %v1207 = vadd.f32 %v1118, %v1206
  %v1208 = vpop.f32.mrb[0].mxu0
  %1209 = vmatprep.mubr.bf16.mxu0 %v421
  %1210 = vmatmul.mubr.bf16.gmra.mrb[0].mxu0 %v420
  %v1211 = vpop.f32.mrb[0].mxu0
  %v1212 = vadd.f32 %v1123, %v1211
  %v1213 = vpop.f32.mrb[0].mxu0
  %v1214 = vpop.f32.mrb[0].mxu0
  %v1215 = vadd.f32 %v1126, %v1214
  %v1216 = vpop.f32.mrb[0].mxu0
  %1217 = vmatprep.mubr.bf16.mxu0 %v429
  %1218 = vmatmul.mubr.bf16.gmra.mrb[0].mxu0 %v428
  %v1219 = vpop.f32.mrb[0].mxu0
  %v1220 = vadd.f32 %v1131, %v1219
  %v1221 = vpop.f32.mrb[0].mxu0
  %v1222 = vpop.f32.mrb[0].mxu0
  %v1223 = vadd.f32 %v1134, %v1222
  %v1224 = vpop.f32.mrb[0].mxu0
  %1225 = vdwg.mxu0
  %vm1226 = vcmp.ge.f32.partialorder %v1172, 0.0
  %vm1227 = vcmp.ge.f32.partialorder %v1175, 0.0
  %vm1228 = vcmp.ge.f32.partialorder %v1180, 0.0
  %vm1229 = vcmp.ge.f32.partialorder %v1183, 0.0
  %vm1230 = vcmp.ge.f32.partialorder %v1188, 0.0
  %vm1231 = vcmp.ge.f32.partialorder %v1191, 0.0
  %vm1232 = vcmp.ge.f32.partialorder %v1196, 0.0
  %vm1233 = vcmp.ge.f32.partialorder %v1199, 0.0
  %vm1234 = vcmp.ge.f32.partialorder %v1204, 0.0
  %vm1235 = vcmp.ge.f32.partialorder %v1207, 0.0
  %vm1236 = vcmp.ge.f32.partialorder %v1212, 0.0
  %vm1237 = vcmp.ge.f32.partialorder %v1215, 0.0
  %vm1238 = vcmp.ge.f32.partialorder %v1220, 0.0
  %vm1239 = vcmp.ge.f32.partialorder %v1223, 0.0
  %v1240 = vmul.f32 %v1172, 0.1
  %v1241 = vmul.f32 %v1175, 0.1
  %v1242 = vmul.f32 %v1180, 0.1
  %v1243 = vmul.f32 %v1183, 0.1
  %v1244 = vmul.f32 %v1188, 0.1
  %v1245 = vmul.f32 %v1191, 0.1
  %v1246 = vmul.f32 %v1196, 0.1
  %v1247 = vmul.f32 %v1199, 0.1
  %v1248 = vmul.f32 %v1204, 0.1
  %v1249 = vmul.f32 %v1207, 0.1
  %v1250 = vmul.f32 %v1212, 0.1
  %v1251 = vmul.f32 %v1215, 0.1
  %v1252 = vmul.f32 %v1220, 0.1
  %v1253 = vmul.f32 %v1223, 0.1
  %v1254 = vsel %vm1226, %v1172, %v1240
  %v1255 = vsel %vm1227, %v1175, %v1241
  %v1256 = vsel %vm1228, %v1180, %v1242
  %v1257 = vsel %vm1229, %v1183, %v1243
  %v1258 = vsel %vm1230, %v1188, %v1244
  %v1259 = vsel %vm1231, %v1191, %v1245
  %v1260 = vsel %vm1232, %v1196, %v1246
  %v1261 = vsel %vm1233, %v1199, %v1247
  %v1262 = vsel %vm1234, %v1204, %v1248
  %v1263 = vsel %vm1235, %v1207, %v1249
  %v1264 = vsel %vm1236, %v1212, %v1250
  %v1265 = vsel %vm1237, %v1215, %v1251
  %v1266 = vsel %vm1238, %v1220, %v1252
  %v1267 = vsel %vm1239, %v1223, %v1253
  %v1268 = vpack.c.bf16 %v1255, %v1254
  %v1269 = vpack.c.bf16 %v1257, %v1256
  %v1270 = vpack.c.bf16 %v1259, %v1258
  %v1271 = vpack.c.bf16 %v1261, %v1260
  %v1272 = vpack.c.bf16 %v1263, %v1262
  %v1273 = vpack.c.bf16 %v1265, %v1264
  %v1274 = vpack.c.bf16 %v1267, %v1266
  %v1282 = vunpack.c.l.b16 %v1268
  %v1283 = vunpack.c.h.b16 %v1268
  %v1284 = vunpack.c.l.b16 %v1269
  %v1285 = vunpack.c.h.b16 %v1269
  %v1286 = vunpack.c.l.b16 %v1270
  %v1287 = vunpack.c.h.b16 %v1270
  %v1288 = vunpack.c.l.b16 %v1271
  %v1289 = vunpack.c.h.b16 %v1271
  %v1290 = vunpack.c.l.b16 %v1272
  %v1291 = vunpack.c.h.b16 %v1272
  %v1292 = vunpack.c.l.b16 %v1273
  %v1293 = vunpack.c.h.b16 %v1273
  %v1294 = vunpack.c.l.b16 %v1274
  %v1295 = vunpack.c.h.b16 %v1274
  %v1296 = vpack.c.b16 %v1282, %v1282
  %v1297 = vpack.c.b16 %v1283, %v1283
  %v1298 = vpack.c.b16 %v1284, %v1284
  %v1299 = vpack.c.b16 %v1285, %v1285
  %v1300 = vpack.c.b16 %v1286, %v1286
  %v1301 = vpack.c.b16 %v1287, %v1287
  %v1302 = vpack.c.b16 %v1288, %v1288
  %v1303 = vpack.c.b16 %v1289, %v1289
  %v1304 = vpack.c.b16 %v1290, %v1290
  %v1305 = vpack.c.b16 %v1291, %v1291
  %v1306 = vpack.c.b16 %v1292, %v1292
  %v1307 = vpack.c.b16 %v1293, %v1293
  %v1308 = vpack.c.b16 %v1294, %v1294
  %v1309 = vpack.c.b16 %v1295, %v1295
  %1324 = vst [vmem:[%s3] sm:$0xf] %v1296
  %1325 = vst [vmem:[%s3 + $0x4] sm:$0xf] %v1297
  %1326 = vst [vmem:[%s3 + $0x8] sm:$0xf] %v1298
  %1327 = vst [vmem:[%s3 + $0xc] sm:$0xf] %v1299
  %1328 = vst [vmem:[%s3 + $0x10] sm:$0xf] %v1300
  %1329 = vst [vmem:[%s3 + $0x14] sm:$0xf] %v1301
  %1330 = vst [vmem:[%s3 + $0x18] sm:$0xf] %v1302
  %1331 = vst [vmem:[%s3 + $0x1c] sm:$0xf] %v1303
  %1332 = vst [vmem:[%s3 + $0x20] sm:$0xf] %v1304
  %1333 = vst [vmem:[%s3 + $0x24] sm:$0xf] %v1305
  %1334 = vst [vmem:[%s3 + $0x28] sm:$0xf] %v1306
  %1335 = vst [vmem:[%s3 + $0x2c] sm:$0xf] %v1307
  %1336 = vst [vmem:[%s3 + $0x30] sm:$0xf] %v1308
  %1337 = vst [vmem:[%s3 + $0x34] sm:$0xf] %v1309
  // Predicated region
  $region14: #{_lambda_.31} parent=0 // pred_check
    _
  $region15: #{_lambda_.31} parent=0 // pred_check_branch
    %1339 = sbr.rel (0) target = $region17
  $region16: #{_lambda_.31} parent=0 // pred_region
    _
  $region17: #{_lambda_.31} parent=0 // pred_fallthru
    _
  // Predicated region
  $region18: #{_lambda_.31} parent=0 // pred_check
    _
  $region19: #{_lambda_.31} parent=0 // pred_check_branch
    %1341 = sbr.rel (0) target = $region21
  $region20: #{_lambda_.31} parent=0 // pred_region
    _
  $region21: #{_lambda_.31} parent=0 // pred_fallthru
    _

// kernel: _lambda_.32
$region0: #{_lambda_.32}
  #allocation0 [shape = 'u32[]', space=smem, size = 0x4, offset = 0x4, fixed_abs, tag = 'smem constant byte address 0x4 - core index']
  #allocation1 [shape = 'u32[144,128]{1,0:T(1,128)}', space=vmem, size = 0x12000, scoped, tag = 'internal scratch']
  %s0 = inlined_call_operand.vmem [shape: bf16[64,640], index: 0, kind: input, shape index: {}]
  %s1 = inlined_call_operand.vmem [shape: bf16[640,128], index: 1, kind: input, shape index: {}]
  %s2 = inlined_call_operand.vmem [shape: f32[1,128], index: 2, kind: input, shape index: {}]
  %s3 = inlined_call_operand.vmem [shape: bf16[64,128], index: 3, kind: output, shape index: {}]
  %s4 = sld [smem:[#allocation0]]
  $region22: #{_lambda_.32} parent=0
    _
  %s6 = ssub.s32 1, %s4
  %s7 = scalar_select 0, %s6, %s4
  // Predicated region
  $region2: #{_lambda_.32} parent=0 // pred_check
    _
  $region3: #{_lambda_.32} parent=0 // pred_check_branch
    %9 = sbr.rel (0) target = $region5
  $region4: #{_lambda_.32} parent=0 // pred_region
    _
  $region5: #{_lambda_.32} parent=0 // pred_fallthru
    _
  // Predicated region
  $region6: #{_lambda_.32} parent=0 // pred_check
    _
  $region7: #{_lambda_.32} parent=0 // pred_check_branch
    %11 = sbr.rel (0) target = $region9
  $region8: #{_lambda_.32} parent=0 // pred_region
    _
  $region9: #{_lambda_.32} parent=0 // pred_fallthru
    _
  // Predicated region
  $region10: #{_lambda_.32} parent=0 // pred_check
    _
  $region11: #{_lambda_.32} parent=0 // pred_check_branch
    %13 = sbr.rel (0) target = $region13
  $region12: #{_lambda_.32} parent=0 // pred_region
    _
  $region13: #{_lambda_.32} parent=0 // pred_fallthru
    _
  %v15 = vld [vmem:[%s0] sm:$0xff]
  %v16 = vld [vmem:[%s0 + $0x8] sm:$0xff]
  %v17 = vld [vmem:[%s0 + $0x10] sm:$0xf]
  %v18 = vld [vmem:[%s0 + $0x14] sm:$0xff]
  %v19 = vld [vmem:[%s0 + $0x1c] sm:$0xff]
  %v20 = vld [vmem:[%s0 + $0x24] sm:$0xf]
  %v21 = vld [vmem:[%s0 + $0x28] sm:$0xff]
  %v22 = vld [vmem:[%s0 + $0x30] sm:$0xff]
  %v23 = vld [vmem:[%s0 + $0x38] sm:$0xf]
  %v24 = vld [vmem:[%s0 + $0x3c] sm:$0xff]
  %v25 = vld [vmem:[%s0 + $0x44] sm:$0xff]
  %v26 = vld [vmem:[%s0 + $0x4c] sm:$0xf]
  %v27 = vld [vmem:[%s0 + $0x50] sm:$0xff]
  %v28 = vld [vmem:[%s0 + $0x58] sm:$0xff]
  %v29 = vld [vmem:[%s0 + $0x60] sm:$0xf]
  %v30 = vld [vmem:[%s0 + $0x64] sm:$0xff]
  %v31 = vld [vmem:[%s0 + $0x6c] sm:$0xff]
  %v32 = vld [vmem:[%s0 + $0x74] sm:$0xf]
  %v33 = vld [vmem:[%s0 + $0x78] sm:$0xff]
  %v34 = vld [vmem:[%s0 + $0x80] sm:$0xff]
  %v35 = vld [vmem:[%s0 + $0x88] sm:$0xf]
  %v36 = vld [vmem:[%s0 + $0x8c] sm:$0xff]
  %v37 = vld [vmem:[%s0 + $0x94] sm:$0xff]
  %v38 = vld [vmem:[%s0 + $0x9c] sm:$0xf]
  %v39 = vld [vmem:[%s1] sm:$0xf]
  %v40 = vld [vmem:[%s1 + $0x4] sm:$0xf]
  %v41 = vld [vmem:[%s1 + $0x8] sm:$0xf]
  %v42 = vld [vmem:[%s1 + $0xc] sm:$0xf]
  %v43 = vld [vmem:[%s1 + $0x10] sm:$0xf]
  %v44 = vld [vmem:[%s1 + $0x14] sm:$0xf]
  %v45 = vld [vmem:[%s1 + $0x18] sm:$0xf]
  %v46 = vld [vmem:[%s1 + $0x1c] sm:$0xf]
  %v47 = vld [vmem:[%s1 + $0x20] sm:$0xf]
  %v48 = vld [vmem:[%s1 + $0x24] sm:$0xf]
  %v49 = vld [vmem:[%s1 + $0x28] sm:$0xf]
  %v50 = vld [vmem:[%s1 + $0x2c] sm:$0xf]
  %v51 = vld [vmem:[%s1 + $0x30] sm:$0xf]
  %v52 = vld [vmem:[%s1 + $0x34] sm:$0xf]
  %v53 = vld [vmem:[%s1 + $0x38] sm:$0xf]
  %v54 = vld [vmem:[%s1 + $0x3c] sm:$0xf]
  %v55 = vld [vmem:[%s1 + $0x40] sm:$0xf]
  %v56 = vld [vmem:[%s1 + $0x44] sm:$0xf]
  %v57 = vld [vmem:[%s1 + $0x48] sm:$0xf]
  %v58 = vld [vmem:[%s1 + $0x4c] sm:$0xf]
  %v59 = vld [vmem:[%s1 + $0x50] sm:$0xf]
  %v60 = vld [vmem:[%s1 + $0x54] sm:$0xf]
  %v61 = vld [vmem:[%s1 + $0x58] sm:$0xf]
  %v62 = vld [vmem:[%s1 + $0x5c] sm:$0xf]
  %v63 = vld [vmem:[%s1 + $0x60] sm:$0xf]
  %v64 = vld [vmem:[%s1 + $0x64] sm:$0xf]
  %v65 = vld [vmem:[%s1 + $0x68] sm:$0xf]
  %v66 = vld [vmem:[%s1 + $0x6c] sm:$0xf]
  %v67 = vld [vmem:[%s1 + $0x70] sm:$0xf]
  %v68 = vld [vmem:[%s1 + $0x74] sm:$0xf]
  %v69 = vld [vmem:[%s1 + $0x78] sm:$0xf]
  %v70 = vld [vmem:[%s1 + $0x7c] sm:$0xf]
  %v71 = vld [vmem:[%s1 + $0x80] sm:$0xf]
  %v72 = vld [vmem:[%s1 + $0x84] sm:$0xf]
  %v73 = vld [vmem:[%s1 + $0x88] sm:$0xf]
  %v74 = vld [vmem:[%s1 + $0x8c] sm:$0xf]
  %v75 = vld [vmem:[%s1 + $0x90] sm:$0xf]
  %v76 = vld [vmem:[%s1 + $0x94] sm:$0xf]
  %v77 = vld [vmem:[%s1 + $0x98] sm:$0xf]
  %v78 = vld [vmem:[%s1 + $0x9c] sm:$0xf]
  %v79 = vld [vmem:[%s1 + $0xa0] sm:$0xf]
  %v80 = vld [vmem:[%s1 + $0xa4] sm:$0xf]
  %v81 = vld [vmem:[%s1 + $0xa8] sm:$0xf]
  %v82 = vld [vmem:[%s1 + $0xac] sm:$0xf]
  %v83 = vld [vmem:[%s1 + $0xb0] sm:$0xf]
  %v84 = vld [vmem:[%s1 + $0xb4] sm:$0xf]
  %v85 = vld [vmem:[%s1 + $0xb8] sm:$0xf]
  %v86 = vld [vmem:[%s1 + $0xbc] sm:$0xf]
  %v87 = vld [vmem:[%s1 + $0xc0] sm:$0xf]
  %v88 = vld [vmem:[%s1 + $0xc4] sm:$0xf]
  %v89 = vld [vmem:[%s1 + $0xc8] sm:$0xf]
  %v90 = vld [vmem:[%s1 + $0xcc] sm:$0xf]
  %v91 = vld [vmem:[%s1 + $0xd0] sm:$0xf]
  %v92 = vld [vmem:[%s1 + $0xd4] sm:$0xf]
  %v93 = vld [vmem:[%s1 + $0xd8] sm:$0xf]
  %v94 = vld [vmem:[%s1 + $0xdc] sm:$0xf]
  %v95 = vld [vmem:[%s1 + $0xe0] sm:$0xf]
  %v96 = vld [vmem:[%s1 + $0xe4] sm:$0xf]
  %v97 = vld [vmem:[%s1 + $0xe8] sm:$0xf]
  %v98 = vld [vmem:[%s1 + $0xec] sm:$0xf]
  %v99 = vld [vmem:[%s1 + $0xf0] sm:$0xf]
  %v100 = vld [vmem:[%s1 + $0xf4] sm:$0xf]
  %v101 = vld [vmem:[%s1 + $0xf8] sm:$0xf]
  %v102 = vld [vmem:[%s1 + $0xfc] sm:$0xf]
  %v103 = vld [vmem:[%s1 + $0x100] sm:$0xf]
  %v104 = vld [vmem:[%s1 + $0x104] sm:$0xf]
  %v105 = vld [vmem:[%s1 + $0x108] sm:$0xf]
  %v106 = vld [vmem:[%s1 + $0x10c] sm:$0xf]
  %v107 = vld [vmem:[%s1 + $0x110] sm:$0xf]
  %v108 = vld [vmem:[%s1 + $0x114] sm:$0xf]
  %v109 = vld [vmem:[%s1 + $0x118] sm:$0xf]
  %v110 = vld [vmem:[%s1 + $0x11c] sm:$0xf]
  %v111 = vld [vmem:[%s1 + $0x120] sm:$0xf]
  %v112 = vld [vmem:[%s1 + $0x124] sm:$0xf]
  %v113 = vld [vmem:[%s1 + $0x128] sm:$0xf]
  %v114 = vld [vmem:[%s1 + $0x12c] sm:$0xf]
  %v115 = vld [vmem:[%s1 + $0x130] sm:$0xf]
  %v116 = vld [vmem:[%s1 + $0x134] sm:$0xf]
  %v117 = vld [vmem:[%s1 + $0x138] sm:$0xf]
  %v118 = vld [vmem:[%s1 + $0x13c] sm:$0xf]
  %v119 = vld [vmem:[%s2] sm:$0x1]
  %v121 = vlaneseq
  %v122 = vshrl.u32 %v121, 7
  %v123 = vsub.s32 0, %v122
  %v124 = vrot.slane %v119, %v123
  %v150 = vunpack.c.l.b16 %v15
  %v151 = vunpack.c.h.b16 %v15
  %v152 = vunpack.c.l.b16 %v16
  %v153 = vunpack.c.h.b16 %v16
  %v154 = vunpack.c.l.b16 %v17
  %v155 = vunpack.c.l.b16 %v18
  %v156 = vunpack.c.h.b16 %v18
  %v157 = vunpack.c.l.b16 %v19
  %v158 = vunpack.c.h.b16 %v19
  %v159 = vunpack.c.l.b16 %v20
  %v160 = vunpack.c.l.b16 %v21
  %v161 = vunpack.c.h.b16 %v21
  %v162 = vunpack.c.l.b16 %v22
  %v163 = vunpack.c.h.b16 %v22
  %v164 = vunpack.c.l.b16 %v23
  %v165 = vunpack.c.l.b16 %v24
  %v166 = vunpack.c.h.b16 %v24
  %v167 = vunpack.c.l.b16 %v25
  %v168 = vunpack.c.h.b16 %v25
  %v169 = vunpack.c.l.b16 %v26
  %v170 = vunpack.c.l.b16 %v27
  %v171 = vunpack.c.h.b16 %v27
  %v172 = vunpack.c.l.b16 %v28
  %v173 = vunpack.c.h.b16 %v28
  %v174 = vunpack.c.l.b16 %v29
  %v175 = vunpack.c.l.b16 %v30
  %v176 = vunpack.c.h.b16 %v30
  %v177 = vunpack.c.l.b16 %v31
  %v178 = vunpack.c.h.b16 %v31
  %v179 = vunpack.c.l.b16 %v32
  %v180 = vunpack.c.l.b16 %v33
  %v181 = vunpack.c.h.b16 %v33
  %v182 = vunpack.c.l.b16 %v34
  %v183 = vunpack.c.h.b16 %v34
  %v184 = vunpack.c.l.b16 %v35
  %v185 = vunpack.c.l.b16 %v36
  %v186 = vunpack.c.h.b16 %v36
  %v187 = vunpack.c.l.b16 %v37
  %v188 = vunpack.c.h.b16 %v37
  %v189 = vunpack.c.l.b16 %v38
  %v190 = vpack.c.b16 %v155, %v150
  %v191 = vpack.c.b16 %v156, %v151
  %v192 = vpack.c.b16 %v157, %v152
  %v193 = vpack.c.b16 %v158, %v153
  %v194 = vpack.c.b16 %v159, %v154
  %v195 = vpack.c.b16 %v165, %v160
  %v196 = vpack.c.b16 %v166, %v161
  %v197 = vpack.c.b16 %v167, %v162
  %v198 = vpack.c.b16 %v168, %v163
  %v199 = vpack.c.b16 %v169, %v164
  %v200 = vpack.c.b16 %v175, %v170
  %v201 = vpack.c.b16 %v176, %v171
  %v202 = vpack.c.b16 %v177, %v172
  %v203 = vpack.c.b16 %v178, %v173
  %v204 = vpack.c.b16 %v179, %v174
  %v205 = vpack.c.b16 %v185, %v180
  %v206 = vpack.c.b16 %v186, %v181
  %v207 = vpack.c.b16 %v187, %v182
  %v208 = vpack.c.b16 %v188, %v183
  %v209 = vpack.c.b16 %v189, %v184
  %v310 = vunpack.c.l.b16 %v39
  %v311 = vunpack.c.l.b16 %v40
  %v312 = vunpack.c.l.b16 %v41
  %v313 = vunpack.c.l.b16 %v42
  %v314 = vunpack.c.l.b16 %v43
  %v315 = vunpack.c.l.b16 %v44
  %v316 = vunpack.c.l.b16 %v45
  %v317 = vunpack.c.l.b16 %v46
  %v318 = vunpack.c.l.b16 %v47
  %v319 = vunpack.c.l.b16 %v48
  %v320 = vunpack.c.l.b16 %v49
  %v321 = vunpack.c.l.b16 %v50
  %v322 = vunpack.c.l.b16 %v51
  %v323 = vunpack.c.l.b16 %v52
  %v324 = vunpack.c.l.b16 %v53
  %v325 = vunpack.c.l.b16 %v54
  %v326 = vunpack.c.l.b16 %v55
  %v327 = vunpack.c.l.b16 %v56
  %v328 = vunpack.c.l.b16 %v57
  %v329 = vunpack.c.l.b16 %v58
  %v330 = vunpack.c.l.b16 %v59
  %v331 = vunpack.c.l.b16 %v60
  %v332 = vunpack.c.l.b16 %v61
  %v333 = vunpack.c.l.b16 %v62
  %v334 = vunpack.c.l.b16 %v63
  %v335 = vunpack.c.l.b16 %v64
  %v336 = vunpack.c.l.b16 %v65
  %v337 = vunpack.c.l.b16 %v66
  %v338 = vunpack.c.l.b16 %v67
  %v339 = vunpack.c.l.b16 %v68
  %v340 = vunpack.c.l.b16 %v69
  %v341 = vunpack.c.l.b16 %v70
  %v342 = vunpack.c.l.b16 %v71
  %v343 = vunpack.c.l.b16 %v72
  %v344 = vunpack.c.l.b16 %v73
  %v345 = vunpack.c.l.b16 %v74
  %v346 = vunpack.c.l.b16 %v75
  %v347 = vunpack.c.l.b16 %v76
  %v348 = vunpack.c.l.b16 %v77
  %v349 = vunpack.c.l.b16 %v78
  %v350 = vunpack.c.l.b16 %v79
  %v351 = vunpack.c.l.b16 %v80
  %v352 = vunpack.c.l.b16 %v81
  %v353 = vunpack.c.l.b16 %v82
  %v354 = vunpack.c.l.b16 %v83
  %v355 = vunpack.c.l.b16 %v84
  %v356 = vunpack.c.l.b16 %v85
  %v357 = vunpack.c.l.b16 %v86
  %v358 = vunpack.c.l.b16 %v87
  %v359 = vunpack.c.l.b16 %v88
  %v360 = vunpack.c.l.b16 %v89
  %v361 = vunpack.c.l.b16 %v90
  %v362 = vunpack.c.l.b16 %v91
  %v363 = vunpack.c.l.b16 %v92
  %v364 = vunpack.c.l.b16 %v93
  %v365 = vunpack.c.l.b16 %v94
  %v366 = vunpack.c.l.b16 %v95
  %v367 = vunpack.c.l.b16 %v96
  %v368 = vunpack.c.l.b16 %v97
  %v369 = vunpack.c.l.b16 %v98
  %v370 = vunpack.c.l.b16 %v99
  %v371 = vunpack.c.l.b16 %v100
  %v372 = vunpack.c.l.b16 %v101
  %v373 = vunpack.c.l.b16 %v102
  %v374 = vunpack.c.l.b16 %v103
  %v375 = vunpack.c.l.b16 %v104
  %v376 = vunpack.c.l.b16 %v105
  %v377 = vunpack.c.l.b16 %v106
  %v378 = vunpack.c.l.b16 %v107
  %v379 = vunpack.c.l.b16 %v108
  %v380 = vunpack.c.l.b16 %v109
  %v381 = vunpack.c.l.b16 %v110
  %v382 = vunpack.c.l.b16 %v111
  %v383 = vunpack.c.l.b16 %v112
  %v384 = vunpack.c.l.b16 %v113
  %v385 = vunpack.c.l.b16 %v114
  %v386 = vunpack.c.l.b16 %v115
  %v387 = vunpack.c.l.b16 %v116
  %v388 = vunpack.c.l.b16 %v117
  %v389 = vunpack.c.l.b16 %v118
  %v390 = vpack.c.b16 %v311, %v310
  %v391 = vpack.c.b16 %v313, %v312
  %v392 = vpack.c.b16 %v315, %v314
  %v393 = vpack.c.b16 %v317, %v316
  %v394 = vpack.c.b16 %v319, %v318
  %v395 = vpack.c.b16 %v321, %v320
  %v396 = vpack.c.b16 %v323, %v322
  %v397 = vpack.c.b16 %v325, %v324
  %v398 = vpack.c.b16 %v327, %v326
  %v399 = vpack.c.b16 %v329, %v328
  %v400 = vpack.c.b16 %v331, %v330
  %v401 = vpack.c.b16 %v333, %v332
  %v402 = vpack.c.b16 %v335, %v334
  %v403 = vpack.c.b16 %v337, %v336
  %v404 = vpack.c.b16 %v339, %v338
  %v405 = vpack.c.b16 %v341, %v340
  %v406 = vpack.c.b16 %v343, %v342
  %v407 = vpack.c.b16 %v345, %v344
  %v408 = vpack.c.b16 %v347, %v346
  %v409 = vpack.c.b16 %v349, %v348
  %v410 = vpack.c.b16 %v351, %v350
  %v411 = vpack.c.b16 %v353, %v352
  %v412 = vpack.c.b16 %v355, %v354
  %v413 = vpack.c.b16 %v357, %v356
  %v414 = vpack.c.b16 %v359, %v358
  %v415 = vpack.c.b16 %v361, %v360
  %v416 = vpack.c.b16 %v363, %v362
  %v417 = vpack.c.b16 %v365, %v364
  %v418 = vpack.c.b16 %v367, %v366
  %v419 = vpack.c.b16 %v369, %v368
  %v420 = vpack.c.b16 %v371, %v370
  %v421 = vpack.c.b16 %v373, %v372
  %v422 = vpack.c.b16 %v375, %v374
  %v423 = vpack.c.b16 %v377, %v376
  %v424 = vpack.c.b16 %v379, %v378
  %v425 = vpack.c.b16 %v381, %v380
  %v426 = vpack.c.b16 %v383, %v382
  %v427 = vpack.c.b16 %v385, %v384
  %v428 = vpack.c.b16 %v387, %v386
  %v429 = vpack.c.b16 %v389, %v388
  %470 = vmatprep.subr.bf16.mxu0 0
  %471 = vmatpush1.bf16.msra.mxu0 %v390
  %472 = vmatprep.subr.bf16.mxu0 0
  %473 = vmatpush1.bf16.msra.mxu0 %v391
  %474 = vmatprep.subr.bf16.mxu0 0
  %475 = vmatpush1.bf16.msra.mxu0 %v392
  %476 = vmatprep.subr.bf16.mxu0 0
  %477 = vmatpush1.bf16.msra.mxu0 %v393
  %478 = vmatprep.subr.bf16.mxu0 0
  %479 = vmatpush1.bf16.msra.mxu0 %v394
  %480 = vmatprep.subr.bf16.mxu0 0
  %481 = vmatpush1.bf16.msra.mxu0 %v395
  %482 = vmatprep.subr.bf16.mxu0 0
  %483 = vmatpush1.bf16.msra.mxu0 %v396
  %484 = vmatprep.subr.bf16.mxu0 0
  %485 = vmatpush1.bf16.msra.mxu0 %v397
  %486 = vmatprep.subr.bf16.mxu0 0
  %487 = vmatpush1.bf16.msra.mxu0 %v398
  %488 = vmatprep.subr.bf16.mxu0 0
  %489 = vmatpush1.bf16.msra.mxu0 %v399
  %490 = vmatprep.subr.bf16.mxu0 0
  %491 = vmatpush1.bf16.msra.mxu0 %v400
  %492 = vmatprep.subr.bf16.mxu0 0
  %493 = vmatpush1.bf16.msra.mxu0 %v401
  %494 = vmatprep.subr.bf16.mxu0 0
  %495 = vmatpush1.bf16.msra.mxu0 %v402
  %496 = vmatprep.subr.bf16.mxu0 0
  %497 = vmatpush1.bf16.msra.mxu0 %v403
  %498 = vmatprep.subr.bf16.mxu0 0
  %499 = vmatpush1.bf16.msra.mxu0 %v404
  %500 = vmatprep.subr.bf16.mxu0 0
  %501 = vmatpush1.bf16.msra.mxu0 %v405
  %502 = vmatprep.mubr.bf16.mxu0 %v191
  %503 = vmatmul.mubr.bf16.gmra.mrb[0].mxu0 %v190
  %v504 = vpop.f32.mrb[0].mxu0
  %v505 = vadd.f32 %v124, %v504
  %v506 = vpop.f32.mrb[0].mxu0
  %v507 = vpop.f32.mrb[0].mxu0
  %v508 = vadd.f32 %v124, %v507
  %v509 = vpop.f32.mrb[0].mxu0
  %510 = vmatprep.mubr.bf16.mxu0 %v196
  %511 = vmatmul.mubr.bf16.gmra.mrb[0].mxu0 %v195
  %v512 = vpop.f32.mrb[0].mxu0
  %v513 = vadd.f32 %v124, %v512
  %v514 = vpop.f32.mrb[0].mxu0
  %v515 = vpop.f32.mrb[0].mxu0
  %v516 = vadd.f32 %v124, %v515
  %v517 = vpop.f32.mrb[0].mxu0
  %518 = vmatprep.mubr.bf16.mxu0 %v201
  %519 = vmatmul.mubr.bf16.gmra.mrb[0].mxu0 %v200
  %v520 = vpop.f32.mrb[0].mxu0
  %v521 = vadd.f32 %v124, %v520
  %v522 = vpop.f32.mrb[0].mxu0
  %v523 = vpop.f32.mrb[0].mxu0
  %v524 = vadd.f32 %v124, %v523
  %v525 = vpop.f32.mrb[0].mxu0
  %526 = vmatprep.mubr.bf16.mxu0 %v206
  %527 = vmatmul.mubr.bf16.gmra.mrb[0].mxu0 %v205
  %v528 = vpop.f32.mrb[0].mxu0
  %v529 = vadd.f32 %v124, %v528
  %v530 = vpop.f32.mrb[0].mxu0
  %v531 = vpop.f32.mrb[0].mxu0
  %v532 = vadd.f32 %v124, %v531
  %v533 = vpop.f32.mrb[0].mxu0
  %534 = vdwg.mxu0
  %535 = vmatprep.subr.bf16.mxu0 0
  %536 = vmatpush1.bf16.msra.mxu0 %v406
  %537 = vmatprep.subr.bf16.mxu0 0
  %538 = vmatpush1.bf16.msra.mxu0 %v407
  %539 = vmatprep.subr.bf16.mxu0 0
  %540 = vmatpush1.bf16.msra.mxu0 %v408
  %541 = vmatprep.subr.bf16.mxu0 0
  %542 = vmatpush1.bf16.msra.mxu0 %v409
  %543 = vmatprep.subr.bf16.mxu0 0
  %544 = vmatpush1.bf16.msra.mxu0 %v410
  %545 = vmatprep.subr.bf16.mxu0 0
  %546 = vmatpush1.bf16.msra.mxu0 %v411
  %547 = vmatprep.subr.bf16.mxu0 0
  %548 = vmatpush1.bf16.msra.mxu0 %v412
  %549 = vmatprep.subr.bf16.mxu0 0
  %550 = vmatpush1.bf16.msra.mxu0 %v413
  %551 = vmatprep.subr.bf16.mxu0 0
  %552 = vmatpush1.bf16.msra.mxu0 %v414
  %553 = vmatprep.subr.bf16.mxu0 0
  %554 = vmatpush1.bf16.msra.mxu0 %v415
  %555 = vmatprep.subr.bf16.mxu0 0
  %556 = vmatpush1.bf16.msra.mxu0 %v416
  %557 = vmatprep.subr.bf16.mxu0 0
  %558 = vmatpush1.bf16.msra.mxu0 %v417
  %559 = vmatprep.subr.bf16.mxu0 0
  %560 = vmatpush1.bf16.msra.mxu0 %v418
  %561 = vmatprep.subr.bf16.mxu0 0
  %562 = vmatpush1.bf16.msra.mxu0 %v419
  %563 = vmatprep.subr.bf16.mxu0 0
  %564 = vmatpush1.bf16.msra.mxu0 %v420
  %565 = vmatprep.subr.bf16.mxu0 0
  %566 = vmatpush1.bf16.msra.mxu0 %v421
  %567 = vmatprep.mubr.bf16.mxu0 %v193
  %568 = vmatmul.mubr.bf16.gmra.mrb[0].mxu0 %v192
  %v569 = vpop.f32.mrb[0].mxu0
  %v570 = vadd.f32 %v505, %v569
  %v571 = vpop.f32.mrb[0].mxu0
  %v572 = vpop.f32.mrb[0].mxu0
  %v573 = vadd.f32 %v508, %v572
  %v574 = vpop.f32.mrb[0].mxu0
  %575 = vmatprep.mubr.bf16.mxu0 %v198
  %576 = vmatmul.mubr.bf16.gmra.mrb[0].mxu0 %v197
  %v577 = vpop.f32.mrb[0].mxu0
  %v578 = vadd.f32 %v513, %v577
  %v579 = vpop.f32.mrb[0].mxu0
  %v580 = vpop.f32.mrb[0].mxu0
  %v581 = vadd.f32 %v516, %v580
  %v582 = vpop.f32.mrb[0].mxu0
  %583 = vmatprep.mubr.bf16.mxu0 %v203
  %584 = vmatmul.mubr.bf16.gmra.mrb[0].mxu0 %v202
  %v585 = vpop.f32.mrb[0].mxu0
  %v586 = vadd.f32 %v521, %v585
  %v587 = vpop.f32.mrb[0].mxu0
  %v588 = vpop.f32.mrb[0].mxu0
  %v589 = vadd.f32 %v524, %v588
  %v590 = vpop.f32.mrb[0].mxu0
  %591 = vmatprep.mubr.bf16.mxu0 %v208
  %592 = vmatmul.mubr.bf16.gmra.mrb[0].mxu0 %v207
  %v593 = vpop.f32.mrb[0].mxu0
  %v594 = vadd.f32 %v529, %v593
  %v595 = vpop.f32.mrb[0].mxu0
  %v596 = vpop.f32.mrb[0].mxu0
  %v597 = vadd.f32 %v532, %v596
  %v598 = vpop.f32.mrb[0].mxu0
  %599 = vdwg.mxu0
  %600 = vmatprep.subr.bf16.mxu0 0
  %601 = vmatpush1.bf16.msra.mxu0 %v422
  %602 = vmatprep.subr.bf16.mxu0 0
  %603 = vmatpush1.bf16.msra.mxu0 %v423
  %604 = vmatprep.subr.bf16.mxu0 0
  %605 = vmatpush1.bf16.msra.mxu0 %v424
  %606 = vmatprep.subr.bf16.mxu0 0
  %607 = vmatpush1.bf16.msra.mxu0 %v425
  %608 = vmatprep.subr.bf16.mxu0 0
  %609 = vmatpush1.bf16.msra.mxu0 %v426
  %610 = vmatprep.subr.bf16.mxu0 0
  %611 = vmatpush1.bf16.msra.mxu0 %v427
  %612 = vmatprep.subr.bf16.mxu0 0
  %613 = vmatpush1.bf16.msra.mxu0 %v428
  %614 = vmatprep.subr.bf16.mxu0 0
  %615 = vmatpush1.bf16.msra.mxu0 %v429
  %616 = vmatprep.subr.bf16.mxu0 0
  %617 = vmatpush1.bf16.msra.mxu0 0
  %618 = vmatprep.subr.bf16.mxu0 0
  %619 = vmatpush1.bf16.msra.mxu0 0
  %620 = vmatprep.subr.bf16.mxu0 0
  %621 = vmatpush1.bf16.msra.mxu0 0
  %622 = vmatprep.subr.bf16.mxu0 0
  %623 = vmatpush1.bf16.msra.mxu0 0
  %624 = vmatprep.subr.bf16.mxu0 0
  %625 = vmatpush1.bf16.msra.mxu0 0
  %626 = vmatprep.subr.bf16.mxu0 0
  %627 = vmatpush1.bf16.msra.mxu0 0
  %628 = vmatprep.subr.bf16.mxu0 0
  %629 = vmatpush1.bf16.msra.mxu0 0
  %630 = vmatprep.subr.bf16.mxu0 0
  %631 = vmatpush1.bf16.msra.mxu0 0
  %632 = vmatprep.mubr.bf16.mxu0 0
  %633 = vmatmul.mubr.bf16.gmra.mrb[0].mxu0 %v194
  %v634 = vpop.f32.mrb[0].mxu0
  %v635 = vadd.f32 %v570, %v634
  %v636 = vpop.f32.mrb[0].mxu0
  %v637 = vpop.f32.mrb[0].mxu0
  %v638 = vadd.f32 %v573, %v637
  %v639 = vpop.f32.mrb[0].mxu0
  %640 = vmatprep.mubr.bf16.mxu0 0
  %641 = vmatmul.mubr.bf16.gmra.mrb[0].mxu0 %v199
  %v642 = vpop.f32.mrb[0].mxu0
  %v643 = vadd.f32 %v578, %v642
  %v644 = vpop.f32.mrb[0].mxu0
  %v645 = vpop.f32.mrb[0].mxu0
  %v646 = vadd.f32 %v581, %v645
  %v647 = vpop.f32.mrb[0].mxu0
  %648 = vmatprep.mubr.bf16.mxu0 0
  %649 = vmatmul.mubr.bf16.gmra.mrb[0].mxu0 %v204
  %v650 = vpop.f32.mrb[0].mxu0
  %v651 = vadd.f32 %v586, %v650
  %v652 = vpop.f32.mrb[0].mxu0
  %v653 = vpop.f32.mrb[0].mxu0
  %v654 = vadd.f32 %v589, %v653
  %v655 = vpop.f32.mrb[0].mxu0
  %656 = vmatprep.mubr.bf16.mxu0 0
  %657 = vmatmul.mubr.bf16.gmra.mrb[0].mxu0 %v209
  %v658 = vpop.f32.mrb[0].mxu0
  %v659 = vadd.f32 %v594, %v658
  %v660 = vpop.f32.mrb[0].mxu0
  %v661 = vpop.f32.mrb[0].mxu0
  %v662 = vadd.f32 %v597, %v661
  %v663 = vpop.f32.mrb[0].mxu0
  %664 = vdwg.mxu0
  %vm665 = vcmp.ge.f32.partialorder %v635, 0.0
  %vm666 = vcmp.ge.f32.partialorder %v638, 0.0
  %vm667 = vcmp.ge.f32.partialorder %v643, 0.0
  %vm668 = vcmp.ge.f32.partialorder %v646, 0.0
  %vm669 = vcmp.ge.f32.partialorder %v651, 0.0
  %vm670 = vcmp.ge.f32.partialorder %v654, 0.0
  %vm671 = vcmp.ge.f32.partialorder %v659, 0.0
  %vm672 = vcmp.ge.f32.partialorder %v662, 0.0
  %v673 = vmul.f32 %v635, 0.1
  %v674 = vmul.f32 %v638, 0.1
  %v675 = vmul.f32 %v643, 0.1
  %v676 = vmul.f32 %v646, 0.1
  %v677 = vmul.f32 %v651, 0.1
  %v678 = vmul.f32 %v654, 0.1
  %v679 = vmul.f32 %v659, 0.1
  %v680 = vmul.f32 %v662, 0.1
  %v681 = vsel %vm665, %v635, %v673
  %v682 = vsel %vm666, %v638, %v674
  %v683 = vsel %vm667, %v643, %v675
  %v684 = vsel %vm668, %v646, %v676
  %v685 = vsel %vm669, %v651, %v677
  %v686 = vsel %vm670, %v654, %v678
  %v687 = vsel %vm671, %v659, %v679
  %v688 = vsel %vm672, %v662, %v680
  %v689 = vpack.c.bf16 %v682, %v681
  %v690 = vpack.c.bf16 %v684, %v683
  %v691 = vpack.c.bf16 %v686, %v685
  %v692 = vpack.c.bf16 %v688, %v687
  %v697 = vunpack.c.l.b16 %v689
  %v698 = vunpack.c.h.b16 %v689
  %v699 = vunpack.c.l.b16 %v690
  %v700 = vunpack.c.h.b16 %v690
  %v701 = vunpack.c.l.b16 %v691
  %v702 = vunpack.c.h.b16 %v691
  %v703 = vunpack.c.l.b16 %v692
  %v704 = vunpack.c.h.b16 %v692
  %v705 = vpack.c.b16 %v697, %v697
  %v706 = vpack.c.b16 %v698, %v698
  %v707 = vpack.c.b16 %v699, %v699
  %v708 = vpack.c.b16 %v700, %v700
  %v709 = vpack.c.b16 %v701, %v701
  %v710 = vpack.c.b16 %v702, %v702
  %v711 = vpack.c.b16 %v703, %v703
  %v712 = vpack.c.b16 %v704, %v704
  %721 = vst [vmem:[%s3] sm:$0xf] %v705
  %722 = vst [vmem:[%s3 + $0x4] sm:$0xf] %v706
  %723 = vst [vmem:[%s3 + $0x8] sm:$0xf] %v707
  %724 = vst [vmem:[%s3 + $0xc] sm:$0xf] %v708
  %725 = vst [vmem:[%s3 + $0x10] sm:$0xf] %v709
  %726 = vst [vmem:[%s3 + $0x14] sm:$0xf] %v710
  %727 = vst [vmem:[%s3 + $0x18] sm:$0xf] %v711
  %728 = vst [vmem:[%s3 + $0x1c] sm:$0xf] %v712
  // Predicated region
  $region14: #{_lambda_.32} parent=0 // pred_check
    _
  $region15: #{_lambda_.32} parent=0 // pred_check_branch
    %730 = sbr.rel (0) target = $region17
  $region16: #{_lambda_.32} parent=0 // pred_region
    _
  $region17: #{_lambda_.32} parent=0 // pred_fallthru
    _
  // Predicated region
  $region18: #{_lambda_.32} parent=0 // pred_check
    _
  $region19: #{_lambda_.32} parent=0 // pred_check_branch
    %732 = sbr.rel (0) target = $region21
  $region20: #{_lambda_.32} parent=0 // pred_region
    _
  $region21: #{_lambda_.32} parent=0 // pred_fallthru
    _

// kernel: _lambda_.33
$region0: #{_lambda_.33}
  #allocation0 [shape = 'u32[]', space=smem, size = 0x4, offset = 0x4, fixed_abs, tag = 'smem constant byte address 0x4 - core index']
  #allocation1 [shape = 'u32[144,128]{1,0:T(1,128)}', space=vmem, size = 0x12000, scoped, tag = 'internal scratch']
  %s0 = inlined_call_operand.vmem [shape: bf16[32,640], index: 0, kind: input, shape index: {}]
  %s1 = inlined_call_operand.vmem [shape: bf16[640,128], index: 1, kind: input, shape index: {}]
  %s2 = inlined_call_operand.vmem [shape: f32[1,128], index: 2, kind: input, shape index: {}]
  %s3 = inlined_call_operand.vmem [shape: bf16[32,128], index: 3, kind: output, shape index: {}]
  %s4 = sld [smem:[#allocation0]]
  $region22: #{_lambda_.33} parent=0
    _
  %s6 = ssub.s32 1, %s4
  %s7 = scalar_select 0, %s6, %s4
  // Predicated region
  $region2: #{_lambda_.33} parent=0 // pred_check
    _
  $region3: #{_lambda_.33} parent=0 // pred_check_branch
    %9 = sbr.rel (0) target = $region5
  $region4: #{_lambda_.33} parent=0 // pred_region
    _
  $region5: #{_lambda_.33} parent=0 // pred_fallthru
    _
  // Predicated region
  $region6: #{_lambda_.33} parent=0 // pred_check
    _
  $region7: #{_lambda_.33} parent=0 // pred_check_branch
    %11 = sbr.rel (0) target = $region9
  $region8: #{_lambda_.33} parent=0 // pred_region
    _
  $region9: #{_lambda_.33} parent=0 // pred_fallthru
    _
  // Predicated region
  $region10: #{_lambda_.33} parent=0 // pred_check
    _
  $region11: #{_lambda_.33} parent=0 // pred_check_branch
    %13 = sbr.rel (0) target = $region13
  $region12: #{_lambda_.33} parent=0 // pred_region
    _
  $region13: #{_lambda_.33} parent=0 // pred_fallthru
    _
  %v15 = vld [vmem:[%s0] sm:$0xff]
  %v16 = vld [vmem:[%s0 + $0x8] sm:$0xff]
  %v17 = vld [vmem:[%s0 + $0x10] sm:$0xf]
  %v18 = vld [vmem:[%s0 + $0x14] sm:$0xff]
  %v19 = vld [vmem:[%s0 + $0x1c] sm:$0xff]
  %v20 = vld [vmem:[%s0 + $0x24] sm:$0xf]
  %v21 = vld [vmem:[%s0 + $0x28] sm:$0xff]
  %v22 = vld [vmem:[%s0 + $0x30] sm:$0xff]
  %v23 = vld [vmem:[%s0 + $0x38] sm:$0xf]
  %v24 = vld [vmem:[%s0 + $0x3c] sm:$0xff]
  %v25 = vld [vmem:[%s0 + $0x44] sm:$0xff]
  %v26 = vld [vmem:[%s0 + $0x4c] sm:$0xf]
  %v27 = vld [vmem:[%s1] sm:$0xf]
  %v28 = vld [vmem:[%s1 + $0x4] sm:$0xf]
  %v29 = vld [vmem:[%s1 + $0x8] sm:$0xf]
  %v30 = vld [vmem:[%s1 + $0xc] sm:$0xf]
  %v31 = vld [vmem:[%s1 + $0x10] sm:$0xf]
  %v32 = vld [vmem:[%s1 + $0x14] sm:$0xf]
  %v33 = vld [vmem:[%s1 + $0x18] sm:$0xf]
  %v34 = vld [vmem:[%s1 + $0x1c] sm:$0xf]
  %v35 = vld [vmem:[%s1 + $0x20] sm:$0xf]
  %v36 = vld [vmem:[%s1 + $0x24] sm:$0xf]
  %v37 = vld [vmem:[%s1 + $0x28] sm:$0xf]
  %v38 = vld [vmem:[%s1 + $0x2c] sm:$0xf]
  %v39 = vld [vmem:[%s1 + $0x30] sm:$0xf]
  %v40 = vld [vmem:[%s1 + $0x34] sm:$0xf]
  %v41 = vld [vmem:[%s1 + $0x38] sm:$0xf]
  %v42 = vld [vmem:[%s1 + $0x3c] sm:$0xf]
  %v43 = vld [vmem:[%s1 + $0x40] sm:$0xf]
  %v44 = vld [vmem:[%s1 + $0x44] sm:$0xf]
  %v45 = vld [vmem:[%s1 + $0x48] sm:$0xf]
  %v46 = vld [vmem:[%s1 + $0x4c] sm:$0xf]
  %v47 = vld [vmem:[%s1 + $0x50] sm:$0xf]
  %v48 = vld [vmem:[%s1 + $0x54] sm:$0xf]
  %v49 = vld [vmem:[%s1 + $0x58] sm:$0xf]
  %v50 = vld [vmem:[%s1 + $0x5c] sm:$0xf]
  %v51 = vld [vmem:[%s1 + $0x60] sm:$0xf]
  %v52 = vld [vmem:[%s1 + $0x64] sm:$0xf]
  %v53 = vld [vmem:[%s1 + $0x68] sm:$0xf]
  %v54 = vld [vmem:[%s1 + $0x6c] sm:$0xf]
  %v55 = vld [vmem:[%s1 + $0x70] sm:$0xf]
  %v56 = vld [vmem:[%s1 + $0x74] sm:$0xf]
  %v57 = vld [vmem:[%s1 + $0x78] sm:$0xf]
  %v58 = vld [vmem:[%s1 + $0x7c] sm:$0xf]
  %v59 = vld [vmem:[%s1 + $0x80] sm:$0xf]
  %v60 = vld [vmem:[%s1 + $0x84] sm:$0xf]
  %v61 = vld [vmem:[%s1 + $0x88] sm:$0xf]
  %v62 = vld [vmem:[%s1 + $0x8c] sm:$0xf]
  %v63 = vld [vmem:[%s1 + $0x90] sm:$0xf]
  %v64 = vld [vmem:[%s1 + $0x94] sm:$0xf]
  %v65 = vld [vmem:[%s1 + $0x98] sm:$0xf]
  %v66 = vld [vmem:[%s1 + $0x9c] sm:$0xf]
  %v67 = vld [vmem:[%s1 + $0xa0] sm:$0xf]
  %v68 = vld [vmem:[%s1 + $0xa4] sm:$0xf]
  %v69 = vld [vmem:[%s1 + $0xa8] sm:$0xf]
  %v70 = vld [vmem:[%s1 + $0xac] sm:$0xf]
  %v71 = vld [vmem:[%s1 + $0xb0] sm:$0xf]
  %v72 = vld [vmem:[%s1 + $0xb4] sm:$0xf]
  %v73 = vld [vmem:[%s1 + $0xb8] sm:$0xf]
  %v74 = vld [vmem:[%s1 + $0xbc] sm:$0xf]
  %v75 = vld [vmem:[%s1 + $0xc0] sm:$0xf]
  %v76 = vld [vmem:[%s1 + $0xc4] sm:$0xf]
  %v77 = vld [vmem:[%s1 + $0xc8] sm:$0xf]
  %v78 = vld [vmem:[%s1 + $0xcc] sm:$0xf]
  %v79 = vld [vmem:[%s1 + $0xd0] sm:$0xf]
  %v80 = vld [vmem:[%s1 + $0xd4] sm:$0xf]
  %v81 = vld [vmem:[%s1 + $0xd8] sm:$0xf]
  %v82 = vld [vmem:[%s1 + $0xdc] sm:$0xf]
  %v83 = vld [vmem:[%s1 + $0xe0] sm:$0xf]
  %v84 = vld [vmem:[%s1 + $0xe4] sm:$0xf]
  %v85 = vld [vmem:[%s1 + $0xe8] sm:$0xf]
  %v86 = vld [vmem:[%s1 + $0xec] sm:$0xf]
  %v87 = vld [vmem:[%s1 + $0xf0] sm:$0xf]
  %v88 = vld [vmem:[%s1 + $0xf4] sm:$0xf]
  %v89 = vld [vmem:[%s1 + $0xf8] sm:$0xf]
  %v90 = vld [vmem:[%s1 + $0xfc] sm:$0xf]
  %v91 = vld [vmem:[%s1 + $0x100] sm:$0xf]
  %v92 = vld [vmem:[%s1 + $0x104] sm:$0xf]
  %v93 = vld [vmem:[%s1 + $0x108] sm:$0xf]
  %v94 = vld [vmem:[%s1 + $0x10c] sm:$0xf]
  %v95 = vld [vmem:[%s1 + $0x110] sm:$0xf]
  %v96 = vld [vmem:[%s1 + $0x114] sm:$0xf]
  %v97 = vld [vmem:[%s1 + $0x118] sm:$0xf]
  %v98 = vld [vmem:[%s1 + $0x11c] sm:$0xf]
  %v99 = vld [vmem:[%s1 + $0x120] sm:$0xf]
  %v100 = vld [vmem:[%s1 + $0x124] sm:$0xf]
  %v101 = vld [vmem:[%s1 + $0x128] sm:$0xf]
  %v102 = vld [vmem:[%s1 + $0x12c] sm:$0xf]
  %v103 = vld [vmem:[%s1 + $0x130] sm:$0xf]
  %v104 = vld [vmem:[%s1 + $0x134] sm:$0xf]
  %v105 = vld [vmem:[%s1 + $0x138] sm:$0xf]
  %v106 = vld [vmem:[%s1 + $0x13c] sm:$0xf]
  %v107 = vld [vmem:[%s2] sm:$0x1]
  %v109 = vlaneseq
  %v110 = vshrl.u32 %v109, 7
  %v111 = vsub.s32 0, %v110
  %v112 = vrot.slane %v107, %v111
  %v126 = vunpack.c.l.b16 %v15
  %v127 = vunpack.c.h.b16 %v15
  %v128 = vunpack.c.l.b16 %v16
  %v129 = vunpack.c.h.b16 %v16
  %v130 = vunpack.c.l.b16 %v17
  %v131 = vunpack.c.l.b16 %v18
  %v132 = vunpack.c.h.b16 %v18
  %v133 = vunpack.c.l.b16 %v19
  %v134 = vunpack.c.h.b16 %v19
  %v135 = vunpack.c.l.b16 %v20
  %v136 = vunpack.c.l.b16 %v21
  %v137 = vunpack.c.h.b16 %v21
  %v138 = vunpack.c.l.b16 %v22
  %v139 = vunpack.c.h.b16 %v22
  %v140 = vunpack.c.l.b16 %v23
  %v141 = vunpack.c.l.b16 %v24
  %v142 = vunpack.c.h.b16 %v24
  %v143 = vunpack.c.l.b16 %v25
  %v144 = vunpack.c.h.b16 %v25
  %v145 = vunpack.c.l.b16 %v26
  %v146 = vpack.c.b16 %v131, %v126
  %v147 = vpack.c.b16 %v132, %v127
  %v148 = vpack.c.b16 %v133, %v128
  %v149 = vpack.c.b16 %v134, %v129
  %v150 = vpack.c.b16 %v135, %v130
  %v151 = vpack.c.b16 %v141, %v136
  %v152 = vpack.c.b16 %v142, %v137
  %v153 = vpack.c.b16 %v143, %v138
  %v154 = vpack.c.b16 %v144, %v139
  %v155 = vpack.c.b16 %v145, %v140
  %v246 = vunpack.c.l.b16 %v27
  %v247 = vunpack.c.l.b16 %v28
  %v248 = vunpack.c.l.b16 %v29
  %v249 = vunpack.c.l.b16 %v30
  %v250 = vunpack.c.l.b16 %v31
  %v251 = vunpack.c.l.b16 %v32
  %v252 = vunpack.c.l.b16 %v33
  %v253 = vunpack.c.l.b16 %v34
  %v254 = vunpack.c.l.b16 %v35
  %v255 = vunpack.c.l.b16 %v36
  %v256 = vunpack.c.l.b16 %v37
  %v257 = vunpack.c.l.b16 %v38
  %v258 = vunpack.c.l.b16 %v39
  %v259 = vunpack.c.l.b16 %v40
  %v260 = vunpack.c.l.b16 %v41
  %v261 = vunpack.c.l.b16 %v42
  %v262 = vunpack.c.l.b16 %v43
  %v263 = vunpack.c.l.b16 %v44
  %v264 = vunpack.c.l.b16 %v45
  %v265 = vunpack.c.l.b16 %v46
  %v266 = vunpack.c.l.b16 %v47
  %v267 = vunpack.c.l.b16 %v48
  %v268 = vunpack.c.l.b16 %v49
  %v269 = vunpack.c.l.b16 %v50
  %v270 = vunpack.c.l.b16 %v51
  %v271 = vunpack.c.l.b16 %v52
  %v272 = vunpack.c.l.b16 %v53
  %v273 = vunpack.c.l.b16 %v54
  %v274 = vunpack.c.l.b16 %v55
  %v275 = vunpack.c.l.b16 %v56
  %v276 = vunpack.c.l.b16 %v57
  %v277 = vunpack.c.l.b16 %v58
  %v278 = vunpack.c.l.b16 %v59
  %v279 = vunpack.c.l.b16 %v60
  %v280 = vunpack.c.l.b16 %v61
  %v281 = vunpack.c.l.b16 %v62
  %v282 = vunpack.c.l.b16 %v63
  %v283 = vunpack.c.l.b16 %v64
  %v284 = vunpack.c.l.b16 %v65
  %v285 = vunpack.c.l.b16 %v66
  %v286 = vunpack.c.l.b16 %v67
  %v287 = vunpack.c.l.b16 %v68
  %v288 = vunpack.c.l.b16 %v69
  %v289 = vunpack.c.l.b16 %v70
  %v290 = vunpack.c.l.b16 %v71
  %v291 = vunpack.c.l.b16 %v72
  %v292 = vunpack.c.l.b16 %v73
  %v293 = vunpack.c.l.b16 %v74
  %v294 = vunpack.c.l.b16 %v75
  %v295 = vunpack.c.l.b16 %v76
  %v296 = vunpack.c.l.b16 %v77
  %v297 = vunpack.c.l.b16 %v78
  %v298 = vunpack.c.l.b16 %v79
  %v299 = vunpack.c.l.b16 %v80
  %v300 = vunpack.c.l.b16 %v81
  %v301 = vunpack.c.l.b16 %v82
  %v302 = vunpack.c.l.b16 %v83
  %v303 = vunpack.c.l.b16 %v84
  %v304 = vunpack.c.l.b16 %v85
  %v305 = vunpack.c.l.b16 %v86
  %v306 = vunpack.c.l.b16 %v87
  %v307 = vunpack.c.l.b16 %v88
  %v308 = vunpack.c.l.b16 %v89
  %v309 = vunpack.c.l.b16 %v90
  %v310 = vunpack.c.l.b16 %v91
  %v311 = vunpack.c.l.b16 %v92
  %v312 = vunpack.c.l.b16 %v93
  %v313 = vunpack.c.l.b16 %v94
  %v314 = vunpack.c.l.b16 %v95
  %v315 = vunpack.c.l.b16 %v96
  %v316 = vunpack.c.l.b16 %v97
  %v317 = vunpack.c.l.b16 %v98
  %v318 = vunpack.c.l.b16 %v99
  %v319 = vunpack.c.l.b16 %v100
  %v320 = vunpack.c.l.b16 %v101
  %v321 = vunpack.c.l.b16 %v102
  %v322 = vunpack.c.l.b16 %v103
  %v323 = vunpack.c.l.b16 %v104
  %v324 = vunpack.c.l.b16 %v105
  %v325 = vunpack.c.l.b16 %v106
  %v326 = vpack.c.b16 %v247, %v246
  %v327 = vpack.c.b16 %v249, %v248
  %v328 = vpack.c.b16 %v251, %v250
  %v329 = vpack.c.b16 %v253, %v252
  %v330 = vpack.c.b16 %v255, %v254
  %v331 = vpack.c.b16 %v257, %v256
  %v332 = vpack.c.b16 %v259, %v258
  %v333 = vpack.c.b16 %v261, %v260
  %v334 = vpack.c.b16 %v263, %v262
  %v335 = vpack.c.b16 %v265, %v264
  %v336 = vpack.c.b16 %v267, %v266
  %v337 = vpack.c.b16 %v269, %v268
  %v338 = vpack.c.b16 %v271, %v270
  %v339 = vpack.c.b16 %v273, %v272
  %v340 = vpack.c.b16 %v275, %v274
  %v341 = vpack.c.b16 %v277, %v276
  %v342 = vpack.c.b16 %v279, %v278
  %v343 = vpack.c.b16 %v281, %v280
  %v344 = vpack.c.b16 %v283, %v282
  %v345 = vpack.c.b16 %v285, %v284
  %v346 = vpack.c.b16 %v287, %v286
  %v347 = vpack.c.b16 %v289, %v288
  %v348 = vpack.c.b16 %v291, %v290
  %v349 = vpack.c.b16 %v293, %v292
  %v350 = vpack.c.b16 %v295, %v294
  %v351 = vpack.c.b16 %v297, %v296
  %v352 = vpack.c.b16 %v299, %v298
  %v353 = vpack.c.b16 %v301, %v300
  %v354 = vpack.c.b16 %v303, %v302
  %v355 = vpack.c.b16 %v305, %v304
  %v356 = vpack.c.b16 %v307, %v306
  %v357 = vpack.c.b16 %v309, %v308
  %v358 = vpack.c.b16 %v311, %v310
  %v359 = vpack.c.b16 %v313, %v312
  %v360 = vpack.c.b16 %v315, %v314
  %v361 = vpack.c.b16 %v317, %v316
  %v362 = vpack.c.b16 %v319, %v318
  %v363 = vpack.c.b16 %v321, %v320
  %v364 = vpack.c.b16 %v323, %v322
  %v365 = vpack.c.b16 %v325, %v324
  %406 = vmatprep.subr.bf16.mxu0 0
  %407 = vmatpush1.bf16.msra.mxu0 %v326
  %408 = vmatprep.subr.bf16.mxu0 0
  %409 = vmatpush1.bf16.msra.mxu0 %v327
  %410 = vmatprep.subr.bf16.mxu0 0
  %411 = vmatpush1.bf16.msra.mxu0 %v328
  %412 = vmatprep.subr.bf16.mxu0 0
  %413 = vmatpush1.bf16.msra.mxu0 %v329
  %414 = vmatprep.subr.bf16.mxu0 0
  %415 = vmatpush1.bf16.msra.mxu0 %v330
  %416 = vmatprep.subr.bf16.mxu0 0
  %417 = vmatpush1.bf16.msra.mxu0 %v331
  %418 = vmatprep.subr.bf16.mxu0 0
  %419 = vmatpush1.bf16.msra.mxu0 %v332
  %420 = vmatprep.subr.bf16.mxu0 0
  %421 = vmatpush1.bf16.msra.mxu0 %v333
  %422 = vmatprep.subr.bf16.mxu0 0
  %423 = vmatpush1.bf16.msra.mxu0 %v334
  %424 = vmatprep.subr.bf16.mxu0 0
  %425 = vmatpush1.bf16.msra.mxu0 %v335
  %426 = vmatprep.subr.bf16.mxu0 0
  %427 = vmatpush1.bf16.msra.mxu0 %v336
  %428 = vmatprep.subr.bf16.mxu0 0
  %429 = vmatpush1.bf16.msra.mxu0 %v337
  %430 = vmatprep.subr.bf16.mxu0 0
  %431 = vmatpush1.bf16.msra.mxu0 %v338
  %432 = vmatprep.subr.bf16.mxu0 0
  %433 = vmatpush1.bf16.msra.mxu0 %v339
  %434 = vmatprep.subr.bf16.mxu0 0
  %435 = vmatpush1.bf16.msra.mxu0 %v340
  %436 = vmatprep.subr.bf16.mxu0 0
  %437 = vmatpush1.bf16.msra.mxu0 %v341
  %438 = vmatprep.mubr.bf16.mxu0 %v147
  %439 = vmatmul.mubr.bf16.gmra.mrb[0].mxu0 %v146
  %v440 = vpop.f32.mrb[0].mxu0
  %v441 = vadd.f32 %v112, %v440
  %v442 = vpop.f32.mrb[0].mxu0
  %v443 = vpop.f32.mrb[0].mxu0
  %v444 = vadd.f32 %v112, %v443
  %v445 = vpop.f32.mrb[0].mxu0
  %446 = vmatprep.mubr.bf16.mxu0 %v152
  %447 = vmatmul.mubr.bf16.gmra.mrb[0].mxu0 %v151
  %v448 = vpop.f32.mrb[0].mxu0
  %v449 = vadd.f32 %v112, %v448
  %v450 = vpop.f32.mrb[0].mxu0
  %v451 = vpop.f32.mrb[0].mxu0
  %v452 = vadd.f32 %v112, %v451
  %v453 = vpop.f32.mrb[0].mxu0
  %454 = vdwg.mxu0
  %455 = vmatprep.subr.bf16.mxu0 0
  %456 = vmatpush1.bf16.msra.mxu0 %v342
  %457 = vmatprep.subr.bf16.mxu0 0
  %458 = vmatpush1.bf16.msra.mxu0 %v343
  %459 = vmatprep.subr.bf16.mxu0 0
  %460 = vmatpush1.bf16.msra.mxu0 %v344
  %461 = vmatprep.subr.bf16.mxu0 0
  %462 = vmatpush1.bf16.msra.mxu0 %v345
  %463 = vmatprep.subr.bf16.mxu0 0
  %464 = vmatpush1.bf16.msra.mxu0 %v346
  %465 = vmatprep.subr.bf16.mxu0 0
  %466 = vmatpush1.bf16.msra.mxu0 %v347
  %467 = vmatprep.subr.bf16.mxu0 0
  %468 = vmatpush1.bf16.msra.mxu0 %v348
  %469 = vmatprep.subr.bf16.mxu0 0
  %470 = vmatpush1.bf16.msra.mxu0 %v349
  %471 = vmatprep.subr.bf16.mxu0 0
  %472 = vmatpush1.bf16.msra.mxu0 %v350
  %473 = vmatprep.subr.bf16.mxu0 0
  %474 = vmatpush1.bf16.msra.mxu0 %v351
  %475 = vmatprep.subr.bf16.mxu0 0
  %476 = vmatpush1.bf16.msra.mxu0 %v352
  %477 = vmatprep.subr.bf16.mxu0 0
  %478 = vmatpush1.bf16.msra.mxu0 %v353
  %479 = vmatprep.subr.bf16.mxu0 0
  %480 = vmatpush1.bf16.msra.mxu0 %v354
  %481 = vmatprep.subr.bf16.mxu0 0
  %482 = vmatpush1.bf16.msra.mxu0 %v355
  %483 = vmatprep.subr.bf16.mxu0 0
  %484 = vmatpush1.bf16.msra.mxu0 %v356
  %485 = vmatprep.subr.bf16.mxu0 0
  %486 = vmatpush1.bf16.msra.mxu0 %v357
  %487 = vmatprep.mubr.bf16.mxu0 %v149
  %488 = vmatmul.mubr.bf16.gmra.mrb[0].mxu0 %v148
  %v489 = vpop.f32.mrb[0].mxu0
  %v490 = vadd.f32 %v441, %v489
  %v491 = vpop.f32.mrb[0].mxu0
  %v492 = vpop.f32.mrb[0].mxu0
  %v493 = vadd.f32 %v444, %v492
  %v494 = vpop.f32.mrb[0].mxu0
  %495 = vmatprep.mubr.bf16.mxu0 %v154
  %496 = vmatmul.mubr.bf16.gmra.mrb[0].mxu0 %v153
  %v497 = vpop.f32.mrb[0].mxu0
  %v498 = vadd.f32 %v449, %v497
  %v499 = vpop.f32.mrb[0].mxu0
  %v500 = vpop.f32.mrb[0].mxu0
  %v501 = vadd.f32 %v452, %v500
  %v502 = vpop.f32.mrb[0].mxu0
  %503 = vdwg.mxu0
  %504 = vmatprep.subr.bf16.mxu0 0
  %505 = vmatpush1.bf16.msra.mxu0 %v358
  %506 = vmatprep.subr.bf16.mxu0 0
  %507 = vmatpush1.bf16.msra.mxu0 %v359
  %508 = vmatprep.subr.bf16.mxu0 0
  %509 = vmatpush1.bf16.msra.mxu0 %v360
  %510 = vmatprep.subr.bf16.mxu0 0
  %511 = vmatpush1.bf16.msra.mxu0 %v361
  %512 = vmatprep.subr.bf16.mxu0 0
  %513 = vmatpush1.bf16.msra.mxu0 %v362
  %514 = vmatprep.subr.bf16.mxu0 0
  %515 = vmatpush1.bf16.msra.mxu0 %v363
  %516 = vmatprep.subr.bf16.mxu0 0
  %517 = vmatpush1.bf16.msra.mxu0 %v364
  %518 = vmatprep.subr.bf16.mxu0 0
  %519 = vmatpush1.bf16.msra.mxu0 %v365
  %520 = vmatprep.subr.bf16.mxu0 0
  %521 = vmatpush1.bf16.msra.mxu0 0
  %522 = vmatprep.subr.bf16.mxu0 0
  %523 = vmatpush1.bf16.msra.mxu0 0
  %524 = vmatprep.subr.bf16.mxu0 0
  %525 = vmatpush1.bf16.msra.mxu0 0
  %526 = vmatprep.subr.bf16.mxu0 0
  %527 = vmatpush1.bf16.msra.mxu0 0
  %528 = vmatprep.subr.bf16.mxu0 0
  %529 = vmatpush1.bf16.msra.mxu0 0
  %530 = vmatprep.subr.bf16.mxu0 0
  %531 = vmatpush1.bf16.msra.mxu0 0
  %532 = vmatprep.subr.bf16.mxu0 0
  %533 = vmatpush1.bf16.msra.mxu0 0
  %534 = vmatprep.subr.bf16.mxu0 0
  %535 = vmatpush1.bf16.msra.mxu0 0
  %536 = vmatprep.mubr.bf16.mxu0 0
  %537 = vmatmul.mubr.bf16.gmra.mrb[0].mxu0 %v150
  %v538 = vpop.f32.mrb[0].mxu0
  %v539 = vadd.f32 %v490, %v538
  %v540 = vpop.f32.mrb[0].mxu0
  %v541 = vpop.f32.mrb[0].mxu0
  %v542 = vadd.f32 %v493, %v541
  %v543 = vpop.f32.mrb[0].mxu0
  %544 = vmatprep.mubr.bf16.mxu0 0
  %545 = vmatmul.mubr.bf16.gmra.mrb[0].mxu0 %v155
  %v546 = vpop.f32.mrb[0].mxu0
  %v547 = vadd.f32 %v498, %v546
  %v548 = vpop.f32.mrb[0].mxu0
  %v549 = vpop.f32.mrb[0].mxu0
  %v550 = vadd.f32 %v501, %v549
  %v551 = vpop.f32.mrb[0].mxu0
  %552 = vdwg.mxu0
  %vm553 = vcmp.ge.f32.partialorder %v539, 0.0
  %vm554 = vcmp.ge.f32.partialorder %v542, 0.0
  %vm555 = vcmp.ge.f32.partialorder %v547, 0.0
  %vm556 = vcmp.ge.f32.partialorder %v550, 0.0
  %v557 = vmul.f32 %v539, 0.1
  %v558 = vmul.f32 %v542, 0.1
  %v559 = vmul.f32 %v547, 0.1
  %v560 = vmul.f32 %v550, 0.1
  %v561 = vsel %vm553, %v539, %v557
  %v562 = vsel %vm554, %v542, %v558
  %v563 = vsel %vm555, %v547, %v559
  %v564 = vsel %vm556, %v550, %v560
  %v565 = vpack.c.bf16 %v562, %v561
  %v566 = vpack.c.bf16 %v564, %v563
  %v569 = vunpack.c.l.b16 %v565
  %v570 = vunpack.c.h.b16 %v565
  %v571 = vunpack.c.l.b16 %v566
  %v572 = vunpack.c.h.b16 %v566
  %v573 = vpack.c.b16 %v569, %v569
  %v574 = vpack.c.b16 %v570, %v570
  %v575 = vpack.c.b16 %v571, %v571
  %v576 = vpack.c.b16 %v572, %v572
  %581 = vst [vmem:[%s3] sm:$0xf] %v573
  %582 = vst [vmem:[%s3 + $0x4] sm:$0xf] %v574
  %583 = vst [vmem:[%s3 + $0x8] sm:$0xf] %v575
  %584 = vst [vmem:[%s3 + $0xc] sm:$0xf] %v576
  // Predicated region
  $region14: #{_lambda_.33} parent=0 // pred_check
    _
  $region15: #{_lambda_.33} parent=0 // pred_check_branch
    %586 = sbr.rel (0) target = $region17
  $region16: #{_lambda_.33} parent=0 // pred_region
    _
  $region17: #{_lambda_.33} parent=0 // pred_fallthru
    _
  // Predicated region
  $region18: #{_lambda_.33} parent=0 // pred_check
    _
  $region19: #{_lambda_.33} parent=0 // pred_check_branch
    %588 = sbr.rel (0) target = $region21
  $region20: #{_lambda_.33} parent=0 // pred_region
    _
  $region21: #{_lambda_.33} parent=0 // pred_fallthru
    _

// kernel: _lambda_.34
$region0: #{_lambda_.34}
  #allocation0 [shape = 'u32[]', space=smem, size = 0x4, offset = 0x4, fixed_abs, tag = 'smem constant byte address 0x4 - core index']
  #allocation1 [shape = 'u32[144,128]{1,0:T(1,128)}', space=vmem, size = 0x12000, scoped, tag = 'internal scratch']
  %s0 = inlined_call_operand.vmem [shape: bf16[32,640], index: 0, kind: input, shape index: {}]
  %s1 = inlined_call_operand.vmem [shape: bf16[640,128], index: 1, kind: input, shape index: {}]
  %s2 = inlined_call_operand.vmem [shape: f32[1,128], index: 2, kind: input, shape index: {}]
  %s3 = inlined_call_operand.vmem [shape: bf16[32,128], index: 3, kind: output, shape index: {}]
  %s4 = sld [smem:[#allocation0]]
  $region22: #{_lambda_.34} parent=0
    _
  %s6 = ssub.s32 1, %s4
  %s7 = scalar_select 0, %s6, %s4
  // Predicated region
  $region2: #{_lambda_.34} parent=0 // pred_check
    _
  $region3: #{_lambda_.34} parent=0 // pred_check_branch
    %9 = sbr.rel (0) target = $region5
  $region4: #{_lambda_.34} parent=0 // pred_region
    _
  $region5: #{_lambda_.34} parent=0 // pred_fallthru
    _
  // Predicated region
  $region6: #{_lambda_.34} parent=0 // pred_check
    _
  $region7: #{_lambda_.34} parent=0 // pred_check_branch
    %11 = sbr.rel (0) target = $region9
  $region8: #{_lambda_.34} parent=0 // pred_region
    _
  $region9: #{_lambda_.34} parent=0 // pred_fallthru
    _
  // Predicated region
  $region10: #{_lambda_.34} parent=0 // pred_check
    _
  $region11: #{_lambda_.34} parent=0 // pred_check_branch
    %13 = sbr.rel (0) target = $region13
  $region12: #{_lambda_.34} parent=0 // pred_region
    _
  $region13: #{_lambda_.34} parent=0 // pred_fallthru
    _
  %v15 = vld [vmem:[%s0] sm:$0xff]
  %v16 = vld [vmem:[%s0 + $0x8] sm:$0xff]
  %v17 = vld [vmem:[%s0 + $0x10] sm:$0xf]
  %v18 = vld [vmem:[%s0 + $0x14] sm:$0xff]
  %v19 = vld [vmem:[%s0 + $0x1c] sm:$0xff]
  %v20 = vld [vmem:[%s0 + $0x24] sm:$0xf]
  %v21 = vld [vmem:[%s0 + $0x28] sm:$0xff]
  %v22 = vld [vmem:[%s0 + $0x30] sm:$0xff]
  %v23 = vld [vmem:[%s0 + $0x38] sm:$0xf]
  %v24 = vld [vmem:[%s0 + $0x3c] sm:$0xff]
  %v25 = vld [vmem:[%s0 + $0x44] sm:$0xff]
  %v26 = vld [vmem:[%s0 + $0x4c] sm:$0xf]
  %v27 = vld [vmem:[%s1] sm:$0xf]
  %v28 = vld [vmem:[%s1 + $0x4] sm:$0xf]
  %v29 = vld [vmem:[%s1 + $0x8] sm:$0xf]
  %v30 = vld [vmem:[%s1 + $0xc] sm:$0xf]
  %v31 = vld [vmem:[%s1 + $0x10] sm:$0xf]
  %v32 = vld [vmem:[%s1 + $0x14] sm:$0xf]
  %v33 = vld [vmem:[%s1 + $0x18] sm:$0xf]
  %v34 = vld [vmem:[%s1 + $0x1c] sm:$0xf]
  %v35 = vld [vmem:[%s1 + $0x20] sm:$0xf]
  %v36 = vld [vmem:[%s1 + $0x24] sm:$0xf]
  %v37 = vld [vmem:[%s1 + $0x28] sm:$0xf]
  %v38 = vld [vmem:[%s1 + $0x2c] sm:$0xf]
  %v39 = vld [vmem:[%s1 + $0x30] sm:$0xf]
  %v40 = vld [vmem:[%s1 + $0x34] sm:$0xf]
  %v41 = vld [vmem:[%s1 + $0x38] sm:$0xf]
  %v42 = vld [vmem:[%s1 + $0x3c] sm:$0xf]
  %v43 = vld [vmem:[%s1 + $0x40] sm:$0xf]
  %v44 = vld [vmem:[%s1 + $0x44] sm:$0xf]
  %v45 = vld [vmem:[%s1 + $0x48] sm:$0xf]
  %v46 = vld [vmem:[%s1 + $0x4c] sm:$0xf]
  %v47 = vld [vmem:[%s1 + $0x50] sm:$0xf]
  %v48 = vld [vmem:[%s1 + $0x54] sm:$0xf]
  %v49 = vld [vmem:[%s1 + $0x58] sm:$0xf]
  %v50 = vld [vmem:[%s1 + $0x5c] sm:$0xf]
  %v51 = vld [vmem:[%s1 + $0x60] sm:$0xf]
  %v52 = vld [vmem:[%s1 + $0x64] sm:$0xf]
  %v53 = vld [vmem:[%s1 + $0x68] sm:$0xf]
  %v54 = vld [vmem:[%s1 + $0x6c] sm:$0xf]
  %v55 = vld [vmem:[%s1 + $0x70] sm:$0xf]
  %v56 = vld [vmem:[%s1 + $0x74] sm:$0xf]
  %v57 = vld [vmem:[%s1 + $0x78] sm:$0xf]
  %v58 = vld [vmem:[%s1 + $0x7c] sm:$0xf]
  %v59 = vld [vmem:[%s1 + $0x80] sm:$0xf]
  %v60 = vld [vmem:[%s1 + $0x84] sm:$0xf]
  %v61 = vld [vmem:[%s1 + $0x88] sm:$0xf]
  %v62 = vld [vmem:[%s1 + $0x8c] sm:$0xf]
  %v63 = vld [vmem:[%s1 + $0x90] sm:$0xf]
  %v64 = vld [vmem:[%s1 + $0x94] sm:$0xf]
  %v65 = vld [vmem:[%s1 + $0x98] sm:$0xf]
  %v66 = vld [vmem:[%s1 + $0x9c] sm:$0xf]
  %v67 = vld [vmem:[%s1 + $0xa0] sm:$0xf]
  %v68 = vld [vmem:[%s1 + $0xa4] sm:$0xf]
  %v69 = vld [vmem:[%s1 + $0xa8] sm:$0xf]
  %v70 = vld [vmem:[%s1 + $0xac] sm:$0xf]
  %v71 = vld [vmem:[%s1 + $0xb0] sm:$0xf]
  %v72 = vld [vmem:[%s1 + $0xb4] sm:$0xf]
  %v73 = vld [vmem:[%s1 + $0xb8] sm:$0xf]
  %v74 = vld [vmem:[%s1 + $0xbc] sm:$0xf]
  %v75 = vld [vmem:[%s1 + $0xc0] sm:$0xf]
  %v76 = vld [vmem:[%s1 + $0xc4] sm:$0xf]
  %v77 = vld [vmem:[%s1 + $0xc8] sm:$0xf]
  %v78 = vld [vmem:[%s1 + $0xcc] sm:$0xf]
  %v79 = vld [vmem:[%s1 + $0xd0] sm:$0xf]
  %v80 = vld [vmem:[%s1 + $0xd4] sm:$0xf]
  %v81 = vld [vmem:[%s1 + $0xd8] sm:$0xf]
  %v82 = vld [vmem:[%s1 + $0xdc] sm:$0xf]
  %v83 = vld [vmem:[%s1 + $0xe0] sm:$0xf]
  %v84 = vld [vmem:[%s1 + $0xe4] sm:$0xf]
  %v85 = vld [vmem:[%s1 + $0xe8] sm:$0xf]
  %v86 = vld [vmem:[%s1 + $0xec] sm:$0xf]
  %v87 = vld [vmem:[%s1 + $0xf0] sm:$0xf]
  %v88 = vld [vmem:[%s1 + $0xf4] sm:$0xf]
  %v89 = vld [vmem:[%s1 + $0xf8] sm:$0xf]
  %v90 = vld [vmem:[%s1 + $0xfc] sm:$0xf]
  %v91 = vld [vmem:[%s1 + $0x100] sm:$0xf]
  %v92 = vld [vmem:[%s1 + $0x104] sm:$0xf]
  %v93 = vld [vmem:[%s1 + $0x108] sm:$0xf]
  %v94 = vld [vmem:[%s1 + $0x10c] sm:$0xf]
  %v95 = vld [vmem:[%s1 + $0x110] sm:$0xf]
  %v96 = vld [vmem:[%s1 + $0x114] sm:$0xf]
  %v97 = vld [vmem:[%s1 + $0x118] sm:$0xf]
  %v98 = vld [vmem:[%s1 + $0x11c] sm:$0xf]
  %v99 = vld [vmem:[%s1 + $0x120] sm:$0xf]
  %v100 = vld [vmem:[%s1 + $0x124] sm:$0xf]
  %v101 = vld [vmem:[%s1 + $0x128] sm:$0xf]
  %v102 = vld [vmem:[%s1 + $0x12c] sm:$0xf]
  %v103 = vld [vmem:[%s1 + $0x130] sm:$0xf]
  %v104 = vld [vmem:[%s1 + $0x134] sm:$0xf]
  %v105 = vld [vmem:[%s1 + $0x138] sm:$0xf]
  %v106 = vld [vmem:[%s1 + $0x13c] sm:$0xf]
  %v107 = vld [vmem:[%s2] sm:$0x1]
  %v109 = vlaneseq
  %v110 = vshrl.u32 %v109, 7
  %v111 = vsub.s32 0, %v110
  %v112 = vrot.slane %v107, %v111
  %v126 = vunpack.c.l.b16 %v15
  %v127 = vunpack.c.h.b16 %v15
  %v128 = vunpack.c.l.b16 %v16
  %v129 = vunpack.c.h.b16 %v16
  %v130 = vunpack.c.l.b16 %v17
  %v131 = vunpack.c.l.b16 %v18
  %v132 = vunpack.c.h.b16 %v18
  %v133 = vunpack.c.l.b16 %v19
  %v134 = vunpack.c.h.b16 %v19
  %v135 = vunpack.c.l.b16 %v20
  %v136 = vunpack.c.l.b16 %v21
  %v137 = vunpack.c.h.b16 %v21
  %v138 = vunpack.c.l.b16 %v22
  %v139 = vunpack.c.h.b16 %v22
  %v140 = vunpack.c.l.b16 %v23
  %v141 = vunpack.c.l.b16 %v24
  %v142 = vunpack.c.h.b16 %v24
  %v143 = vunpack.c.l.b16 %v25
  %v144 = vunpack.c.h.b16 %v25
  %v145 = vunpack.c.l.b16 %v26
  %v146 = vpack.c.b16 %v131, %v126
  %v147 = vpack.c.b16 %v132, %v127
  %v148 = vpack.c.b16 %v133, %v128
  %v149 = vpack.c.b16 %v134, %v129
  %v150 = vpack.c.b16 %v135, %v130
  %v151 = vpack.c.b16 %v141, %v136
  %v152 = vpack.c.b16 %v142, %v137
  %v153 = vpack.c.b16 %v143, %v138
  %v154 = vpack.c.b16 %v144, %v139
  %v155 = vpack.c.b16 %v145, %v140
  %v246 = vunpack.c.l.b16 %v27
  %v247 = vunpack.c.l.b16 %v28
  %v248 = vunpack.c.l.b16 %v29
  %v249 = vunpack.c.l.b16 %v30
  %v250 = vunpack.c.l.b16 %v31
  %v251 = vunpack.c.l.b16 %v32
  %v252 = vunpack.c.l.b16 %v33
  %v253 = vunpack.c.l.b16 %v34
  %v254 = vunpack.c.l.b16 %v35
  %v255 = vunpack.c.l.b16 %v36
  %v256 = vunpack.c.l.b16 %v37
  %v257 = vunpack.c.l.b16 %v38
  %v258 = vunpack.c.l.b16 %v39
  %v259 = vunpack.c.l.b16 %v40
  %v260 = vunpack.c.l.b16 %v41
  %v261 = vunpack.c.l.b16 %v42
  %v262 = vunpack.c.l.b16 %v43
  %v263 = vunpack.c.l.b16 %v44
  %v264 = vunpack.c.l.b16 %v45
  %v265 = vunpack.c.l.b16 %v46
  %v266 = vunpack.c.l.b16 %v47
  %v267 = vunpack.c.l.b16 %v48
  %v268 = vunpack.c.l.b16 %v49
  %v269 = vunpack.c.l.b16 %v50
  %v270 = vunpack.c.l.b16 %v51
  %v271 = vunpack.c.l.b16 %v52
  %v272 = vunpack.c.l.b16 %v53
  %v273 = vunpack.c.l.b16 %v54
  %v274 = vunpack.c.l.b16 %v55
  %v275 = vunpack.c.l.b16 %v56
  %v276 = vunpack.c.l.b16 %v57
  %v277 = vunpack.c.l.b16 %v58
  %v278 = vunpack.c.l.b16 %v59
  %v279 = vunpack.c.l.b16 %v60
  %v280 = vunpack.c.l.b16 %v61
  %v281 = vunpack.c.l.b16 %v62
  %v282 = vunpack.c.l.b16 %v63
  %v283 = vunpack.c.l.b16 %v64
  %v284 = vunpack.c.l.b16 %v65
  %v285 = vunpack.c.l.b16 %v66
  %v286 = vunpack.c.l.b16 %v67
  %v287 = vunpack.c.l.b16 %v68
  %v288 = vunpack.c.l.b16 %v69
  %v289 = vunpack.c.l.b16 %v70
  %v290 = vunpack.c.l.b16 %v71
  %v291 = vunpack.c.l.b16 %v72
  %v292 = vunpack.c.l.b16 %v73
  %v293 = vunpack.c.l.b16 %v74
  %v294 = vunpack.c.l.b16 %v75
  %v295 = vunpack.c.l.b16 %v76
  %v296 = vunpack.c.l.b16 %v77
  %v297 = vunpack.c.l.b16 %v78
  %v298 = vunpack.c.l.b16 %v79
  %v299 = vunpack.c.l.b16 %v80
  %v300 = vunpack.c.l.b16 %v81
  %v301 = vunpack.c.l.b16 %v82
  %v302 = vunpack.c.l.b16 %v83
  %v303 = vunpack.c.l.b16 %v84
  %v304 = vunpack.c.l.b16 %v85
  %v305 = vunpack.c.l.b16 %v86
  %v306 = vunpack.c.l.b16 %v87
  %v307 = vunpack.c.l.b16 %v88
  %v308 = vunpack.c.l.b16 %v89
  %v309 = vunpack.c.l.b16 %v90
  %v310 = vunpack.c.l.b16 %v91
  %v311 = vunpack.c.l.b16 %v92
  %v312 = vunpack.c.l.b16 %v93
  %v313 = vunpack.c.l.b16 %v94
  %v314 = vunpack.c.l.b16 %v95
  %v315 = vunpack.c.l.b16 %v96
  %v316 = vunpack.c.l.b16 %v97
  %v317 = vunpack.c.l.b16 %v98
  %v318 = vunpack.c.l.b16 %v99
  %v319 = vunpack.c.l.b16 %v100
  %v320 = vunpack.c.l.b16 %v101
  %v321 = vunpack.c.l.b16 %v102
  %v322 = vunpack.c.l.b16 %v103
  %v323 = vunpack.c.l.b16 %v104
  %v324 = vunpack.c.l.b16 %v105
  %v325 = vunpack.c.l.b16 %v106
  %v326 = vpack.c.b16 %v247, %v246
  %v327 = vpack.c.b16 %v249, %v248
  %v328 = vpack.c.b16 %v251, %v250
  %v329 = vpack.c.b16 %v253, %v252
  %v330 = vpack.c.b16 %v255, %v254
  %v331 = vpack.c.b16 %v257, %v256
  %v332 = vpack.c.b16 %v259, %v258
  %v333 = vpack.c.b16 %v261, %v260
  %v334 = vpack.c.b16 %v263, %v262
  %v335 = vpack.c.b16 %v265, %v264
  %v336 = vpack.c.b16 %v267, %v266
  %v337 = vpack.c.b16 %v269, %v268
  %v338 = vpack.c.b16 %v271, %v270
  %v339 = vpack.c.b16 %v273, %v272
  %v340 = vpack.c.b16 %v275, %v274
  %v341 = vpack.c.b16 %v277, %v276
  %v342 = vpack.c.b16 %v279, %v278
  %v343 = vpack.c.b16 %v281, %v280
  %v344 = vpack.c.b16 %v283, %v282
  %v345 = vpack.c.b16 %v285, %v284
  %v346 = vpack.c.b16 %v287, %v286
  %v347 = vpack.c.b16 %v289, %v288
  %v348 = vpack.c.b16 %v291, %v290
  %v349 = vpack.c.b16 %v293, %v292
  %v350 = vpack.c.b16 %v295, %v294
  %v351 = vpack.c.b16 %v297, %v296
  %v352 = vpack.c.b16 %v299, %v298
  %v353 = vpack.c.b16 %v301, %v300
  %v354 = vpack.c.b16 %v303, %v302
  %v355 = vpack.c.b16 %v305, %v304
  %v356 = vpack.c.b16 %v307, %v306
  %v357 = vpack.c.b16 %v309, %v308
  %v358 = vpack.c.b16 %v311, %v310
  %v359 = vpack.c.b16 %v313, %v312
  %v360 = vpack.c.b16 %v315, %v314
  %v361 = vpack.c.b16 %v317, %v316
  %v362 = vpack.c.b16 %v319, %v318
  %v363 = vpack.c.b16 %v321, %v320
  %v364 = vpack.c.b16 %v323, %v322
  %v365 = vpack.c.b16 %v325, %v324
  %406 = vmatprep.subr.bf16.mxu0 0
  %407 = vmatpush1.bf16.msra.mxu0 %v326
  %408 = vmatprep.subr.bf16.mxu0 0
  %409 = vmatpush1.bf16.msra.mxu0 %v327
  %410 = vmatprep.subr.bf16.mxu0 0
  %411 = vmatpush1.bf16.msra.mxu0 %v328
  %412 = vmatprep.subr.bf16.mxu0 0
  %413 = vmatpush1.bf16.msra.mxu0 %v329
  %414 = vmatprep.subr.bf16.mxu0 0
  %415 = vmatpush1.bf16.msra.mxu0 %v330
  %416 = vmatprep.subr.bf16.mxu0 0
  %417 = vmatpush1.bf16.msra.mxu0 %v331
  %418 = vmatprep.subr.bf16.mxu0 0
  %419 = vmatpush1.bf16.msra.mxu0 %v332
  %420 = vmatprep.subr.bf16.mxu0 0
  %421 = vmatpush1.bf16.msra.mxu0 %v333
  %422 = vmatprep.subr.bf16.mxu0 0
  %423 = vmatpush1.bf16.msra.mxu0 %v334
  %424 = vmatprep.subr.bf16.mxu0 0
  %425 = vmatpush1.bf16.msra.mxu0 %v335
  %426 = vmatprep.subr.bf16.mxu0 0
  %427 = vmatpush1.bf16.msra.mxu0 %v336
  %428 = vmatprep.subr.bf16.mxu0 0
  %429 = vmatpush1.bf16.msra.mxu0 %v337
  %430 = vmatprep.subr.bf16.mxu0 0
  %431 = vmatpush1.bf16.msra.mxu0 %v338
  %432 = vmatprep.subr.bf16.mxu0 0
  %433 = vmatpush1.bf16.msra.mxu0 %v339
  %434 = vmatprep.subr.bf16.mxu0 0
  %435 = vmatpush1.bf16.msra.mxu0 %v340
  %436 = vmatprep.subr.bf16.mxu0 0
  %437 = vmatpush1.bf16.msra.mxu0 %v341
  %438 = vmatprep.mubr.bf16.mxu0 %v147
  %439 = vmatmul.mubr.bf16.gmra.mrb[0].mxu0 %v146
  %v440 = vpop.f32.mrb[0].mxu0
  %v441 = vadd.f32 %v112, %v440
  %v442 = vpop.f32.mrb[0].mxu0
  %v443 = vpop.f32.mrb[0].mxu0
  %v444 = vadd.f32 %v112, %v443
  %v445 = vpop.f32.mrb[0].mxu0
  %446 = vmatprep.mubr.bf16.mxu0 %v152
  %447 = vmatmul.mubr.bf16.gmra.mrb[0].mxu0 %v151
  %v448 = vpop.f32.mrb[0].mxu0
  %v449 = vadd.f32 %v112, %v448
  %v450 = vpop.f32.mrb[0].mxu0
  %v451 = vpop.f32.mrb[0].mxu0
  %v452 = vadd.f32 %v112, %v451
  %v453 = vpop.f32.mrb[0].mxu0
  %454 = vdwg.mxu0
  %455 = vmatprep.subr.bf16.mxu0 0
  %456 = vmatpush1.bf16.msra.mxu0 %v342
  %457 = vmatprep.subr.bf16.mxu0 0
  %458 = vmatpush1.bf16.msra.mxu0 %v343
  %459 = vmatprep.subr.bf16.mxu0 0
  %460 = vmatpush1.bf16.msra.mxu0 %v344
  %461 = vmatprep.subr.bf16.mxu0 0
  %462 = vmatpush1.bf16.msra.mxu0 %v345
  %463 = vmatprep.subr.bf16.mxu0 0
  %464 = vmatpush1.bf16.msra.mxu0 %v346
  %465 = vmatprep.subr.bf16.mxu0 0
  %466 = vmatpush1.bf16.msra.mxu0 %v347
  %467 = vmatprep.subr.bf16.mxu0 0
  %468 = vmatpush1.bf16.msra.mxu0 %v348
  %469 = vmatprep.subr.bf16.mxu0 0
  %470 = vmatpush1.bf16.msra.mxu0 %v349
  %471 = vmatprep.subr.bf16.mxu0 0
  %472 = vmatpush1.bf16.msra.mxu0 %v350
  %473 = vmatprep.subr.bf16.mxu0 0
  %474 = vmatpush1.bf16.msra.mxu0 %v351
  %475 = vmatprep.subr.bf16.mxu0 0
  %476 = vmatpush1.bf16.msra.mxu0 %v352
  %477 = vmatprep.subr.bf16.mxu0 0
  %478 = vmatpush1.bf16.msra.mxu0 %v353
  %479 = vmatprep.subr.bf16.mxu0 0
  %480 = vmatpush1.bf16.msra.mxu0 %v354
  %481 = vmatprep.subr.bf16.mxu0 0
  %482 = vmatpush1.bf16.msra.mxu0 %v355
  %483 = vmatprep.subr.bf16.mxu0 0
  %484 = vmatpush1.bf16.msra.mxu0 %v356
  %485 = vmatprep.subr.bf16.mxu0 0
  %486 = vmatpush1.bf16.msra.mxu0 %v357
  %487 = vmatprep.mubr.bf16.mxu0 %v149
  %488 = vmatmul.mubr.bf16.gmra.mrb[0].mxu0 %v148
  %v489 = vpop.f32.mrb[0].mxu0
  %v490 = vadd.f32 %v441, %v489
  %v491 = vpop.f32.mrb[0].mxu0
  %v492 = vpop.f32.mrb[0].mxu0
  %v493 = vadd.f32 %v444, %v492
  %v494 = vpop.f32.mrb[0].mxu0
  %495 = vmatprep.mubr.bf16.mxu0 %v154
  %496 = vmatmul.mubr.bf16.gmra.mrb[0].mxu0 %v153
  %v497 = vpop.f32.mrb[0].mxu0
  %v498 = vadd.f32 %v449, %v497
  %v499 = vpop.f32.mrb[0].mxu0
  %v500 = vpop.f32.mrb[0].mxu0
  %v501 = vadd.f32 %v452, %v500
  %v502 = vpop.f32.mrb[0].mxu0
  %503 = vdwg.mxu0
  %504 = vmatprep.subr.bf16.mxu0 0
  %505 = vmatpush1.bf16.msra.mxu0 %v358
  %506 = vmatprep.subr.bf16.mxu0 0
  %507 = vmatpush1.bf16.msra.mxu0 %v359
  %508 = vmatprep.subr.bf16.mxu0 0
  %509 = vmatpush1.bf16.msra.mxu0 %v360
  %510 = vmatprep.subr.bf16.mxu0 0
  %511 = vmatpush1.bf16.msra.mxu0 %v361
  %512 = vmatprep.subr.bf16.mxu0 0
  %513 = vmatpush1.bf16.msra.mxu0 %v362
  %514 = vmatprep.subr.bf16.mxu0 0
  %515 = vmatpush1.bf16.msra.mxu0 %v363
  %516 = vmatprep.subr.bf16.mxu0 0
  %517 = vmatpush1.bf16.msra.mxu0 %v364
  %518 = vmatprep.subr.bf16.mxu0 0
  %519 = vmatpush1.bf16.msra.mxu0 %v365
  %520 = vmatprep.subr.bf16.mxu0 0
  %521 = vmatpush1.bf16.msra.mxu0 0
  %522 = vmatprep.subr.bf16.mxu0 0
  %523 = vmatpush1.bf16.msra.mxu0 0
  %524 = vmatprep.subr.bf16.mxu0 0
  %525 = vmatpush1.bf16.msra.mxu0 0
  %526 = vmatprep.subr.bf16.mxu0 0
  %527 = vmatpush1.bf16.msra.mxu0 0
  %528 = vmatprep.subr.bf16.mxu0 0
  %529 = vmatpush1.bf16.msra.mxu0 0
  %530 = vmatprep.subr.bf16.mxu0 0
  %531 = vmatpush1.bf16.msra.mxu0 0
  %532 = vmatprep.subr.bf16.mxu0 0
  %533 = vmatpush1.bf16.msra.mxu0 0
  %534 = vmatprep.subr.bf16.mxu0 0
  %535 = vmatpush1.bf16.msra.mxu0 0
  %536 = vmatprep.mubr.bf16.mxu0 0
  %537 = vmatmul.mubr.bf16.gmra.mrb[0].mxu0 %v150
  %v538 = vpop.f32.mrb[0].mxu0
  %v539 = vadd.f32 %v490, %v538
  %v540 = vpop.f32.mrb[0].mxu0
  %v541 = vpop.f32.mrb[0].mxu0
  %v542 = vadd.f32 %v493, %v541
  %v543 = vpop.f32.mrb[0].mxu0
  %544 = vmatprep.mubr.bf16.mxu0 0
  %545 = vmatmul.mubr.bf16.gmra.mrb[0].mxu0 %v155
  %v546 = vpop.f32.mrb[0].mxu0
  %v547 = vadd.f32 %v498, %v546
  %v548 = vpop.f32.mrb[0].mxu0
  %v549 = vpop.f32.mrb[0].mxu0
  %v550 = vadd.f32 %v501, %v549
  %v551 = vpop.f32.mrb[0].mxu0
  %552 = vdwg.mxu0
  %v553 = vpack.c.bf16 %v542, %v539
  %v554 = vpack.c.bf16 %v550, %v547
  %v557 = vunpack.c.l.b16 %v553
  %v558 = vunpack.c.h.b16 %v553
  %v559 = vunpack.c.l.b16 %v554
  %v560 = vunpack.c.h.b16 %v554
  %v561 = vpack.c.b16 %v557, %v557
  %v562 = vpack.c.b16 %v558, %v558
  %v563 = vpack.c.b16 %v559, %v559
  %v564 = vpack.c.b16 %v560, %v560
  %569 = vst [vmem:[%s3] sm:$0xf] %v561
  %570 = vst [vmem:[%s3 + $0x4] sm:$0xf] %v562
  %571 = vst [vmem:[%s3 + $0x8] sm:$0xf] %v563
  %572 = vst [vmem:[%s3 + $0xc] sm:$0xf] %v564
  // Predicated region
  $region14: #{_lambda_.34} parent=0 // pred_check
    _
  $region15: #{_lambda_.34} parent=0 // pred_check_branch
    %574 = sbr.rel (0) target = $region17
  $region16: #{_lambda_.34} parent=0 // pred_region
    _
  $region17: #{_lambda_.34} parent=0 // pred_fallthru
    _
  // Predicated region
  $region18: #{_lambda_.34} parent=0 // pred_check
    _
  $region19: #{_lambda_.34} parent=0 // pred_check_branch
    %576 = sbr.rel (0) target = $region21
  $region20: #{_lambda_.34} parent=0 // pred_region
    _
  $region21: #{_lambda_.34} parent=0 // pred_fallthru
    _

// kernel: _lambda_.23
$region0: #{_lambda_.23}
  #allocation0 [shape = 'u32[]', space=smem, size = 0x4, offset = 0x4, fixed_abs, tag = 'smem constant byte address 0x4 - core index']
  #allocation1 [shape = 'u32[144,128]{1,0:T(1,128)}', space=vmem, size = 0x12000, scoped, tag = 'internal scratch']
  %s0 = inlined_call_operand.vmem [shape: bf16[336,1024], index: 0, kind: input, shape index: {}]
  %s1 = inlined_call_operand.vmem [shape: bf16[1024,128], index: 1, kind: input, shape index: {}]
  %s2 = inlined_call_operand.vmem [shape: f32[1,128], index: 2, kind: input, shape index: {}]
  %s3 = inlined_call_operand.vmem [shape: bf16[336,128], index: 3, kind: output, shape index: {}]
  %s4 = sld [smem:[#allocation0]]
  $region22: #{_lambda_.23} parent=0
    _
  %s6 = ssub.s32 1, %s4
  %s7 = scalar_select 0, %s6, %s4
  // Predicated region
  $region2: #{_lambda_.23} parent=0 // pred_check
    _
  $region3: #{_lambda_.23} parent=0 // pred_check_branch
    %9 = sbr.rel (0) target = $region5
  $region4: #{_lambda_.23} parent=0 // pred_region
    _
  $region5: #{_lambda_.23} parent=0 // pred_fallthru
    _
  // Predicated region
  $region6: #{_lambda_.23} parent=0 // pred_check
    _
  $region7: #{_lambda_.23} parent=0 // pred_check_branch
    %11 = sbr.rel (0) target = $region9
  $region8: #{_lambda_.23} parent=0 // pred_region
    _
  $region9: #{_lambda_.23} parent=0 // pred_fallthru
    _
  // Predicated region
  $region10: #{_lambda_.23} parent=0 // pred_check
    _
  $region11: #{_lambda_.23} parent=0 // pred_check_branch
    %13 = sbr.rel (0) target = $region13
  $region12: #{_lambda_.23} parent=0 // pred_region
    _
  $region13: #{_lambda_.23} parent=0 // pred_fallthru
    _
  %v15 = vld [vmem:[%s0] sm:$0xff]
  %v16 = vld [vmem:[%s0 + $0x8] sm:$0xff]
  %v17 = vld [vmem:[%s0 + $0x10] sm:$0xff]
  %v18 = vld [vmem:[%s0 + $0x18] sm:$0xff]
  %v19 = vld [vmem:[%s0 + $0x20] sm:$0xff]
  %v20 = vld [vmem:[%s0 + $0x28] sm:$0xff]
  %v21 = vld [vmem:[%s0 + $0x30] sm:$0xff]
  %v22 = vld [vmem:[%s0 + $0x38] sm:$0xff]
  %v23 = vld [vmem:[%s0 + $0x40] sm:$0xff]
  %v24 = vld [vmem:[%s0 + $0x48] sm:$0xff]
  %v25 = vld [vmem:[%s0 + $0x50] sm:$0xff]
  %v26 = vld [vmem:[%s0 + $0x58] sm:$0xff]
  %v27 = vld [vmem:[%s0 + $0x60] sm:$0xff]
  %v28 = vld [vmem:[%s0 + $0x68] sm:$0xff]
  %v29 = vld [vmem:[%s0 + $0x70] sm:$0xff]
  %v30 = vld [vmem:[%s0 + $0x78] sm:$0xff]
  %v31 = vld [vmem:[%s0 + $0x80] sm:$0xff]
  %v32 = vld [vmem:[%s0 + $0x88] sm:$0xff]
  %v33 = vld [vmem:[%s0 + $0x90] sm:$0xff]
  %v34 = vld [vmem:[%s0 + $0x98] sm:$0xff]
  %v35 = vld [vmem:[%s0 + $0xa0] sm:$0xff]
  %v36 = vld [vmem:[%s0 + $0xa8] sm:$0xff]
  %v37 = vld [vmem:[%s0 + $0xb0] sm:$0xff]
  %v38 = vld [vmem:[%s0 + $0xb8] sm:$0xff]
  %v39 = vld [vmem:[%s0 + $0xc0] sm:$0xff]
  %v40 = vld [vmem:[%s0 + $0xc8] sm:$0xff]
  %v41 = vld [vmem:[%s0 + $0xd0] sm:$0xff]
  %v42 = vld [vmem:[%s0 + $0xd8] sm:$0xff]
  %v43 = vld [vmem:[%s0 + $0xe0] sm:$0xff]
  %v44 = vld [vmem:[%s0 + $0xe8] sm:$0xff]
  %v45 = vld [vmem:[%s0 + $0xf0] sm:$0xff]
  %v46 = vld [vmem:[%s0 + $0xf8] sm:$0xff]
  %v47 = vld [vmem:[%s0 + $0x100] sm:$0xff]
  %v48 = vld [vmem:[%s0 + $0x108] sm:$0xff]
  %v49 = vld [vmem:[%s0 + $0x110] sm:$0xff]
  %v50 = vld [vmem:[%s0 + $0x118] sm:$0xff]
  %v51 = vld [vmem:[%s0 + $0x120] sm:$0xff]
  %v52 = vld [vmem:[%s0 + $0x128] sm:$0xff]
  %v53 = vld [vmem:[%s0 + $0x130] sm:$0xff]
  %v54 = vld [vmem:[%s0 + $0x138] sm:$0xff]
  %v55 = vld [vmem:[%s0 + $0x140] sm:$0xff]
  %v56 = vld [vmem:[%s0 + $0x148] sm:$0xff]
  %v57 = vld [vmem:[%s0 + $0x150] sm:$0xff]
  %v58 = vld [vmem:[%s0 + $0x158] sm:$0xff]
  %v59 = vld [vmem:[%s0 + $0x160] sm:$0xff]
  %v60 = vld [vmem:[%s0 + $0x168] sm:$0xff]
  %v61 = vld [vmem:[%s0 + $0x170] sm:$0xff]
  %v62 = vld [vmem:[%s0 + $0x178] sm:$0xff]
  %v63 = vld [vmem:[%s0 + $0x180] sm:$0xff]
  %v64 = vld [vmem:[%s0 + $0x188] sm:$0xff]
  %v65 = vld [vmem:[%s0 + $0x190] sm:$0xff]
  %v66 = vld [vmem:[%s0 + $0x198] sm:$0xff]
  %v67 = vld [vmem:[%s0 + $0x1a0] sm:$0xff]
  %v68 = vld [vmem:[%s0 + $0x1a8] sm:$0xff]
  %v69 = vld [vmem:[%s0 + $0x1b0] sm:$0xff]
  %v70 = vld [vmem:[%s0 + $0x1b8] sm:$0xff]
  %v71 = vld [vmem:[%s0 + $0x1c0] sm:$0xff]
  %v72 = vld [vmem:[%s0 + $0x1c8] sm:$0xff]
  %v73 = vld [vmem:[%s0 + $0x1d0] sm:$0xff]
  %v74 = vld [vmem:[%s0 + $0x1d8] sm:$0xff]
  %v75 = vld [vmem:[%s0 + $0x1e0] sm:$0xff]
  %v76 = vld [vmem:[%s0 + $0x1e8] sm:$0xff]
  %v77 = vld [vmem:[%s0 + $0x1f0] sm:$0xff]
  %v78 = vld [vmem:[%s0 + $0x1f8] sm:$0xff]
  %v79 = vld [vmem:[%s0 + $0x200] sm:$0xff]
  %v80 = vld [vmem:[%s0 + $0x208] sm:$0xff]
  %v81 = vld [vmem:[%s0 + $0x210] sm:$0xff]
  %v82 = vld [vmem:[%s0 + $0x218] sm:$0xff]
  %v83 = vld [vmem:[%s0 + $0x220] sm:$0xff]
  %v84 = vld [vmem:[%s0 + $0x228] sm:$0xff]
  %v85 = vld [vmem:[%s0 + $0x230] sm:$0xff]
  %v86 = vld [vmem:[%s0 + $0x238] sm:$0xff]
  %v87 = vld [vmem:[%s0 + $0x240] sm:$0xff]
  %v88 = vld [vmem:[%s0 + $0x248] sm:$0xff]
  %v89 = vld [vmem:[%s0 + $0x250] sm:$0xff]
  %v90 = vld [vmem:[%s0 + $0x258] sm:$0xff]
  %v91 = vld [vmem:[%s0 + $0x260] sm:$0xff]
  %v92 = vld [vmem:[%s0 + $0x268] sm:$0xff]
  %v93 = vld [vmem:[%s0 + $0x270] sm:$0xff]
  %v94 = vld [vmem:[%s0 + $0x278] sm:$0xff]
  %v95 = vld [vmem:[%s0 + $0x280] sm:$0xff]
  %v96 = vld [vmem:[%s0 + $0x288] sm:$0xff]
  %v97 = vld [vmem:[%s0 + $0x290] sm:$0xff]
  %v98 = vld [vmem:[%s0 + $0x298] sm:$0xff]
  %v99 = vld [vmem:[%s0 + $0x2a0] sm:$0xff]
  %v100 = vld [vmem:[%s0 + $0x2a8] sm:$0xff]
  %v101 = vld [vmem:[%s0 + $0x2b0] sm:$0xff]
  %v102 = vld [vmem:[%s0 + $0x2b8] sm:$0xff]
  %v103 = vld [vmem:[%s0 + $0x2c0] sm:$0xff]
  %v104 = vld [vmem:[%s0 + $0x2c8] sm:$0xff]
  %v105 = vld [vmem:[%s0 + $0x2d0] sm:$0xff]
  %v106 = vld [vmem:[%s0 + $0x2d8] sm:$0xff]
  %v107 = vld [vmem:[%s0 + $0x2e0] sm:$0xff]
  %v108 = vld [vmem:[%s0 + $0x2e8] sm:$0xff]
  %v109 = vld [vmem:[%s0 + $0x2f0] sm:$0xff]
  %v110 = vld [vmem:[%s0 + $0x2f8] sm:$0xff]
  %v111 = vld [vmem:[%s0 + $0x300] sm:$0xff]
  %v112 = vld [vmem:[%s0 + $0x308] sm:$0xff]
  %v113 = vld [vmem:[%s0 + $0x310] sm:$0xff]
  %v114 = vld [vmem:[%s0 + $0x318] sm:$0xff]
  %v115 = vld [vmem:[%s0 + $0x320] sm:$0xff]
  %v116 = vld [vmem:[%s0 + $0x328] sm:$0xff]
  %v117 = vld [vmem:[%s0 + $0x330] sm:$0xff]
  %v118 = vld [vmem:[%s0 + $0x338] sm:$0xff]
  %v119 = vld [vmem:[%s0 + $0x340] sm:$0xff]
  %v120 = vld [vmem:[%s0 + $0x348] sm:$0xff]
  %v121 = vld [vmem:[%s0 + $0x350] sm:$0xff]
  %v122 = vld [vmem:[%s0 + $0x358] sm:$0xff]
  %v123 = vld [vmem:[%s0 + $0x360] sm:$0xff]
  %v124 = vld [vmem:[%s0 + $0x368] sm:$0xff]
  %v125 = vld [vmem:[%s0 + $0x370] sm:$0xff]
  %v126 = vld [vmem:[%s0 + $0x378] sm:$0xff]
  %v127 = vld [vmem:[%s0 + $0x380] sm:$0xff]
  %v128 = vld [vmem:[%s0 + $0x388] sm:$0xff]
  %v129 = vld [vmem:[%s0 + $0x390] sm:$0xff]
  %v130 = vld [vmem:[%s0 + $0x398] sm:$0xff]
  %v131 = vld [vmem:[%s0 + $0x3a0] sm:$0xff]
  %v132 = vld [vmem:[%s0 + $0x3a8] sm:$0xff]
  %v133 = vld [vmem:[%s0 + $0x3b0] sm:$0xff]
  %v134 = vld [vmem:[%s0 + $0x3b8] sm:$0xff]
  %v135 = vld [vmem:[%s0 + $0x3c0] sm:$0xff]
  %v136 = vld [vmem:[%s0 + $0x3c8] sm:$0xff]
  %v137 = vld [vmem:[%s0 + $0x3d0] sm:$0xff]
  %v138 = vld [vmem:[%s0 + $0x3d8] sm:$0xff]
  %v139 = vld [vmem:[%s0 + $0x3e0] sm:$0xff]
  %v140 = vld [vmem:[%s0 + $0x3e8] sm:$0xff]
  %v141 = vld [vmem:[%s0 + $0x3f0] sm:$0xff]
  %v142 = vld [vmem:[%s0 + $0x3f8] sm:$0xff]
  %v143 = vld [vmem:[%s0 + $0x400] sm:$0xff]
  %v144 = vld [vmem:[%s0 + $0x408] sm:$0xff]
  %v145 = vld [vmem:[%s0 + $0x410] sm:$0xff]
  %v146 = vld [vmem:[%s0 + $0x418] sm:$0xff]
  %v147 = vld [vmem:[%s0 + $0x420] sm:$0xff]
  %v148 = vld [vmem:[%s0 + $0x428] sm:$0xff]
  %v149 = vld [vmem:[%s0 + $0x430] sm:$0xff]
  %v150 = vld [vmem:[%s0 + $0x438] sm:$0xff]
  %v151 = vld [vmem:[%s0 + $0x440] sm:$0xff]
  %v152 = vld [vmem:[%s0 + $0x448] sm:$0xff]
  %v153 = vld [vmem:[%s0 + $0x450] sm:$0xff]
  %v154 = vld [vmem:[%s0 + $0x458] sm:$0xff]
  %v155 = vld [vmem:[%s0 + $0x460] sm:$0xff]
  %v156 = vld [vmem:[%s0 + $0x468] sm:$0xff]
  %v157 = vld [vmem:[%s0 + $0x470] sm:$0xff]
  %v158 = vld [vmem:[%s0 + $0x478] sm:$0xff]
  %v159 = vld [vmem:[%s0 + $0x480] sm:$0xff]
  %v160 = vld [vmem:[%s0 + $0x488] sm:$0xff]
  %v161 = vld [vmem:[%s0 + $0x490] sm:$0xff]
  %v162 = vld [vmem:[%s0 + $0x498] sm:$0xff]
  %v163 = vld [vmem:[%s0 + $0x4a0] sm:$0xff]
  %v164 = vld [vmem:[%s0 + $0x4a8] sm:$0xff]
  %v165 = vld [vmem:[%s0 + $0x4b0] sm:$0xff]
  %v166 = vld [vmem:[%s0 + $0x4b8] sm:$0xff]
  %v167 = vld [vmem:[%s0 + $0x4c0] sm:$0xff]
  %v168 = vld [vmem:[%s0 + $0x4c8] sm:$0xff]
  %v169 = vld [vmem:[%s0 + $0x4d0] sm:$0xff]
  %v170 = vld [vmem:[%s0 + $0x4d8] sm:$0xff]
  %v171 = vld [vmem:[%s0 + $0x4e0] sm:$0xff]
  %v172 = vld [vmem:[%s0 + $0x4e8] sm:$0xff]
  %v173 = vld [vmem:[%s0 + $0x4f0] sm:$0xff]
  %v174 = vld [vmem:[%s0 + $0x4f8] sm:$0xff]
  %v175 = vld [vmem:[%s0 + $0x500] sm:$0xff]
  %v176 = vld [vmem:[%s0 + $0x508] sm:$0xff]
  %v177 = vld [vmem:[%s0 + $0x510] sm:$0xff]
  %v178 = vld [vmem:[%s0 + $0x518] sm:$0xff]
  %v179 = vld [vmem:[%s0 + $0x520] sm:$0xff]
  %v180 = vld [vmem:[%s0 + $0x528] sm:$0xff]
  %v181 = vld [vmem:[%s0 + $0x530] sm:$0xff]
  %v182 = vld [vmem:[%s0 + $0x538] sm:$0xff]
  %v183 = vld [vmem:[%s1] sm:$0xf]
  %v184 = vld [vmem:[%s1 + $0x4] sm:$0xf]
  %v185 = vld [vmem:[%s1 + $0x8] sm:$0xf]
  %v186 = vld [vmem:[%s1 + $0xc] sm:$0xf]
  %v187 = vld [vmem:[%s1 + $0x10] sm:$0xf]
  %v188 = vld [vmem:[%s1 + $0x14] sm:$0xf]
  %v189 = vld [vmem:[%s1 + $0x18] sm:$0xf]
  %v190 = vld [vmem:[%s1 + $0x1c] sm:$0xf]
  %v191 = vld [vmem:[%s1 + $0x20] sm:$0xf]
  %v192 = vld [vmem:[%s1 + $0x24] sm:$0xf]
  %v193 = vld [vmem:[%s1 + $0x28] sm:$0xf]
  %v194 = vld [vmem:[%s1 + $0x2c] sm:$0xf]
  %v195 = vld [vmem:[%s1 + $0x30] sm:$0xf]
  %v196 = vld [vmem:[%s1 + $0x34] sm:$0xf]
  %v197 = vld [vmem:[%s1 + $0x38] sm:$0xf]
  %v198 = vld [vmem:[%s1 + $0x3c] sm:$0xf]
  %v199 = vld [vmem:[%s1 + $0x40] sm:$0xf]
  %v200 = vld [vmem:[%s1 + $0x44] sm:$0xf]
  %v201 = vld [vmem:[%s1 + $0x48] sm:$0xf]
  %v202 = vld [vmem:[%s1 + $0x4c] sm:$0xf]
  %v203 = vld [vmem:[%s1 + $0x50] sm:$0xf]
  %v204 = vld [vmem:[%s1 + $0x54] sm:$0xf]
  %v205 = vld [vmem:[%s1 + $0x58] sm:$0xf]
  %v206 = vld [vmem:[%s1 + $0x5c] sm:$0xf]
  %v207 = vld [vmem:[%s1 + $0x60] sm:$0xf]
  %v208 = vld [vmem:[%s1 + $0x64] sm:$0xf]
  %v209 = vld [vmem:[%s1 + $0x68] sm:$0xf]
  %v210 = vld [vmem:[%s1 + $0x6c] sm:$0xf]
  %v211 = vld [vmem:[%s1 + $0x70] sm:$0xf]
  %v212 = vld [vmem:[%s1 + $0x74] sm:$0xf]
  %v213 = vld [vmem:[%s1 + $0x78] sm:$0xf]
  %v214 = vld [vmem:[%s1 + $0x7c] sm:$0xf]
  %v215 = vld [vmem:[%s1 + $0x80] sm:$0xf]
  %v216 = vld [vmem:[%s1 + $0x84] sm:$0xf]
  %v217 = vld [vmem:[%s1 + $0x88] sm:$0xf]
  %v218 = vld [vmem:[%s1 + $0x8c] sm:$0xf]
  %v219 = vld [vmem:[%s1 + $0x90] sm:$0xf]
  %v220 = vld [vmem:[%s1 + $0x94] sm:$0xf]
  %v221 = vld [vmem:[%s1 + $0x98] sm:$0xf]
  %v222 = vld [vmem:[%s1 + $0x9c] sm:$0xf]
  %v223 = vld [vmem:[%s1 + $0xa0] sm:$0xf]
  %v224 = vld [vmem:[%s1 + $0xa4] sm:$0xf]
  %v225 = vld [vmem:[%s1 + $0xa8] sm:$0xf]
  %v226 = vld [vmem:[%s1 + $0xac] sm:$0xf]
  %v227 = vld [vmem:[%s1 + $0xb0] sm:$0xf]
  %v228 = vld [vmem:[%s1 + $0xb4] sm:$0xf]
  %v229 = vld [vmem:[%s1 + $0xb8] sm:$0xf]
  %v230 = vld [vmem:[%s1 + $0xbc] sm:$0xf]
  %v231 = vld [vmem:[%s1 + $0xc0] sm:$0xf]
  %v232 = vld [vmem:[%s1 + $0xc4] sm:$0xf]
  %v233 = vld [vmem:[%s1 + $0xc8] sm:$0xf]
  %v234 = vld [vmem:[%s1 + $0xcc] sm:$0xf]
  %v235 = vld [vmem:[%s1 + $0xd0] sm:$0xf]
  %v236 = vld [vmem:[%s1 + $0xd4] sm:$0xf]
  %v237 = vld [vmem:[%s1 + $0xd8] sm:$0xf]
  %v238 = vld [vmem:[%s1 + $0xdc] sm:$0xf]
  %v239 = vld [vmem:[%s1 + $0xe0] sm:$0xf]
  %v240 = vld [vmem:[%s1 + $0xe4] sm:$0xf]
  %v241 = vld [vmem:[%s1 + $0xe8] sm:$0xf]
  %v242 = vld [vmem:[%s1 + $0xec] sm:$0xf]
  %v243 = vld [vmem:[%s1 + $0xf0] sm:$0xf]
  %v244 = vld [vmem:[%s1 + $0xf4] sm:$0xf]
  %v245 = vld [vmem:[%s1 + $0xf8] sm:$0xf]
  %v246 = vld [vmem:[%s1 + $0xfc] sm:$0xf]
  %v247 = vld [vmem:[%s1 + $0x100] sm:$0xf]
  %v248 = vld [vmem:[%s1 + $0x104] sm:$0xf]
  %v249 = vld [vmem:[%s1 + $0x108] sm:$0xf]
  %v250 = vld [vmem:[%s1 + $0x10c] sm:$0xf]
  %v251 = vld [vmem:[%s1 + $0x110] sm:$0xf]
  %v252 = vld [vmem:[%s1 + $0x114] sm:$0xf]
  %v253 = vld [vmem:[%s1 + $0x118] sm:$0xf]
  %v254 = vld [vmem:[%s1 + $0x11c] sm:$0xf]
  %v255 = vld [vmem:[%s1 + $0x120] sm:$0xf]
  %v256 = vld [vmem:[%s1 + $0x124] sm:$0xf]
  %v257 = vld [vmem:[%s1 + $0x128] sm:$0xf]
  %v258 = vld [vmem:[%s1 + $0x12c] sm:$0xf]
  %v259 = vld [vmem:[%s1 + $0x130] sm:$0xf]
  %v260 = vld [vmem:[%s1 + $0x134] sm:$0xf]
  %v261 = vld [vmem:[%s1 + $0x138] sm:$0xf]
  %v262 = vld [vmem:[%s1 + $0x13c] sm:$0xf]
  %v263 = vld [vmem:[%s1 + $0x140] sm:$0xf]
  %v264 = vld [vmem:[%s1 + $0x144] sm:$0xf]
  %v265 = vld [vmem:[%s1 + $0x148] sm:$0xf]
  %v266 = vld [vmem:[%s1 + $0x14c] sm:$0xf]
  %v267 = vld [vmem:[%s1 + $0x150] sm:$0xf]
  %v268 = vld [vmem:[%s1 + $0x154] sm:$0xf]
  %v269 = vld [vmem:[%s1 + $0x158] sm:$0xf]
  %v270 = vld [vmem:[%s1 + $0x15c] sm:$0xf]
  %v271 = vld [vmem:[%s1 + $0x160] sm:$0xf]
  %v272 = vld [vmem:[%s1 + $0x164] sm:$0xf]
  %v273 = vld [vmem:[%s1 + $0x168] sm:$0xf]
  %v274 = vld [vmem:[%s1 + $0x16c] sm:$0xf]
  %v275 = vld [vmem:[%s1 + $0x170] sm:$0xf]
  %v276 = vld [vmem:[%s1 + $0x174] sm:$0xf]
  %v277 = vld [vmem:[%s1 + $0x178] sm:$0xf]
  %v278 = vld [vmem:[%s1 + $0x17c] sm:$0xf]
  %v279 = vld [vmem:[%s1 + $0x180] sm:$0xf]
  %v280 = vld [vmem:[%s1 + $0x184] sm:$0xf]
  %v281 = vld [vmem:[%s1 + $0x188] sm:$0xf]
  %v282 = vld [vmem:[%s1 + $0x18c] sm:$0xf]
  %v283 = vld [vmem:[%s1 + $0x190] sm:$0xf]
  %v284 = vld [vmem:[%s1 + $0x194] sm:$0xf]
  %v285 = vld [vmem:[%s1 + $0x198] sm:$0xf]
  %v286 = vld [vmem:[%s1 + $0x19c] sm:$0xf]
  %v287 = vld [vmem:[%s1 + $0x1a0] sm:$0xf]
  %v288 = vld [vmem:[%s1 + $0x1a4] sm:$0xf]
  %v289 = vld [vmem:[%s1 + $0x1a8] sm:$0xf]
  %v290 = vld [vmem:[%s1 + $0x1ac] sm:$0xf]
  %v291 = vld [vmem:[%s1 + $0x1b0] sm:$0xf]
  %v292 = vld [vmem:[%s1 + $0x1b4] sm:$0xf]
  %v293 = vld [vmem:[%s1 + $0x1b8] sm:$0xf]
  %v294 = vld [vmem:[%s1 + $0x1bc] sm:$0xf]
  %v295 = vld [vmem:[%s1 + $0x1c0] sm:$0xf]
  %v296 = vld [vmem:[%s1 + $0x1c4] sm:$0xf]
  %v297 = vld [vmem:[%s1 + $0x1c8] sm:$0xf]
  %v298 = vld [vmem:[%s1 + $0x1cc] sm:$0xf]
  %v299 = vld [vmem:[%s1 + $0x1d0] sm:$0xf]
  %v300 = vld [vmem:[%s1 + $0x1d4] sm:$0xf]
  %v301 = vld [vmem:[%s1 + $0x1d8] sm:$0xf]
  %v302 = vld [vmem:[%s1 + $0x1dc] sm:$0xf]
  %v303 = vld [vmem:[%s1 + $0x1e0] sm:$0xf]
  %v304 = vld [vmem:[%s1 + $0x1e4] sm:$0xf]
  %v305 = vld [vmem:[%s1 + $0x1e8] sm:$0xf]
  %v306 = vld [vmem:[%s1 + $0x1ec] sm:$0xf]
  %v307 = vld [vmem:[%s1 + $0x1f0] sm:$0xf]
  %v308 = vld [vmem:[%s1 + $0x1f4] sm:$0xf]
  %v309 = vld [vmem:[%s1 + $0x1f8] sm:$0xf]
  %v310 = vld [vmem:[%s1 + $0x1fc] sm:$0xf]
  %v311 = vld [vmem:[%s2] sm:$0x1]
  %v313 = vlaneseq
  %v314 = vshrl.u32 %v313, 7
  %v315 = vsub.s32 0, %v314
  %v316 = vrot.slane %v311, %v315
  %v486 = vunpack.c.l.b16 %v15
  %v487 = vunpack.c.h.b16 %v15
  %v488 = vunpack.c.l.b16 %v16
  %v489 = vunpack.c.h.b16 %v16
  %v490 = vunpack.c.l.b16 %v17
  %v491 = vunpack.c.h.b16 %v17
  %v492 = vunpack.c.l.b16 %v18
  %v493 = vunpack.c.h.b16 %v18
  %v494 = vunpack.c.l.b16 %v19
  %v495 = vunpack.c.h.b16 %v19
  %v496 = vunpack.c.l.b16 %v20
  %v497 = vunpack.c.h.b16 %v20
  %v498 = vunpack.c.l.b16 %v21
  %v499 = vunpack.c.h.b16 %v21
  %v500 = vunpack.c.l.b16 %v22
  %v501 = vunpack.c.h.b16 %v22
  %v502 = vunpack.c.l.b16 %v23
  %v503 = vunpack.c.h.b16 %v23
  %v504 = vunpack.c.l.b16 %v24
  %v505 = vunpack.c.h.b16 %v24
  %v506 = vunpack.c.l.b16 %v25
  %v507 = vunpack.c.h.b16 %v25
  %v508 = vunpack.c.l.b16 %v26
  %v509 = vunpack.c.h.b16 %v26
  %v510 = vunpack.c.l.b16 %v27
  %v511 = vunpack.c.h.b16 %v27
  %v512 = vunpack.c.l.b16 %v28
  %v513 = vunpack.c.h.b16 %v28
  %v514 = vunpack.c.l.b16 %v29
  %v515 = vunpack.c.h.b16 %v29
  %v516 = vunpack.c.l.b16 %v30
  %v517 = vunpack.c.h.b16 %v30
  %v518 = vunpack.c.l.b16 %v31
  %v519 = vunpack.c.h.b16 %v31
  %v520 = vunpack.c.l.b16 %v32
  %v521 = vunpack.c.h.b16 %v32
  %v522 = vunpack.c.l.b16 %v33
  %v523 = vunpack.c.h.b16 %v33
  %v524 = vunpack.c.l.b16 %v34
  %v525 = vunpack.c.h.b16 %v34
  %v526 = vunpack.c.l.b16 %v35
  %v527 = vunpack.c.h.b16 %v35
  %v528 = vunpack.c.l.b16 %v36
  %v529 = vunpack.c.h.b16 %v36
  %v530 = vunpack.c.l.b16 %v37
  %v531 = vunpack.c.h.b16 %v37
  %v532 = vunpack.c.l.b16 %v38
  %v533 = vunpack.c.h.b16 %v38
  %v534 = vunpack.c.l.b16 %v39
  %v535 = vunpack.c.h.b16 %v39
  %v536 = vunpack.c.l.b16 %v40
  %v537 = vunpack.c.h.b16 %v40
  %v538 = vunpack.c.l.b16 %v41
  %v539 = vunpack.c.h.b16 %v41
  %v540 = vunpack.c.l.b16 %v42
  %v541 = vunpack.c.h.b16 %v42
  %v542 = vunpack.c.l.b16 %v43
  %v543 = vunpack.c.h.b16 %v43
  %v544 = vunpack.c.l.b16 %v44
  %v545 = vunpack.c.h.b16 %v44
  %v546 = vunpack.c.l.b16 %v45
  %v547 = vunpack.c.h.b16 %v45
  %v548 = vunpack.c.l.b16 %v46
  %v549 = vunpack.c.h.b16 %v46
  %v550 = vunpack.c.l.b16 %v47
  %v551 = vunpack.c.h.b16 %v47
  %v552 = vunpack.c.l.b16 %v48
  %v553 = vunpack.c.h.b16 %v48
  %v554 = vunpack.c.l.b16 %v49
  %v555 = vunpack.c.h.b16 %v49
  %v556 = vunpack.c.l.b16 %v50
  %v557 = vunpack.c.h.b16 %v50
  %v558 = vunpack.c.l.b16 %v51
  %v559 = vunpack.c.h.b16 %v51
  %v560 = vunpack.c.l.b16 %v52
  %v561 = vunpack.c.h.b16 %v52
  %v562 = vunpack.c.l.b16 %v53
  %v563 = vunpack.c.h.b16 %v53
  %v564 = vunpack.c.l.b16 %v54
  %v565 = vunpack.c.h.b16 %v54
  %v566 = vunpack.c.l.b16 %v55
  %v567 = vunpack.c.h.b16 %v55
  %v568 = vunpack.c.l.b16 %v56
  %v569 = vunpack.c.h.b16 %v56
  %v570 = vunpack.c.l.b16 %v57
  %v571 = vunpack.c.h.b16 %v57
  %v572 = vunpack.c.l.b16 %v58
  %v573 = vunpack.c.h.b16 %v58
  %v574 = vunpack.c.l.b16 %v59
  %v575 = vunpack.c.h.b16 %v59
  %v576 = vunpack.c.l.b16 %v60
  %v577 = vunpack.c.h.b16 %v60
  %v578 = vunpack.c.l.b16 %v61
  %v579 = vunpack.c.h.b16 %v61
  %v580 = vunpack.c.l.b16 %v62
  %v581 = vunpack.c.h.b16 %v62
  %v582 = vunpack.c.l.b16 %v63
  %v583 = vunpack.c.h.b16 %v63
  %v584 = vunpack.c.l.b16 %v64
  %v585 = vunpack.c.h.b16 %v64
  %v586 = vunpack.c.l.b16 %v65
  %v587 = vunpack.c.h.b16 %v65
  %v588 = vunpack.c.l.b16 %v66
  %v589 = vunpack.c.h.b16 %v66
  %v590 = vunpack.c.l.b16 %v67
  %v591 = vunpack.c.h.b16 %v67
  %v592 = vunpack.c.l.b16 %v68
  %v593 = vunpack.c.h.b16 %v68
  %v594 = vunpack.c.l.b16 %v69
  %v595 = vunpack.c.h.b16 %v69
  %v596 = vunpack.c.l.b16 %v70
  %v597 = vunpack.c.h.b16 %v70
  %v598 = vunpack.c.l.b16 %v71
  %v599 = vunpack.c.h.b16 %v71
  %v600 = vunpack.c.l.b16 %v72
  %v601 = vunpack.c.h.b16 %v72
  %v602 = vunpack.c.l.b16 %v73
  %v603 = vunpack.c.h.b16 %v73
  %v604 = vunpack.c.l.b16 %v74
  %v605 = vunpack.c.h.b16 %v74
  %v606 = vunpack.c.l.b16 %v75
  %v607 = vunpack.c.h.b16 %v75
  %v608 = vunpack.c.l.b16 %v76
  %v609 = vunpack.c.h.b16 %v76
  %v610 = vunpack.c.l.b16 %v77
  %v611 = vunpack.c.h.b16 %v77
  %v612 = vunpack.c.l.b16 %v78
  %v613 = vunpack.c.h.b16 %v78
  %v614 = vunpack.c.l.b16 %v79
  %v615 = vunpack.c.h.b16 %v79
  %v616 = vunpack.c.l.b16 %v80
  %v617 = vunpack.c.h.b16 %v80
  %v618 = vunpack.c.l.b16 %v81
  %v619 = vunpack.c.h.b16 %v81
  %v620 = vunpack.c.l.b16 %v82
  %v621 = vunpack.c.h.b16 %v82
  %v622 = vunpack.c.l.b16 %v83
  %v623 = vunpack.c.h.b16 %v83
  %v624 = vunpack.c.l.b16 %v84
  %v625 = vunpack.c.h.b16 %v84
  %v626 = vunpack.c.l.b16 %v85
  %v627 = vunpack.c.h.b16 %v85
  %v628 = vunpack.c.l.b16 %v86
  %v629 = vunpack.c.h.b16 %v86
  %v630 = vunpack.c.l.b16 %v87
  %v631 = vunpack.c.h.b16 %v87
  %v632 = vunpack.c.l.b16 %v88
  %v633 = vunpack.c.h.b16 %v88
  %v634 = vunpack.c.l.b16 %v89
  %v635 = vunpack.c.h.b16 %v89
  %v636 = vunpack.c.l.b16 %v90
  %v637 = vunpack.c.h.b16 %v90
  %v638 = vunpack.c.l.b16 %v91
  %v639 = vunpack.c.h.b16 %v91
  %v640 = vunpack.c.l.b16 %v92
  %v641 = vunpack.c.h.b16 %v92
  %v642 = vunpack.c.l.b16 %v93
  %v643 = vunpack.c.h.b16 %v93
  %v644 = vunpack.c.l.b16 %v94
  %v645 = vunpack.c.h.b16 %v94
  %v646 = vunpack.c.l.b16 %v95
  %v647 = vunpack.c.h.b16 %v95
  %v648 = vunpack.c.l.b16 %v96
  %v649 = vunpack.c.h.b16 %v96
  %v650 = vunpack.c.l.b16 %v97
  %v651 = vunpack.c.h.b16 %v97
  %v652 = vunpack.c.l.b16 %v98
  %v653 = vunpack.c.h.b16 %v98
  %v654 = vunpack.c.l.b16 %v99
  %v655 = vunpack.c.h.b16 %v99
  %v656 = vunpack.c.l.b16 %v100
  %v657 = vunpack.c.h.b16 %v100
  %v658 = vunpack.c.l.b16 %v101
  %v659 = vunpack.c.h.b16 %v101
  %v660 = vunpack.c.l.b16 %v102
  %v661 = vunpack.c.h.b16 %v102
  %v662 = vunpack.c.l.b16 %v103
  %v663 = vunpack.c.h.b16 %v103
  %v664 = vunpack.c.l.b16 %v104
  %v665 = vunpack.c.h.b16 %v104
  %v666 = vunpack.c.l.b16 %v105
  %v667 = vunpack.c.h.b16 %v105
  %v668 = vunpack.c.l.b16 %v106
  %v669 = vunpack.c.h.b16 %v106
  %v670 = vunpack.c.l.b16 %v107
  %v671 = vunpack.c.h.b16 %v107
  %v672 = vunpack.c.l.b16 %v108
  %v673 = vunpack.c.h.b16 %v108
  %v674 = vunpack.c.l.b16 %v109
  %v675 = vunpack.c.h.b16 %v109
  %v676 = vunpack.c.l.b16 %v110
  %v677 = vunpack.c.h.b16 %v110
  %v678 = vunpack.c.l.b16 %v111
  %v679 = vunpack.c.h.b16 %v111
  %v680 = vunpack.c.l.b16 %v112
  %v681 = vunpack.c.h.b16 %v112
  %v682 = vunpack.c.l.b16 %v113
  %v683 = vunpack.c.h.b16 %v113
  %v684 = vunpack.c.l.b16 %v114
  %v685 = vunpack.c.h.b16 %v114
  %v686 = vunpack.c.l.b16 %v115
  %v687 = vunpack.c.h.b16 %v115
  %v688 = vunpack.c.l.b16 %v116
  %v689 = vunpack.c.h.b16 %v116
  %v690 = vunpack.c.l.b16 %v117
  %v691 = vunpack.c.h.b16 %v117
  %v692 = vunpack.c.l.b16 %v118
  %v693 = vunpack.c.h.b16 %v118
  %v694 = vunpack.c.l.b16 %v119
  %v695 = vunpack.c.h.b16 %v119
  %v696 = vunpack.c.l.b16 %v120
  %v697 = vunpack.c.h.b16 %v120
  %v698 = vunpack.c.l.b16 %v121
  %v699 = vunpack.c.h.b16 %v121
  %v700 = vunpack.c.l.b16 %v122
  %v701 = vunpack.c.h.b16 %v122
  %v702 = vunpack.c.l.b16 %v123
  %v703 = vunpack.c.h.b16 %v123
  %v704 = vunpack.c.l.b16 %v124
  %v705 = vunpack.c.h.b16 %v124
  %v706 = vunpack.c.l.b16 %v125
  %v707 = vunpack.c.h.b16 %v125
  %v708 = vunpack.c.l.b16 %v126
  %v709 = vunpack.c.h.b16 %v126
  %v710 = vunpack.c.l.b16 %v127
  %v711 = vunpack.c.h.b16 %v127
  %v712 = vunpack.c.l.b16 %v128
  %v713 = vunpack.c.h.b16 %v128
  %v714 = vunpack.c.l.b16 %v129
  %v715 = vunpack.c.h.b16 %v129
  %v716 = vunpack.c.l.b16 %v130
  %v717 = vunpack.c.h.b16 %v130
  %v718 = vunpack.c.l.b16 %v131
  %v719 = vunpack.c.h.b16 %v131
  %v720 = vunpack.c.l.b16 %v132
  %v721 = vunpack.c.h.b16 %v132
  %v722 = vunpack.c.l.b16 %v133
  %v723 = vunpack.c.h.b16 %v133
  %v724 = vunpack.c.l.b16 %v134
  %v725 = vunpack.c.h.b16 %v134
  %v726 = vunpack.c.l.b16 %v135
  %v727 = vunpack.c.h.b16 %v135
  %v728 = vunpack.c.l.b16 %v136
  %v729 = vunpack.c.h.b16 %v136
  %v730 = vunpack.c.l.b16 %v137
  %v731 = vunpack.c.h.b16 %v137
  %v732 = vunpack.c.l.b16 %v138
  %v733 = vunpack.c.h.b16 %v138
  %v734 = vunpack.c.l.b16 %v139
  %v735 = vunpack.c.h.b16 %v139
  %v736 = vunpack.c.l.b16 %v140
  %v737 = vunpack.c.h.b16 %v140
  %v738 = vunpack.c.l.b16 %v141
  %v739 = vunpack.c.h.b16 %v141
  %v740 = vunpack.c.l.b16 %v142
  %v741 = vunpack.c.h.b16 %v142
  %v742 = vunpack.c.l.b16 %v143
  %v743 = vunpack.c.h.b16 %v143
  %v744 = vunpack.c.l.b16 %v144
  %v745 = vunpack.c.h.b16 %v144
  %v746 = vunpack.c.l.b16 %v145
  %v747 = vunpack.c.h.b16 %v145
  %v748 = vunpack.c.l.b16 %v146
  %v749 = vunpack.c.h.b16 %v146
  %v750 = vunpack.c.l.b16 %v147
  %v751 = vunpack.c.h.b16 %v147
  %v752 = vunpack.c.l.b16 %v148
  %v753 = vunpack.c.h.b16 %v148
  %v754 = vunpack.c.l.b16 %v149
  %v755 = vunpack.c.h.b16 %v149
  %v756 = vunpack.c.l.b16 %v150
  %v757 = vunpack.c.h.b16 %v150
  %v758 = vunpack.c.l.b16 %v151
  %v759 = vunpack.c.h.b16 %v151
  %v760 = vunpack.c.l.b16 %v152
  %v761 = vunpack.c.h.b16 %v152
  %v762 = vunpack.c.l.b16 %v153
  %v763 = vunpack.c.h.b16 %v153
  %v764 = vunpack.c.l.b16 %v154
  %v765 = vunpack.c.h.b16 %v154
  %v766 = vunpack.c.l.b16 %v155
  %v767 = vunpack.c.h.b16 %v155
  %v768 = vunpack.c.l.b16 %v156
  %v769 = vunpack.c.h.b16 %v156
  %v770 = vunpack.c.l.b16 %v157
  %v771 = vunpack.c.h.b16 %v157
  %v772 = vunpack.c.l.b16 %v158
  %v773 = vunpack.c.h.b16 %v158
  %v774 = vunpack.c.l.b16 %v159
  %v775 = vunpack.c.h.b16 %v159
  %v776 = vunpack.c.l.b16 %v160
  %v777 = vunpack.c.h.b16 %v160
  %v778 = vunpack.c.l.b16 %v161
  %v779 = vunpack.c.h.b16 %v161
  %v780 = vunpack.c.l.b16 %v162
  %v781 = vunpack.c.h.b16 %v162
  %v782 = vunpack.c.l.b16 %v163
  %v783 = vunpack.c.h.b16 %v163
  %v784 = vunpack.c.l.b16 %v164
  %v785 = vunpack.c.h.b16 %v164
  %v786 = vunpack.c.l.b16 %v165
  %v787 = vunpack.c.h.b16 %v165
  %v788 = vunpack.c.l.b16 %v166
  %v789 = vunpack.c.h.b16 %v166
  %v790 = vunpack.c.l.b16 %v167
  %v791 = vunpack.c.h.b16 %v167
  %v792 = vunpack.c.l.b16 %v168
  %v793 = vunpack.c.h.b16 %v168
  %v794 = vunpack.c.l.b16 %v169
  %v795 = vunpack.c.h.b16 %v169
  %v796 = vunpack.c.l.b16 %v170
  %v797 = vunpack.c.h.b16 %v170
  %v798 = vunpack.c.l.b16 %v171
  %v799 = vunpack.c.h.b16 %v171
  %v800 = vunpack.c.l.b16 %v172
  %v801 = vunpack.c.h.b16 %v172
  %v802 = vunpack.c.l.b16 %v173
  %v803 = vunpack.c.h.b16 %v173
  %v804 = vunpack.c.l.b16 %v174
  %v805 = vunpack.c.h.b16 %v174
  %v806 = vunpack.c.l.b16 %v175
  %v807 = vunpack.c.h.b16 %v175
  %v808 = vunpack.c.l.b16 %v176
  %v809 = vunpack.c.h.b16 %v176
  %v810 = vunpack.c.l.b16 %v177
  %v811 = vunpack.c.h.b16 %v177
  %v812 = vunpack.c.l.b16 %v178
  %v813 = vunpack.c.h.b16 %v178
  %v814 = vunpack.c.l.b16 %v179
  %v815 = vunpack.c.h.b16 %v179
  %v816 = vunpack.c.l.b16 %v180
  %v817 = vunpack.c.h.b16 %v180
  %v818 = vunpack.c.l.b16 %v181
  %v819 = vunpack.c.h.b16 %v181
  %v820 = vunpack.c.l.b16 %v182
  %v821 = vunpack.c.h.b16 %v182
  %v822 = vpack.c.b16 %v494, %v486
  %v823 = vpack.c.b16 %v495, %v487
  %v824 = vpack.c.b16 %v496, %v488
  %v825 = vpack.c.b16 %v497, %v489
  %v826 = vpack.c.b16 %v498, %v490
  %v827 = vpack.c.b16 %v499, %v491
  %v828 = vpack.c.b16 %v500, %v492
  %v829 = vpack.c.b16 %v501, %v493
  %v830 = vpack.c.b16 %v510, %v502
  %v831 = vpack.c.b16 %v511, %v503
  %v832 = vpack.c.b16 %v512, %v504
  %v833 = vpack.c.b16 %v513, %v505
  %v834 = vpack.c.b16 %v514, %v506
  %v835 = vpack.c.b16 %v515, %v507
  %v836 = vpack.c.b16 %v516, %v508
  %v837 = vpack.c.b16 %v517, %v509
  %v838 = vpack.c.b16 %v526, %v518
  %v839 = vpack.c.b16 %v527, %v519
  %v840 = vpack.c.b16 %v528, %v520
  %v841 = vpack.c.b16 %v529, %v521
  %v842 = vpack.c.b16 %v530, %v522
  %v843 = vpack.c.b16 %v531, %v523
  %v844 = vpack.c.b16 %v532, %v524
  %v845 = vpack.c.b16 %v533, %v525
  %v846 = vpack.c.b16 %v542, %v534
  %v847 = vpack.c.b16 %v543, %v535
  %v848 = vpack.c.b16 %v544, %v536
  %v849 = vpack.c.b16 %v545, %v537
  %v850 = vpack.c.b16 %v546, %v538
  %v851 = vpack.c.b16 %v547, %v539
  %v852 = vpack.c.b16 %v548, %v540
  %v853 = vpack.c.b16 %v549, %v541
  %v854 = vpack.c.b16 %v558, %v550
  %v855 = vpack.c.b16 %v559, %v551
  %v856 = vpack.c.b16 %v560, %v552
  %v857 = vpack.c.b16 %v561, %v553
  %v858 = vpack.c.b16 %v562, %v554
  %v859 = vpack.c.b16 %v563, %v555
  %v860 = vpack.c.b16 %v564, %v556
  %v861 = vpack.c.b16 %v565, %v557
  %v862 = vpack.c.b16 %v574, %v566
  %v863 = vpack.c.b16 %v575, %v567
  %v864 = vpack.c.b16 %v576, %v568
  %v865 = vpack.c.b16 %v577, %v569
  %v866 = vpack.c.b16 %v578, %v570
  %v867 = vpack.c.b16 %v579, %v571
  %v868 = vpack.c.b16 %v580, %v572
  %v869 = vpack.c.b16 %v581, %v573
  %v870 = vpack.c.b16 %v590, %v582
  %v871 = vpack.c.b16 %v591, %v583
  %v872 = vpack.c.b16 %v592, %v584
  %v873 = vpack.c.b16 %v593, %v585
  %v874 = vpack.c.b16 %v594, %v586
  %v875 = vpack.c.b16 %v595, %v587
  %v876 = vpack.c.b16 %v596, %v588
  %v877 = vpack.c.b16 %v597, %v589
  %v878 = vpack.c.b16 %v606, %v598
  %v879 = vpack.c.b16 %v607, %v599
  %v880 = vpack.c.b16 %v608, %v600
  %v881 = vpack.c.b16 %v609, %v601
  %v882 = vpack.c.b16 %v610, %v602
  %v883 = vpack.c.b16 %v611, %v603
  %v884 = vpack.c.b16 %v612, %v604
  %v885 = vpack.c.b16 %v613, %v605
  %v886 = vpack.c.b16 %v622, %v614
  %v887 = vpack.c.b16 %v623, %v615
  %v888 = vpack.c.b16 %v624, %v616
  %v889 = vpack.c.b16 %v625, %v617
  %v890 = vpack.c.b16 %v626, %v618
  %v891 = vpack.c.b16 %v627, %v619
  %v892 = vpack.c.b16 %v628, %v620
  %v893 = vpack.c.b16 %v629, %v621
  %v894 = vpack.c.b16 %v638, %v630
  %v895 = vpack.c.b16 %v639, %v631
  %v896 = vpack.c.b16 %v640, %v632
  %v897 = vpack.c.b16 %v641, %v633
  %v898 = vpack.c.b16 %v642, %v634
  %v899 = vpack.c.b16 %v643, %v635
  %v900 = vpack.c.b16 %v644, %v636
  %v901 = vpack.c.b16 %v645, %v637
  %v902 = vpack.c.b16 %v654, %v646
  %v903 = vpack.c.b16 %v655, %v647
  %v904 = vpack.c.b16 %v656, %v648
  %v905 = vpack.c.b16 %v657, %v649
  %v906 = vpack.c.b16 %v658, %v650
  %v907 = vpack.c.b16 %v659, %v651
  %v908 = vpack.c.b16 %v660, %v652
  %v909 = vpack.c.b16 %v661, %v653
  %v910 = vpack.c.b16 %v670, %v662
  %v911 = vpack.c.b16 %v671, %v663
  %v912 = vpack.c.b16 %v672, %v664
  %v913 = vpack.c.b16 %v673, %v665
  %v914 = vpack.c.b16 %v674, %v666
  %v915 = vpack.c.b16 %v675, %v667
  %v916 = vpack.c.b16 %v676, %v668
  %v917 = vpack.c.b16 %v677, %v669
  %v918 = vpack.c.b16 %v686, %v678
  %v919 = vpack.c.b16 %v687, %v679
  %v920 = vpack.c.b16 %v688, %v680
  %v921 = vpack.c.b16 %v689, %v681
  %v922 = vpack.c.b16 %v690, %v682
  %v923 = vpack.c.b16 %v691, %v683
  %v924 = vpack.c.b16 %v692, %v684
  %v925 = vpack.c.b16 %v693, %v685
  %v926 = vpack.c.b16 %v702, %v694
  %v927 = vpack.c.b16 %v703, %v695
  %v928 = vpack.c.b16 %v704, %v696
  %v929 = vpack.c.b16 %v705, %v697
  %v930 = vpack.c.b16 %v706, %v698
  %v931 = vpack.c.b16 %v707, %v699
  %v932 = vpack.c.b16 %v708, %v700
  %v933 = vpack.c.b16 %v709, %v701
  %v934 = vpack.c.b16 %v718, %v710
  %v935 = vpack.c.b16 %v719, %v711
  %v936 = vpack.c.b16 %v720, %v712
  %v937 = vpack.c.b16 %v721, %v713
  %v938 = vpack.c.b16 %v722, %v714
  %v939 = vpack.c.b16 %v723, %v715
  %v940 = vpack.c.b16 %v724, %v716
  %v941 = vpack.c.b16 %v725, %v717
  %v942 = vpack.c.b16 %v734, %v726
  %v943 = vpack.c.b16 %v735, %v727
  %v944 = vpack.c.b16 %v736, %v728
  %v945 = vpack.c.b16 %v737, %v729
  %v946 = vpack.c.b16 %v738, %v730
  %v947 = vpack.c.b16 %v739, %v731
  %v948 = vpack.c.b16 %v740, %v732
  %v949 = vpack.c.b16 %v741, %v733
  %v950 = vpack.c.b16 %v750, %v742
  %v951 = vpack.c.b16 %v751, %v743
  %v952 = vpack.c.b16 %v752, %v744
  %v953 = vpack.c.b16 %v753, %v745
  %v954 = vpack.c.b16 %v754, %v746
  %v955 = vpack.c.b16 %v755, %v747
  %v956 = vpack.c.b16 %v756, %v748
  %v957 = vpack.c.b16 %v757, %v749
  %v958 = vpack.c.b16 %v766, %v758
  %v959 = vpack.c.b16 %v767, %v759
  %v960 = vpack.c.b16 %v768, %v760
  %v961 = vpack.c.b16 %v769, %v761
  %v962 = vpack.c.b16 %v770, %v762
  %v963 = vpack.c.b16 %v771, %v763
  %v964 = vpack.c.b16 %v772, %v764
  %v965 = vpack.c.b16 %v773, %v765
  %v966 = vpack.c.b16 %v782, %v774
  %v967 = vpack.c.b16 %v783, %v775
  %v968 = vpack.c.b16 %v784, %v776
  %v969 = vpack.c.b16 %v785, %v777
  %v970 = vpack.c.b16 %v786, %v778
  %v971 = vpack.c.b16 %v787, %v779
  %v972 = vpack.c.b16 %v788, %v780
  %v973 = vpack.c.b16 %v789, %v781
  %v974 = vpack.c.b16 %v798, %v790
  %v975 = vpack.c.b16 %v799, %v791
  %v976 = vpack.c.b16 %v800, %v792
  %v977 = vpack.c.b16 %v801, %v793
  %v978 = vpack.c.b16 %v802, %v794
  %v979 = vpack.c.b16 %v803, %v795
  %v980 = vpack.c.b16 %v804, %v796
  %v981 = vpack.c.b16 %v805, %v797
  %v982 = vpack.c.b16 %v814, %v806
  %v983 = vpack.c.b16 %v815, %v807
  %v984 = vpack.c.b16 %v816, %v808
  %v985 = vpack.c.b16 %v817, %v809
  %v986 = vpack.c.b16 %v818, %v810
  %v987 = vpack.c.b16 %v819, %v811
  %v988 = vpack.c.b16 %v820, %v812
  %v989 = vpack.c.b16 %v821, %v813
  %v1286 = vunpack.c.l.b16 %v183
  %v1287 = vunpack.c.l.b16 %v184
  %v1288 = vunpack.c.l.b16 %v185
  %v1289 = vunpack.c.l.b16 %v186
  %v1290 = vunpack.c.l.b16 %v187
  %v1291 = vunpack.c.l.b16 %v188
  %v1292 = vunpack.c.l.b16 %v189
  %v1293 = vunpack.c.l.b16 %v190
  %v1294 = vunpack.c.l.b16 %v191
  %v1295 = vunpack.c.l.b16 %v192
  %v1296 = vunpack.c.l.b16 %v193
  %v1297 = vunpack.c.l.b16 %v194
  %v1298 = vunpack.c.l.b16 %v195
  %v1299 = vunpack.c.l.b16 %v196
  %v1300 = vunpack.c.l.b16 %v197
  %v1301 = vunpack.c.l.b16 %v198
  %v1302 = vunpack.c.l.b16 %v199
  %v1303 = vunpack.c.l.b16 %v200
  %v1304 = vunpack.c.l.b16 %v201
  %v1305 = vunpack.c.l.b16 %v202
  %v1306 = vunpack.c.l.b16 %v203
  %v1307 = vunpack.c.l.b16 %v204
  %v1308 = vunpack.c.l.b16 %v205
  %v1309 = vunpack.c.l.b16 %v206
  %v1310 = vunpack.c.l.b16 %v207
  %v1311 = vunpack.c.l.b16 %v208
  %v1312 = vunpack.c.l.b16 %v209
  %v1313 = vunpack.c.l.b16 %v210
  %v1314 = vunpack.c.l.b16 %v211
  %v1315 = vunpack.c.l.b16 %v212
  %v1316 = vunpack.c.l.b16 %v213
  %v1317 = vunpack.c.l.b16 %v214
  %v1318 = vunpack.c.l.b16 %v215
  %v1319 = vunpack.c.l.b16 %v216
  %v1320 = vunpack.c.l.b16 %v217
  %v1321 = vunpack.c.l.b16 %v218
  %v1322 = vunpack.c.l.b16 %v219
  %v1323 = vunpack.c.l.b16 %v220
  %v1324 = vunpack.c.l.b16 %v221
  %v1325 = vunpack.c.l.b16 %v222
  %v1326 = vunpack.c.l.b16 %v223
  %v1327 = vunpack.c.l.b16 %v224
  %v1328 = vunpack.c.l.b16 %v225
  %v1329 = vunpack.c.l.b16 %v226
  %v1330 = vunpack.c.l.b16 %v227
  %v1331 = vunpack.c.l.b16 %v228
  %v1332 = vunpack.c.l.b16 %v229
  %v1333 = vunpack.c.l.b16 %v230
  %v1334 = vunpack.c.l.b16 %v231
  %v1335 = vunpack.c.l.b16 %v232
  %v1336 = vunpack.c.l.b16 %v233
  %v1337 = vunpack.c.l.b16 %v234
  %v1338 = vunpack.c.l.b16 %v235
  %v1339 = vunpack.c.l.b16 %v236
  %v1340 = vunpack.c.l.b16 %v237
  %v1341 = vunpack.c.l.b16 %v238
  %v1342 = vunpack.c.l.b16 %v239
  %v1343 = vunpack.c.l.b16 %v240
  %v1344 = vunpack.c.l.b16 %v241
  %v1345 = vunpack.c.l.b16 %v242
  %v1346 = vunpack.c.l.b16 %v243
  %v1347 = vunpack.c.l.b16 %v244
  %v1348 = vunpack.c.l.b16 %v245
  %v1349 = vunpack.c.l.b16 %v246
  %v1350 = vunpack.c.l.b16 %v247
  %v1351 = vunpack.c.l.b16 %v248
  %v1352 = vunpack.c.l.b16 %v249
  %v1353 = vunpack.c.l.b16 %v250
  %v1354 = vunpack.c.l.b16 %v251
  %v1355 = vunpack.c.l.b16 %v252
  %v1356 = vunpack.c.l.b16 %v253
  %v1357 = vunpack.c.l.b16 %v254
  %v1358 = vunpack.c.l.b16 %v255
  %v1359 = vunpack.c.l.b16 %v256
  %v1360 = vunpack.c.l.b16 %v257
  %v1361 = vunpack.c.l.b16 %v258
  %v1362 = vunpack.c.l.b16 %v259
  %v1363 = vunpack.c.l.b16 %v260
  %v1364 = vunpack.c.l.b16 %v261
  %v1365 = vunpack.c.l.b16 %v262
  %v1366 = vunpack.c.l.b16 %v263
  %v1367 = vunpack.c.l.b16 %v264
  %v1368 = vunpack.c.l.b16 %v265
  %v1369 = vunpack.c.l.b16 %v266
  %v1370 = vunpack.c.l.b16 %v267
  %v1371 = vunpack.c.l.b16 %v268
  %v1372 = vunpack.c.l.b16 %v269
  %v1373 = vunpack.c.l.b16 %v270
  %v1374 = vunpack.c.l.b16 %v271
  %v1375 = vunpack.c.l.b16 %v272
  %v1376 = vunpack.c.l.b16 %v273
  %v1377 = vunpack.c.l.b16 %v274
  %v1378 = vunpack.c.l.b16 %v275
  %v1379 = vunpack.c.l.b16 %v276
  %v1380 = vunpack.c.l.b16 %v277
  %v1381 = vunpack.c.l.b16 %v278
  %v1382 = vunpack.c.l.b16 %v279
  %v1383 = vunpack.c.l.b16 %v280
  %v1384 = vunpack.c.l.b16 %v281
  %v1385 = vunpack.c.l.b16 %v282
  %v1386 = vunpack.c.l.b16 %v283
  %v1387 = vunpack.c.l.b16 %v284
  %v1388 = vunpack.c.l.b16 %v285
  %v1389 = vunpack.c.l.b16 %v286
  %v1390 = vunpack.c.l.b16 %v287
  %v1391 = vunpack.c.l.b16 %v288
  %v1392 = vunpack.c.l.b16 %v289
  %v1393 = vunpack.c.l.b16 %v290
  %v1394 = vunpack.c.l.b16 %v291
  %v1395 = vunpack.c.l.b16 %v292
  %v1396 = vunpack.c.l.b16 %v293
  %v1397 = vunpack.c.l.b16 %v294
  %v1398 = vunpack.c.l.b16 %v295
  %v1399 = vunpack.c.l.b16 %v296
  %v1400 = vunpack.c.l.b16 %v297
  %v1401 = vunpack.c.l.b16 %v298
  %v1402 = vunpack.c.l.b16 %v299
  %v1403 = vunpack.c.l.b16 %v300
  %v1404 = vunpack.c.l.b16 %v301
  %v1405 = vunpack.c.l.b16 %v302
  %v1406 = vunpack.c.l.b16 %v303
  %v1407 = vunpack.c.l.b16 %v304
  %v1408 = vunpack.c.l.b16 %v305
  %v1409 = vunpack.c.l.b16 %v306
  %v1410 = vunpack.c.l.b16 %v307
  %v1411 = vunpack.c.l.b16 %v308
  %v1412 = vunpack.c.l.b16 %v309
  %v1413 = vunpack.c.l.b16 %v310
  %v1414 = vpack.c.b16 %v1287, %v1286
  %v1415 = vpack.c.b16 %v1289, %v1288
  %v1416 = vpack.c.b16 %v1291, %v1290
  %v1417 = vpack.c.b16 %v1293, %v1292
  %v1418 = vpack.c.b16 %v1295, %v1294
  %v1419 = vpack.c.b16 %v1297, %v1296
  %v1420 = vpack.c.b16 %v1299, %v1298
  %v1421 = vpack.c.b16 %v1301, %v1300
  %v1422 = vpack.c.b16 %v1303, %v1302
  %v1423 = vpack.c.b16 %v1305, %v1304
  %v1424 = vpack.c.b16 %v1307, %v1306
  %v1425 = vpack.c.b16 %v1309, %v1308
  %v1426 = vpack.c.b16 %v1311, %v1310
  %v1427 = vpack.c.b16 %v1313, %v1312
  %v1428 = vpack.c.b16 %v1315, %v1314
  %v1429 = vpack.c.b16 %v1317, %v1316
  %v1430 = vpack.c.b16 %v1319, %v1318
  %v1431 = vpack.c.b16 %v1321, %v1320
  %v1432 = vpack.c.b16 %v1323, %v1322
  %v1433 = vpack.c.b16 %v1325, %v1324
  %v1434 = vpack.c.b16 %v1327, %v1326
  %v1435 = vpack.c.b16 %v1329, %v1328
  %v1436 = vpack.c.b16 %v1331, %v1330
  %v1437 = vpack.c.b16 %v1333, %v1332
  %v1438 = vpack.c.b16 %v1335, %v1334
  %v1439 = vpack.c.b16 %v1337, %v1336
  %v1440 = vpack.c.b16 %v1339, %v1338
  %v1441 = vpack.c.b16 %v1341, %v1340
  %v1442 = vpack.c.b16 %v1343, %v1342
  %v1443 = vpack.c.b16 %v1345, %v1344
  %v1444 = vpack.c.b16 %v1347, %v1346
  %v1445 = vpack.c.b16 %v1349, %v1348
  %v1446 = vpack.c.b16 %v1351, %v1350
  %v1447 = vpack.c.b16 %v1353, %v1352
  %v1448 = vpack.c.b16 %v1355, %v1354
  %v1449 = vpack.c.b16 %v1357, %v1356
  %v1450 = vpack.c.b16 %v1359, %v1358
  %v1451 = vpack.c.b16 %v1361, %v1360
  %v1452 = vpack.c.b16 %v1363, %v1362
  %v1453 = vpack.c.b16 %v1365, %v1364
  %v1454 = vpack.c.b16 %v1367, %v1366
  %v1455 = vpack.c.b16 %v1369, %v1368
  %v1456 = vpack.c.b16 %v1371, %v1370
  %v1457 = vpack.c.b16 %v1373, %v1372
  %v1458 = vpack.c.b16 %v1375, %v1374
  %v1459 = vpack.c.b16 %v1377, %v1376
  %v1460 = vpack.c.b16 %v1379, %v1378
  %v1461 = vpack.c.b16 %v1381, %v1380
  %v1462 = vpack.c.b16 %v1383, %v1382
  %v1463 = vpack.c.b16 %v1385, %v1384
  %v1464 = vpack.c.b16 %v1387, %v1386
  %v1465 = vpack.c.b16 %v1389, %v1388
  %v1466 = vpack.c.b16 %v1391, %v1390
  %v1467 = vpack.c.b16 %v1393, %v1392
  %v1468 = vpack.c.b16 %v1395, %v1394
  %v1469 = vpack.c.b16 %v1397, %v1396
  %v1470 = vpack.c.b16 %v1399, %v1398
  %v1471 = vpack.c.b16 %v1401, %v1400
  %v1472 = vpack.c.b16 %v1403, %v1402
  %v1473 = vpack.c.b16 %v1405, %v1404
  %v1474 = vpack.c.b16 %v1407, %v1406
  %v1475 = vpack.c.b16 %v1409, %v1408
  %v1476 = vpack.c.b16 %v1411, %v1410
  %v1477 = vpack.c.b16 %v1413, %v1412
  %1542 = vmatprep.subr.bf16.mxu0 0
  %1543 = vmatpush1.bf16.msra.mxu0 %v1414
  %1544 = vmatprep.subr.bf16.mxu0 0
  %1545 = vmatpush1.bf16.msra.mxu0 %v1415
  %1546 = vmatprep.subr.bf16.mxu0 0
  %1547 = vmatpush1.bf16.msra.mxu0 %v1416
  %1548 = vmatprep.subr.bf16.mxu0 0
  %1549 = vmatpush1.bf16.msra.mxu0 %v1417
  %1550 = vmatprep.subr.bf16.mxu0 0
  %1551 = vmatpush1.bf16.msra.mxu0 %v1418
  %1552 = vmatprep.subr.bf16.mxu0 0
  %1553 = vmatpush1.bf16.msra.mxu0 %v1419
  %1554 = vmatprep.subr.bf16.mxu0 0
  %1555 = vmatpush1.bf16.msra.mxu0 %v1420
  %1556 = vmatprep.subr.bf16.mxu0 0
  %1557 = vmatpush1.bf16.msra.mxu0 %v1421
  %1558 = vmatprep.subr.bf16.mxu0 0
  %1559 = vmatpush1.bf16.msra.mxu0 %v1422
  %1560 = vmatprep.subr.bf16.mxu0 0
  %1561 = vmatpush1.bf16.msra.mxu0 %v1423
  %1562 = vmatprep.subr.bf16.mxu0 0
  %1563 = vmatpush1.bf16.msra.mxu0 %v1424
  %1564 = vmatprep.subr.bf16.mxu0 0
  %1565 = vmatpush1.bf16.msra.mxu0 %v1425
  %1566 = vmatprep.subr.bf16.mxu0 0
  %1567 = vmatpush1.bf16.msra.mxu0 %v1426
  %1568 = vmatprep.subr.bf16.mxu0 0
  %1569 = vmatpush1.bf16.msra.mxu0 %v1427
  %1570 = vmatprep.subr.bf16.mxu0 0
  %1571 = vmatpush1.bf16.msra.mxu0 %v1428
  %1572 = vmatprep.subr.bf16.mxu0 0
  %1573 = vmatpush1.bf16.msra.mxu0 %v1429
  %1574 = vmatprep.mubr.bf16.mxu0 %v823
  %1575 = vmatmul.mubr.bf16.gmra.mrb[0].mxu0 %v822
  %v1576 = vpop.f32.mrb[0].mxu0
  %v1577 = vadd.f32 %v316, %v1576
  %v1578 = vpop.f32.mrb[0].mxu0
  %v1579 = vpop.f32.mrb[0].mxu0
  %v1580 = vadd.f32 %v316, %v1579
  %v1581 = vpop.f32.mrb[0].mxu0
  %1582 = vmatprep.mubr.bf16.mxu0 %v831
  %1583 = vmatmul.mubr.bf16.gmra.mrb[0].mxu0 %v830
  %v1584 = vpop.f32.mrb[0].mxu0
  %v1585 = vadd.f32 %v316, %v1584
  %v1586 = vpop.f32.mrb[0].mxu0
  %v1587 = vpop.f32.mrb[0].mxu0
  %v1588 = vadd.f32 %v316, %v1587
  %v1589 = vpop.f32.mrb[0].mxu0
  %1590 = vmatprep.mubr.bf16.mxu0 %v839
  %1591 = vmatmul.mubr.bf16.gmra.mrb[0].mxu0 %v838
  %v1592 = vpop.f32.mrb[0].mxu0
  %v1593 = vadd.f32 %v316, %v1592
  %v1594 = vpop.f32.mrb[0].mxu0
  %v1595 = vpop.f32.mrb[0].mxu0
  %v1596 = vadd.f32 %v316, %v1595
  %v1597 = vpop.f32.mrb[0].mxu0
  %1598 = vmatprep.mubr.bf16.mxu0 %v847
  %1599 = vmatmul.mubr.bf16.gmra.mrb[0].mxu0 %v846
  %v1600 = vpop.f32.mrb[0].mxu0
  %v1601 = vadd.f32 %v316, %v1600
  %v1602 = vpop.f32.mrb[0].mxu0
  %v1603 = vpop.f32.mrb[0].mxu0
  %v1604 = vadd.f32 %v316, %v1603
  %v1605 = vpop.f32.mrb[0].mxu0
  %1606 = vmatprep.mubr.bf16.mxu0 %v855
  %1607 = vmatmul.mubr.bf16.gmra.mrb[0].mxu0 %v854
  %v1608 = vpop.f32.mrb[0].mxu0
  %v1609 = vadd.f32 %v316, %v1608
  %v1610 = vpop.f32.mrb[0].mxu0
  %v1611 = vpop.f32.mrb[0].mxu0
  %v1612 = vadd.f32 %v316, %v1611
  %v1613 = vpop.f32.mrb[0].mxu0
  %1614 = vmatprep.mubr.bf16.mxu0 %v863
  %1615 = vmatmul.mubr.bf16.gmra.mrb[0].mxu0 %v862
  %v1616 = vpop.f32.mrb[0].mxu0
  %v1617 = vadd.f32 %v316, %v1616
  %v1618 = vpop.f32.mrb[0].mxu0
  %v1619 = vpop.f32.mrb[0].mxu0
  %v1620 = vadd.f32 %v316, %v1619
  %v1621 = vpop.f32.mrb[0].mxu0
  %1622 = vmatprep.mubr.bf16.mxu0 %v871
  %1623 = vmatmul.mubr.bf16.gmra.mrb[0].mxu0 %v870
  %v1624 = vpop.f32.mrb[0].mxu0
  %v1625 = vadd.f32 %v316, %v1624
  %v1626 = vpop.f32.mrb[0].mxu0
  %v1627 = vpop.f32.mrb[0].mxu0
  %v1628 = vadd.f32 %v316, %v1627
  %v1629 = vpop.f32.mrb[0].mxu0
  %1630 = vmatprep.mubr.bf16.mxu0 %v879
  %1631 = vmatmul.mubr.bf16.gmra.mrb[0].mxu0 %v878
  %v1632 = vpop.f32.mrb[0].mxu0
  %v1633 = vadd.f32 %v316, %v1632
  %v1634 = vpop.f32.mrb[0].mxu0
  %v1635 = vpop.f32.mrb[0].mxu0
  %v1636 = vadd.f32 %v316, %v1635
  %v1637 = vpop.f32.mrb[0].mxu0
  %1638 = vmatprep.mubr.bf16.mxu0 %v887
  %1639 = vmatmul.mubr.bf16.gmra.mrb[0].mxu0 %v886
  %v1640 = vpop.f32.mrb[0].mxu0
  %v1641 = vadd.f32 %v316, %v1640
  %v1642 = vpop.f32.mrb[0].mxu0
  %v1643 = vpop.f32.mrb[0].mxu0
  %v1644 = vadd.f32 %v316, %v1643
  %v1645 = vpop.f32.mrb[0].mxu0
  %1646 = vmatprep.mubr.bf16.mxu0 %v895
  %1647 = vmatmul.mubr.bf16.gmra.mrb[0].mxu0 %v894
  %v1648 = vpop.f32.mrb[0].mxu0
  %v1649 = vadd.f32 %v316, %v1648
  %v1650 = vpop.f32.mrb[0].mxu0
  %v1651 = vpop.f32.mrb[0].mxu0
  %v1652 = vadd.f32 %v316, %v1651
  %v1653 = vpop.f32.mrb[0].mxu0
  %1654 = vmatprep.mubr.bf16.mxu0 %v903
  %1655 = vmatmul.mubr.bf16.gmra.mrb[0].mxu0 %v902
  %v1656 = vpop.f32.mrb[0].mxu0
  %v1657 = vadd.f32 %v316, %v1656
  %v1658 = vpop.f32.mrb[0].mxu0
  %v1659 = vpop.f32.mrb[0].mxu0
  %v1660 = vadd.f32 %v316, %v1659
  %v1661 = vpop.f32.mrb[0].mxu0
  %1662 = vmatprep.mubr.bf16.mxu0 %v911
  %1663 = vmatmul.mubr.bf16.gmra.mrb[0].mxu0 %v910
  %v1664 = vpop.f32.mrb[0].mxu0
  %v1665 = vadd.f32 %v316, %v1664
  %v1666 = vpop.f32.mrb[0].mxu0
  %v1667 = vpop.f32.mrb[0].mxu0
  %v1668 = vadd.f32 %v316, %v1667
  %v1669 = vpop.f32.mrb[0].mxu0
  %1670 = vmatprep.mubr.bf16.mxu0 %v919
  %1671 = vmatmul.mubr.bf16.gmra.mrb[0].mxu0 %v918
  %v1672 = vpop.f32.mrb[0].mxu0
  %v1673 = vadd.f32 %v316, %v1672
  %v1674 = vpop.f32.mrb[0].mxu0
  %v1675 = vpop.f32.mrb[0].mxu0
  %v1676 = vadd.f32 %v316, %v1675
  %v1677 = vpop.f32.mrb[0].mxu0
  %1678 = vmatprep.mubr.bf16.mxu0 %v927
  %1679 = vmatmul.mubr.bf16.gmra.mrb[0].mxu0 %v926
  %v1680 = vpop.f32.mrb[0].mxu0
  %v1681 = vadd.f32 %v316, %v1680
  %v1682 = vpop.f32.mrb[0].mxu0
  %v1683 = vpop.f32.mrb[0].mxu0
  %v1684 = vadd.f32 %v316, %v1683
  %v1685 = vpop.f32.mrb[0].mxu0
  %1686 = vmatprep.mubr.bf16.mxu0 %v935
  %1687 = vmatmul.mubr.bf16.gmra.mrb[0].mxu0 %v934
  %v1688 = vpop.f32.mrb[0].mxu0
  %v1689 = vadd.f32 %v316, %v1688
  %v1690 = vpop.f32.mrb[0].mxu0
  %v1691 = vpop.f32.mrb[0].mxu0
  %v1692 = vadd.f32 %v316, %v1691
  %v1693 = vpop.f32.mrb[0].mxu0
  %1694 = vmatprep.mubr.bf16.mxu0 %v943
  %1695 = vmatmul.mubr.bf16.gmra.mrb[0].mxu0 %v942
  %v1696 = vpop.f32.mrb[0].mxu0
  %v1697 = vadd.f32 %v316, %v1696
  %v1698 = vpop.f32.mrb[0].mxu0
  %v1699 = vpop.f32.mrb[0].mxu0
  %v1700 = vadd.f32 %v316, %v1699
  %v1701 = vpop.f32.mrb[0].mxu0
  %1702 = vmatprep.mubr.bf16.mxu0 %v951
  %1703 = vmatmul.mubr.bf16.gmra.mrb[0].mxu0 %v950
  %v1704 = vpop.f32.mrb[0].mxu0
  %v1705 = vadd.f32 %v316, %v1704
  %v1706 = vpop.f32.mrb[0].mxu0
  %v1707 = vpop.f32.mrb[0].mxu0
  %v1708 = vadd.f32 %v316, %v1707
  %v1709 = vpop.f32.mrb[0].mxu0
  %1710 = vmatprep.mubr.bf16.mxu0 %v959
  %1711 = vmatmul.mubr.bf16.gmra.mrb[0].mxu0 %v958
  %v1712 = vpop.f32.mrb[0].mxu0
  %v1713 = vadd.f32 %v316, %v1712
  %v1714 = vpop.f32.mrb[0].mxu0
  %v1715 = vpop.f32.mrb[0].mxu0
  %v1716 = vadd.f32 %v316, %v1715
  %v1717 = vpop.f32.mrb[0].mxu0
  %1718 = vmatprep.mubr.bf16.mxu0 %v967
  %1719 = vmatmul.mubr.bf16.gmra.mrb[0].mxu0 %v966
  %v1720 = vpop.f32.mrb[0].mxu0
  %v1721 = vadd.f32 %v316, %v1720
  %v1722 = vpop.f32.mrb[0].mxu0
  %v1723 = vpop.f32.mrb[0].mxu0
  %v1724 = vadd.f32 %v316, %v1723
  %v1725 = vpop.f32.mrb[0].mxu0
  %1726 = vmatprep.mubr.bf16.mxu0 %v975
  %1727 = vmatmul.mubr.bf16.gmra.mrb[0].mxu0 %v974
  %v1728 = vpop.f32.mrb[0].mxu0
  %v1729 = vadd.f32 %v316, %v1728
  %v1730 = vpop.f32.mrb[0].mxu0
  %v1731 = vpop.f32.mrb[0].mxu0
  %v1732 = vadd.f32 %v316, %v1731
  %v1733 = vpop.f32.mrb[0].mxu0
  %1734 = vmatprep.mubr.bf16.mxu0 %v983
  %1735 = vmatmul.mubr.bf16.gmra.mrb[0].mxu0 %v982
  %v1736 = vpop.f32.mrb[0].mxu0
  %v1737 = vadd.f32 %v316, %v1736
  %v1738 = vpop.f32.mrb[0].mxu0
  %v1739 = vpop.f32.mrb[0].mxu0
  %v1740 = vadd.f32 %v316, %v1739
  %v1741 = vpop.f32.mrb[0].mxu0
  %1742 = vdwg.mxu0
  %1743 = vmatprep.subr.bf16.mxu0 0
  %1744 = vmatpush1.bf16.msra.mxu0 %v1430
  %1745 = vmatprep.subr.bf16.mxu0 0
  %1746 = vmatpush1.bf16.msra.mxu0 %v1431
  %1747 = vmatprep.subr.bf16.mxu0 0
  %1748 = vmatpush1.bf16.msra.mxu0 %v1432
  %1749 = vmatprep.subr.bf16.mxu0 0
  %1750 = vmatpush1.bf16.msra.mxu0 %v1433
  %1751 = vmatprep.subr.bf16.mxu0 0
  %1752 = vmatpush1.bf16.msra.mxu0 %v1434
  %1753 = vmatprep.subr.bf16.mxu0 0
  %1754 = vmatpush1.bf16.msra.mxu0 %v1435
  %1755 = vmatprep.subr.bf16.mxu0 0
  %1756 = vmatpush1.bf16.msra.mxu0 %v1436
  %1757 = vmatprep.subr.bf16.mxu0 0
  %1758 = vmatpush1.bf16.msra.mxu0 %v1437
  %1759 = vmatprep.subr.bf16.mxu0 0
  %1760 = vmatpush1.bf16.msra.mxu0 %v1438
  %1761 = vmatprep.subr.bf16.mxu0 0
  %1762 = vmatpush1.bf16.msra.mxu0 %v1439
  %1763 = vmatprep.subr.bf16.mxu0 0
  %1764 = vmatpush1.bf16.msra.mxu0 %v1440
  %1765 = vmatprep.subr.bf16.mxu0 0
  %1766 = vmatpush1.bf16.msra.mxu0 %v1441
  %1767 = vmatprep.subr.bf16.mxu0 0
  %1768 = vmatpush1.bf16.msra.mxu0 %v1442
  %1769 = vmatprep.subr.bf16.mxu0 0
  %1770 = vmatpush1.bf16.msra.mxu0 %v1443
  %1771 = vmatprep.subr.bf16.mxu0 0
  %1772 = vmatpush1.bf16.msra.mxu0 %v1444
  %1773 = vmatprep.subr.bf16.mxu0 0
  %1774 = vmatpush1.bf16.msra.mxu0 %v1445
  %1775 = vmatprep.mubr.bf16.mxu0 %v825
  %1776 = vmatmul.mubr.bf16.gmra.mrb[0].mxu0 %v824
  %v1777 = vpop.f32.mrb[0].mxu0
  %v1778 = vadd.f32 %v1577, %v1777
  %v1779 = vpop.f32.mrb[0].mxu0
  %v1780 = vpop.f32.mrb[0].mxu0
  %v1781 = vadd.f32 %v1580, %v1780
  %v1782 = vpop.f32.mrb[0].mxu0
  %1783 = vmatprep.mubr.bf16.mxu0 %v833
  %1784 = vmatmul.mubr.bf16.gmra.mrb[0].mxu0 %v832
  %v1785 = vpop.f32.mrb[0].mxu0
  %v1786 = vadd.f32 %v1585, %v1785
  %v1787 = vpop.f32.mrb[0].mxu0
  %v1788 = vpop.f32.mrb[0].mxu0
  %v1789 = vadd.f32 %v1588, %v1788
  %v1790 = vpop.f32.mrb[0].mxu0
  %1791 = vmatprep.mubr.bf16.mxu0 %v841
  %1792 = vmatmul.mubr.bf16.gmra.mrb[0].mxu0 %v840
  %v1793 = vpop.f32.mrb[0].mxu0
  %v1794 = vadd.f32 %v1593, %v1793
  %v1795 = vpop.f32.mrb[0].mxu0
  %v1796 = vpop.f32.mrb[0].mxu0
  %v1797 = vadd.f32 %v1596, %v1796
  %v1798 = vpop.f32.mrb[0].mxu0
  %1799 = vmatprep.mubr.bf16.mxu0 %v849
  %1800 = vmatmul.mubr.bf16.gmra.mrb[0].mxu0 %v848
  %v1801 = vpop.f32.mrb[0].mxu0
  %v1802 = vadd.f32 %v1601, %v1801
  %v1803 = vpop.f32.mrb[0].mxu0
  %v1804 = vpop.f32.mrb[0].mxu0
  %v1805 = vadd.f32 %v1604, %v1804
  %v1806 = vpop.f32.mrb[0].mxu0
  %1807 = vmatprep.mubr.bf16.mxu0 %v857
  %1808 = vmatmul.mubr.bf16.gmra.mrb[0].mxu0 %v856
  %v1809 = vpop.f32.mrb[0].mxu0
  %v1810 = vadd.f32 %v1609, %v1809
  %v1811 = vpop.f32.mrb[0].mxu0
  %v1812 = vpop.f32.mrb[0].mxu0
  %v1813 = vadd.f32 %v1612, %v1812
  %v1814 = vpop.f32.mrb[0].mxu0
  %1815 = vmatprep.mubr.bf16.mxu0 %v865
  %1816 = vmatmul.mubr.bf16.gmra.mrb[0].mxu0 %v864
  %v1817 = vpop.f32.mrb[0].mxu0
  %v1818 = vadd.f32 %v1617, %v1817
  %v1819 = vpop.f32.mrb[0].mxu0
  %v1820 = vpop.f32.mrb[0].mxu0
  %v1821 = vadd.f32 %v1620, %v1820
  %v1822 = vpop.f32.mrb[0].mxu0
  %1823 = vmatprep.mubr.bf16.mxu0 %v873
  %1824 = vmatmul.mubr.bf16.gmra.mrb[0].mxu0 %v872
  %v1825 = vpop.f32.mrb[0].mxu0
  %v1826 = vadd.f32 %v1625, %v1825
  %v1827 = vpop.f32.mrb[0].mxu0
  %v1828 = vpop.f32.mrb[0].mxu0
  %v1829 = vadd.f32 %v1628, %v1828
  %v1830 = vpop.f32.mrb[0].mxu0
  %1831 = vmatprep.mubr.bf16.mxu0 %v881
  %1832 = vmatmul.mubr.bf16.gmra.mrb[0].mxu0 %v880
  %v1833 = vpop.f32.mrb[0].mxu0
  %v1834 = vadd.f32 %v1633, %v1833
  %v1835 = vpop.f32.mrb[0].mxu0
  %v1836 = vpop.f32.mrb[0].mxu0
  %v1837 = vadd.f32 %v1636, %v1836
  %v1838 = vpop.f32.mrb[0].mxu0
  %1839 = vmatprep.mubr.bf16.mxu0 %v889
  %1840 = vmatmul.mubr.bf16.gmra.mrb[0].mxu0 %v888
  %v1841 = vpop.f32.mrb[0].mxu0
  %v1842 = vadd.f32 %v1641, %v1841
  %v1843 = vpop.f32.mrb[0].mxu0
  %v1844 = vpop.f32.mrb[0].mxu0
  %v1845 = vadd.f32 %v1644, %v1844
  %v1846 = vpop.f32.mrb[0].mxu0
  %1847 = vmatprep.mubr.bf16.mxu0 %v897
  %1848 = vmatmul.mubr.bf16.gmra.mrb[0].mxu0 %v896
  %v1849 = vpop.f32.mrb[0].mxu0
  %v1850 = vadd.f32 %v1649, %v1849
  %v1851 = vpop.f32.mrb[0].mxu0
  %v1852 = vpop.f32.mrb[0].mxu0
  %v1853 = vadd.f32 %v1652, %v1852
  %v1854 = vpop.f32.mrb[0].mxu0
  %1855 = vmatprep.mubr.bf16.mxu0 %v905
  %1856 = vmatmul.mubr.bf16.gmra.mrb[0].mxu0 %v904
  %v1857 = vpop.f32.mrb[0].mxu0
  %v1858 = vadd.f32 %v1657, %v1857
  %v1859 = vpop.f32.mrb[0].mxu0
  %v1860 = vpop.f32.mrb[0].mxu0
  %v1861 = vadd.f32 %v1660, %v1860
  %v1862 = vpop.f32.mrb[0].mxu0
  %1863 = vmatprep.mubr.bf16.mxu0 %v913
  %1864 = vmatmul.mubr.bf16.gmra.mrb[0].mxu0 %v912
  %v1865 = vpop.f32.mrb[0].mxu0
  %v1866 = vadd.f32 %v1665, %v1865
  %v1867 = vpop.f32.mrb[0].mxu0
  %v1868 = vpop.f32.mrb[0].mxu0
  %v1869 = vadd.f32 %v1668, %v1868
  %v1870 = vpop.f32.mrb[0].mxu0
  %1871 = vmatprep.mubr.bf16.mxu0 %v921
  %1872 = vmatmul.mubr.bf16.gmra.mrb[0].mxu0 %v920
  %v1873 = vpop.f32.mrb[0].mxu0
  %v1874 = vadd.f32 %v1673, %v1873
  %v1875 = vpop.f32.mrb[0].mxu0
  %v1876 = vpop.f32.mrb[0].mxu0
  %v1877 = vadd.f32 %v1676, %v1876
  %v1878 = vpop.f32.mrb[0].mxu0
  %1879 = vmatprep.mubr.bf16.mxu0 %v929
  %1880 = vmatmul.mubr.bf16.gmra.mrb[0].mxu0 %v928
  %v1881 = vpop.f32.mrb[0].mxu0
  %v1882 = vadd.f32 %v1681, %v1881
  %v1883 = vpop.f32.mrb[0].mxu0
  %v1884 = vpop.f32.mrb[0].mxu0
  %v1885 = vadd.f32 %v1684, %v1884
  %v1886 = vpop.f32.mrb[0].mxu0
  %1887 = vmatprep.mubr.bf16.mxu0 %v937
  %1888 = vmatmul.mubr.bf16.gmra.mrb[0].mxu0 %v936
  %v1889 = vpop.f32.mrb[0].mxu0
  %v1890 = vadd.f32 %v1689, %v1889
  %v1891 = vpop.f32.mrb[0].mxu0
  %v1892 = vpop.f32.mrb[0].mxu0
  %v1893 = vadd.f32 %v1692, %v1892
  %v1894 = vpop.f32.mrb[0].mxu0
  %1895 = vmatprep.mubr.bf16.mxu0 %v945
  %1896 = vmatmul.mubr.bf16.gmra.mrb[0].mxu0 %v944
  %v1897 = vpop.f32.mrb[0].mxu0
  %v1898 = vadd.f32 %v1697, %v1897
  %v1899 = vpop.f32.mrb[0].mxu0
  %v1900 = vpop.f32.mrb[0].mxu0
  %v1901 = vadd.f32 %v1700, %v1900
  %v1902 = vpop.f32.mrb[0].mxu0
  %1903 = vmatprep.mubr.bf16.mxu0 %v953
  %1904 = vmatmul.mubr.bf16.gmra.mrb[0].mxu0 %v952
  %v1905 = vpop.f32.mrb[0].mxu0
  %v1906 = vadd.f32 %v1705, %v1905
  %v1907 = vpop.f32.mrb[0].mxu0
  %v1908 = vpop.f32.mrb[0].mxu0
  %v1909 = vadd.f32 %v1708, %v1908
  %v1910 = vpop.f32.mrb[0].mxu0
  %1911 = vmatprep.mubr.bf16.mxu0 %v961
  %1912 = vmatmul.mubr.bf16.gmra.mrb[0].mxu0 %v960
  %v1913 = vpop.f32.mrb[0].mxu0
  %v1914 = vadd.f32 %v1713, %v1913
  %v1915 = vpop.f32.mrb[0].mxu0
  %v1916 = vpop.f32.mrb[0].mxu0
  %v1917 = vadd.f32 %v1716, %v1916
  %v1918 = vpop.f32.mrb[0].mxu0
  %1919 = vmatprep.mubr.bf16.mxu0 %v969
  %1920 = vmatmul.mubr.bf16.gmra.mrb[0].mxu0 %v968
  %v1921 = vpop.f32.mrb[0].mxu0
  %v1922 = vadd.f32 %v1721, %v1921
  %v1923 = vpop.f32.mrb[0].mxu0
  %v1924 = vpop.f32.mrb[0].mxu0
  %v1925 = vadd.f32 %v1724, %v1924
  %v1926 = vpop.f32.mrb[0].mxu0
  %1927 = vmatprep.mubr.bf16.mxu0 %v977
  %1928 = vmatmul.mubr.bf16.gmra.mrb[0].mxu0 %v976
  %v1929 = vpop.f32.mrb[0].mxu0
  %v1930 = vadd.f32 %v1729, %v1929
  %v1931 = vpop.f32.mrb[0].mxu0
  %v1932 = vpop.f32.mrb[0].mxu0
  %v1933 = vadd.f32 %v1732, %v1932
  %v1934 = vpop.f32.mrb[0].mxu0
  %1935 = vmatprep.mubr.bf16.mxu0 %v985
  %1936 = vmatmul.mubr.bf16.gmra.mrb[0].mxu0 %v984
  %v1937 = vpop.f32.mrb[0].mxu0
  %v1938 = vadd.f32 %v1737, %v1937
  %v1939 = vpop.f32.mrb[0].mxu0
  %v1940 = vpop.f32.mrb[0].mxu0
  %v1941 = vadd.f32 %v1740, %v1940
  %v1942 = vpop.f32.mrb[0].mxu0
  %1943 = vdwg.mxu0
  %1944 = vmatprep.subr.bf16.mxu0 0
  %1945 = vmatpush1.bf16.msra.mxu0 %v1446
  %1946 = vmatprep.subr.bf16.mxu0 0
  %1947 = vmatpush1.bf16.msra.mxu0 %v1447
  %1948 = vmatprep.subr.bf16.mxu0 0
  %1949 = vmatpush1.bf16.msra.mxu0 %v1448
  %1950 = vmatprep.subr.bf16.mxu0 0
  %1951 = vmatpush1.bf16.msra.mxu0 %v1449
  %1952 = vmatprep.subr.bf16.mxu0 0
  %1953 = vmatpush1.bf16.msra.mxu0 %v1450
  %1954 = vmatprep.subr.bf16.mxu0 0
  %1955 = vmatpush1.bf16.msra.mxu0 %v1451
  %1956 = vmatprep.subr.bf16.mxu0 0
  %1957 = vmatpush1.bf16.msra.mxu0 %v1452
  %1958 = vmatprep.subr.bf16.mxu0 0
  %1959 = vmatpush1.bf16.msra.mxu0 %v1453
  %1960 = vmatprep.subr.bf16.mxu0 0
  %1961 = vmatpush1.bf16.msra.mxu0 %v1454
  %1962 = vmatprep.subr.bf16.mxu0 0
  %1963 = vmatpush1.bf16.msra.mxu0 %v1455
  %1964 = vmatprep.subr.bf16.mxu0 0
  %1965 = vmatpush1.bf16.msra.mxu0 %v1456
  %1966 = vmatprep.subr.bf16.mxu0 0
  %1967 = vmatpush1.bf16.msra.mxu0 %v1457
  %1968 = vmatprep.subr.bf16.mxu0 0
  %1969 = vmatpush1.bf16.msra.mxu0 %v1458
  %1970 = vmatprep.subr.bf16.mxu0 0
  %1971 = vmatpush1.bf16.msra.mxu0 %v1459
  %1972 = vmatprep.subr.bf16.mxu0 0
  %1973 = vmatpush1.bf16.msra.mxu0 %v1460
  %1974 = vmatprep.subr.bf16.mxu0 0
  %1975 = vmatpush1.bf16.msra.mxu0 %v1461
  %1976 = vmatprep.mubr.bf16.mxu0 %v827
  %1977 = vmatmul.mubr.bf16.gmra.mrb[0].mxu0 %v826
  %v1978 = vpop.f32.mrb[0].mxu0
  %v1979 = vadd.f32 %v1778, %v1978
  %v1980 = vpop.f32.mrb[0].mxu0
  %v1981 = vpop.f32.mrb[0].mxu0
  %v1982 = vadd.f32 %v1781, %v1981
  %v1983 = vpop.f32.mrb[0].mxu0
  %1984 = vmatprep.mubr.bf16.mxu0 %v835
  %1985 = vmatmul.mubr.bf16.gmra.mrb[0].mxu0 %v834
  %v1986 = vpop.f32.mrb[0].mxu0
  %v1987 = vadd.f32 %v1786, %v1986
  %v1988 = vpop.f32.mrb[0].mxu0
  %v1989 = vpop.f32.mrb[0].mxu0
  %v1990 = vadd.f32 %v1789, %v1989
  %v1991 = vpop.f32.mrb[0].mxu0
  %1992 = vmatprep.mubr.bf16.mxu0 %v843
  %1993 = vmatmul.mubr.bf16.gmra.mrb[0].mxu0 %v842
  %v1994 = vpop.f32.mrb[0].mxu0
  %v1995 = vadd.f32 %v1794, %v1994
  %v1996 = vpop.f32.mrb[0].mxu0
  %v1997 = vpop.f32.mrb[0].mxu0
  %v1998 = vadd.f32 %v1797, %v1997
  %v1999 = vpop.f32.mrb[0].mxu0
  %2000 = vmatprep.mubr.bf16.mxu0 %v851
  %2001 = vmatmul.mubr.bf16.gmra.mrb[0].mxu0 %v850
  %v2002 = vpop.f32.mrb[0].mxu0
  %v2003 = vadd.f32 %v1802, %v2002
  %v2004 = vpop.f32.mrb[0].mxu0
  %v2005 = vpop.f32.mrb[0].mxu0
  %v2006 = vadd.f32 %v1805, %v2005
  %v2007 = vpop.f32.mrb[0].mxu0
  %2008 = vmatprep.mubr.bf16.mxu0 %v859
  %2009 = vmatmul.mubr.bf16.gmra.mrb[0].mxu0 %v858
  %v2010 = vpop.f32.mrb[0].mxu0
  %v2011 = vadd.f32 %v1810, %v2010
  %v2012 = vpop.f32.mrb[0].mxu0
  %v2013 = vpop.f32.mrb[0].mxu0
  %v2014 = vadd.f32 %v1813, %v2013
  %v2015 = vpop.f32.mrb[0].mxu0
  %2016 = vmatprep.mubr.bf16.mxu0 %v867
  %2017 = vmatmul.mubr.bf16.gmra.mrb[0].mxu0 %v866
  %v2018 = vpop.f32.mrb[0].mxu0
  %v2019 = vadd.f32 %v1818, %v2018
  %v2020 = vpop.f32.mrb[0].mxu0
  %v2021 = vpop.f32.mrb[0].mxu0
  %v2022 = vadd.f32 %v1821, %v2021
  %v2023 = vpop.f32.mrb[0].mxu0
  %2024 = vmatprep.mubr.bf16.mxu0 %v875
  %2025 = vmatmul.mubr.bf16.gmra.mrb[0].mxu0 %v874
  %v2026 = vpop.f32.mrb[0].mxu0
  %v2027 = vadd.f32 %v1826, %v2026
  %v2028 = vpop.f32.mrb[0].mxu0
  %v2029 = vpop.f32.mrb[0].mxu0
  %v2030 = vadd.f32 %v1829, %v2029
  %v2031 = vpop.f32.mrb[0].mxu0
  %2032 = vmatprep.mubr.bf16.mxu0 %v883
  %2033 = vmatmul.mubr.bf16.gmra.mrb[0].mxu0 %v882
  %v2034 = vpop.f32.mrb[0].mxu0
  %v2035 = vadd.f32 %v1834, %v2034
  %v2036 = vpop.f32.mrb[0].mxu0
  %v2037 = vpop.f32.mrb[0].mxu0
  %v2038 = vadd.f32 %v1837, %v2037
  %v2039 = vpop.f32.mrb[0].mxu0
  %2040 = vmatprep.mubr.bf16.mxu0 %v891
  %2041 = vmatmul.mubr.bf16.gmra.mrb[0].mxu0 %v890
  %v2042 = vpop.f32.mrb[0].mxu0
  %v2043 = vadd.f32 %v1842, %v2042
  %v2044 = vpop.f32.mrb[0].mxu0
  %v2045 = vpop.f32.mrb[0].mxu0
  %v2046 = vadd.f32 %v1845, %v2045
  %v2047 = vpop.f32.mrb[0].mxu0
  %2048 = vmatprep.mubr.bf16.mxu0 %v899
  %2049 = vmatmul.mubr.bf16.gmra.mrb[0].mxu0 %v898
  %v2050 = vpop.f32.mrb[0].mxu0
  %v2051 = vadd.f32 %v1850, %v2050
  %v2052 = vpop.f32.mrb[0].mxu0
  %v2053 = vpop.f32.mrb[0].mxu0
  %v2054 = vadd.f32 %v1853, %v2053
  %v2055 = vpop.f32.mrb[0].mxu0
  %2056 = vmatprep.mubr.bf16.mxu0 %v907
  %2057 = vmatmul.mubr.bf16.gmra.mrb[0].mxu0 %v906
  %v2058 = vpop.f32.mrb[0].mxu0
  %v2059 = vadd.f32 %v1858, %v2058
  %v2060 = vpop.f32.mrb[0].mxu0
  %v2061 = vpop.f32.mrb[0].mxu0
  %v2062 = vadd.f32 %v1861, %v2061
  %v2063 = vpop.f32.mrb[0].mxu0
  %2064 = vmatprep.mubr.bf16.mxu0 %v915
  %2065 = vmatmul.mubr.bf16.gmra.mrb[0].mxu0 %v914
  %v2066 = vpop.f32.mrb[0].mxu0
  %v2067 = vadd.f32 %v1866, %v2066
  %v2068 = vpop.f32.mrb[0].mxu0
  %v2069 = vpop.f32.mrb[0].mxu0
  %v2070 = vadd.f32 %v1869, %v2069
  %v2071 = vpop.f32.mrb[0].mxu0
  %2072 = vmatprep.mubr.bf16.mxu0 %v923
  %2073 = vmatmul.mubr.bf16.gmra.mrb[0].mxu0 %v922
  %v2074 = vpop.f32.mrb[0].mxu0
  %v2075 = vadd.f32 %v1874, %v2074
  %v2076 = vpop.f32.mrb[0].mxu0
  %v2077 = vpop.f32.mrb[0].mxu0
  %v2078 = vadd.f32 %v1877, %v2077
  %v2079 = vpop.f32.mrb[0].mxu0
  %2080 = vmatprep.mubr.bf16.mxu0 %v931
  %2081 = vmatmul.mubr.bf16.gmra.mrb[0].mxu0 %v930
  %v2082 = vpop.f32.mrb[0].mxu0
  %v2083 = vadd.f32 %v1882, %v2082
  %v2084 = vpop.f32.mrb[0].mxu0
  %v2085 = vpop.f32.mrb[0].mxu0
  %v2086 = vadd.f32 %v1885, %v2085
  %v2087 = vpop.f32.mrb[0].mxu0
  %2088 = vmatprep.mubr.bf16.mxu0 %v939
  %2089 = vmatmul.mubr.bf16.gmra.mrb[0].mxu0 %v938
  %v2090 = vpop.f32.mrb[0].mxu0
  %v2091 = vadd.f32 %v1890, %v2090
  %v2092 = vpop.f32.mrb[0].mxu0
  %v2093 = vpop.f32.mrb[0].mxu0
  %v2094 = vadd.f32 %v1893, %v2093
  %v2095 = vpop.f32.mrb[0].mxu0
  %2096 = vmatprep.mubr.bf16.mxu0 %v947
  %2097 = vmatmul.mubr.bf16.gmra.mrb[0].mxu0 %v946
  %v2098 = vpop.f32.mrb[0].mxu0
  %v2099 = vadd.f32 %v1898, %v2098
  %v2100 = vpop.f32.mrb[0].mxu0
  %v2101 = vpop.f32.mrb[0].mxu0
  %v2102 = vadd.f32 %v1901, %v2101
  %v2103 = vpop.f32.mrb[0].mxu0
  %2104 = vmatprep.mubr.bf16.mxu0 %v955
  %2105 = vmatmul.mubr.bf16.gmra.mrb[0].mxu0 %v954
  %v2106 = vpop.f32.mrb[0].mxu0
  %v2107 = vadd.f32 %v1906, %v2106
  %v2108 = vpop.f32.mrb[0].mxu0
  %v2109 = vpop.f32.mrb[0].mxu0
  %v2110 = vadd.f32 %v1909, %v2109
  %v2111 = vpop.f32.mrb[0].mxu0
  %2112 = vmatprep.mubr.bf16.mxu0 %v963
  %2113 = vmatmul.mubr.bf16.gmra.mrb[0].mxu0 %v962
  %v2114 = vpop.f32.mrb[0].mxu0
  %v2115 = vadd.f32 %v1914, %v2114
  %v2116 = vpop.f32.mrb[0].mxu0
  %v2117 = vpop.f32.mrb[0].mxu0
  %v2118 = vadd.f32 %v1917, %v2117
  %v2119 = vpop.f32.mrb[0].mxu0
  %2120 = vmatprep.mubr.bf16.mxu0 %v971
  %2121 = vmatmul.mubr.bf16.gmra.mrb[0].mxu0 %v970
  %v2122 = vpop.f32.mrb[0].mxu0
  %v2123 = vadd.f32 %v1922, %v2122
  %v2124 = vpop.f32.mrb[0].mxu0
  %v2125 = vpop.f32.mrb[0].mxu0
  %v2126 = vadd.f32 %v1925, %v2125
  %v2127 = vpop.f32.mrb[0].mxu0
  %2128 = vmatprep.mubr.bf16.mxu0 %v979
  %2129 = vmatmul.mubr.bf16.gmra.mrb[0].mxu0 %v978
  %v2130 = vpop.f32.mrb[0].mxu0
  %v2131 = vadd.f32 %v1930, %v2130
  %v2132 = vpop.f32.mrb[0].mxu0
  %v2133 = vpop.f32.mrb[0].mxu0
  %v2134 = vadd.f32 %v1933, %v2133
  %v2135 = vpop.f32.mrb[0].mxu0
  %2136 = vmatprep.mubr.bf16.mxu0 %v987
  %2137 = vmatmul.mubr.bf16.gmra.mrb[0].mxu0 %v986
  %v2138 = vpop.f32.mrb[0].mxu0
  %v2139 = vadd.f32 %v1938, %v2138
  %v2140 = vpop.f32.mrb[0].mxu0
  %v2141 = vpop.f32.mrb[0].mxu0
  %v2142 = vadd.f32 %v1941, %v2141
  %v2143 = vpop.f32.mrb[0].mxu0
  %2144 = vdwg.mxu0
  %2145 = vmatprep.subr.bf16.mxu0 0
  %2146 = vmatpush1.bf16.msra.mxu0 %v1462
  %2147 = vmatprep.subr.bf16.mxu0 0
  %2148 = vmatpush1.bf16.msra.mxu0 %v1463
  %2149 = vmatprep.subr.bf16.mxu0 0
  %2150 = vmatpush1.bf16.msra.mxu0 %v1464
  %2151 = vmatprep.subr.bf16.mxu0 0
  %2152 = vmatpush1.bf16.msra.mxu0 %v1465
  %2153 = vmatprep.subr.bf16.mxu0 0
  %2154 = vmatpush1.bf16.msra.mxu0 %v1466
  %2155 = vmatprep.subr.bf16.mxu0 0
  %2156 = vmatpush1.bf16.msra.mxu0 %v1467
  %2157 = vmatprep.subr.bf16.mxu0 0
  %2158 = vmatpush1.bf16.msra.mxu0 %v1468
  %2159 = vmatprep.subr.bf16.mxu0 0
  %2160 = vmatpush1.bf16.msra.mxu0 %v1469
  %2161 = vmatprep.subr.bf16.mxu0 0
  %2162 = vmatpush1.bf16.msra.mxu0 %v1470
  %2163 = vmatprep.subr.bf16.mxu0 0
  %2164 = vmatpush1.bf16.msra.mxu0 %v1471
  %2165 = vmatprep.subr.bf16.mxu0 0
  %2166 = vmatpush1.bf16.msra.mxu0 %v1472
  %2167 = vmatprep.subr.bf16.mxu0 0
  %2168 = vmatpush1.bf16.msra.mxu0 %v1473
  %2169 = vmatprep.subr.bf16.mxu0 0
  %2170 = vmatpush1.bf16.msra.mxu0 %v1474
  %2171 = vmatprep.subr.bf16.mxu0 0
  %2172 = vmatpush1.bf16.msra.mxu0 %v1475
  %2173 = vmatprep.subr.bf16.mxu0 0
  %2174 = vmatpush1.bf16.msra.mxu0 %v1476
  %2175 = vmatprep.subr.bf16.mxu0 0
  %2176 = vmatpush1.bf16.msra.mxu0 %v1477
  %2177 = vmatprep.mubr.bf16.mxu0 %v829
  %2178 = vmatmul.mubr.bf16.gmra.mrb[0].mxu0 %v828
  %v2179 = vpop.f32.mrb[0].mxu0
  %v2180 = vadd.f32 %v1979, %v2179
  %v2181 = vpop.f32.mrb[0].mxu0
  %v2182 = vpop.f32.mrb[0].mxu0
  %v2183 = vadd.f32 %v1982, %v2182
  %v2184 = vpop.f32.mrb[0].mxu0
  %2185 = vmatprep.mubr.bf16.mxu0 %v837
  %2186 = vmatmul.mubr.bf16.gmra.mrb[0].mxu0 %v836
  %v2187 = vpop.f32.mrb[0].mxu0
  %v2188 = vadd.f32 %v1987, %v2187
  %v2189 = vpop.f32.mrb[0].mxu0
  %v2190 = vpop.f32.mrb[0].mxu0
  %v2191 = vadd.f32 %v1990, %v2190
  %v2192 = vpop.f32.mrb[0].mxu0
  %2193 = vmatprep.mubr.bf16.mxu0 %v845
  %2194 = vmatmul.mubr.bf16.gmra.mrb[0].mxu0 %v844
  %v2195 = vpop.f32.mrb[0].mxu0
  %v2196 = vadd.f32 %v1995, %v2195
  %v2197 = vpop.f32.mrb[0].mxu0
  %v2198 = vpop.f32.mrb[0].mxu0
  %v2199 = vadd.f32 %v1998, %v2198
  %v2200 = vpop.f32.mrb[0].mxu0
  %2201 = vmatprep.mubr.bf16.mxu0 %v853
  %2202 = vmatmul.mubr.bf16.gmra.mrb[0].mxu0 %v852
  %v2203 = vpop.f32.mrb[0].mxu0
  %v2204 = vadd.f32 %v2003, %v2203
  %v2205 = vpop.f32.mrb[0].mxu0
  %v2206 = vpop.f32.mrb[0].mxu0
  %v2207 = vadd.f32 %v2006, %v2206
  %v2208 = vpop.f32.mrb[0].mxu0
  %2209 = vmatprep.mubr.bf16.mxu0 %v861
  %2210 = vmatmul.mubr.bf16.gmra.mrb[0].mxu0 %v860
  %v2211 = vpop.f32.mrb[0].mxu0
  %v2212 = vadd.f32 %v2011, %v2211
  %v2213 = vpop.f32.mrb[0].mxu0
  %v2214 = vpop.f32.mrb[0].mxu0
  %v2215 = vadd.f32 %v2014, %v2214
  %v2216 = vpop.f32.mrb[0].mxu0
  %2217 = vmatprep.mubr.bf16.mxu0 %v869
  %2218 = vmatmul.mubr.bf16.gmra.mrb[0].mxu0 %v868
  %v2219 = vpop.f32.mrb[0].mxu0
  %v2220 = vadd.f32 %v2019, %v2219
  %v2221 = vpop.f32.mrb[0].mxu0
  %v2222 = vpop.f32.mrb[0].mxu0
  %v2223 = vadd.f32 %v2022, %v2222
  %v2224 = vpop.f32.mrb[0].mxu0
  %2225 = vmatprep.mubr.bf16.mxu0 %v877
  %2226 = vmatmul.mubr.bf16.gmra.mrb[0].mxu0 %v876
  %v2227 = vpop.f32.mrb[0].mxu0
  %v2228 = vadd.f32 %v2027, %v2227
  %v2229 = vpop.f32.mrb[0].mxu0
  %v2230 = vpop.f32.mrb[0].mxu0
  %v2231 = vadd.f32 %v2030, %v2230
  %v2232 = vpop.f32.mrb[0].mxu0
  %2233 = vmatprep.mubr.bf16.mxu0 %v885
  %2234 = vmatmul.mubr.bf16.gmra.mrb[0].mxu0 %v884
  %v2235 = vpop.f32.mrb[0].mxu0
  %v2236 = vadd.f32 %v2035, %v2235
  %v2237 = vpop.f32.mrb[0].mxu0
  %v2238 = vpop.f32.mrb[0].mxu0
  %v2239 = vadd.f32 %v2038, %v2238
  %v2240 = vpop.f32.mrb[0].mxu0
  %2241 = vmatprep.mubr.bf16.mxu0 %v893
  %2242 = vmatmul.mubr.bf16.gmra.mrb[0].mxu0 %v892
  %v2243 = vpop.f32.mrb[0].mxu0
  %v2244 = vadd.f32 %v2043, %v2243
  %v2245 = vpop.f32.mrb[0].mxu0
  %v2246 = vpop.f32.mrb[0].mxu0
  %v2247 = vadd.f32 %v2046, %v2246
  %v2248 = vpop.f32.mrb[0].mxu0
  %2249 = vmatprep.mubr.bf16.mxu0 %v901
  %2250 = vmatmul.mubr.bf16.gmra.mrb[0].mxu0 %v900
  %v2251 = vpop.f32.mrb[0].mxu0
  %v2252 = vadd.f32 %v2051, %v2251
  %v2253 = vpop.f32.mrb[0].mxu0
  %v2254 = vpop.f32.mrb[0].mxu0
  %v2255 = vadd.f32 %v2054, %v2254
  %v2256 = vpop.f32.mrb[0].mxu0
  %2257 = vmatprep.mubr.bf16.mxu0 %v909
  %2258 = vmatmul.mubr.bf16.gmra.mrb[0].mxu0 %v908
  %v2259 = vpop.f32.mrb[0].mxu0
  %v2260 = vadd.f32 %v2059, %v2259
  %v2261 = vpop.f32.mrb[0].mxu0
  %v2262 = vpop.f32.mrb[0].mxu0
  %v2263 = vadd.f32 %v2062, %v2262
  %v2264 = vpop.f32.mrb[0].mxu0
  %2265 = vmatprep.mubr.bf16.mxu0 %v917
  %2266 = vmatmul.mubr.bf16.gmra.mrb[0].mxu0 %v916
  %v2267 = vpop.f32.mrb[0].mxu0
  %v2268 = vadd.f32 %v2067, %v2267
  %v2269 = vpop.f32.mrb[0].mxu0
  %v2270 = vpop.f32.mrb[0].mxu0
  %v2271 = vadd.f32 %v2070, %v2270
  %v2272 = vpop.f32.mrb[0].mxu0
  %2273 = vmatprep.mubr.bf16.mxu0 %v925
  %2274 = vmatmul.mubr.bf16.gmra.mrb[0].mxu0 %v924
  %v2275 = vpop.f32.mrb[0].mxu0
  %v2276 = vadd.f32 %v2075, %v2275
  %v2277 = vpop.f32.mrb[0].mxu0
  %v2278 = vpop.f32.mrb[0].mxu0
  %v2279 = vadd.f32 %v2078, %v2278
  %v2280 = vpop.f32.mrb[0].mxu0
  %2281 = vmatprep.mubr.bf16.mxu0 %v933
  %2282 = vmatmul.mubr.bf16.gmra.mrb[0].mxu0 %v932
  %v2283 = vpop.f32.mrb[0].mxu0
  %v2284 = vadd.f32 %v2083, %v2283
  %v2285 = vpop.f32.mrb[0].mxu0
  %v2286 = vpop.f32.mrb[0].mxu0
  %v2287 = vadd.f32 %v2086, %v2286
  %v2288 = vpop.f32.mrb[0].mxu0
  %2289 = vmatprep.mubr.bf16.mxu0 %v941
  %2290 = vmatmul.mubr.bf16.gmra.mrb[0].mxu0 %v940
  %v2291 = vpop.f32.mrb[0].mxu0
  %v2292 = vadd.f32 %v2091, %v2291
  %v2293 = vpop.f32.mrb[0].mxu0
  %v2294 = vpop.f32.mrb[0].mxu0
  %v2295 = vadd.f32 %v2094, %v2294
  %v2296 = vpop.f32.mrb[0].mxu0
  %2297 = vmatprep.mubr.bf16.mxu0 %v949
  %2298 = vmatmul.mubr.bf16.gmra.mrb[0].mxu0 %v948
  %v2299 = vpop.f32.mrb[0].mxu0
  %v2300 = vadd.f32 %v2099, %v2299
  %v2301 = vpop.f32.mrb[0].mxu0
  %v2302 = vpop.f32.mrb[0].mxu0
  %v2303 = vadd.f32 %v2102, %v2302
  %v2304 = vpop.f32.mrb[0].mxu0
  %2305 = vmatprep.mubr.bf16.mxu0 %v957
  %2306 = vmatmul.mubr.bf16.gmra.mrb[0].mxu0 %v956
  %v2307 = vpop.f32.mrb[0].mxu0
  %v2308 = vadd.f32 %v2107, %v2307
  %v2309 = vpop.f32.mrb[0].mxu0
  %v2310 = vpop.f32.mrb[0].mxu0
  %v2311 = vadd.f32 %v2110, %v2310
  %v2312 = vpop.f32.mrb[0].mxu0
  %2313 = vmatprep.mubr.bf16.mxu0 %v965
  %2314 = vmatmul.mubr.bf16.gmra.mrb[0].mxu0 %v964
  %v2315 = vpop.f32.mrb[0].mxu0
  %v2316 = vadd.f32 %v2115, %v2315
  %v2317 = vpop.f32.mrb[0].mxu0
  %v2318 = vpop.f32.mrb[0].mxu0
  %v2319 = vadd.f32 %v2118, %v2318
  %v2320 = vpop.f32.mrb[0].mxu0
  %2321 = vmatprep.mubr.bf16.mxu0 %v973
  %2322 = vmatmul.mubr.bf16.gmra.mrb[0].mxu0 %v972
  %v2323 = vpop.f32.mrb[0].mxu0
  %v2324 = vadd.f32 %v2123, %v2323
  %v2325 = vpop.f32.mrb[0].mxu0
  %v2326 = vpop.f32.mrb[0].mxu0
  %v2327 = vadd.f32 %v2126, %v2326
  %v2328 = vpop.f32.mrb[0].mxu0
  %2329 = vmatprep.mubr.bf16.mxu0 %v981
  %2330 = vmatmul.mubr.bf16.gmra.mrb[0].mxu0 %v980
  %v2331 = vpop.f32.mrb[0].mxu0
  %v2332 = vadd.f32 %v2131, %v2331
  %v2333 = vpop.f32.mrb[0].mxu0
  %v2334 = vpop.f32.mrb[0].mxu0
  %v2335 = vadd.f32 %v2134, %v2334
  %v2336 = vpop.f32.mrb[0].mxu0
  %2337 = vmatprep.mubr.bf16.mxu0 %v989
  %2338 = vmatmul.mubr.bf16.gmra.mrb[0].mxu0 %v988
  %v2339 = vpop.f32.mrb[0].mxu0
  %v2340 = vadd.f32 %v2139, %v2339
  %v2341 = vpop.f32.mrb[0].mxu0
  %v2342 = vpop.f32.mrb[0].mxu0
  %v2343 = vadd.f32 %v2142, %v2342
  %v2344 = vpop.f32.mrb[0].mxu0
  %2345 = vdwg.mxu0
  %vm2346 = vcmp.ge.f32.partialorder %v2180, 0.0
  %vm2347 = vcmp.ge.f32.partialorder %v2183, 0.0
  %vm2348 = vcmp.ge.f32.partialorder %v2188, 0.0
  %vm2349 = vcmp.ge.f32.partialorder %v2191, 0.0
  %vm2350 = vcmp.ge.f32.partialorder %v2196, 0.0
  %vm2351 = vcmp.ge.f32.partialorder %v2199, 0.0
  %vm2352 = vcmp.ge.f32.partialorder %v2204, 0.0
  %vm2353 = vcmp.ge.f32.partialorder %v2207, 0.0
  %vm2354 = vcmp.ge.f32.partialorder %v2212, 0.0
  %vm2355 = vcmp.ge.f32.partialorder %v2215, 0.0
  %vm2356 = vcmp.ge.f32.partialorder %v2220, 0.0
  %vm2357 = vcmp.ge.f32.partialorder %v2223, 0.0
  %vm2358 = vcmp.ge.f32.partialorder %v2228, 0.0
  %vm2359 = vcmp.ge.f32.partialorder %v2231, 0.0
  %vm2360 = vcmp.ge.f32.partialorder %v2236, 0.0
  %vm2361 = vcmp.ge.f32.partialorder %v2239, 0.0
  %vm2362 = vcmp.ge.f32.partialorder %v2244, 0.0
  %vm2363 = vcmp.ge.f32.partialorder %v2247, 0.0
  %vm2364 = vcmp.ge.f32.partialorder %v2252, 0.0
  %vm2365 = vcmp.ge.f32.partialorder %v2255, 0.0
  %vm2366 = vcmp.ge.f32.partialorder %v2260, 0.0
  %vm2367 = vcmp.ge.f32.partialorder %v2263, 0.0
  %vm2368 = vcmp.ge.f32.partialorder %v2268, 0.0
  %vm2369 = vcmp.ge.f32.partialorder %v2271, 0.0
  %vm2370 = vcmp.ge.f32.partialorder %v2276, 0.0
  %vm2371 = vcmp.ge.f32.partialorder %v2279, 0.0
  %vm2372 = vcmp.ge.f32.partialorder %v2284, 0.0
  %vm2373 = vcmp.ge.f32.partialorder %v2287, 0.0
  %vm2374 = vcmp.ge.f32.partialorder %v2292, 0.0
  %vm2375 = vcmp.ge.f32.partialorder %v2295, 0.0
  %vm2376 = vcmp.ge.f32.partialorder %v2300, 0.0
  %vm2377 = vcmp.ge.f32.partialorder %v2303, 0.0
  %vm2378 = vcmp.ge.f32.partialorder %v2308, 0.0
  %vm2379 = vcmp.ge.f32.partialorder %v2311, 0.0
  %vm2380 = vcmp.ge.f32.partialorder %v2316, 0.0
  %vm2381 = vcmp.ge.f32.partialorder %v2319, 0.0
  %vm2382 = vcmp.ge.f32.partialorder %v2324, 0.0
  %vm2383 = vcmp.ge.f32.partialorder %v2327, 0.0
  %vm2384 = vcmp.ge.f32.partialorder %v2332, 0.0
  %vm2385 = vcmp.ge.f32.partialorder %v2335, 0.0
  %vm2386 = vcmp.ge.f32.partialorder %v2340, 0.0
  %vm2387 = vcmp.ge.f32.partialorder %v2343, 0.0
  %v2388 = vmul.f32 %v2180, 0.1
  %v2389 = vmul.f32 %v2183, 0.1
  %v2390 = vmul.f32 %v2188, 0.1
  %v2391 = vmul.f32 %v2191, 0.1
  %v2392 = vmul.f32 %v2196, 0.1
  %v2393 = vmul.f32 %v2199, 0.1
  %v2394 = vmul.f32 %v2204, 0.1
  %v2395 = vmul.f32 %v2207, 0.1
  %v2396 = vmul.f32 %v2212, 0.1
  %v2397 = vmul.f32 %v2215, 0.1
  %v2398 = vmul.f32 %v2220, 0.1
  %v2399 = vmul.f32 %v2223, 0.1
  %v2400 = vmul.f32 %v2228, 0.1
  %v2401 = vmul.f32 %v2231, 0.1
  %v2402 = vmul.f32 %v2236, 0.1
  %v2403 = vmul.f32 %v2239, 0.1
  %v2404 = vmul.f32 %v2244, 0.1
  %v2405 = vmul.f32 %v2247, 0.1
  %v2406 = vmul.f32 %v2252, 0.1
  %v2407 = vmul.f32 %v2255, 0.1
  %v2408 = vmul.f32 %v2260, 0.1
  %v2409 = vmul.f32 %v2263, 0.1
  %v2410 = vmul.f32 %v2268, 0.1
  %v2411 = vmul.f32 %v2271, 0.1
  %v2412 = vmul.f32 %v2276, 0.1
  %v2413 = vmul.f32 %v2279, 0.1
  %v2414 = vmul.f32 %v2284, 0.1
  %v2415 = vmul.f32 %v2287, 0.1
  %v2416 = vmul.f32 %v2292, 0.1
  %v2417 = vmul.f32 %v2295, 0.1
  %v2418 = vmul.f32 %v2300, 0.1
  %v2419 = vmul.f32 %v2303, 0.1
  %v2420 = vmul.f32 %v2308, 0.1
  %v2421 = vmul.f32 %v2311, 0.1
  %v2422 = vmul.f32 %v2316, 0.1
  %v2423 = vmul.f32 %v2319, 0.1
  %v2424 = vmul.f32 %v2324, 0.1
  %v2425 = vmul.f32 %v2327, 0.1
  %v2426 = vmul.f32 %v2332, 0.1
  %v2427 = vmul.f32 %v2335, 0.1
  %v2428 = vmul.f32 %v2340, 0.1
  %v2429 = vmul.f32 %v2343, 0.1
  %v2430 = vsel %vm2346, %v2180, %v2388
  %v2431 = vsel %vm2347, %v2183, %v2389
  %v2432 = vsel %vm2348, %v2188, %v2390
  %v2433 = vsel %vm2349, %v2191, %v2391
  %v2434 = vsel %vm2350, %v2196, %v2392
  %v2435 = vsel %vm2351, %v2199, %v2393
  %v2436 = vsel %vm2352, %v2204, %v2394
  %v2437 = vsel %vm2353, %v2207, %v2395
  %v2438 = vsel %vm2354, %v2212, %v2396
  %v2439 = vsel %vm2355, %v2215, %v2397
  %v2440 = vsel %vm2356, %v2220, %v2398
  %v2441 = vsel %vm2357, %v2223, %v2399
  %v2442 = vsel %vm2358, %v2228, %v2400
  %v2443 = vsel %vm2359, %v2231, %v2401
  %v2444 = vsel %vm2360, %v2236, %v2402
  %v2445 = vsel %vm2361, %v2239, %v2403
  %v2446 = vsel %vm2362, %v2244, %v2404
  %v2447 = vsel %vm2363, %v2247, %v2405
  %v2448 = vsel %vm2364, %v2252, %v2406
  %v2449 = vsel %vm2365, %v2255, %v2407
  %v2450 = vsel %vm2366, %v2260, %v2408
  %v2451 = vsel %vm2367, %v2263, %v2409
  %v2452 = vsel %vm2368, %v2268, %v2410
  %v2453 = vsel %vm2369, %v2271, %v2411
  %v2454 = vsel %vm2370, %v2276, %v2412
  %v2455 = vsel %vm2371, %v2279, %v2413
  %v2456 = vsel %vm2372, %v2284, %v2414
  %v2457 = vsel %vm2373, %v2287, %v2415
  %v2458 = vsel %vm2374, %v2292, %v2416
  %v2459 = vsel %vm2375, %v2295, %v2417
  %v2460 = vsel %vm2376, %v2300, %v2418
  %v2461 = vsel %vm2377, %v2303, %v2419
  %v2462 = vsel %vm2378, %v2308, %v2420
  %v2463 = vsel %vm2379, %v2311, %v2421
  %v2464 = vsel %vm2380, %v2316, %v2422
  %v2465 = vsel %vm2381, %v2319, %v2423
  %v2466 = vsel %vm2382, %v2324, %v2424
  %v2467 = vsel %vm2383, %v2327, %v2425
  %v2468 = vsel %vm2384, %v2332, %v2426
  %v2469 = vsel %vm2385, %v2335, %v2427
  %v2470 = vsel %vm2386, %v2340, %v2428
  %v2471 = vsel %vm2387, %v2343, %v2429
  %v2472 = vpack.c.bf16 %v2431, %v2430
  %v2473 = vpack.c.bf16 %v2433, %v2432
  %v2474 = vpack.c.bf16 %v2435, %v2434
  %v2475 = vpack.c.bf16 %v2437, %v2436
  %v2476 = vpack.c.bf16 %v2439, %v2438
  %v2477 = vpack.c.bf16 %v2441, %v2440
  %v2478 = vpack.c.bf16 %v2443, %v2442
  %v2479 = vpack.c.bf16 %v2445, %v2444
  %v2480 = vpack.c.bf16 %v2447, %v2446
  %v2481 = vpack.c.bf16 %v2449, %v2448
  %v2482 = vpack.c.bf16 %v2451, %v2450
  %v2483 = vpack.c.bf16 %v2453, %v2452
  %v2484 = vpack.c.bf16 %v2455, %v2454
  %v2485 = vpack.c.bf16 %v2457, %v2456
  %v2486 = vpack.c.bf16 %v2459, %v2458
  %v2487 = vpack.c.bf16 %v2461, %v2460
  %v2488 = vpack.c.bf16 %v2463, %v2462
  %v2489 = vpack.c.bf16 %v2465, %v2464
  %v2490 = vpack.c.bf16 %v2467, %v2466
  %v2491 = vpack.c.bf16 %v2469, %v2468
  %v2492 = vpack.c.bf16 %v2471, %v2470
  %v2514 = vunpack.c.l.b16 %v2472
  %v2515 = vunpack.c.h.b16 %v2472
  %v2516 = vunpack.c.l.b16 %v2473
  %v2517 = vunpack.c.h.b16 %v2473
  %v2518 = vunpack.c.l.b16 %v2474
  %v2519 = vunpack.c.h.b16 %v2474
  %v2520 = vunpack.c.l.b16 %v2475
  %v2521 = vunpack.c.h.b16 %v2475
  %v2522 = vunpack.c.l.b16 %v2476
  %v2523 = vunpack.c.h.b16 %v2476
  %v2524 = vunpack.c.l.b16 %v2477
  %v2525 = vunpack.c.h.b16 %v2477
  %v2526 = vunpack.c.l.b16 %v2478
  %v2527 = vunpack.c.h.b16 %v2478
  %v2528 = vunpack.c.l.b16 %v2479
  %v2529 = vunpack.c.h.b16 %v2479
  %v2530 = vunpack.c.l.b16 %v2480
  %v2531 = vunpack.c.h.b16 %v2480
  %v2532 = vunpack.c.l.b16 %v2481
  %v2533 = vunpack.c.h.b16 %v2481
  %v2534 = vunpack.c.l.b16 %v2482
  %v2535 = vunpack.c.h.b16 %v2482
  %v2536 = vunpack.c.l.b16 %v2483
  %v2537 = vunpack.c.h.b16 %v2483
  %v2538 = vunpack.c.l.b16 %v2484
  %v2539 = vunpack.c.h.b16 %v2484
  %v2540 = vunpack.c.l.b16 %v2485
  %v2541 = vunpack.c.h.b16 %v2485
  %v2542 = vunpack.c.l.b16 %v2486
  %v2543 = vunpack.c.h.b16 %v2486
  %v2544 = vunpack.c.l.b16 %v2487
  %v2545 = vunpack.c.h.b16 %v2487
  %v2546 = vunpack.c.l.b16 %v2488
  %v2547 = vunpack.c.h.b16 %v2488
  %v2548 = vunpack.c.l.b16 %v2489
  %v2549 = vunpack.c.h.b16 %v2489
  %v2550 = vunpack.c.l.b16 %v2490
  %v2551 = vunpack.c.h.b16 %v2490
  %v2552 = vunpack.c.l.b16 %v2491
  %v2553 = vunpack.c.h.b16 %v2491
  %v2554 = vunpack.c.l.b16 %v2492
  %v2555 = vunpack.c.h.b16 %v2492
  %v2556 = vpack.c.b16 %v2514, %v2514
  %v2557 = vpack.c.b16 %v2515, %v2515
  %v2558 = vpack.c.b16 %v2516, %v2516
  %v2559 = vpack.c.b16 %v2517, %v2517
  %v2560 = vpack.c.b16 %v2518, %v2518
  %v2561 = vpack.c.b16 %v2519, %v2519
  %v2562 = vpack.c.b16 %v2520, %v2520
  %v2563 = vpack.c.b16 %v2521, %v2521
  %v2564 = vpack.c.b16 %v2522, %v2522
  %v2565 = vpack.c.b16 %v2523, %v2523
  %v2566 = vpack.c.b16 %v2524, %v2524
  %v2567 = vpack.c.b16 %v2525, %v2525
  %v2568 = vpack.c.b16 %v2526, %v2526
  %v2569 = vpack.c.b16 %v2527, %v2527
  %v2570 = vpack.c.b16 %v2528, %v2528
  %v2571 = vpack.c.b16 %v2529, %v2529
  %v2572 = vpack.c.b16 %v2530, %v2530
  %v2573 = vpack.c.b16 %v2531, %v2531
  %v2574 = vpack.c.b16 %v2532, %v2532
  %v2575 = vpack.c.b16 %v2533, %v2533
  %v2576 = vpack.c.b16 %v2534, %v2534
  %v2577 = vpack.c.b16 %v2535, %v2535
  %v2578 = vpack.c.b16 %v2536, %v2536
  %v2579 = vpack.c.b16 %v2537, %v2537
  %v2580 = vpack.c.b16 %v2538, %v2538
  %v2581 = vpack.c.b16 %v2539, %v2539
  %v2582 = vpack.c.b16 %v2540, %v2540
  %v2583 = vpack.c.b16 %v2541, %v2541
  %v2584 = vpack.c.b16 %v2542, %v2542
  %v2585 = vpack.c.b16 %v2543, %v2543
  %v2586 = vpack.c.b16 %v2544, %v2544
  %v2587 = vpack.c.b16 %v2545, %v2545
  %v2588 = vpack.c.b16 %v2546, %v2546
  %v2589 = vpack.c.b16 %v2547, %v2547
  %v2590 = vpack.c.b16 %v2548, %v2548
  %v2591 = vpack.c.b16 %v2549, %v2549
  %v2592 = vpack.c.b16 %v2550, %v2550
  %v2593 = vpack.c.b16 %v2551, %v2551
  %v2594 = vpack.c.b16 %v2552, %v2552
  %v2595 = vpack.c.b16 %v2553, %v2553
  %v2596 = vpack.c.b16 %v2554, %v2554
  %v2597 = vpack.c.b16 %v2555, %v2555
  %2640 = vst [vmem:[%s3] sm:$0xf] %v2556
  %2641 = vst [vmem:[%s3 + $0x4] sm:$0xf] %v2557
  %2642 = vst [vmem:[%s3 + $0x8] sm:$0xf] %v2558
  %2643 = vst [vmem:[%s3 + $0xc] sm:$0xf] %v2559
  %2644 = vst [vmem:[%s3 + $0x10] sm:$0xf] %v2560
  %2645 = vst [vmem:[%s3 + $0x14] sm:$0xf] %v2561
  %2646 = vst [vmem:[%s3 + $0x18] sm:$0xf] %v2562
  %2647 = vst [vmem:[%s3 + $0x1c] sm:$0xf] %v2563
  %2648 = vst [vmem:[%s3 + $0x20] sm:$0xf] %v2564
  %2649 = vst [vmem:[%s3 + $0x24] sm:$0xf] %v2565
  %2650 = vst [vmem:[%s3 + $0x28] sm:$0xf] %v2566
  %2651 = vst [vmem:[%s3 + $0x2c] sm:$0xf] %v2567
  %2652 = vst [vmem:[%s3 + $0x30] sm:$0xf] %v2568
  %2653 = vst [vmem:[%s3 + $0x34] sm:$0xf] %v2569
  %2654 = vst [vmem:[%s3 + $0x38] sm:$0xf] %v2570
  %2655 = vst [vmem:[%s3 + $0x3c] sm:$0xf] %v2571
  %2656 = vst [vmem:[%s3 + $0x40] sm:$0xf] %v2572
  %2657 = vst [vmem:[%s3 + $0x44] sm:$0xf] %v2573
  %2658 = vst [vmem:[%s3 + $0x48] sm:$0xf] %v2574
  %2659 = vst [vmem:[%s3 + $0x4c] sm:$0xf] %v2575
  %2660 = vst [vmem:[%s3 + $0x50] sm:$0xf] %v2576
  %2661 = vst [vmem:[%s3 + $0x54] sm:$0xf] %v2577
  %2662 = vst [vmem:[%s3 + $0x58] sm:$0xf] %v2578
  %2663 = vst [vmem:[%s3 + $0x5c] sm:$0xf] %v2579
  %2664 = vst [vmem:[%s3 + $0x60] sm:$0xf] %v2580
  %2665 = vst [vmem:[%s3 + $0x64] sm:$0xf] %v2581
  %2666 = vst [vmem:[%s3 + $0x68] sm:$0xf] %v2582
  %2667 = vst [vmem:[%s3 + $0x6c] sm:$0xf] %v2583
  %2668 = vst [vmem:[%s3 + $0x70] sm:$0xf] %v2584
  %2669 = vst [vmem:[%s3 + $0x74] sm:$0xf] %v2585
  %2670 = vst [vmem:[%s3 + $0x78] sm:$0xf] %v2586
  %2671 = vst [vmem:[%s3 + $0x7c] sm:$0xf] %v2587
  %2672 = vst [vmem:[%s3 + $0x80] sm:$0xf] %v2588
  %2673 = vst [vmem:[%s3 + $0x84] sm:$0xf] %v2589
  %2674 = vst [vmem:[%s3 + $0x88] sm:$0xf] %v2590
  %2675 = vst [vmem:[%s3 + $0x8c] sm:$0xf] %v2591
  %2676 = vst [vmem:[%s3 + $0x90] sm:$0xf] %v2592
  %2677 = vst [vmem:[%s3 + $0x94] sm:$0xf] %v2593
  %2678 = vst [vmem:[%s3 + $0x98] sm:$0xf] %v2594
  %2679 = vst [vmem:[%s3 + $0x9c] sm:$0xf] %v2595
  %2680 = vst [vmem:[%s3 + $0xa0] sm:$0xf] %v2596
  %2681 = vst [vmem:[%s3 + $0xa4] sm:$0xf] %v2597
  // Predicated region
  $region14: #{_lambda_.23} parent=0 // pred_check
    _
  $region15: #{_lambda_.23} parent=0 // pred_check_branch
    %2683 = sbr.rel (0) target = $region17
  $region16: #{_lambda_.23} parent=0 // pred_region
    _
  $region17: #{_lambda_.23} parent=0 // pred_fallthru
    _
  // Predicated region
  $region18: #{_lambda_.23} parent=0 // pred_check
    _
  $region19: #{_lambda_.23} parent=0 // pred_check_branch
    %2685 = sbr.rel (0) target = $region21
  $region20: #{_lambda_.23} parent=0 // pred_region
    _
  $region21: #{_lambda_.23} parent=0 // pred_fallthru
    _

// kernel: _lambda_.39
$region0: #{_lambda_.39}
  #allocation0 [shape = 'u32[]', space=smem, size = 0x4, offset = 0x4, fixed_abs, tag = 'smem constant byte address 0x4 - core index']
  #allocation1 [shape = 'u32[144,128]{1,0:T(1,128)}', space=vmem, size = 0x12000, scoped, tag = 'internal scratch']
  %s0 = inlined_call_operand.vmem [shape: bf16[80,640], index: 0, kind: input, shape index: {}]
  %s1 = inlined_call_operand.vmem [shape: bf16[640,128], index: 1, kind: input, shape index: {}]
  %s2 = inlined_call_operand.vmem [shape: f32[1,128], index: 2, kind: input, shape index: {}]
  %s3 = inlined_call_operand.vmem [shape: bf16[80,128], index: 3, kind: output, shape index: {}]
  %s4 = sld [smem:[#allocation0]]
  $region22: #{_lambda_.39} parent=0
    _
  %s6 = ssub.s32 1, %s4
  %s7 = scalar_select 0, %s6, %s4
  // Predicated region
  $region2: #{_lambda_.39} parent=0 // pred_check
    _
  $region3: #{_lambda_.39} parent=0 // pred_check_branch
    %9 = sbr.rel (0) target = $region5
  $region4: #{_lambda_.39} parent=0 // pred_region
    _
  $region5: #{_lambda_.39} parent=0 // pred_fallthru
    _
  // Predicated region
  $region6: #{_lambda_.39} parent=0 // pred_check
    _
  $region7: #{_lambda_.39} parent=0 // pred_check_branch
    %11 = sbr.rel (0) target = $region9
  $region8: #{_lambda_.39} parent=0 // pred_region
    _
  $region9: #{_lambda_.39} parent=0 // pred_fallthru
    _
  // Predicated region
  $region10: #{_lambda_.39} parent=0 // pred_check
    _
  $region11: #{_lambda_.39} parent=0 // pred_check_branch
    %13 = sbr.rel (0) target = $region13
  $region12: #{_lambda_.39} parent=0 // pred_region
    _
  $region13: #{_lambda_.39} parent=0 // pred_fallthru
    _
  %v15 = vld [vmem:[%s0] sm:$0xff]
  %v16 = vld [vmem:[%s0 + $0x8] sm:$0xff]
  %v17 = vld [vmem:[%s0 + $0x10] sm:$0xf]
  %v18 = vld [vmem:[%s0 + $0x14] sm:$0xff]
  %v19 = vld [vmem:[%s0 + $0x1c] sm:$0xff]
  %v20 = vld [vmem:[%s0 + $0x24] sm:$0xf]
  %v21 = vld [vmem:[%s0 + $0x28] sm:$0xff]
  %v22 = vld [vmem:[%s0 + $0x30] sm:$0xff]
  %v23 = vld [vmem:[%s0 + $0x38] sm:$0xf]
  %v24 = vld [vmem:[%s0 + $0x3c] sm:$0xff]
  %v25 = vld [vmem:[%s0 + $0x44] sm:$0xff]
  %v26 = vld [vmem:[%s0 + $0x4c] sm:$0xf]
  %v27 = vld [vmem:[%s0 + $0x50] sm:$0xff]
  %v28 = vld [vmem:[%s0 + $0x58] sm:$0xff]
  %v29 = vld [vmem:[%s0 + $0x60] sm:$0xf]
  %v30 = vld [vmem:[%s0 + $0x64] sm:$0xff]
  %v31 = vld [vmem:[%s0 + $0x6c] sm:$0xff]
  %v32 = vld [vmem:[%s0 + $0x74] sm:$0xf]
  %v33 = vld [vmem:[%s0 + $0x78] sm:$0xff]
  %v34 = vld [vmem:[%s0 + $0x80] sm:$0xff]
  %v35 = vld [vmem:[%s0 + $0x88] sm:$0xf]
  %v36 = vld [vmem:[%s0 + $0x8c] sm:$0xff]
  %v37 = vld [vmem:[%s0 + $0x94] sm:$0xff]
  %v38 = vld [vmem:[%s0 + $0x9c] sm:$0xf]
  %v39 = vld [vmem:[%s0 + $0xa0] sm:$0xff]
  %v40 = vld [vmem:[%s0 + $0xa8] sm:$0xff]
  %v41 = vld [vmem:[%s0 + $0xb0] sm:$0xf]
  %v42 = vld [vmem:[%s0 + $0xb4] sm:$0xff]
  %v43 = vld [vmem:[%s0 + $0xbc] sm:$0xff]
  %v44 = vld [vmem:[%s0 + $0xc4] sm:$0xf]
  %v45 = vld [vmem:[%s1] sm:$0xf]
  %v46 = vld [vmem:[%s1 + $0x4] sm:$0xf]
  %v47 = vld [vmem:[%s1 + $0x8] sm:$0xf]
  %v48 = vld [vmem:[%s1 + $0xc] sm:$0xf]
  %v49 = vld [vmem:[%s1 + $0x10] sm:$0xf]
  %v50 = vld [vmem:[%s1 + $0x14] sm:$0xf]
  %v51 = vld [vmem:[%s1 + $0x18] sm:$0xf]
  %v52 = vld [vmem:[%s1 + $0x1c] sm:$0xf]
  %v53 = vld [vmem:[%s1 + $0x20] sm:$0xf]
  %v54 = vld [vmem:[%s1 + $0x24] sm:$0xf]
  %v55 = vld [vmem:[%s1 + $0x28] sm:$0xf]
  %v56 = vld [vmem:[%s1 + $0x2c] sm:$0xf]
  %v57 = vld [vmem:[%s1 + $0x30] sm:$0xf]
  %v58 = vld [vmem:[%s1 + $0x34] sm:$0xf]
  %v59 = vld [vmem:[%s1 + $0x38] sm:$0xf]
  %v60 = vld [vmem:[%s1 + $0x3c] sm:$0xf]
  %v61 = vld [vmem:[%s1 + $0x40] sm:$0xf]
  %v62 = vld [vmem:[%s1 + $0x44] sm:$0xf]
  %v63 = vld [vmem:[%s1 + $0x48] sm:$0xf]
  %v64 = vld [vmem:[%s1 + $0x4c] sm:$0xf]
  %v65 = vld [vmem:[%s1 + $0x50] sm:$0xf]
  %v66 = vld [vmem:[%s1 + $0x54] sm:$0xf]
  %v67 = vld [vmem:[%s1 + $0x58] sm:$0xf]
  %v68 = vld [vmem:[%s1 + $0x5c] sm:$0xf]
  %v69 = vld [vmem:[%s1 + $0x60] sm:$0xf]
  %v70 = vld [vmem:[%s1 + $0x64] sm:$0xf]
  %v71 = vld [vmem:[%s1 + $0x68] sm:$0xf]
  %v72 = vld [vmem:[%s1 + $0x6c] sm:$0xf]
  %v73 = vld [vmem:[%s1 + $0x70] sm:$0xf]
  %v74 = vld [vmem:[%s1 + $0x74] sm:$0xf]
  %v75 = vld [vmem:[%s1 + $0x78] sm:$0xf]
  %v76 = vld [vmem:[%s1 + $0x7c] sm:$0xf]
  %v77 = vld [vmem:[%s1 + $0x80] sm:$0xf]
  %v78 = vld [vmem:[%s1 + $0x84] sm:$0xf]
  %v79 = vld [vmem:[%s1 + $0x88] sm:$0xf]
  %v80 = vld [vmem:[%s1 + $0x8c] sm:$0xf]
  %v81 = vld [vmem:[%s1 + $0x90] sm:$0xf]
  %v82 = vld [vmem:[%s1 + $0x94] sm:$0xf]
  %v83 = vld [vmem:[%s1 + $0x98] sm:$0xf]
  %v84 = vld [vmem:[%s1 + $0x9c] sm:$0xf]
  %v85 = vld [vmem:[%s1 + $0xa0] sm:$0xf]
  %v86 = vld [vmem:[%s1 + $0xa4] sm:$0xf]
  %v87 = vld [vmem:[%s1 + $0xa8] sm:$0xf]
  %v88 = vld [vmem:[%s1 + $0xac] sm:$0xf]
  %v89 = vld [vmem:[%s1 + $0xb0] sm:$0xf]
  %v90 = vld [vmem:[%s1 + $0xb4] sm:$0xf]
  %v91 = vld [vmem:[%s1 + $0xb8] sm:$0xf]
  %v92 = vld [vmem:[%s1 + $0xbc] sm:$0xf]
  %v93 = vld [vmem:[%s1 + $0xc0] sm:$0xf]
  %v94 = vld [vmem:[%s1 + $0xc4] sm:$0xf]
  %v95 = vld [vmem:[%s1 + $0xc8] sm:$0xf]
  %v96 = vld [vmem:[%s1 + $0xcc] sm:$0xf]
  %v97 = vld [vmem:[%s1 + $0xd0] sm:$0xf]
  %v98 = vld [vmem:[%s1 + $0xd4] sm:$0xf]
  %v99 = vld [vmem:[%s1 + $0xd8] sm:$0xf]
  %v100 = vld [vmem:[%s1 + $0xdc] sm:$0xf]
  %v101 = vld [vmem:[%s1 + $0xe0] sm:$0xf]
  %v102 = vld [vmem:[%s1 + $0xe4] sm:$0xf]
  %v103 = vld [vmem:[%s1 + $0xe8] sm:$0xf]
  %v104 = vld [vmem:[%s1 + $0xec] sm:$0xf]
  %v105 = vld [vmem:[%s1 + $0xf0] sm:$0xf]
  %v106 = vld [vmem:[%s1 + $0xf4] sm:$0xf]
  %v107 = vld [vmem:[%s1 + $0xf8] sm:$0xf]
  %v108 = vld [vmem:[%s1 + $0xfc] sm:$0xf]
  %v109 = vld [vmem:[%s1 + $0x100] sm:$0xf]
  %v110 = vld [vmem:[%s1 + $0x104] sm:$0xf]
  %v111 = vld [vmem:[%s1 + $0x108] sm:$0xf]
  %v112 = vld [vmem:[%s1 + $0x10c] sm:$0xf]
  %v113 = vld [vmem:[%s1 + $0x110] sm:$0xf]
  %v114 = vld [vmem:[%s1 + $0x114] sm:$0xf]
  %v115 = vld [vmem:[%s1 + $0x118] sm:$0xf]
  %v116 = vld [vmem:[%s1 + $0x11c] sm:$0xf]
  %v117 = vld [vmem:[%s1 + $0x120] sm:$0xf]
  %v118 = vld [vmem:[%s1 + $0x124] sm:$0xf]
  %v119 = vld [vmem:[%s1 + $0x128] sm:$0xf]
  %v120 = vld [vmem:[%s1 + $0x12c] sm:$0xf]
  %v121 = vld [vmem:[%s1 + $0x130] sm:$0xf]
  %v122 = vld [vmem:[%s1 + $0x134] sm:$0xf]
  %v123 = vld [vmem:[%s1 + $0x138] sm:$0xf]
  %v124 = vld [vmem:[%s1 + $0x13c] sm:$0xf]
  %v125 = vld [vmem:[%s2] sm:$0x1]
  %v127 = vlaneseq
  %v128 = vshrl.u32 %v127, 7
  %v129 = vsub.s32 0, %v128
  %v130 = vrot.slane %v125, %v129
  %v162 = vunpack.c.l.b16 %v15
  %v163 = vunpack.c.h.b16 %v15
  %v164 = vunpack.c.l.b16 %v16
  %v165 = vunpack.c.h.b16 %v16
  %v166 = vunpack.c.l.b16 %v17
  %v167 = vunpack.c.l.b16 %v18
  %v168 = vunpack.c.h.b16 %v18
  %v169 = vunpack.c.l.b16 %v19
  %v170 = vunpack.c.h.b16 %v19
  %v171 = vunpack.c.l.b16 %v20
  %v172 = vunpack.c.l.b16 %v21
  %v173 = vunpack.c.h.b16 %v21
  %v174 = vunpack.c.l.b16 %v22
  %v175 = vunpack.c.h.b16 %v22
  %v176 = vunpack.c.l.b16 %v23
  %v177 = vunpack.c.l.b16 %v24
  %v178 = vunpack.c.h.b16 %v24
  %v179 = vunpack.c.l.b16 %v25
  %v180 = vunpack.c.h.b16 %v25
  %v181 = vunpack.c.l.b16 %v26
  %v182 = vunpack.c.l.b16 %v27
  %v183 = vunpack.c.h.b16 %v27
  %v184 = vunpack.c.l.b16 %v28
  %v185 = vunpack.c.h.b16 %v28
  %v186 = vunpack.c.l.b16 %v29
  %v187 = vunpack.c.l.b16 %v30
  %v188 = vunpack.c.h.b16 %v30
  %v189 = vunpack.c.l.b16 %v31
  %v190 = vunpack.c.h.b16 %v31
  %v191 = vunpack.c.l.b16 %v32
  %v192 = vunpack.c.l.b16 %v33
  %v193 = vunpack.c.h.b16 %v33
  %v194 = vunpack.c.l.b16 %v34
  %v195 = vunpack.c.h.b16 %v34
  %v196 = vunpack.c.l.b16 %v35
  %v197 = vunpack.c.l.b16 %v36
  %v198 = vunpack.c.h.b16 %v36
  %v199 = vunpack.c.l.b16 %v37
  %v200 = vunpack.c.h.b16 %v37
  %v201 = vunpack.c.l.b16 %v38
  %v202 = vunpack.c.l.b16 %v39
  %v203 = vunpack.c.h.b16 %v39
  %v204 = vunpack.c.l.b16 %v40
  %v205 = vunpack.c.h.b16 %v40
  %v206 = vunpack.c.l.b16 %v41
  %v207 = vunpack.c.l.b16 %v42
  %v208 = vunpack.c.h.b16 %v42
  %v209 = vunpack.c.l.b16 %v43
  %v210 = vunpack.c.h.b16 %v43
  %v211 = vunpack.c.l.b16 %v44
  %v212 = vpack.c.b16 %v167, %v162
  %v213 = vpack.c.b16 %v168, %v163
  %v214 = vpack.c.b16 %v169, %v164
  %v215 = vpack.c.b16 %v170, %v165
  %v216 = vpack.c.b16 %v171, %v166
  %v217 = vpack.c.b16 %v177, %v172
  %v218 = vpack.c.b16 %v178, %v173
  %v219 = vpack.c.b16 %v179, %v174
  %v220 = vpack.c.b16 %v180, %v175
  %v221 = vpack.c.b16 %v181, %v176
  %v222 = vpack.c.b16 %v187, %v182
  %v223 = vpack.c.b16 %v188, %v183
  %v224 = vpack.c.b16 %v189, %v184
  %v225 = vpack.c.b16 %v190, %v185
  %v226 = vpack.c.b16 %v191, %v186
  %v227 = vpack.c.b16 %v197, %v192
  %v228 = vpack.c.b16 %v198, %v193
  %v229 = vpack.c.b16 %v199, %v194
  %v230 = vpack.c.b16 %v200, %v195
  %v231 = vpack.c.b16 %v201, %v196
  %v232 = vpack.c.b16 %v207, %v202
  %v233 = vpack.c.b16 %v208, %v203
  %v234 = vpack.c.b16 %v209, %v204
  %v235 = vpack.c.b16 %v210, %v205
  %v236 = vpack.c.b16 %v211, %v206
  %v342 = vunpack.c.l.b16 %v45
  %v343 = vunpack.c.l.b16 %v46
  %v344 = vunpack.c.l.b16 %v47
  %v345 = vunpack.c.l.b16 %v48
  %v346 = vunpack.c.l.b16 %v49
  %v347 = vunpack.c.l.b16 %v50
  %v348 = vunpack.c.l.b16 %v51
  %v349 = vunpack.c.l.b16 %v52
  %v350 = vunpack.c.l.b16 %v53
  %v351 = vunpack.c.l.b16 %v54
  %v352 = vunpack.c.l.b16 %v55
  %v353 = vunpack.c.l.b16 %v56
  %v354 = vunpack.c.l.b16 %v57
  %v355 = vunpack.c.l.b16 %v58
  %v356 = vunpack.c.l.b16 %v59
  %v357 = vunpack.c.l.b16 %v60
  %v358 = vunpack.c.l.b16 %v61
  %v359 = vunpack.c.l.b16 %v62
  %v360 = vunpack.c.l.b16 %v63
  %v361 = vunpack.c.l.b16 %v64
  %v362 = vunpack.c.l.b16 %v65
  %v363 = vunpack.c.l.b16 %v66
  %v364 = vunpack.c.l.b16 %v67
  %v365 = vunpack.c.l.b16 %v68
  %v366 = vunpack.c.l.b16 %v69
  %v367 = vunpack.c.l.b16 %v70
  %v368 = vunpack.c.l.b16 %v71
  %v369 = vunpack.c.l.b16 %v72
  %v370 = vunpack.c.l.b16 %v73
  %v371 = vunpack.c.l.b16 %v74
  %v372 = vunpack.c.l.b16 %v75
  %v373 = vunpack.c.l.b16 %v76
  %v374 = vunpack.c.l.b16 %v77
  %v375 = vunpack.c.l.b16 %v78
  %v376 = vunpack.c.l.b16 %v79
  %v377 = vunpack.c.l.b16 %v80
  %v378 = vunpack.c.l.b16 %v81
  %v379 = vunpack.c.l.b16 %v82
  %v380 = vunpack.c.l.b16 %v83
  %v381 = vunpack.c.l.b16 %v84
  %v382 = vunpack.c.l.b16 %v85
  %v383 = vunpack.c.l.b16 %v86
  %v384 = vunpack.c.l.b16 %v87
  %v385 = vunpack.c.l.b16 %v88
  %v386 = vunpack.c.l.b16 %v89
  %v387 = vunpack.c.l.b16 %v90
  %v388 = vunpack.c.l.b16 %v91
  %v389 = vunpack.c.l.b16 %v92
  %v390 = vunpack.c.l.b16 %v93
  %v391 = vunpack.c.l.b16 %v94
  %v392 = vunpack.c.l.b16 %v95
  %v393 = vunpack.c.l.b16 %v96
  %v394 = vunpack.c.l.b16 %v97
  %v395 = vunpack.c.l.b16 %v98
  %v396 = vunpack.c.l.b16 %v99
  %v397 = vunpack.c.l.b16 %v100
  %v398 = vunpack.c.l.b16 %v101
  %v399 = vunpack.c.l.b16 %v102
  %v400 = vunpack.c.l.b16 %v103
  %v401 = vunpack.c.l.b16 %v104
  %v402 = vunpack.c.l.b16 %v105
  %v403 = vunpack.c.l.b16 %v106
  %v404 = vunpack.c.l.b16 %v107
  %v405 = vunpack.c.l.b16 %v108
  %v406 = vunpack.c.l.b16 %v109
  %v407 = vunpack.c.l.b16 %v110
  %v408 = vunpack.c.l.b16 %v111
  %v409 = vunpack.c.l.b16 %v112
  %v410 = vunpack.c.l.b16 %v113
  %v411 = vunpack.c.l.b16 %v114
  %v412 = vunpack.c.l.b16 %v115
  %v413 = vunpack.c.l.b16 %v116
  %v414 = vunpack.c.l.b16 %v117
  %v415 = vunpack.c.l.b16 %v118
  %v416 = vunpack.c.l.b16 %v119
  %v417 = vunpack.c.l.b16 %v120
  %v418 = vunpack.c.l.b16 %v121
  %v419 = vunpack.c.l.b16 %v122
  %v420 = vunpack.c.l.b16 %v123
  %v421 = vunpack.c.l.b16 %v124
  %v422 = vpack.c.b16 %v343, %v342
  %v423 = vpack.c.b16 %v345, %v344
  %v424 = vpack.c.b16 %v347, %v346
  %v425 = vpack.c.b16 %v349, %v348
  %v426 = vpack.c.b16 %v351, %v350
  %v427 = vpack.c.b16 %v353, %v352
  %v428 = vpack.c.b16 %v355, %v354
  %v429 = vpack.c.b16 %v357, %v356
  %v430 = vpack.c.b16 %v359, %v358
  %v431 = vpack.c.b16 %v361, %v360
  %v432 = vpack.c.b16 %v363, %v362
  %v433 = vpack.c.b16 %v365, %v364
  %v434 = vpack.c.b16 %v367, %v366
  %v435 = vpack.c.b16 %v369, %v368
  %v436 = vpack.c.b16 %v371, %v370
  %v437 = vpack.c.b16 %v373, %v372
  %v438 = vpack.c.b16 %v375, %v374
  %v439 = vpack.c.b16 %v377, %v376
  %v440 = vpack.c.b16 %v379, %v378
  %v441 = vpack.c.b16 %v381, %v380
  %v442 = vpack.c.b16 %v383, %v382
  %v443 = vpack.c.b16 %v385, %v384
  %v444 = vpack.c.b16 %v387, %v386
  %v445 = vpack.c.b16 %v389, %v388
  %v446 = vpack.c.b16 %v391, %v390
  %v447 = vpack.c.b16 %v393, %v392
  %v448 = vpack.c.b16 %v395, %v394
  %v449 = vpack.c.b16 %v397, %v396
  %v450 = vpack.c.b16 %v399, %v398
  %v451 = vpack.c.b16 %v401, %v400
  %v452 = vpack.c.b16 %v403, %v402
  %v453 = vpack.c.b16 %v405, %v404
  %v454 = vpack.c.b16 %v407, %v406
  %v455 = vpack.c.b16 %v409, %v408
  %v456 = vpack.c.b16 %v411, %v410
  %v457 = vpack.c.b16 %v413, %v412
  %v458 = vpack.c.b16 %v415, %v414
  %v459 = vpack.c.b16 %v417, %v416
  %v460 = vpack.c.b16 %v419, %v418
  %v461 = vpack.c.b16 %v421, %v420
  %502 = vmatprep.subr.bf16.mxu0 0
  %503 = vmatpush1.bf16.msra.mxu0 %v422
  %504 = vmatprep.subr.bf16.mxu0 0
  %505 = vmatpush1.bf16.msra.mxu0 %v423
  %506 = vmatprep.subr.bf16.mxu0 0
  %507 = vmatpush1.bf16.msra.mxu0 %v424
  %508 = vmatprep.subr.bf16.mxu0 0
  %509 = vmatpush1.bf16.msra.mxu0 %v425
  %510 = vmatprep.subr.bf16.mxu0 0
  %511 = vmatpush1.bf16.msra.mxu0 %v426
  %512 = vmatprep.subr.bf16.mxu0 0
  %513 = vmatpush1.bf16.msra.mxu0 %v427
  %514 = vmatprep.subr.bf16.mxu0 0
  %515 = vmatpush1.bf16.msra.mxu0 %v428
  %516 = vmatprep.subr.bf16.mxu0 0
  %517 = vmatpush1.bf16.msra.mxu0 %v429
  %518 = vmatprep.subr.bf16.mxu0 0
  %519 = vmatpush1.bf16.msra.mxu0 %v430
  %520 = vmatprep.subr.bf16.mxu0 0
  %521 = vmatpush1.bf16.msra.mxu0 %v431
  %522 = vmatprep.subr.bf16.mxu0 0
  %523 = vmatpush1.bf16.msra.mxu0 %v432
  %524 = vmatprep.subr.bf16.mxu0 0
  %525 = vmatpush1.bf16.msra.mxu0 %v433
  %526 = vmatprep.subr.bf16.mxu0 0
  %527 = vmatpush1.bf16.msra.mxu0 %v434
  %528 = vmatprep.subr.bf16.mxu0 0
  %529 = vmatpush1.bf16.msra.mxu0 %v435
  %530 = vmatprep.subr.bf16.mxu0 0
  %531 = vmatpush1.bf16.msra.mxu0 %v436
  %532 = vmatprep.subr.bf16.mxu0 0
  %533 = vmatpush1.bf16.msra.mxu0 %v437
  %534 = vmatprep.mubr.bf16.mxu0 %v213
  %535 = vmatmul.mubr.bf16.gmra.mrb[0].mxu0 %v212
  %v536 = vpop.f32.mrb[0].mxu0
  %v537 = vadd.f32 %v130, %v536
  %v538 = vpop.f32.mrb[0].mxu0
  %v539 = vpop.f32.mrb[0].mxu0
  %v540 = vadd.f32 %v130, %v539
  %v541 = vpop.f32.mrb[0].mxu0
  %542 = vmatprep.mubr.bf16.mxu0 %v218
  %543 = vmatmul.mubr.bf16.gmra.mrb[0].mxu0 %v217
  %v544 = vpop.f32.mrb[0].mxu0
  %v545 = vadd.f32 %v130, %v544
  %v546 = vpop.f32.mrb[0].mxu0
  %v547 = vpop.f32.mrb[0].mxu0
  %v548 = vadd.f32 %v130, %v547
  %v549 = vpop.f32.mrb[0].mxu0
  %550 = vmatprep.mubr.bf16.mxu0 %v223
  %551 = vmatmul.mubr.bf16.gmra.mrb[0].mxu0 %v222
  %v552 = vpop.f32.mrb[0].mxu0
  %v553 = vadd.f32 %v130, %v552
  %v554 = vpop.f32.mrb[0].mxu0
  %v555 = vpop.f32.mrb[0].mxu0
  %v556 = vadd.f32 %v130, %v555
  %v557 = vpop.f32.mrb[0].mxu0
  %558 = vmatprep.mubr.bf16.mxu0 %v228
  %559 = vmatmul.mubr.bf16.gmra.mrb[0].mxu0 %v227
  %v560 = vpop.f32.mrb[0].mxu0
  %v561 = vadd.f32 %v130, %v560
  %v562 = vpop.f32.mrb[0].mxu0
  %v563 = vpop.f32.mrb[0].mxu0
  %v564 = vadd.f32 %v130, %v563
  %v565 = vpop.f32.mrb[0].mxu0
  %566 = vmatprep.mubr.bf16.mxu0 %v233
  %567 = vmatmul.mubr.bf16.gmra.mrb[0].mxu0 %v232
  %v568 = vpop.f32.mrb[0].mxu0
  %v569 = vadd.f32 %v130, %v568
  %v570 = vpop.f32.mrb[0].mxu0
  %v571 = vpop.f32.mrb[0].mxu0
  %v572 = vadd.f32 %v130, %v571
  %v573 = vpop.f32.mrb[0].mxu0
  %574 = vdwg.mxu0
  %575 = vmatprep.subr.bf16.mxu0 0
  %576 = vmatpush1.bf16.msra.mxu0 %v438
  %577 = vmatprep.subr.bf16.mxu0 0
  %578 = vmatpush1.bf16.msra.mxu0 %v439
  %579 = vmatprep.subr.bf16.mxu0 0
  %580 = vmatpush1.bf16.msra.mxu0 %v440
  %581 = vmatprep.subr.bf16.mxu0 0
  %582 = vmatpush1.bf16.msra.mxu0 %v441
  %583 = vmatprep.subr.bf16.mxu0 0
  %584 = vmatpush1.bf16.msra.mxu0 %v442
  %585 = vmatprep.subr.bf16.mxu0 0
  %586 = vmatpush1.bf16.msra.mxu0 %v443
  %587 = vmatprep.subr.bf16.mxu0 0
  %588 = vmatpush1.bf16.msra.mxu0 %v444
  %589 = vmatprep.subr.bf16.mxu0 0
  %590 = vmatpush1.bf16.msra.mxu0 %v445
  %591 = vmatprep.subr.bf16.mxu0 0
  %592 = vmatpush1.bf16.msra.mxu0 %v446
  %593 = vmatprep.subr.bf16.mxu0 0
  %594 = vmatpush1.bf16.msra.mxu0 %v447
  %595 = vmatprep.subr.bf16.mxu0 0
  %596 = vmatpush1.bf16.msra.mxu0 %v448
  %597 = vmatprep.subr.bf16.mxu0 0
  %598 = vmatpush1.bf16.msra.mxu0 %v449
  %599 = vmatprep.subr.bf16.mxu0 0
  %600 = vmatpush1.bf16.msra.mxu0 %v450
  %601 = vmatprep.subr.bf16.mxu0 0
  %602 = vmatpush1.bf16.msra.mxu0 %v451
  %603 = vmatprep.subr.bf16.mxu0 0
  %604 = vmatpush1.bf16.msra.mxu0 %v452
  %605 = vmatprep.subr.bf16.mxu0 0
  %606 = vmatpush1.bf16.msra.mxu0 %v453
  %607 = vmatprep.mubr.bf16.mxu0 %v215
  %608 = vmatmul.mubr.bf16.gmra.mrb[0].mxu0 %v214
  %v609 = vpop.f32.mrb[0].mxu0
  %v610 = vadd.f32 %v537, %v609
  %v611 = vpop.f32.mrb[0].mxu0
  %v612 = vpop.f32.mrb[0].mxu0
  %v613 = vadd.f32 %v540, %v612
  %v614 = vpop.f32.mrb[0].mxu0
  %615 = vmatprep.mubr.bf16.mxu0 %v220
  %616 = vmatmul.mubr.bf16.gmra.mrb[0].mxu0 %v219
  %v617 = vpop.f32.mrb[0].mxu0
  %v618 = vadd.f32 %v545, %v617
  %v619 = vpop.f32.mrb[0].mxu0
  %v620 = vpop.f32.mrb[0].mxu0
  %v621 = vadd.f32 %v548, %v620
  %v622 = vpop.f32.mrb[0].mxu0
  %623 = vmatprep.mubr.bf16.mxu0 %v225
  %624 = vmatmul.mubr.bf16.gmra.mrb[0].mxu0 %v224
  %v625 = vpop.f32.mrb[0].mxu0
  %v626 = vadd.f32 %v553, %v625
  %v627 = vpop.f32.mrb[0].mxu0
  %v628 = vpop.f32.mrb[0].mxu0
  %v629 = vadd.f32 %v556, %v628
  %v630 = vpop.f32.mrb[0].mxu0
  %631 = vmatprep.mubr.bf16.mxu0 %v230
  %632 = vmatmul.mubr.bf16.gmra.mrb[0].mxu0 %v229
  %v633 = vpop.f32.mrb[0].mxu0
  %v634 = vadd.f32 %v561, %v633
  %v635 = vpop.f32.mrb[0].mxu0
  %v636 = vpop.f32.mrb[0].mxu0
  %v637 = vadd.f32 %v564, %v636
  %v638 = vpop.f32.mrb[0].mxu0
  %639 = vmatprep.mubr.bf16.mxu0 %v235
  %640 = vmatmul.mubr.bf16.gmra.mrb[0].mxu0 %v234
  %v641 = vpop.f32.mrb[0].mxu0
  %v642 = vadd.f32 %v569, %v641
  %v643 = vpop.f32.mrb[0].mxu0
  %v644 = vpop.f32.mrb[0].mxu0
  %v645 = vadd.f32 %v572, %v644
  %v646 = vpop.f32.mrb[0].mxu0
  %647 = vdwg.mxu0
  %648 = vmatprep.subr.bf16.mxu0 0
  %649 = vmatpush1.bf16.msra.mxu0 %v454
  %650 = vmatprep.subr.bf16.mxu0 0
  %651 = vmatpush1.bf16.msra.mxu0 %v455
  %652 = vmatprep.subr.bf16.mxu0 0
  %653 = vmatpush1.bf16.msra.mxu0 %v456
  %654 = vmatprep.subr.bf16.mxu0 0
  %655 = vmatpush1.bf16.msra.mxu0 %v457
  %656 = vmatprep.subr.bf16.mxu0 0
  %657 = vmatpush1.bf16.msra.mxu0 %v458
  %658 = vmatprep.subr.bf16.mxu0 0
  %659 = vmatpush1.bf16.msra.mxu0 %v459
  %660 = vmatprep.subr.bf16.mxu0 0
  %661 = vmatpush1.bf16.msra.mxu0 %v460
  %662 = vmatprep.subr.bf16.mxu0 0
  %663 = vmatpush1.bf16.msra.mxu0 %v461
  %664 = vmatprep.subr.bf16.mxu0 0
  %665 = vmatpush1.bf16.msra.mxu0 0
  %666 = vmatprep.subr.bf16.mxu0 0
  %667 = vmatpush1.bf16.msra.mxu0 0
  %668 = vmatprep.subr.bf16.mxu0 0
  %669 = vmatpush1.bf16.msra.mxu0 0
  %670 = vmatprep.subr.bf16.mxu0 0
  %671 = vmatpush1.bf16.msra.mxu0 0
  %672 = vmatprep.subr.bf16.mxu0 0
  %673 = vmatpush1.bf16.msra.mxu0 0
  %674 = vmatprep.subr.bf16.mxu0 0
  %675 = vmatpush1.bf16.msra.mxu0 0
  %676 = vmatprep.subr.bf16.mxu0 0
  %677 = vmatpush1.bf16.msra.mxu0 0
  %678 = vmatprep.subr.bf16.mxu0 0
  %679 = vmatpush1.bf16.msra.mxu0 0
  %680 = vmatprep.mubr.bf16.mxu0 0
  %681 = vmatmul.mubr.bf16.gmra.mrb[0].mxu0 %v216
  %v682 = vpop.f32.mrb[0].mxu0
  %v683 = vadd.f32 %v610, %v682
  %v684 = vpop.f32.mrb[0].mxu0
  %v685 = vpop.f32.mrb[0].mxu0
  %v686 = vadd.f32 %v613, %v685
  %v687 = vpop.f32.mrb[0].mxu0
  %688 = vmatprep.mubr.bf16.mxu0 0
  %689 = vmatmul.mubr.bf16.gmra.mrb[0].mxu0 %v221
  %v690 = vpop.f32.mrb[0].mxu0
  %v691 = vadd.f32 %v618, %v690
  %v692 = vpop.f32.mrb[0].mxu0
  %v693 = vpop.f32.mrb[0].mxu0
  %v694 = vadd.f32 %v621, %v693
  %v695 = vpop.f32.mrb[0].mxu0
  %696 = vmatprep.mubr.bf16.mxu0 0
  %697 = vmatmul.mubr.bf16.gmra.mrb[0].mxu0 %v226
  %v698 = vpop.f32.mrb[0].mxu0
  %v699 = vadd.f32 %v626, %v698
  %v700 = vpop.f32.mrb[0].mxu0
  %v701 = vpop.f32.mrb[0].mxu0
  %v702 = vadd.f32 %v629, %v701
  %v703 = vpop.f32.mrb[0].mxu0
  %704 = vmatprep.mubr.bf16.mxu0 0
  %705 = vmatmul.mubr.bf16.gmra.mrb[0].mxu0 %v231
  %v706 = vpop.f32.mrb[0].mxu0
  %v707 = vadd.f32 %v634, %v706
  %v708 = vpop.f32.mrb[0].mxu0
  %v709 = vpop.f32.mrb[0].mxu0
  %v710 = vadd.f32 %v637, %v709
  %v711 = vpop.f32.mrb[0].mxu0
  %712 = vmatprep.mubr.bf16.mxu0 0
  %713 = vmatmul.mubr.bf16.gmra.mrb[0].mxu0 %v236
  %v714 = vpop.f32.mrb[0].mxu0
  %v715 = vadd.f32 %v642, %v714
  %v716 = vpop.f32.mrb[0].mxu0
  %v717 = vpop.f32.mrb[0].mxu0
  %v718 = vadd.f32 %v645, %v717
  %v719 = vpop.f32.mrb[0].mxu0
  %720 = vdwg.mxu0
  %vm721 = vcmp.ge.f32.partialorder %v683, 0.0
  %vm722 = vcmp.ge.f32.partialorder %v686, 0.0
  %vm723 = vcmp.ge.f32.partialorder %v691, 0.0
  %vm724 = vcmp.ge.f32.partialorder %v694, 0.0
  %vm725 = vcmp.ge.f32.partialorder %v699, 0.0
  %vm726 = vcmp.ge.f32.partialorder %v702, 0.0
  %vm727 = vcmp.ge.f32.partialorder %v707, 0.0
  %vm728 = vcmp.ge.f32.partialorder %v710, 0.0
  %vm729 = vcmp.ge.f32.partialorder %v715, 0.0
  %vm730 = vcmp.ge.f32.partialorder %v718, 0.0
  %v731 = vmul.f32 %v683, 0.1
  %v732 = vmul.f32 %v686, 0.1
  %v733 = vmul.f32 %v691, 0.1
  %v734 = vmul.f32 %v694, 0.1
  %v735 = vmul.f32 %v699, 0.1
  %v736 = vmul.f32 %v702, 0.1
  %v737 = vmul.f32 %v707, 0.1
  %v738 = vmul.f32 %v710, 0.1
  %v739 = vmul.f32 %v715, 0.1
  %v740 = vmul.f32 %v718, 0.1
  %v741 = vsel %vm721, %v683, %v731
  %v742 = vsel %vm722, %v686, %v732
  %v743 = vsel %vm723, %v691, %v733
  %v744 = vsel %vm724, %v694, %v734
  %v745 = vsel %vm725, %v699, %v735
  %v746 = vsel %vm726, %v702, %v736
  %v747 = vsel %vm727, %v707, %v737
  %v748 = vsel %vm728, %v710, %v738
  %v749 = vsel %vm729, %v715, %v739
  %v750 = vsel %vm730, %v718, %v740
  %v751 = vpack.c.bf16 %v742, %v741
  %v752 = vpack.c.bf16 %v744, %v743
  %v753 = vpack.c.bf16 %v746, %v745
  %v754 = vpack.c.bf16 %v748, %v747
  %v755 = vpack.c.bf16 %v750, %v749
  %v761 = vunpack.c.l.b16 %v751
  %v762 = vunpack.c.h.b16 %v751
  %v763 = vunpack.c.l.b16 %v752
  %v764 = vunpack.c.h.b16 %v752
  %v765 = vunpack.c.l.b16 %v753
  %v766 = vunpack.c.h.b16 %v753
  %v767 = vunpack.c.l.b16 %v754
  %v768 = vunpack.c.h.b16 %v754
  %v769 = vunpack.c.l.b16 %v755
  %v770 = vunpack.c.h.b16 %v755
  %v771 = vpack.c.b16 %v761, %v761
  %v772 = vpack.c.b16 %v762, %v762
  %v773 = vpack.c.b16 %v763, %v763
  %v774 = vpack.c.b16 %v764, %v764
  %v775 = vpack.c.b16 %v765, %v765
  %v776 = vpack.c.b16 %v766, %v766
  %v777 = vpack.c.b16 %v767, %v767
  %v778 = vpack.c.b16 %v768, %v768
  %v779 = vpack.c.b16 %v769, %v769
  %v780 = vpack.c.b16 %v770, %v770
  %791 = vst [vmem:[%s3] sm:$0xf] %v771
  %792 = vst [vmem:[%s3 + $0x4] sm:$0xf] %v772
  %793 = vst [vmem:[%s3 + $0x8] sm:$0xf] %v773
  %794 = vst [vmem:[%s3 + $0xc] sm:$0xf] %v774
  %795 = vst [vmem:[%s3 + $0x10] sm:$0xf] %v775
  %796 = vst [vmem:[%s3 + $0x14] sm:$0xf] %v776
  %797 = vst [vmem:[%s3 + $0x18] sm:$0xf] %v777
  %798 = vst [vmem:[%s3 + $0x1c] sm:$0xf] %v778
  %799 = vst [vmem:[%s3 + $0x20] sm:$0xf] %v779
  %800 = vst [vmem:[%s3 + $0x24] sm:$0xf] %v780
  // Predicated region
  $region14: #{_lambda_.39} parent=0 // pred_check
    _
  $region15: #{_lambda_.39} parent=0 // pred_check_branch
    %802 = sbr.rel (0) target = $region17
  $region16: #{_lambda_.39} parent=0 // pred_region
    _
  $region17: #{_lambda_.39} parent=0 // pred_fallthru
    _
  // Predicated region
  $region18: #{_lambda_.39} parent=0 // pred_check
    _
  $region19: #{_lambda_.39} parent=0 // pred_check_branch
    %804 = sbr.rel (0) target = $region21
  $region20: #{_lambda_.39} parent=0 // pred_region
    _
  $region21: #{_lambda_.39} parent=0 // pred_fallthru
    _

</llo_original>
